<compile_context>
chip_gen: v7x
topology: tpu7x:2x2x1
jax: 0.10.0
libtpu: 0.0.40
codegen_flags: <defaults>
</compile_context>

<pallas_src>
import functools
import math

import jax
import jax.numpy as jnp
from jax.experimental import pallas as pl
from jax.experimental.pallas import tpu as pltpu

# ----------------------------- configuration ------------------------------

OBS_DIM = 12
HIDDEN_DIM = 32
MLP_DIM = 4 * HIDDEN_DIM          # 128 -> lane friendly
NUM_BLOCKS = 2
ACTION_DIM = 6
BATCH = 512                       # whole batch processed in one grid step
SUB_TILE = 128                    # rows per in-kernel strip (bounds vregs)
OUT_PAD = MLP_DIM                 # lane-dense padded output width (128)
SHIFT_CONSTANT = 3.0
RSNORM_EPS = 1e-5
L2_EPS = 1e-8

assert OUT_PAD == 128 and ACTION_DIM <= OUT_PAD
VEC_ROWS = max(8, ((3 + NUM_BLOCKS + 7) // 8) * 8)   # slab rows (sublane padded)


# ------------------------------ Pallas kernel ------------------------------

def simba_v2_kernel(x_ref, vec_ref, we_ref, w1_ref, w2_ref, o_ref, *,
                    num_blocks, obs_dim, hidden_dim, sub_tile):
    # x_ref   : (TB, obs)            activation tile (whole padded batch)
    # vec_ref : (VEC_ROWS, 128)      packed per-feature vectors (resident)
    #             row 0: rs scale, row 1: rs offset, row 2: embed bias,
    #             rows 3..3+NB-1: alpha per block
    # we_ref  : (obs, hidden)        embedding weight (s_embed folded in)
    # w1_ref  : (NB+1, hidden, MLP)  per-block W1 (s1 folded in); slot NB is
    #                                the lane-padded output weight
    # w2_ref  : (NB, MLP, hidden)    per-block W2
    # o_ref   : (TB, 128)            lane-dense padded output
    scale = vec_ref[0:1, :obs_dim]                        # (1, obs)
    offset = vec_ref[1:2, :obs_dim]                       # (1, obs)
    ebias = vec_ref[2:3, :hidden_dim]                     # (1, hidden)
    alphas = [vec_ref[3 + b:4 + b, :hidden_dim] for b in range(num_blocks)]

    # ones columns: lane reductions become MXU dots (XLU stays idle)
    ones_obs = jnp.ones((obs_dim, 1), jnp.float32)
    ones_h = jnp.ones((hidden_dim, 1), jnp.float32)

    def l2n(v):                                           # last dim = hidden
        ss = jnp.dot(v * v, ones_h, preferred_element_type=jnp.float32)
        return v * jax.lax.rsqrt(ss + L2_EPS)

    n_sub = x_ref.shape[0] // sub_tile

    def body(t, carry):
        r = pl.multiple_of(t * sub_tile, sub_tile)
        x = x_ref[pl.ds(r, sub_tile), :]                  # (ST, obs)

        # RSNorm (host-folded): xn = (x - mean) * rsqrt(var + eps)
        xn = x * scale + offset

        # shift-concat + l2_norm, fused: ||[xn, c]||^2 = ||xn||^2 + c^2
        ss = jnp.dot(xn * xn, ones_obs, preferred_element_type=jnp.float32)
        inv = jax.lax.rsqrt(ss + SHIFT_CONSTANT * SHIFT_CONSTANT + L2_EPS)

        # embedding linear (+scaler folded) + l2_norm
        h0 = (jnp.dot(xn, we_ref[...], preferred_element_type=jnp.float32)
              + ebias) * inv                              # (ST, hidden)
        h = l2n(h0)

        # residual hyperspherical blocks (num_blocks small -> static unroll)
        for b in range(num_blocks):
            u = jnp.maximum(
                jnp.dot(h, w1_ref[b], preferred_element_type=jnp.float32), 0.0)
            v = l2n(jnp.dot(u, w2_ref[b], preferred_element_type=jnp.float32))
            h = l2n(h + alphas[b] * (v - h))

        # output linear into lane-dense padded block (first ACTION_DIM live)
        o_ref[pl.ds(r, sub_tile), :] = jnp.dot(
            h, w1_ref[num_blocks], preferred_element_type=jnp.float32)
        return carry

    # Strip-mine rows to keep live vregs bounded (~48 per iteration) while
    # staying inside a single pallas_call grid step.
    jax.lax.fori_loop(0, n_sub, body, 0, unroll=True)


# ------------------------------ wrapper / glue -----------------------------

def pack_params(p):
    """Host-side folding + packing of raw (PyTorch-layout) params."""
    scale = jax.lax.rsqrt(p["rs_var"] + RSNORM_EPS)                 # (1, obs)
    offset = -p["rs_mean"] * scale                                   # (1, obs)
    we_scaled = p["w_embed"] * p["s_embed"]                          # (obs+1, H)
    we_obs = we_scaled[:OBS_DIM]                                     # (obs, H)
    ebias = SHIFT_CONSTANT * we_scaled[OBS_DIM]                      # (H,)

    vec = jnp.zeros((VEC_ROWS, 128), jnp.float32)
    vec = vec.at[0, :OBS_DIM].set(scale[0])
    vec = vec.at[1, :OBS_DIM].set(offset[0])
    vec = vec.at[2, :HIDDEN_DIM].set(ebias)
    for b in range(NUM_BLOCKS):
        vec = vec.at[3 + b, :HIDDEN_DIM].set(p["blocks"][b]["alpha"][0])

    w1_all = jnp.zeros((NUM_BLOCKS + 1, HIDDEN_DIM, MLP_DIM), jnp.float32)
    w2_all = jnp.zeros((NUM_BLOCKS, MLP_DIM, HIDDEN_DIM), jnp.float32)
    for b in range(NUM_BLOCKS):
        blk = p["blocks"][b]
        w1_all = w1_all.at[b].set(blk["w1"] * blk["s1"])             # fold s1
        w2_all = w2_all.at[b].set(blk["w2"])
    # output weight, zero-padded to 128 lanes (keeps padded lanes exact zero)
    w_out_pad = jnp.zeros((HIDDEN_DIM, OUT_PAD), jnp.float32)
    w_out_pad = w_out_pad.at[:, :ACTION_DIM].set(p["w_out"])
    w1_all = w1_all.at[NUM_BLOCKS].set(w_out_pad)

    return {"vec": vec, "we_obs": we_obs, "w1_all": w1_all, "w2_all": w2_all}


def simba_v2_forward(x, packed, *, tile_b=None):
    """Returns the lane-dense padded (padded_B, 128) output.

    Live data is rows [0, B) and lanes [0, ACTION_DIM); slicing is left to the
    consumer (avoids a standalone post-kernel XLA slice op).
    """
    batch = x.shape[0]
    padded_b = ((batch + SUB_TILE - 1) // SUB_TILE) * SUB_TILE
    if tile_b is None:
        tile_b = padded_b                 # single grid step (whole batch)
    padded_b = ((padded_b + tile_b - 1) // tile_b) * tile_b
    if padded_b != batch:
        x = jnp.pad(x, ((0, padded_b - batch), (0, 0)))   # zero rows are safe

    sub_tile = SUB_TILE if tile_b % SUB_TILE == 0 else tile_b
    assert tile_b % sub_tile == 0

    kernel = functools.partial(
        simba_v2_kernel, num_blocks=NUM_BLOCKS,
        obs_dim=OBS_DIM, hidden_dim=HIDDEN_DIM, sub_tile=sub_tile)

    out = pl.pallas_call(
        kernel,
        out_shape=jax.ShapeDtypeStruct((padded_b, OUT_PAD), jnp.float32),
        grid=(padded_b // tile_b,),
        in_specs=[
            pl.BlockSpec((tile_b, OBS_DIM), lambda i: (i, 0)),       # streamed
            pl.BlockSpec(packed["vec"].shape, lambda i: (0, 0)),     # resident
            pl.BlockSpec(packed["we_obs"].shape, lambda i: (0, 0)),  # resident
            pl.BlockSpec(packed["w1_all"].shape, lambda i: (0, 0, 0)),
            pl.BlockSpec(packed["w2_all"].shape, lambda i: (0, 0, 0)),
        ],
        out_specs=pl.BlockSpec((tile_b, OUT_PAD), lambda i: (i, 0)),
        compiler_params=pltpu.CompilerParams(
            dimension_semantics=("arbitrary",)),   # grid is (1,) by default
    )(x, packed["vec"], packed["we_obs"], packed["w1_all"], packed["w2_all"])

    return out


# --------------------------- raw parameter init -----------------------------

def _orthogonal(key, in_dim, out_dim):
    w = jax.nn.initializers.orthogonal()(key, (out_dim, in_dim), jnp.float32)
    return jnp.transpose(w)                    # (in, out) for x @ W


def make_params(key):
    ks = list(jax.random.split(key, 6 + 3 * NUM_BLOCKS))
    params = {
        "rs_mean": 0.1 * jax.random.normal(ks[0], (1, OBS_DIM), jnp.float32),
        "rs_var": 1.0 + 0.2 * jax.random.uniform(ks[1], (1, OBS_DIM),
                                                 jnp.float32),
        "w_embed": _orthogonal(ks[2], OBS_DIM + 1, HIDDEN_DIM),
        "s_embed": jnp.full((1, HIDDEN_DIM), 1.0 / math.sqrt(HIDDEN_DIM),
                            jnp.float32),
        "w_out": _orthogonal(ks[3], HIDDEN_DIM, ACTION_DIM),
        "blocks": [],
    }
    for b in range(NUM_BLOCKS):
        params["blocks"].append({
            "w1": _orthogonal(ks[4 + 3 * b], HIDDEN_DIM, MLP_DIM),
            "s1": 1.0 + 0.05 * jax.random.normal(ks[5 + 3 * b], (1, MLP_DIM),
                                                 jnp.float32),
            "w2": _orthogonal(ks[6 + 3 * b], MLP_DIM, HIDDEN_DIM),
            "alpha": jnp.full((1, HIDDEN_DIM), 0.5, jnp.float32),
        })
    return params


# ------------------------------ reference (JAX) ----------------------------

def _l2_norm_ref(v):
    return v * jax.lax.rsqrt(jnp.sum(v * v, axis=-1, keepdims=True) + L2_EPS)


def simba_v2_reference(x, p):
    xn = (x - p["rs_mean"]) * jax.lax.rsqrt(p["rs_var"] + RSNORM_EPS)
    shift = jnp.full((x.shape[0], 1), SHIFT_CONSTANT, jnp.float32)
    xs = jnp.concatenate([xn, shift], axis=-1)
    xt = _l2_norm_ref(xs)
    h = _l2_norm_ref(jnp.dot(xt, p["w_embed"]) * p["s_embed"])
    for blk in p["blocks"]:
        u = jnp.maximum(jnp.dot(h, blk["w1"]) * blk["s1"], 0.0)
        v = _l2_norm_ref(jnp.dot(u, blk["w2"]))
        h = _l2_norm_ref(h + blk["alpha"] * (v - h))
    return jnp.dot(h, p["w_out"])


# ----------------------------------- main -----------------------------------

if __name__ == "__main__":
    key = jax.random.PRNGKey(0)
    k_x, k_p = jax.random.split(key)
    x = jax.random.normal(k_x, (BATCH, OBS_DIM), jnp.float32)
    raw_params = make_params(k_p)
    packed = pack_params(raw_params)

    out_padded = simba_v2_forward(x, packed)
    out_padded = jax.block_until_ready(out_padded)
    assert out_padded.shape == (BATCH, OUT_PAD)

    # Consumer-side slice (only for the correctness check).
    out = out_padded[:BATCH, :ACTION_DIM]
    ref = simba_v2_reference(x, raw_params)
    assert jnp.allclose(out, ref, atol=2e-4, rtol=2e-4), "mismatch vs JAX reference"

    print("KERNEL_OK")
</pallas_src>

<mosaic_0001>
module attributes {stable_mosaic.version = 11 : i64} {
  func.func @simba_v2_kernel(%arg0: i32, %arg1: memref<512x12xf32, #tpu.memory_space<vmem>>, %arg2: memref<8x128xf32, #tpu.memory_space<vmem>>, %arg3: memref<12x32xf32, #tpu.memory_space<vmem>>, %arg4: memref<3x32x128xf32, #tpu.memory_space<vmem>>, %arg5: memref<2x128x32xf32, #tpu.memory_space<vmem>>, %arg6: memref<512x128xf32, #tpu.memory_space<vmem>>) attributes {dimension_semantics = [#tpu.dimension_semantics<arbitrary>], iteration_bounds = array<i64: 1>, scalar_prefetch = 0 : i64, scratch_operands = 0 : i64, tpu.core_type = #tpu.core_type<tc>, window_params = [{transform_indices = @transform_0, window_bounds = array<i64: 512, 12>}, {pipeline_mode = #tpu.pipeline_mode<synchronous>, transform_indices = @transform_1, window_bounds = array<i64: 8, 128>}, {pipeline_mode = #tpu.pipeline_mode<synchronous>, transform_indices = @transform_2, window_bounds = array<i64: 12, 32>}, {pipeline_mode = #tpu.pipeline_mode<synchronous>, transform_indices = @transform_3, window_bounds = array<i64: 3, 32, 128>}, {pipeline_mode = #tpu.pipeline_mode<synchronous>, transform_indices = @transform_4, window_bounds = array<i64: 2, 128, 32>}, {transform_indices = @transform_5, window_bounds = array<i64: 512, 128>}]} {
    %c0 = arith.constant 0 : index
    %c0_0 = arith.constant 0 : index
    %0 = vector.load %arg2[%c0, %c0_0] : memref<8x128xf32, #tpu.memory_space<vmem>>, vector<1x12xf32>
    %c1 = arith.constant 1 : index
    %c0_1 = arith.constant 0 : index
    %1 = vector.load %arg2[%c1, %c0_1] : memref<8x128xf32, #tpu.memory_space<vmem>>, vector<1x12xf32>
    %c2 = arith.constant 2 : index
    %c0_2 = arith.constant 0 : index
    %2 = vector.load %arg2[%c2, %c0_2] : memref<8x128xf32, #tpu.memory_space<vmem>>, vector<1x32xf32>
    %c3 = arith.constant 3 : index
    %c0_3 = arith.constant 0 : index
    %3 = vector.load %arg2[%c3, %c0_3] : memref<8x128xf32, #tpu.memory_space<vmem>>, vector<1x32xf32>
    %c4 = arith.constant 4 : index
    %c0_4 = arith.constant 0 : index
    %4 = vector.load %arg2[%c4, %c0_4] : memref<8x128xf32, #tpu.memory_space<vmem>>, vector<1x32xf32>
    %cst = arith.constant 1.000000e+00 : f32
    %5 = vector.broadcast %cst : f32 to vector<12x1xf32>
    %cst_5 = arith.constant 1.000000e+00 : f32
    %6 = vector.broadcast %cst_5 : f32 to vector<32x1xf32>
    %c0_i32 = arith.constant 0 : i32
    %c128_i32 = arith.constant 128 : i32
    %7 = arith.muli %c0_i32, %c128_i32 : i32
    %8 = tpu.assume_multiple %7, 128 : i32
    %9 = arith.index_cast %8 : i32 to index
    %c0_6 = arith.constant 0 : index
    %10 = vector.load %arg1[%9, %c0_6] : memref<512x12xf32, #tpu.memory_space<vmem>>, vector<128x12xf32>
    %11 = vector.broadcast %0 : vector<1x12xf32> to vector<128x12xf32>
    %12 = arith.mulf %10, %11 : vector<128x12xf32>
    %13 = vector.broadcast %1 : vector<1x12xf32> to vector<128x12xf32>
    %14 = arith.addf %12, %13 : vector<128x12xf32>
    %15 = arith.mulf %14, %14 : vector<128x12xf32>
    %cst_7 = arith.constant dense<0.000000e+00> : vector<128x1xf32>
    %16 = tpu.matmul %15, %5, %cst_7 {dimension_numbers = #tpu.dot_dimension_numbers<[1], [0], [0], [1], [0, 0, 1, 1], [], []>} : vector<128x12xf32>, vector<12x1xf32>, vector<128x1xf32> -> vector<128x1xf32>
    %cst_8 = arith.constant 9.000000e+00 : f32
    %17 = vector.broadcast %cst_8 : f32 to vector<128x1xf32>
    %18 = arith.addf %16, %17 : vector<128x1xf32>
    %cst_9 = arith.constant 9.99999993E-9 : f32
    %19 = vector.broadcast %cst_9 : f32 to vector<128x1xf32>
    %20 = arith.addf %18, %19 : vector<128x1xf32>
    %21 = math.rsqrt %20 : vector<128x1xf32>
    %c0_10 = arith.constant 0 : index
    %c0_11 = arith.constant 0 : index
    %22 = vector.load %arg3[%c0_10, %c0_11] : memref<12x32xf32, #tpu.memory_space<vmem>>, vector<12x32xf32>
    %cst_12 = arith.constant dense<0.000000e+00> : vector<128x32xf32>
    %23 = tpu.matmul %14, %22, %cst_12 {dimension_numbers = #tpu.dot_dimension_numbers<[1], [0], [0], [1], [0, 0, 1, 1], [], []>} : vector<128x12xf32>, vector<12x32xf32>, vector<128x32xf32> -> vector<128x32xf32>
    %24 = vector.broadcast %2 : vector<1x32xf32> to vector<128x32xf32>
    %25 = arith.addf %23, %24 : vector<128x32xf32>
    %26 = vector.broadcast %21 : vector<128x1xf32> to vector<128x32xf32>
    %27 = arith.mulf %25, %26 : vector<128x32xf32>
    %28 = arith.mulf %27, %27 : vector<128x32xf32>
    %cst_13 = arith.constant dense<0.000000e+00> : vector<128x1xf32>
    %29 = tpu.matmul %28, %6, %cst_13 {dimension_numbers = #tpu.dot_dimension_numbers<[1], [0], [0], [1], [0, 0, 1, 1], [], []>} : vector<128x32xf32>, vector<32x1xf32>, vector<128x1xf32> -> vector<128x1xf32>
    %cst_14 = arith.constant 9.99999993E-9 : f32
    %30 = vector.broadcast %cst_14 : f32 to vector<128x1xf32>
    %31 = arith.addf %29, %30 : vector<128x1xf32>
    %32 = math.rsqrt %31 : vector<128x1xf32>
    %33 = vector.broadcast %32 : vector<128x1xf32> to vector<128x32xf32>
    %34 = arith.mulf %27, %33 : vector<128x32xf32>
    %c0_15 = arith.constant 0 : index
    %c0_16 = arith.constant 0 : index
    %c0_17 = arith.constant 0 : index
    %35 = vector.load %arg4[%c0_15, %c0_16, %c0_17] : memref<3x32x128xf32, #tpu.memory_space<vmem>>, vector<1x32x128xf32>
    %36 = vector.shape_cast %35 : vector<1x32x128xf32> to vector<32x128xf32>
    %cst_18 = arith.constant dense<0.000000e+00> : vector<128x128xf32>
    %37 = tpu.matmul %34, %36, %cst_18 {dimension_numbers = #tpu.dot_dimension_numbers<[1], [0], [0], [1], [0, 0, 1, 1], [], []>} : vector<128x32xf32>, vector<32x128xf32>, vector<128x128xf32> -> vector<128x128xf32>
    %cst_19 = arith.constant 0.000000e+00 : f32
    %38 = vector.broadcast %cst_19 : f32 to vector<128x128xf32>
    %39 = arith.maximumf %37, %38 : vector<128x128xf32>
    %c0_20 = arith.constant 0 : index
    %c0_21 = arith.constant 0 : index
    %c0_22 = arith.constant 0 : index
    %40 = vector.load %arg5[%c0_20, %c0_21, %c0_22] : memref<2x128x32xf32, #tpu.memory_space<vmem>>, vector<1x128x32xf32>
    %41 = vector.shape_cast %40 : vector<1x128x32xf32> to vector<128x32xf32>
    %cst_23 = arith.constant dense<0.000000e+00> : vector<128x32xf32>
    %42 = tpu.matmul %39, %41, %cst_23 {dimension_numbers = #tpu.dot_dimension_numbers<[1], [0], [0], [1], [0, 0, 1, 1], [], []>} : vector<128x128xf32>, vector<128x32xf32>, vector<128x32xf32> -> vector<128x32xf32>
    %43 = arith.mulf %42, %42 : vector<128x32xf32>
    %cst_24 = arith.constant dense<0.000000e+00> : vector<128x1xf32>
    %44 = tpu.matmul %43, %6, %cst_24 {dimension_numbers = #tpu.dot_dimension_numbers<[1], [0], [0], [1], [0, 0, 1, 1], [], []>} : vector<128x32xf32>, vector<32x1xf32>, vector<128x1xf32> -> vector<128x1xf32>
    %cst_25 = arith.constant 9.99999993E-9 : f32
    %45 = vector.broadcast %cst_25 : f32 to vector<128x1xf32>
    %46 = arith.addf %44, %45 : vector<128x1xf32>
    %47 = math.rsqrt %46 : vector<128x1xf32>
    %48 = vector.broadcast %47 : vector<128x1xf32> to vector<128x32xf32>
    %49 = arith.mulf %42, %48 : vector<128x32xf32>
    %50 = arith.subf %49, %34 : vector<128x32xf32>
    %51 = vector.broadcast %3 : vector<1x32xf32> to vector<128x32xf32>
    %52 = arith.mulf %51, %50 : vector<128x32xf32>
    %53 = arith.addf %34, %52 : vector<128x32xf32>
    %54 = arith.mulf %53, %53 : vector<128x32xf32>
    %cst_26 = arith.constant dense<0.000000e+00> : vector<128x1xf32>
    %55 = tpu.matmul %54, %6, %cst_26 {dimension_numbers = #tpu.dot_dimension_numbers<[1], [0], [0], [1], [0, 0, 1, 1], [], []>} : vector<128x32xf32>, vector<32x1xf32>, vector<128x1xf32> -> vector<128x1xf32>
    %cst_27 = arith.constant 9.99999993E-9 : f32
    %56 = vector.broadcast %cst_27 : f32 to vector<128x1xf32>
    %57 = arith.addf %55, %56 : vector<128x1xf32>
    %58 = math.rsqrt %57 : vector<128x1xf32>
    %59 = vector.broadcast %58 : vector<128x1xf32> to vector<128x32xf32>
    %60 = arith.mulf %53, %59 : vector<128x32xf32>
    %c1_28 = arith.constant 1 : index
    %c0_29 = arith.constant 0 : index
    %c0_30 = arith.constant 0 : index
    %61 = vector.load %arg4[%c1_28, %c0_29, %c0_30] : memref<3x32x128xf32, #tpu.memory_space<vmem>>, vector<1x32x128xf32>
    %62 = vector.shape_cast %61 : vector<1x32x128xf32> to vector<32x128xf32>
    %cst_31 = arith.constant dense<0.000000e+00> : vector<128x128xf32>
    %63 = tpu.matmul %60, %62, %cst_31 {dimension_numbers = #tpu.dot_dimension_numbers<[1], [0], [0], [1], [0, 0, 1, 1], [], []>} : vector<128x32xf32>, vector<32x128xf32>, vector<128x128xf32> -> vector<128x128xf32>
    %cst_32 = arith.constant 0.000000e+00 : f32
    %64 = vector.broadcast %cst_32 : f32 to vector<128x128xf32>
    %65 = arith.maximumf %63, %64 : vector<128x128xf32>
    %c1_33 = arith.constant 1 : index
    %c0_34 = arith.constant 0 : index
    %c0_35 = arith.constant 0 : index
    %66 = vector.load %arg5[%c1_33, %c0_34, %c0_35] : memref<2x128x32xf32, #tpu.memory_space<vmem>>, vector<1x128x32xf32>
    %67 = vector.shape_cast %66 : vector<1x128x32xf32> to vector<128x32xf32>
    %cst_36 = arith.constant dense<0.000000e+00> : vector<128x32xf32>
    %68 = tpu.matmul %65, %67, %cst_36 {dimension_numbers = #tpu.dot_dimension_numbers<[1], [0], [0], [1], [0, 0, 1, 1], [], []>} : vector<128x128xf32>, vector<128x32xf32>, vector<128x32xf32> -> vector<128x32xf32>
    %69 = arith.mulf %68, %68 : vector<128x32xf32>
    %cst_37 = arith.constant dense<0.000000e+00> : vector<128x1xf32>
    %70 = tpu.matmul %69, %6, %cst_37 {dimension_numbers = #tpu.dot_dimension_numbers<[1], [0], [0], [1], [0, 0, 1, 1], [], []>} : vector<128x32xf32>, vector<32x1xf32>, vector<128x1xf32> -> vector<128x1xf32>
    %cst_38 = arith.constant 9.99999993E-9 : f32
    %71 = vector.broadcast %cst_38 : f32 to vector<128x1xf32>
    %72 = arith.addf %70, %71 : vector<128x1xf32>
    %73 = math.rsqrt %72 : vector<128x1xf32>
    %74 = vector.broadcast %73 : vector<128x1xf32> to vector<128x32xf32>
    %75 = arith.mulf %68, %74 : vector<128x32xf32>
    %76 = arith.subf %75, %60 : vector<128x32xf32>
    %77 = vector.broadcast %4 : vector<1x32xf32> to vector<128x32xf32>
    %78 = arith.mulf %77, %76 : vector<128x32xf32>
    %79 = arith.addf %60, %78 : vector<128x32xf32>
    %80 = arith.mulf %79, %79 : vector<128x32xf32>
    %cst_39 = arith.constant dense<0.000000e+00> : vector<128x1xf32>
    %81 = tpu.matmul %80, %6, %cst_39 {dimension_numbers = #tpu.dot_dimension_numbers<[1], [0], [0], [1], [0, 0, 1, 1], [], []>} : vector<128x32xf32>, vector<32x1xf32>, vector<128x1xf32> -> vector<128x1xf32>
    %cst_40 = arith.constant 9.99999993E-9 : f32
    %82 = vector.broadcast %cst_40 : f32 to vector<128x1xf32>
    %83 = arith.addf %81, %82 : vector<128x1xf32>
    %84 = math.rsqrt %83 : vector<128x1xf32>
    %85 = vector.broadcast %84 : vector<128x1xf32> to vector<128x32xf32>
    %86 = arith.mulf %79, %85 : vector<128x32xf32>
    %c2_41 = arith.constant 2 : index
    %c0_42 = arith.constant 0 : index
    %c0_43 = arith.constant 0 : index
    %87 = vector.load %arg4[%c2_41, %c0_42, %c0_43] : memref<3x32x128xf32, #tpu.memory_space<vmem>>, vector<1x32x128xf32>
    %88 = vector.shape_cast %87 : vector<1x32x128xf32> to vector<32x128xf32>
    %cst_44 = arith.constant dense<0.000000e+00> : vector<128x128xf32>
    %89 = tpu.matmul %86, %88, %cst_44 {dimension_numbers = #tpu.dot_dimension_numbers<[1], [0], [0], [1], [0, 0, 1, 1], [], []>} : vector<128x32xf32>, vector<32x128xf32>, vector<128x128xf32> -> vector<128x128xf32>
    %90 = arith.index_cast %8 : i32 to index
    %c0_45 = arith.constant 0 : index
    %91 = vector.load %arg6[%90, %c0_45] : memref<512x128xf32, #tpu.memory_space<vmem>>, vector<128x128xf32>
    tpu.vector_store %arg6[%90, %c0_45], %89 {strides = array<i32>} : memref<512x128xf32, #tpu.memory_space<vmem>>, vector<128x128xf32>,
    %c1_i32 = arith.constant 1 : i32
    %c128_i32_46 = arith.constant 128 : i32
    %92 = arith.muli %c1_i32, %c128_i32_46 : i32
    %93 = tpu.assume_multiple %92, 128 : i32
    %94 = arith.index_cast %93 : i32 to index
    %c0_47 = arith.constant 0 : index
    %95 = vector.load %arg1[%94, %c0_47] : memref<512x12xf32, #tpu.memory_space<vmem>>, vector<128x12xf32>
    %96 = vector.broadcast %0 : vector<1x12xf32> to vector<128x12xf32>
    %97 = arith.mulf %95, %96 : vector<128x12xf32>
    %98 = vector.broadcast %1 : vector<1x12xf32> to vector<128x12xf32>
    %99 = arith.addf %97, %98 : vector<128x12xf32>
    %100 = arith.mulf %99, %99 : vector<128x12xf32>
    %cst_48 = arith.constant dense<0.000000e+00> : vector<128x1xf32>
    %101 = tpu.matmul %100, %5, %cst_48 {dimension_numbers = #tpu.dot_dimension_numbers<[1], [0], [0], [1], [0, 0, 1, 1], [], []>} : vector<128x12xf32>, vector<12x1xf32>, vector<128x1xf32> -> vector<128x1xf32>
    %cst_49 = arith.constant 9.000000e+00 : f32
    %102 = vector.broadcast %cst_49 : f32 to vector<128x1xf32>
    %103 = arith.addf %101, %102 : vector<128x1xf32>
    %cst_50 = arith.constant 9.99999993E-9 : f32
    %104 = vector.broadcast %cst_50 : f32 to vector<128x1xf32>
    %105 = arith.addf %103, %104 : vector<128x1xf32>
    %106 = math.rsqrt %105 : vector<128x1xf32>
    %c0_51 = arith.constant 0 : index
    %c0_52 = arith.constant 0 : index
    %107 = vector.load %arg3[%c0_51, %c0_52] : memref<12x32xf32, #tpu.memory_space<vmem>>, vector<12x32xf32>
    %cst_53 = arith.constant dense<0.000000e+00> : vector<128x32xf32>
    %108 = tpu.matmul %99, %107, %cst_53 {dimension_numbers = #tpu.dot_dimension_numbers<[1], [0], [0], [1], [0, 0, 1, 1], [], []>} : vector<128x12xf32>, vector<12x32xf32>, vector<128x32xf32> -> vector<128x32xf32>
    %109 = vector.broadcast %2 : vector<1x32xf32> to vector<128x32xf32>
    %110 = arith.addf %108, %109 : vector<128x32xf32>
    %111 = vector.broadcast %106 : vector<128x1xf32> to vector<128x32xf32>
    %112 = arith.mulf %110, %111 : vector<128x32xf32>
    %113 = arith.mulf %112, %112 : vector<128x32xf32>
    %cst_54 = arith.constant dense<0.000000e+00> : vector<128x1xf32>
    %114 = tpu.matmul %113, %6, %cst_54 {dimension_numbers = #tpu.dot_dimension_numbers<[1], [0], [0], [1], [0, 0, 1, 1], [], []>} : vector<128x32xf32>, vector<32x1xf32>, vector<128x1xf32> -> vector<128x1xf32>
    %cst_55 = arith.constant 9.99999993E-9 : f32
    %115 = vector.broadcast %cst_55 : f32 to vector<128x1xf32>
    %116 = arith.addf %114, %115 : vector<128x1xf32>
    %117 = math.rsqrt %116 : vector<128x1xf32>
    %118 = vector.broadcast %117 : vector<128x1xf32> to vector<128x32xf32>
    %119 = arith.mulf %112, %118 : vector<128x32xf32>
    %c0_56 = arith.constant 0 : index
    %c0_57 = arith.constant 0 : index
    %c0_58 = arith.constant 0 : index
    %120 = vector.load %arg4[%c0_56, %c0_57, %c0_58] : memref<3x32x128xf32, #tpu.memory_space<vmem>>, vector<1x32x128xf32>
    %121 = vector.shape_cast %120 : vector<1x32x128xf32> to vector<32x128xf32>
    %cst_59 = arith.constant dense<0.000000e+00> : vector<128x128xf32>
    %122 = tpu.matmul %119, %121, %cst_59 {dimension_numbers = #tpu.dot_dimension_numbers<[1], [0], [0], [1], [0, 0, 1, 1], [], []>} : vector<128x32xf32>, vector<32x128xf32>, vector<128x128xf32> -> vector<128x128xf32>
    %cst_60 = arith.constant 0.000000e+00 : f32
    %123 = vector.broadcast %cst_60 : f32 to vector<128x128xf32>
    %124 = arith.maximumf %122, %123 : vector<128x128xf32>
    %c0_61 = arith.constant 0 : index
    %c0_62 = arith.constant 0 : index
    %c0_63 = arith.constant 0 : index
    %125 = vector.load %arg5[%c0_61, %c0_62, %c0_63] : memref<2x128x32xf32, #tpu.memory_space<vmem>>, vector<1x128x32xf32>
    %126 = vector.shape_cast %125 : vector<1x128x32xf32> to vector<128x32xf32>
    %cst_64 = arith.constant dense<0.000000e+00> : vector<128x32xf32>
    %127 = tpu.matmul %124, %126, %cst_64 {dimension_numbers = #tpu.dot_dimension_numbers<[1], [0], [0], [1], [0, 0, 1, 1], [], []>} : vector<128x128xf32>, vector<128x32xf32>, vector<128x32xf32> -> vector<128x32xf32>
    %128 = arith.mulf %127, %127 : vector<128x32xf32>
    %cst_65 = arith.constant dense<0.000000e+00> : vector<128x1xf32>
    %129 = tpu.matmul %128, %6, %cst_65 {dimension_numbers = #tpu.dot_dimension_numbers<[1], [0], [0], [1], [0, 0, 1, 1], [], []>} : vector<128x32xf32>, vector<32x1xf32>, vector<128x1xf32> -> vector<128x1xf32>
    %cst_66 = arith.constant 9.99999993E-9 : f32
    %130 = vector.broadcast %cst_66 : f32 to vector<128x1xf32>
    %131 = arith.addf %129, %130 : vector<128x1xf32>
    %132 = math.rsqrt %131 : vector<128x1xf32>
    %133 = vector.broadcast %132 : vector<128x1xf32> to vector<128x32xf32>
    %134 = arith.mulf %127, %133 : vector<128x32xf32>
    %135 = arith.subf %134, %119 : vector<128x32xf32>
    %136 = vector.broadcast %3 : vector<1x32xf32> to vector<128x32xf32>
    %137 = arith.mulf %136, %135 : vector<128x32xf32>
    %138 = arith.addf %119, %137 : vector<128x32xf32>
    %139 = arith.mulf %138, %138 : vector<128x32xf32>
    %cst_67 = arith.constant dense<0.000000e+00> : vector<128x1xf32>
    %140 = tpu.matmul %139, %6, %cst_67 {dimension_numbers = #tpu.dot_dimension_numbers<[1], [0], [0], [1], [0, 0, 1, 1], [], []>} : vector<128x32xf32>, vector<32x1xf32>, vector<128x1xf32> -> vector<128x1xf32>
    %cst_68 = arith.constant 9.99999993E-9 : f32
    %141 = vector.broadcast %cst_68 : f32 to vector<128x1xf32>
    %142 = arith.addf %140, %141 : vector<128x1xf32>
    %143 = math.rsqrt %142 : vector<128x1xf32>
    %144 = vector.broadcast %143 : vector<128x1xf32> to vector<128x32xf32>
    %145 = arith.mulf %138, %144 : vector<128x32xf32>
    %c1_69 = arith.constant 1 : index
    %c0_70 = arith.constant 0 : index
    %c0_71 = arith.constant 0 : index
    %146 = vector.load %arg4[%c1_69, %c0_70, %c0_71] : memref<3x32x128xf32, #tpu.memory_space<vmem>>, vector<1x32x128xf32>
    %147 = vector.shape_cast %146 : vector<1x32x128xf32> to vector<32x128xf32>
    %cst_72 = arith.constant dense<0.000000e+00> : vector<128x128xf32>
    %148 = tpu.matmul %145, %147, %cst_72 {dimension_numbers = #tpu.dot_dimension_numbers<[1], [0], [0], [1], [0, 0, 1, 1], [], []>} : vector<128x32xf32>, vector<32x128xf32>, vector<128x128xf32> -> vector<128x128xf32>
    %cst_73 = arith.constant 0.000000e+00 : f32
    %149 = vector.broadcast %cst_73 : f32 to vector<128x128xf32>
    %150 = arith.maximumf %148, %149 : vector<128x128xf32>
    %c1_74 = arith.constant 1 : index
    %c0_75 = arith.constant 0 : index
    %c0_76 = arith.constant 0 : index
    %151 = vector.load %arg5[%c1_74, %c0_75, %c0_76] : memref<2x128x32xf32, #tpu.memory_space<vmem>>, vector<1x128x32xf32>
    %152 = vector.shape_cast %151 : vector<1x128x32xf32> to vector<128x32xf32>
    %cst_77 = arith.constant dense<0.000000e+00> : vector<128x32xf32>
    %153 = tpu.matmul %150, %152, %cst_77 {dimension_numbers = #tpu.dot_dimension_numbers<[1], [0], [0], [1], [0, 0, 1, 1], [], []>} : vector<128x128xf32>, vector<128x32xf32>, vector<128x32xf32> -> vector<128x32xf32>
    %154 = arith.mulf %153, %153 : vector<128x32xf32>
    %cst_78 = arith.constant dense<0.000000e+00> : vector<128x1xf32>
    %155 = tpu.matmul %154, %6, %cst_78 {dimension_numbers = #tpu.dot_dimension_numbers<[1], [0], [0], [1], [0, 0, 1, 1], [], []>} : vector<128x32xf32>, vector<32x1xf32>, vector<128x1xf32> -> vector<128x1xf32>
    %cst_79 = arith.constant 9.99999993E-9 : f32
    %156 = vector.broadcast %cst_79 : f32 to vector<128x1xf32>
    %157 = arith.addf %155, %156 : vector<128x1xf32>
    %158 = math.rsqrt %157 : vector<128x1xf32>
    %159 = vector.broadcast %158 : vector<128x1xf32> to vector<128x32xf32>
    %160 = arith.mulf %153, %159 : vector<128x32xf32>
    %161 = arith.subf %160, %145 : vector<128x32xf32>
    %162 = vector.broadcast %4 : vector<1x32xf32> to vector<128x32xf32>
    %163 = arith.mulf %162, %161 : vector<128x32xf32>
    %164 = arith.addf %145, %163 : vector<128x32xf32>
    %165 = arith.mulf %164, %164 : vector<128x32xf32>
    %cst_80 = arith.constant dense<0.000000e+00> : vector<128x1xf32>
    %166 = tpu.matmul %165, %6, %cst_80 {dimension_numbers = #tpu.dot_dimension_numbers<[1], [0], [0], [1], [0, 0, 1, 1], [], []>} : vector<128x32xf32>, vector<32x1xf32>, vector<128x1xf32> -> vector<128x1xf32>
    %cst_81 = arith.constant 9.99999993E-9 : f32
    %167 = vector.broadcast %cst_81 : f32 to vector<128x1xf32>
    %168 = arith.addf %166, %167 : vector<128x1xf32>
    %169 = math.rsqrt %168 : vector<128x1xf32>
    %170 = vector.broadcast %169 : vector<128x1xf32> to vector<128x32xf32>
    %171 = arith.mulf %164, %170 : vector<128x32xf32>
    %c2_82 = arith.constant 2 : index
    %c0_83 = arith.constant 0 : index
    %c0_84 = arith.constant 0 : index
    %172 = vector.load %arg4[%c2_82, %c0_83, %c0_84] : memref<3x32x128xf32, #tpu.memory_space<vmem>>, vector<1x32x128xf32>
    %173 = vector.shape_cast %172 : vector<1x32x128xf32> to vector<32x128xf32>
    %cst_85 = arith.constant dense<0.000000e+00> : vector<128x128xf32>
    %174 = tpu.matmul %171, %173, %cst_85 {dimension_numbers = #tpu.dot_dimension_numbers<[1], [0], [0], [1], [0, 0, 1, 1], [], []>} : vector<128x32xf32>, vector<32x128xf32>, vector<128x128xf32> -> vector<128x128xf32>
    %175 = arith.index_cast %93 : i32 to index
    %c0_86 = arith.constant 0 : index
    %176 = vector.load %arg6[%175, %c0_86] : memref<512x128xf32, #tpu.memory_space<vmem>>, vector<128x128xf32>
    tpu.vector_store %arg6[%175, %c0_86], %174 {strides = array<i32>} : memref<512x128xf32, #tpu.memory_space<vmem>>, vector<128x128xf32>,
    %c2_i32 = arith.constant 2 : i32
    %c128_i32_87 = arith.constant 128 : i32
    %177 = arith.muli %c2_i32, %c128_i32_87 : i32
    %178 = tpu.assume_multiple %177, 128 : i32
    %179 = arith.index_cast %178 : i32 to index
    %c0_88 = arith.constant 0 : index
    %180 = vector.load %arg1[%179, %c0_88] : memref<512x12xf32, #tpu.memory_space<vmem>>, vector<128x12xf32>
    %181 = vector.broadcast %0 : vector<1x12xf32> to vector<128x12xf32>
    %182 = arith.mulf %180, %181 : vector<128x12xf32>
    %183 = vector.broadcast %1 : vector<1x12xf32> to vector<128x12xf32>
    %184 = arith.addf %182, %183 : vector<128x12xf32>
    %185 = arith.mulf %184, %184 : vector<128x12xf32>
    %cst_89 = arith.constant dense<0.000000e+00> : vector<128x1xf32>
    %186 = tpu.matmul %185, %5, %cst_89 {dimension_numbers = #tpu.dot_dimension_numbers<[1], [0], [0], [1], [0, 0, 1, 1], [], []>} : vector<128x12xf32>, vector<12x1xf32>, vector<128x1xf32> -> vector<128x1xf32>
    %cst_90 = arith.constant 9.000000e+00 : f32
    %187 = vector.broadcast %cst_90 : f32 to vector<128x1xf32>
    %188 = arith.addf %186, %187 : vector<128x1xf32>
    %cst_91 = arith.constant 9.99999993E-9 : f32
    %189 = vector.broadcast %cst_91 : f32 to vector<128x1xf32>
    %190 = arith.addf %188, %189 : vector<128x1xf32>
    %191 = math.rsqrt %190 : vector<128x1xf32>
    %c0_92 = arith.constant 0 : index
    %c0_93 = arith.constant 0 : index
    %192 = vector.load %arg3[%c0_92, %c0_93] : memref<12x32xf32, #tpu.memory_space<vmem>>, vector<12x32xf32>
    %cst_94 = arith.constant dense<0.000000e+00> : vector<128x32xf32>
    %193 = tpu.matmul %184, %192, %cst_94 {dimension_numbers = #tpu.dot_dimension_numbers<[1], [0], [0], [1], [0, 0, 1, 1], [], []>} : vector<128x12xf32>, vector<12x32xf32>, vector<128x32xf32> -> vector<128x32xf32>
    %194 = vector.broadcast %2 : vector<1x32xf32> to vector<128x32xf32>
    %195 = arith.addf %193, %194 : vector<128x32xf32>
    %196 = vector.broadcast %191 : vector<128x1xf32> to vector<128x32xf32>
    %197 = arith.mulf %195, %196 : vector<128x32xf32>
    %198 = arith.mulf %197, %197 : vector<128x32xf32>
    %cst_95 = arith.constant dense<0.000000e+00> : vector<128x1xf32>
    %199 = tpu.matmul %198, %6, %cst_95 {dimension_numbers = #tpu.dot_dimension_numbers<[1], [0], [0], [1], [0, 0, 1, 1], [], []>} : vector<128x32xf32>, vector<32x1xf32>, vector<128x1xf32> -> vector<128x1xf32>
    %cst_96 = arith.constant 9.99999993E-9 : f32
    %200 = vector.broadcast %cst_96 : f32 to vector<128x1xf32>
    %201 = arith.addf %199, %200 : vector<128x1xf32>
    %202 = math.rsqrt %201 : vector<128x1xf32>
    %203 = vector.broadcast %202 : vector<128x1xf32> to vector<128x32xf32>
    %204 = arith.mulf %197, %203 : vector<128x32xf32>
    %c0_97 = arith.constant 0 : index
    %c0_98 = arith.constant 0 : index
    %c0_99 = arith.constant 0 : index
    %205 = vector.load %arg4[%c0_97, %c0_98, %c0_99] : memref<3x32x128xf32, #tpu.memory_space<vmem>>, vector<1x32x128xf32>
    %206 = vector.shape_cast %205 : vector<1x32x128xf32> to vector<32x128xf32>
    %cst_100 = arith.constant dense<0.000000e+00> : vector<128x128xf32>
    %207 = tpu.matmul %204, %206, %cst_100 {dimension_numbers = #tpu.dot_dimension_numbers<[1], [0], [0], [1], [0, 0, 1, 1], [], []>} : vector<128x32xf32>, vector<32x128xf32>, vector<128x128xf32> -> vector<128x128xf32>
    %cst_101 = arith.constant 0.000000e+00 : f32
    %208 = vector.broadcast %cst_101 : f32 to vector<128x128xf32>
    %209 = arith.maximumf %207, %208 : vector<128x128xf32>
    %c0_102 = arith.constant 0 : index
    %c0_103 = arith.constant 0 : index
    %c0_104 = arith.constant 0 : index
    %210 = vector.load %arg5[%c0_102, %c0_103, %c0_104] : memref<2x128x32xf32, #tpu.memory_space<vmem>>, vector<1x128x32xf32>
    %211 = vector.shape_cast %210 : vector<1x128x32xf32> to vector<128x32xf32>
    %cst_105 = arith.constant dense<0.000000e+00> : vector<128x32xf32>
    %212 = tpu.matmul %209, %211, %cst_105 {dimension_numbers = #tpu.dot_dimension_numbers<[1], [0], [0], [1], [0, 0, 1, 1], [], []>} : vector<128x128xf32>, vector<128x32xf32>, vector<128x32xf32> -> vector<128x32xf32>
    %213 = arith.mulf %212, %212 : vector<128x32xf32>
    %cst_106 = arith.constant dense<0.000000e+00> : vector<128x1xf32>
    %214 = tpu.matmul %213, %6, %cst_106 {dimension_numbers = #tpu.dot_dimension_numbers<[1], [0], [0], [1], [0, 0, 1, 1], [], []>} : vector<128x32xf32>, vector<32x1xf32>, vector<128x1xf32> -> vector<128x1xf32>
    %cst_107 = arith.constant 9.99999993E-9 : f32
    %215 = vector.broadcast %cst_107 : f32 to vector<128x1xf32>
    %216 = arith.addf %214, %215 : vector<128x1xf32>
    %217 = math.rsqrt %216 : vector<128x1xf32>
    %218 = vector.broadcast %217 : vector<128x1xf32> to vector<128x32xf32>
    %219 = arith.mulf %212, %218 : vector<128x32xf32>
    %220 = arith.subf %219, %204 : vector<128x32xf32>
    %221 = vector.broadcast %3 : vector<1x32xf32> to vector<128x32xf32>
    %222 = arith.mulf %221, %220 : vector<128x32xf32>
    %223 = arith.addf %204, %222 : vector<128x32xf32>
    %224 = arith.mulf %223, %223 : vector<128x32xf32>
    %cst_108 = arith.constant dense<0.000000e+00> : vector<128x1xf32>
    %225 = tpu.matmul %224, %6, %cst_108 {dimension_numbers = #tpu.dot_dimension_numbers<[1], [0], [0], [1], [0, 0, 1, 1], [], []>} : vector<128x32xf32>, vector<32x1xf32>, vector<128x1xf32> -> vector<128x1xf32>
    %cst_109 = arith.constant 9.99999993E-9 : f32
    %226 = vector.broadcast %cst_109 : f32 to vector<128x1xf32>
    %227 = arith.addf %225, %226 : vector<128x1xf32>
    %228 = math.rsqrt %227 : vector<128x1xf32>
    %229 = vector.broadcast %228 : vector<128x1xf32> to vector<128x32xf32>
    %230 = arith.mulf %223, %229 : vector<128x32xf32>
    %c1_110 = arith.constant 1 : index
    %c0_111 = arith.constant 0 : index
    %c0_112 = arith.constant 0 : index
    %231 = vector.load %arg4[%c1_110, %c0_111, %c0_112] : memref<3x32x128xf32, #tpu.memory_space<vmem>>, vector<1x32x128xf32>
    %232 = vector.shape_cast %231 : vector<1x32x128xf32> to vector<32x128xf32>
    %cst_113 = arith.constant dense<0.000000e+00> : vector<128x128xf32>
    %233 = tpu.matmul %230, %232, %cst_113 {dimension_numbers = #tpu.dot_dimension_numbers<[1], [0], [0], [1], [0, 0, 1, 1], [], []>} : vector<128x32xf32>, vector<32x128xf32>, vector<128x128xf32> -> vector<128x128xf32>
    %cst_114 = arith.constant 0.000000e+00 : f32
    %234 = vector.broadcast %cst_114 : f32 to vector<128x128xf32>
    %235 = arith.maximumf %233, %234 : vector<128x128xf32>
    %c1_115 = arith.constant 1 : index
    %c0_116 = arith.constant 0 : index
    %c0_117 = arith.constant 0 : index
    %236 = vector.load %arg5[%c1_115, %c0_116, %c0_117] : memref<2x128x32xf32, #tpu.memory_space<vmem>>, vector<1x128x32xf32>
    %237 = vector.shape_cast %236 : vector<1x128x32xf32> to vector<128x32xf32>
    %cst_118 = arith.constant dense<0.000000e+00> : vector<128x32xf32>
    %238 = tpu.matmul %235, %237, %cst_118 {dimension_numbers = #tpu.dot_dimension_numbers<[1], [0], [0], [1], [0, 0, 1, 1], [], []>} : vector<128x128xf32>, vector<128x32xf32>, vector<128x32xf32> -> vector<128x32xf32>
    %239 = arith.mulf %238, %238 : vector<128x32xf32>
    %cst_119 = arith.constant dense<0.000000e+00> : vector<128x1xf32>
    %240 = tpu.matmul %239, %6, %cst_119 {dimension_numbers = #tpu.dot_dimension_numbers<[1], [0], [0], [1], [0, 0, 1, 1], [], []>} : vector<128x32xf32>, vector<32x1xf32>, vector<128x1xf32> -> vector<128x1xf32>
    %cst_120 = arith.constant 9.99999993E-9 : f32
    %241 = vector.broadcast %cst_120 : f32 to vector<128x1xf32>
    %242 = arith.addf %240, %241 : vector<128x1xf32>
    %243 = math.rsqrt %242 : vector<128x1xf32>
    %244 = vector.broadcast %243 : vector<128x1xf32> to vector<128x32xf32>
    %245 = arith.mulf %238, %244 : vector<128x32xf32>
    %246 = arith.subf %245, %230 : vector<128x32xf32>
    %247 = vector.broadcast %4 : vector<1x32xf32> to vector<128x32xf32>
    %248 = arith.mulf %247, %246 : vector<128x32xf32>
    %249 = arith.addf %230, %248 : vector<128x32xf32>
    %250 = arith.mulf %249, %249 : vector<128x32xf32>
    %cst_121 = arith.constant dense<0.000000e+00> : vector<128x1xf32>
    %251 = tpu.matmul %250, %6, %cst_121 {dimension_numbers = #tpu.dot_dimension_numbers<[1], [0], [0], [1], [0, 0, 1, 1], [], []>} : vector<128x32xf32>, vector<32x1xf32>, vector<128x1xf32> -> vector<128x1xf32>
    %cst_122 = arith.constant 9.99999993E-9 : f32
    %252 = vector.broadcast %cst_122 : f32 to vector<128x1xf32>
    %253 = arith.addf %251, %252 : vector<128x1xf32>
    %254 = math.rsqrt %253 : vector<128x1xf32>
    %255 = vector.broadcast %254 : vector<128x1xf32> to vector<128x32xf32>
    %256 = arith.mulf %249, %255 : vector<128x32xf32>
    %c2_123 = arith.constant 2 : index
    %c0_124 = arith.constant 0 : index
    %c0_125 = arith.constant 0 : index
    %257 = vector.load %arg4[%c2_123, %c0_124, %c0_125] : memref<3x32x128xf32, #tpu.memory_space<vmem>>, vector<1x32x128xf32>
    %258 = vector.shape_cast %257 : vector<1x32x128xf32> to vector<32x128xf32>
    %cst_126 = arith.constant dense<0.000000e+00> : vector<128x128xf32>
    %259 = tpu.matmul %256, %258, %cst_126 {dimension_numbers = #tpu.dot_dimension_numbers<[1], [0], [0], [1], [0, 0, 1, 1], [], []>} : vector<128x32xf32>, vector<32x128xf32>, vector<128x128xf32> -> vector<128x128xf32>
    %260 = arith.index_cast %178 : i32 to index
    %c0_127 = arith.constant 0 : index
    %261 = vector.load %arg6[%260, %c0_127] : memref<512x128xf32, #tpu.memory_space<vmem>>, vector<128x128xf32>
    tpu.vector_store %arg6[%260, %c0_127], %259 {strides = array<i32>} : memref<512x128xf32, #tpu.memory_space<vmem>>, vector<128x128xf32>,
    %c3_i32 = arith.constant 3 : i32
    %c128_i32_128 = arith.constant 128 : i32
    %262 = arith.muli %c3_i32, %c128_i32_128 : i32
    %263 = tpu.assume_multiple %262, 128 : i32
    %264 = arith.index_cast %263 : i32 to index
    %c0_129 = arith.constant 0 : index
    %265 = vector.load %arg1[%264, %c0_129] : memref<512x12xf32, #tpu.memory_space<vmem>>, vector<128x12xf32>
    %266 = vector.broadcast %0 : vector<1x12xf32> to vector<128x12xf32>
    %267 = arith.mulf %265, %266 : vector<128x12xf32>
    %268 = vector.broadcast %1 : vector<1x12xf32> to vector<128x12xf32>
    %269 = arith.addf %267, %268 : vector<128x12xf32>
    %270 = arith.mulf %269, %269 : vector<128x12xf32>
    %cst_130 = arith.constant dense<0.000000e+00> : vector<128x1xf32>
    %271 = tpu.matmul %270, %5, %cst_130 {dimension_numbers = #tpu.dot_dimension_numbers<[1], [0], [0], [1], [0, 0, 1, 1], [], []>} : vector<128x12xf32>, vector<12x1xf32>, vector<128x1xf32> -> vector<128x1xf32>
    %cst_131 = arith.constant 9.000000e+00 : f32
    %272 = vector.broadcast %cst_131 : f32 to vector<128x1xf32>
    %273 = arith.addf %271, %272 : vector<128x1xf32>
    %cst_132 = arith.constant 9.99999993E-9 : f32
    %274 = vector.broadcast %cst_132 : f32 to vector<128x1xf32>
    %275 = arith.addf %273, %274 : vector<128x1xf32>
    %276 = math.rsqrt %275 : vector<128x1xf32>
    %c0_133 = arith.constant 0 : index
    %c0_134 = arith.constant 0 : index
    %277 = vector.load %arg3[%c0_133, %c0_134] : memref<12x32xf32, #tpu.memory_space<vmem>>, vector<12x32xf32>
    %cst_135 = arith.constant dense<0.000000e+00> : vector<128x32xf32>
    %278 = tpu.matmul %269, %277, %cst_135 {dimension_numbers = #tpu.dot_dimension_numbers<[1], [0], [0], [1], [0, 0, 1, 1], [], []>} : vector<128x12xf32>, vector<12x32xf32>, vector<128x32xf32> -> vector<128x32xf32>
    %279 = vector.broadcast %2 : vector<1x32xf32> to vector<128x32xf32>
    %280 = arith.addf %278, %279 : vector<128x32xf32>
    %281 = vector.broadcast %276 : vector<128x1xf32> to vector<128x32xf32>
    %282 = arith.mulf %280, %281 : vector<128x32xf32>
    %283 = arith.mulf %282, %282 : vector<128x32xf32>
    %cst_136 = arith.constant dense<0.000000e+00> : vector<128x1xf32>
    %284 = tpu.matmul %283, %6, %cst_136 {dimension_numbers = #tpu.dot_dimension_numbers<[1], [0], [0], [1], [0, 0, 1, 1], [], []>} : vector<128x32xf32>, vector<32x1xf32>, vector<128x1xf32> -> vector<128x1xf32>
    %cst_137 = arith.constant 9.99999993E-9 : f32
    %285 = vector.broadcast %cst_137 : f32 to vector<128x1xf32>
    %286 = arith.addf %284, %285 : vector<128x1xf32>
    %287 = math.rsqrt %286 : vector<128x1xf32>
    %288 = vector.broadcast %287 : vector<128x1xf32> to vector<128x32xf32>
    %289 = arith.mulf %282, %288 : vector<128x32xf32>
    %c0_138 = arith.constant 0 : index
    %c0_139 = arith.constant 0 : index
    %c0_140 = arith.constant 0 : index
    %290 = vector.load %arg4[%c0_138, %c0_139, %c0_140] : memref<3x32x128xf32, #tpu.memory_space<vmem>>, vector<1x32x128xf32>
    %291 = vector.shape_cast %290 : vector<1x32x128xf32> to vector<32x128xf32>
    %cst_141 = arith.constant dense<0.000000e+00> : vector<128x128xf32>
    %292 = tpu.matmul %289, %291, %cst_141 {dimension_numbers = #tpu.dot_dimension_numbers<[1], [0], [0], [1], [0, 0, 1, 1], [], []>} : vector<128x32xf32>, vector<32x128xf32>, vector<128x128xf32> -> vector<128x128xf32>
    %cst_142 = arith.constant 0.000000e+00 : f32
    %293 = vector.broadcast %cst_142 : f32 to vector<128x128xf32>
    %294 = arith.maximumf %292, %293 : vector<128x128xf32>
    %c0_143 = arith.constant 0 : index
    %c0_144 = arith.constant 0 : index
    %c0_145 = arith.constant 0 : index
    %295 = vector.load %arg5[%c0_143, %c0_144, %c0_145] : memref<2x128x32xf32, #tpu.memory_space<vmem>>, vector<1x128x32xf32>
    %296 = vector.shape_cast %295 : vector<1x128x32xf32> to vector<128x32xf32>
    %cst_146 = arith.constant dense<0.000000e+00> : vector<128x32xf32>
    %297 = tpu.matmul %294, %296, %cst_146 {dimension_numbers = #tpu.dot_dimension_numbers<[1], [0], [0], [1], [0, 0, 1, 1], [], []>} : vector<128x128xf32>, vector<128x32xf32>, vector<128x32xf32> -> vector<128x32xf32>
    %298 = arith.mulf %297, %297 : vector<128x32xf32>
    %cst_147 = arith.constant dense<0.000000e+00> : vector<128x1xf32>
    %299 = tpu.matmul %298, %6, %cst_147 {dimension_numbers = #tpu.dot_dimension_numbers<[1], [0], [0], [1], [0, 0, 1, 1], [], []>} : vector<128x32xf32>, vector<32x1xf32>, vector<128x1xf32> -> vector<128x1xf32>
    %cst_148 = arith.constant 9.99999993E-9 : f32
    %300 = vector.broadcast %cst_148 : f32 to vector<128x1xf32>
    %301 = arith.addf %299, %300 : vector<128x1xf32>
    %302 = math.rsqrt %301 : vector<128x1xf32>
    %303 = vector.broadcast %302 : vector<128x1xf32> to vector<128x32xf32>
    %304 = arith.mulf %297, %303 : vector<128x32xf32>
    %305 = arith.subf %304, %289 : vector<128x32xf32>
    %306 = vector.broadcast %3 : vector<1x32xf32> to vector<128x32xf32>
    %307 = arith.mulf %306, %305 : vector<128x32xf32>
    %308 = arith.addf %289, %307 : vector<128x32xf32>
    %309 = arith.mulf %308, %308 : vector<128x32xf32>
    %cst_149 = arith.constant dense<0.000000e+00> : vector<128x1xf32>
    %310 = tpu.matmul %309, %6, %cst_149 {dimension_numbers = #tpu.dot_dimension_numbers<[1], [0], [0], [1], [0, 0, 1, 1], [], []>} : vector<128x32xf32>, vector<32x1xf32>, vector<128x1xf32> -> vector<128x1xf32>
    %cst_150 = arith.constant 9.99999993E-9 : f32
    %311 = vector.broadcast %cst_150 : f32 to vector<128x1xf32>
    %312 = arith.addf %310, %311 : vector<128x1xf32>
    %313 = math.rsqrt %312 : vector<128x1xf32>
    %314 = vector.broadcast %313 : vector<128x1xf32> to vector<128x32xf32>
    %315 = arith.mulf %308, %314 : vector<128x32xf32>
    %c1_151 = arith.constant 1 : index
    %c0_152 = arith.constant 0 : index
    %c0_153 = arith.constant 0 : index
    %316 = vector.load %arg4[%c1_151, %c0_152, %c0_153] : memref<3x32x128xf32, #tpu.memory_space<vmem>>, vector<1x32x128xf32>
    %317 = vector.shape_cast %316 : vector<1x32x128xf32> to vector<32x128xf32>
    %cst_154 = arith.constant dense<0.000000e+00> : vector<128x128xf32>
    %318 = tpu.matmul %315, %317, %cst_154 {dimension_numbers = #tpu.dot_dimension_numbers<[1], [0], [0], [1], [0, 0, 1, 1], [], []>} : vector<128x32xf32>, vector<32x128xf32>, vector<128x128xf32> -> vector<128x128xf32>
    %cst_155 = arith.constant 0.000000e+00 : f32
    %319 = vector.broadcast %cst_155 : f32 to vector<128x128xf32>
    %320 = arith.maximumf %318, %319 : vector<128x128xf32>
    %c1_156 = arith.constant 1 : index
    %c0_157 = arith.constant 0 : index
    %c0_158 = arith.constant 0 : index
    %321 = vector.load %arg5[%c1_156, %c0_157, %c0_158] : memref<2x128x32xf32, #tpu.memory_space<vmem>>, vector<1x128x32xf32>
    %322 = vector.shape_cast %321 : vector<1x128x32xf32> to vector<128x32xf32>
    %cst_159 = arith.constant dense<0.000000e+00> : vector<128x32xf32>
    %323 = tpu.matmul %320, %322, %cst_159 {dimension_numbers = #tpu.dot_dimension_numbers<[1], [0], [0], [1], [0, 0, 1, 1], [], []>} : vector<128x128xf32>, vector<128x32xf32>, vector<128x32xf32> -> vector<128x32xf32>
    %324 = arith.mulf %323, %323 : vector<128x32xf32>
    %cst_160 = arith.constant dense<0.000000e+00> : vector<128x1xf32>
    %325 = tpu.matmul %324, %6, %cst_160 {dimension_numbers = #tpu.dot_dimension_numbers<[1], [0], [0], [1], [0, 0, 1, 1], [], []>} : vector<128x32xf32>, vector<32x1xf32>, vector<128x1xf32> -> vector<128x1xf32>
    %cst_161 = arith.constant 9.99999993E-9 : f32
    %326 = vector.broadcast %cst_161 : f32 to vector<128x1xf32>
    %327 = arith.addf %325, %326 : vector<128x1xf32>
    %328 = math.rsqrt %327 : vector<128x1xf32>
    %329 = vector.broadcast %328 : vector<128x1xf32> to vector<128x32xf32>
    %330 = arith.mulf %323, %329 : vector<128x32xf32>
    %331 = arith.subf %330, %315 : vector<128x32xf32>
    %332 = vector.broadcast %4 : vector<1x32xf32> to vector<128x32xf32>
    %333 = arith.mulf %332, %331 : vector<128x32xf32>
    %334 = arith.addf %315, %333 : vector<128x32xf32>
    %335 = arith.mulf %334, %334 : vector<128x32xf32>
    %cst_162 = arith.constant dense<0.000000e+00> : vector<128x1xf32>
    %336 = tpu.matmul %335, %6, %cst_162 {dimension_numbers = #tpu.dot_dimension_numbers<[1], [0], [0], [1], [0, 0, 1, 1], [], []>} : vector<128x32xf32>, vector<32x1xf32>, vector<128x1xf32> -> vector<128x1xf32>
    %cst_163 = arith.constant 9.99999993E-9 : f32
    %337 = vector.broadcast %cst_163 : f32 to vector<128x1xf32>
    %338 = arith.addf %336, %337 : vector<128x1xf32>
    %339 = math.rsqrt %338 : vector<128x1xf32>
    %340 = vector.broadcast %339 : vector<128x1xf32> to vector<128x32xf32>
    %341 = arith.mulf %334, %340 : vector<128x32xf32>
    %c2_164 = arith.constant 2 : index
    %c0_165 = arith.constant 0 : index
    %c0_166 = arith.constant 0 : index
    %342 = vector.load %arg4[%c2_164, %c0_165, %c0_166] : memref<3x32x128xf32, #tpu.memory_space<vmem>>, vector<1x32x128xf32>
    %343 = vector.shape_cast %342 : vector<1x32x128xf32> to vector<32x128xf32>
    %cst_167 = arith.constant dense<0.000000e+00> : vector<128x128xf32>
    %344 = tpu.matmul %341, %343, %cst_167 {dimension_numbers = #tpu.dot_dimension_numbers<[1], [0], [0], [1], [0, 0, 1, 1], [], []>} : vector<128x32xf32>, vector<32x128xf32>, vector<128x128xf32> -> vector<128x128xf32>
    %345 = arith.index_cast %263 : i32 to index
    %c0_168 = arith.constant 0 : index
    %346 = vector.load %arg6[%345, %c0_168] : memref<512x128xf32, #tpu.memory_space<vmem>>, vector<128x128xf32>
    tpu.vector_store %arg6[%345, %c0_168], %344 {strides = array<i32>} : memref<512x128xf32, #tpu.memory_space<vmem>>, vector<128x128xf32>,
    %c4_i32 = arith.constant 4 : i32
    return
  }
  func.func @transform_0(%arg0: i32) -> (i32, i32) {
    %c0_i32 = arith.constant 0 : i32
    %c0_i32_0 = arith.constant 0 : i32
    return %arg0, %c0_i32 : i32, i32
  }
  func.func @transform_1(%arg0: i32) -> (i32, i32) {
    %c0_i32 = arith.constant 0 : i32
    %c0_i32_0 = arith.constant 0 : i32
    %c0_i32_1 = arith.constant 0 : i32
    return %c0_i32, %c0_i32_0 : i32, i32
  }
  func.func @transform_2(%arg0: i32) -> (i32, i32) {
    %c0_i32 = arith.constant 0 : i32
    %c0_i32_0 = arith.constant 0 : i32
    %c0_i32_1 = arith.constant 0 : i32
    return %c0_i32, %c0_i32_0 : i32, i32
  }
  func.func @transform_3(%arg0: i32) -> (i32, i32, i32) {
    %c0_i32 = arith.constant 0 : i32
    %c0_i32_0 = arith.constant 0 : i32
    %c0_i32_1 = arith.constant 0 : i32
    %c0_i32_2 = arith.constant 0 : i32
    return %c0_i32, %c0_i32_0, %c0_i32_1 : i32, i32, i32
  }
  func.func @transform_4(%arg0: i32) -> (i32, i32, i32) {
    %c0_i32 = arith.constant 0 : i32
    %c0_i32_0 = arith.constant 0 : i32
    %c0_i32_1 = arith.constant 0 : i32
    %c0_i32_2 = arith.constant 0 : i32
    return %c0_i32, %c0_i32_0, %c0_i32_1 : i32, i32, i32
  }
  func.func @transform_5(%arg0: i32) -> (i32, i32) {
    %c0_i32 = arith.constant 0 : i32
    %c0_i32_0 = arith.constant 0 : i32
    return %arg0, %c0_i32 : i32, i32
  }
}

</mosaic_0001>

<llo_original>
// kernel: tpu_custom_call.1
$region0: #{tpu_custom_call.1}
  #allocation0 [shape = 'u32[]', space=smem, size = 0x4, offset = 0x4, fixed_abs, tag = 'smem constant byte address 0x4 - core index']
  #allocation1 [shape = 'u32[144,128]{1,0:T(1,128)}', space=vmem, size = 0x12000, scoped, tag = 'internal scratch']
  %s0 = inlined_call_operand.vmem [shape: f32[512,12], index: 0, kind: input, shape index: {}]
  %s1 = inlined_call_operand.vmem [shape: f32[8,128], index: 1, kind: input, shape index: {}]
  %s2 = inlined_call_operand.vmem [shape: f32[12,32], index: 2, kind: input, shape index: {}]
  %s3 = inlined_call_operand.vmem [shape: f32[3,32,128], index: 3, kind: input, shape index: {}]
  %s4 = inlined_call_operand.vmem [shape: f32[2,128,32], index: 4, kind: input, shape index: {}]
  %s5 = inlined_call_operand.hbm [shape: f32[512,128], index: 5, kind: output, shape index: {}]
  %s6 = sld [smem:[#allocation0]]
  $region30: #{tpu_custom_call.1} parent=0
    _
  %s8 = ssub.s32 1, %s6
  %s9 = scalar_select 0, %s8, %s6
  $region1: #{tpu_custom_call.1} parent=0
    #allocation2 [shape = 'u8[262144]{0}', space=vmem, size = 0x40000, scoped, tag = 'output window, operand 0, single buffered']
    #allocation3 [shape = 's32[1]{0}', space=sflag, size = 0x4, scoped, tag = 'scoped memory for tpu_custom_call.1']
    %10 = vsyncpa [#allocation3], 0
    // Predicated region
    $region2: #{tpu_custom_call.1} parent=1 // pred_check
      _
    $region3: #{tpu_custom_call.1} parent=1 // pred_check_branch
      %12 = sbr.rel (0) target = $region5
    $region4: #{tpu_custom_call.1} parent=1 // pred_region
      _
    $region5: #{tpu_custom_call.1} parent=1 // pred_fallthru
      _
    // Predicated region
    $region6: #{tpu_custom_call.1} parent=1 // pred_check
      _
    $region7: #{tpu_custom_call.1} parent=1 // pred_check_branch
      %14 = sbr.rel (0) target = $region9
    $region8: #{tpu_custom_call.1} parent=1 // pred_region
      _
    $region9: #{tpu_custom_call.1} parent=1 // pred_fallthru
      _
    // Predicated region
    $region10: #{tpu_custom_call.1} parent=1 // pred_check
      _
    $region11: #{tpu_custom_call.1} parent=1 // pred_check_branch
      %16 = sbr.rel (0) target = $region13
    $region12: #{tpu_custom_call.1} parent=1 // pred_region
      _
    $region13: #{tpu_custom_call.1} parent=1 // pred_fallthru
      _
    // Predicated region
    $region14: #{tpu_custom_call.1} parent=1 // pred_check
      _
    $region15: #{tpu_custom_call.1} parent=1 // pred_check_branch
      %18 = sbr.rel (0) target = $region17
    $region16: #{tpu_custom_call.1} parent=1 // pred_region
      _
    $region17: #{tpu_custom_call.1} parent=1 // pred_fallthru
      _
    // Predicated region
    $region18: #{tpu_custom_call.1} parent=1 // pred_check
      _
    $region19: #{tpu_custom_call.1} parent=1 // pred_check_branch
      %20 = sbr.rel (0) target = $region21
    $region20: #{tpu_custom_call.1} parent=1 // pred_region
      _
    $region21: #{tpu_custom_call.1} parent=1 // pred_fallthru
      _
    %v21 = vld [vmem:[%s1] sm:$0x1]
    %v22 = vld [vmem:[%s1 + $0x1] sm:$0x1]
    %v23 = vld [vmem:[%s1 + $0x2] sm:$0x1]
    %v24 = vld [vmem:[%s1 + $0x3] sm:$0x1]
    %v25 = vld [vmem:[%s1 + $0x4] sm:$0x1]
    %v26 = vld [vmem:[%s0] sm:$0xff]
    %v27 = vld [vmem:[%s0 + $0x8] sm:$0xff]
    %v28 = vld [vmem:[%s0 + $0x10] sm:$0xff]
    %v29 = vld [vmem:[%s0 + $0x18] sm:$0xff]
    %v30 = vld [vmem:[%s0 + $0x20] sm:$0xff]
    %v31 = vld [vmem:[%s0 + $0x28] sm:$0xff]
    %v32 = vld [vmem:[%s0 + $0x30] sm:$0xff]
    %v33 = vld [vmem:[%s0 + $0x38] sm:$0xff]
    %v34 = vld [vmem:[%s0 + $0x40] sm:$0xff]
    %v35 = vld [vmem:[%s0 + $0x48] sm:$0xff]
    %v36 = vld [vmem:[%s0 + $0x50] sm:$0xff]
    %v37 = vld [vmem:[%s0 + $0x58] sm:$0xff]
    %v38 = vld [vmem:[%s0 + $0x60] sm:$0xff]
    %v39 = vld [vmem:[%s0 + $0x68] sm:$0xff]
    %v40 = vld [vmem:[%s0 + $0x70] sm:$0xff]
    %v41 = vld [vmem:[%s0 + $0x78] sm:$0xff]
    %v42 = vlaneseq
    %v43 = vshrl.u32 %v42, 7
    %v44 = vsub.s32 0, %v43
    %v45 = vrot.slane %v21, %v44
    %v46 = vmul.f32 %v26, %v45
    %v47 = vmul.f32 %v27, %v45
    %v48 = vmul.f32 %v28, %v45
    %v49 = vmul.f32 %v29, %v45
    %v50 = vmul.f32 %v30, %v45
    %v51 = vmul.f32 %v31, %v45
    %v52 = vmul.f32 %v32, %v45
    %v53 = vmul.f32 %v33, %v45
    %v54 = vmul.f32 %v34, %v45
    %v55 = vmul.f32 %v35, %v45
    %v56 = vmul.f32 %v36, %v45
    %v57 = vmul.f32 %v37, %v45
    %v58 = vmul.f32 %v38, %v45
    %v59 = vmul.f32 %v39, %v45
    %v60 = vmul.f32 %v40, %v45
    %v61 = vmul.f32 %v41, %v45
    %v62 = vlaneseq
    %v63 = vshrl.u32 %v62, 7
    %v64 = vsub.s32 0, %v63
    %v65 = vrot.slane %v22, %v64
    %v66 = vadd.f32 %v46, %v65
    %v67 = vadd.f32 %v47, %v65
    %v68 = vadd.f32 %v48, %v65
    %v69 = vadd.f32 %v49, %v65
    %v70 = vadd.f32 %v50, %v65
    %v71 = vadd.f32 %v51, %v65
    %v72 = vadd.f32 %v52, %v65
    %v73 = vadd.f32 %v53, %v65
    %v74 = vadd.f32 %v54, %v65
    %v75 = vadd.f32 %v55, %v65
    %v76 = vadd.f32 %v56, %v65
    %v77 = vadd.f32 %v57, %v65
    %v78 = vadd.f32 %v58, %v65
    %v79 = vadd.f32 %v59, %v65
    %v80 = vadd.f32 %v60, %v65
    %v81 = vadd.f32 %v61, %v65
    %v82 = vmul.f32 %v66, %v66
    %v83 = vmul.f32 %v67, %v67
    %v84 = vmul.f32 %v68, %v68
    %v85 = vmul.f32 %v69, %v69
    %v86 = vmul.f32 %v70, %v70
    %v87 = vmul.f32 %v71, %v71
    %v88 = vmul.f32 %v72, %v72
    %v89 = vmul.f32 %v73, %v73
    %v90 = vmul.f32 %v74, %v74
    %v91 = vmul.f32 %v75, %v75
    %v92 = vmul.f32 %v76, %v76
    %v93 = vmul.f32 %v77, %v77
    %v94 = vmul.f32 %v78, %v78
    %v95 = vmul.f32 %v79, %v79
    %v96 = vmul.f32 %v80, %v80
    %v97 = vmul.f32 %v81, %v81
    %vm98 = vcmask 97280
    %v100 = vsel %vm98, %v82, 0
    %v103 = vsel %vm98, %v83, 0
    %v106 = vsel %vm98, %v84, 0
    %v109 = vsel %vm98, %v85, 0
    %v112 = vsel %vm98, %v86, 0
    %v115 = vsel %vm98, %v87, 0
    %v118 = vsel %vm98, %v88, 0
    %v121 = vsel %vm98, %v89, 0
    %v124 = vsel %vm98, %v90, 0
    %v127 = vsel %vm98, %v91, 0
    %v130 = vsel %vm98, %v92, 0
    %v133 = vsel %vm98, %v93, 0
    %v136 = vsel %vm98, %v94, 0
    %v139 = vsel %vm98, %v95, 0
    %v142 = vsel %vm98, %v96, 0
    %v145 = vsel %vm98, %v97, 0
    %vm147 = vcmask 1043456
    %v149 = vsel %vm147, 1.0, 0
    %151 = vmatprep.subr.mxu0 0.0
    %152 = vmatpush1.msra.mxu0 1.0
    %153 = vmatprep.subr.mxu0 0.0
    %154 = vmatpush1.msra.mxu0 %v149
    %155 = vmatprep.subr.mxu0 0.0
    %156 = vmatpush1.msra.mxu0 0.0
    %157 = vmatprep.subr.mxu0 0.0
    %158 = vmatpush1.msra.mxu0 0.0
    %159 = vmatprep.subr.mxu0 0.0
    %160 = vmatpush1.msra.mxu0 0.0
    %161 = vmatprep.subr.mxu0 0.0
    %162 = vmatpush1.msra.mxu0 0.0
    %163 = vmatprep.subr.mxu0 0.0
    %164 = vmatpush1.msra.mxu0 0.0
    %165 = vmatprep.subr.mxu0 0.0
    %166 = vmatpush1.msra.mxu0 0.0
    %167 = vmatprep.subr.mxu0 0.0
    %168 = vmatpush1.msra.mxu0 0.0
    %169 = vmatprep.subr.mxu0 0.0
    %170 = vmatpush1.msra.mxu0 0.0
    %171 = vmatprep.subr.mxu0 0.0
    %172 = vmatpush1.msra.mxu0 0.0
    %173 = vmatprep.subr.mxu0 0.0
    %174 = vmatpush1.msra.mxu0 0.0
    %175 = vmatprep.subr.mxu0 0.0
    %176 = vmatpush1.msra.mxu0 0.0
    %177 = vmatprep.subr.mxu0 0.0
    %178 = vmatpush1.msra.mxu0 0.0
    %179 = vmatprep.subr.mxu0 0.0
    %180 = vmatpush1.msra.mxu0 0.0
    %181 = vmatprep.subr.mxu0 0.0
    %182 = vmatpush1.msra.mxu0 0.0
    %183 = vmatprep.subr.mxu0 0.0
    %184 = vmatpush1.msra.mxu0 0.0
    %185 = vmatprep.subr.mxu0 0.0
    %186 = vmatpush1.msra.mxu0 0.0
    %187 = vmatprep.subr.mxu0 0.0
    %188 = vmatpush1.msra.mxu0 0.0
    %189 = vmatprep.subr.mxu0 0.0
    %190 = vmatpush1.msra.mxu0 0.0
    %191 = vmatprep.subr.mxu0 0.0
    %192 = vmatpush1.msra.mxu0 0.0
    %193 = vmatprep.subr.mxu0 0.0
    %194 = vmatpush1.msra.mxu0 0.0
    %195 = vmatprep.subr.mxu0 0.0
    %196 = vmatpush1.msra.mxu0 0.0
    %197 = vmatprep.subr.mxu0 0.0
    %198 = vmatpush1.msra.mxu0 0.0
    %199 = vmatprep.subr.mxu0 0.0
    %200 = vmatpush1.msra.mxu0 0.0
    %201 = vmatprep.subr.mxu0 0.0
    %202 = vmatpush1.msra.mxu0 0.0
    %203 = vmatprep.subr.mxu0 0.0
    %204 = vmatpush1.msra.mxu0 0.0
    %205 = vmatprep.subr.mxu0 0.0
    %206 = vmatpush1.msra.mxu0 0.0
    %207 = vmatprep.subr.mxu0 0.0
    %208 = vmatpush1.msra.mxu0 0.0
    %209 = vmatprep.subr.mxu0 0.0
    %210 = vmatpush1.msra.mxu0 0.0
    %211 = vmatprep.subr.mxu0 0.0
    %212 = vmatpush1.msra.mxu0 0.0
    %213 = vmatprep.subr.mxu0 0.0
    %214 = vmatpush1.msra.mxu0 0.0
    %215 = vmatprep.mubr.f32.mxu0 0.0
    %216 = vmatmul.mubr.f32.gmra.mrb[0].mxu0 %v100
    %v217 = vpop.f32.mrb[0].mxu0
    %v218 = vadd.f32 9.0, %v217
    %v219 = vpop.f32.mrb[0].mxu0
    %220 = vmatprep.mubr.f32.mxu0 0.0
    %221 = vmatmul.mubr.f32.gmra.mrb[0].mxu0 %v103
    %v222 = vpop.f32.mrb[0].mxu0
    %v223 = vadd.f32 9.0, %v222
    %v224 = vpop.f32.mrb[0].mxu0
    %225 = vmatprep.mubr.f32.mxu0 0.0
    %226 = vmatmul.mubr.f32.gmra.mrb[0].mxu0 %v106
    %v227 = vpop.f32.mrb[0].mxu0
    %v228 = vadd.f32 9.0, %v227
    %v229 = vpop.f32.mrb[0].mxu0
    %230 = vmatprep.mubr.f32.mxu0 0.0
    %231 = vmatmul.mubr.f32.gmra.mrb[0].mxu0 %v109
    %v232 = vpop.f32.mrb[0].mxu0
    %v233 = vadd.f32 9.0, %v232
    %v234 = vpop.f32.mrb[0].mxu0
    %235 = vmatprep.mubr.f32.mxu0 0.0
    %236 = vmatmul.mubr.f32.gmra.mrb[0].mxu0 %v112
    %v237 = vpop.f32.mrb[0].mxu0
    %v238 = vadd.f32 9.0, %v237
    %v239 = vpop.f32.mrb[0].mxu0
    %240 = vmatprep.mubr.f32.mxu0 0.0
    %241 = vmatmul.mubr.f32.gmra.mrb[0].mxu0 %v115
    %v242 = vpop.f32.mrb[0].mxu0
    %v243 = vadd.f32 9.0, %v242
    %v244 = vpop.f32.mrb[0].mxu0
    %245 = vmatprep.mubr.f32.mxu0 0.0
    %246 = vmatmul.mubr.f32.gmra.mrb[0].mxu0 %v118
    %v247 = vpop.f32.mrb[0].mxu0
    %v248 = vadd.f32 9.0, %v247
    %v249 = vpop.f32.mrb[0].mxu0
    %250 = vmatprep.mubr.f32.mxu0 0.0
    %251 = vmatmul.mubr.f32.gmra.mrb[0].mxu0 %v121
    %v252 = vpop.f32.mrb[0].mxu0
    %v253 = vadd.f32 9.0, %v252
    %v254 = vpop.f32.mrb[0].mxu0
    %255 = vmatprep.mubr.f32.mxu0 0.0
    %256 = vmatmul.mubr.f32.gmra.mrb[0].mxu0 %v124
    %v257 = vpop.f32.mrb[0].mxu0
    %v258 = vadd.f32 9.0, %v257
    %v259 = vpop.f32.mrb[0].mxu0
    %260 = vmatprep.mubr.f32.mxu0 0.0
    %261 = vmatmul.mubr.f32.gmra.mrb[0].mxu0 %v127
    %v262 = vpop.f32.mrb[0].mxu0
    %v263 = vadd.f32 9.0, %v262
    %v264 = vpop.f32.mrb[0].mxu0
    %265 = vmatprep.mubr.f32.mxu0 0.0
    %266 = vmatmul.mubr.f32.gmra.mrb[0].mxu0 %v130
    %v267 = vpop.f32.mrb[0].mxu0
    %v268 = vadd.f32 9.0, %v267
    %v269 = vpop.f32.mrb[0].mxu0
    %270 = vmatprep.mubr.f32.mxu0 0.0
    %271 = vmatmul.mubr.f32.gmra.mrb[0].mxu0 %v133
    %v272 = vpop.f32.mrb[0].mxu0
    %v273 = vadd.f32 9.0, %v272
    %v274 = vpop.f32.mrb[0].mxu0
    %275 = vmatprep.mubr.f32.mxu0 0.0
    %276 = vmatmul.mubr.f32.gmra.mrb[0].mxu0 %v136
    %v277 = vpop.f32.mrb[0].mxu0
    %v278 = vadd.f32 9.0, %v277
    %v279 = vpop.f32.mrb[0].mxu0
    %280 = vmatprep.mubr.f32.mxu0 0.0
    %281 = vmatmul.mubr.f32.gmra.mrb[0].mxu0 %v139
    %v282 = vpop.f32.mrb[0].mxu0
    %v283 = vadd.f32 9.0, %v282
    %v284 = vpop.f32.mrb[0].mxu0
    %285 = vmatprep.mubr.f32.mxu0 0.0
    %286 = vmatmul.mubr.f32.gmra.mrb[0].mxu0 %v142
    %v287 = vpop.f32.mrb[0].mxu0
    %v288 = vadd.f32 9.0, %v287
    %v289 = vpop.f32.mrb[0].mxu0
    %290 = vmatprep.mubr.f32.mxu0 0.0
    %291 = vmatmul.mubr.f32.gmra.mrb[0].mxu0 %v145
    %v292 = vpop.f32.mrb[0].mxu0
    %v293 = vadd.f32 9.0, %v292
    %v294 = vpop.f32.mrb[0].mxu0
    %295 = vdwg.mxu0
    %v296 = vadd.f32 %v218, 1e-08
    %v297 = vadd.f32 %v223, 1e-08
    %v298 = vadd.f32 %v228, 1e-08
    %v299 = vadd.f32 %v233, 1e-08
    %v300 = vadd.f32 %v238, 1e-08
    %v301 = vadd.f32 %v243, 1e-08
    %v302 = vadd.f32 %v248, 1e-08
    %v303 = vadd.f32 %v253, 1e-08
    %v304 = vadd.f32 %v258, 1e-08
    %v305 = vadd.f32 %v263, 1e-08
    %v306 = vadd.f32 %v268, 1e-08
    %v307 = vadd.f32 %v273, 1e-08
    %v308 = vadd.f32 %v278, 1e-08
    %v309 = vadd.f32 %v283, 1e-08
    %v310 = vadd.f32 %v288, 1e-08
    %v311 = vadd.f32 %v293, 1e-08
    %v312 = vrsqrt.pop %v296
    %v313 = vrsqrt.pop %v297
    %v314 = vrsqrt.pop %v298
    %v315 = vrsqrt.pop %v299
    %v316 = vrsqrt.pop %v300
    %v317 = vrsqrt.pop %v301
    %v318 = vrsqrt.pop %v302
    %v319 = vrsqrt.pop %v303
    %v320 = vrsqrt.pop %v304
    %v321 = vrsqrt.pop %v305
    %v322 = vrsqrt.pop %v306
    %v323 = vrsqrt.pop %v307
    %v324 = vrsqrt.pop %v308
    %v325 = vrsqrt.pop %v309
    %v326 = vrsqrt.pop %v310
    %v327 = vrsqrt.pop %v311
    %v328 = vld [vmem:[%s2] sm:$0xff]
    %v329 = vld [vmem:[%s2 + $0x8] sm:$0xf]
    %v330 = vlaneseq
    %v331 = vshrl.u32 %v330, 7
    %v332 = vsub.s32 0, %v331
    %v333 = vrot.slane %v23, %v332
    %v335 = vsel %vm98, %v66, 0
    %v338 = vsel %vm98, %v67, 0
    %v341 = vsel %vm98, %v68, 0
    %v344 = vsel %vm98, %v69, 0
    %v347 = vsel %vm98, %v70, 0
    %v350 = vsel %vm98, %v71, 0
    %v353 = vsel %vm98, %v72, 0
    %v356 = vsel %vm98, %v73, 0
    %v359 = vsel %vm98, %v74, 0
    %v362 = vsel %vm98, %v75, 0
    %v365 = vsel %vm98, %v76, 0
    %v368 = vsel %vm98, %v77, 0
    %v371 = vsel %vm98, %v78, 0
    %v374 = vsel %vm98, %v79, 0
    %v377 = vsel %vm98, %v80, 0
    %v380 = vsel %vm98, %v81, 0
    %v383 = vsel %vm147, %v329, 0
    %385 = vmatprep.subr.mxu0 0.0
    %386 = vmatpush1.msra.mxu0 %v328
    %387 = vmatprep.subr.mxu0 0.0
    %388 = vmatpush1.msra.mxu0 %v383
    %389 = vmatprep.subr.mxu0 0.0
    %390 = vmatpush1.msra.mxu0 0.0
    %391 = vmatprep.subr.mxu0 0.0
    %392 = vmatpush1.msra.mxu0 0.0
    %393 = vmatprep.subr.mxu0 0.0
    %394 = vmatpush1.msra.mxu0 0.0
    %395 = vmatprep.subr.mxu0 0.0
    %396 = vmatpush1.msra.mxu0 0.0
    %397 = vmatprep.subr.mxu0 0.0
    %398 = vmatpush1.msra.mxu0 0.0
    %399 = vmatprep.subr.mxu0 0.0
    %400 = vmatpush1.msra.mxu0 0.0
    %401 = vmatprep.subr.mxu0 0.0
    %402 = vmatpush1.msra.mxu0 0.0
    %403 = vmatprep.subr.mxu0 0.0
    %404 = vmatpush1.msra.mxu0 0.0
    %405 = vmatprep.subr.mxu0 0.0
    %406 = vmatpush1.msra.mxu0 0.0
    %407 = vmatprep.subr.mxu0 0.0
    %408 = vmatpush1.msra.mxu0 0.0
    %409 = vmatprep.subr.mxu0 0.0
    %410 = vmatpush1.msra.mxu0 0.0
    %411 = vmatprep.subr.mxu0 0.0
    %412 = vmatpush1.msra.mxu0 0.0
    %413 = vmatprep.subr.mxu0 0.0
    %414 = vmatpush1.msra.mxu0 0.0
    %415 = vmatprep.subr.mxu0 0.0
    %416 = vmatpush1.msra.mxu0 0.0
    %417 = vmatprep.subr.mxu0 0.0
    %418 = vmatpush1.msra.mxu0 0.0
    %419 = vmatprep.subr.mxu0 0.0
    %420 = vmatpush1.msra.mxu0 0.0
    %421 = vmatprep.subr.mxu0 0.0
    %422 = vmatpush1.msra.mxu0 0.0
    %423 = vmatprep.subr.mxu0 0.0
    %424 = vmatpush1.msra.mxu0 0.0
    %425 = vmatprep.subr.mxu0 0.0
    %426 = vmatpush1.msra.mxu0 0.0
    %427 = vmatprep.subr.mxu0 0.0
    %428 = vmatpush1.msra.mxu0 0.0
    %429 = vmatprep.subr.mxu0 0.0
    %430 = vmatpush1.msra.mxu0 0.0
    %431 = vmatprep.subr.mxu0 0.0
    %432 = vmatpush1.msra.mxu0 0.0
    %433 = vmatprep.subr.mxu0 0.0
    %434 = vmatpush1.msra.mxu0 0.0
    %435 = vmatprep.subr.mxu0 0.0
    %436 = vmatpush1.msra.mxu0 0.0
    %437 = vmatprep.subr.mxu0 0.0
    %438 = vmatpush1.msra.mxu0 0.0
    %439 = vmatprep.subr.mxu0 0.0
    %440 = vmatpush1.msra.mxu0 0.0
    %441 = vmatprep.subr.mxu0 0.0
    %442 = vmatpush1.msra.mxu0 0.0
    %443 = vmatprep.subr.mxu0 0.0
    %444 = vmatpush1.msra.mxu0 0.0
    %445 = vmatprep.subr.mxu0 0.0
    %446 = vmatpush1.msra.mxu0 0.0
    %447 = vmatprep.subr.mxu0 0.0
    %448 = vmatpush1.msra.mxu0 0.0
    %449 = vmatprep.mubr.f32.mxu0 0.0
    %450 = vmatmul.mubr.f32.gmra.mrb[0].mxu0 %v335
    %v451 = vpop.f32.mrb[0].mxu0
    %v452 = vadd.f32 %v333, %v451
    %v453 = vpop.f32.mrb[0].mxu0
    %454 = vmatprep.mubr.f32.mxu0 0.0
    %455 = vmatmul.mubr.f32.gmra.mrb[0].mxu0 %v338
    %v456 = vpop.f32.mrb[0].mxu0
    %v457 = vadd.f32 %v333, %v456
    %v458 = vpop.f32.mrb[0].mxu0
    %459 = vmatprep.mubr.f32.mxu0 0.0
    %460 = vmatmul.mubr.f32.gmra.mrb[0].mxu0 %v341
    %v461 = vpop.f32.mrb[0].mxu0
    %v462 = vadd.f32 %v333, %v461
    %v463 = vpop.f32.mrb[0].mxu0
    %464 = vmatprep.mubr.f32.mxu0 0.0
    %465 = vmatmul.mubr.f32.gmra.mrb[0].mxu0 %v344
    %v466 = vpop.f32.mrb[0].mxu0
    %v467 = vadd.f32 %v333, %v466
    %v468 = vpop.f32.mrb[0].mxu0
    %469 = vmatprep.mubr.f32.mxu0 0.0
    %470 = vmatmul.mubr.f32.gmra.mrb[0].mxu0 %v347
    %v471 = vpop.f32.mrb[0].mxu0
    %v472 = vadd.f32 %v333, %v471
    %v473 = vpop.f32.mrb[0].mxu0
    %474 = vmatprep.mubr.f32.mxu0 0.0
    %475 = vmatmul.mubr.f32.gmra.mrb[0].mxu0 %v350
    %v476 = vpop.f32.mrb[0].mxu0
    %v477 = vadd.f32 %v333, %v476
    %v478 = vpop.f32.mrb[0].mxu0
    %479 = vmatprep.mubr.f32.mxu0 0.0
    %480 = vmatmul.mubr.f32.gmra.mrb[0].mxu0 %v353
    %v481 = vpop.f32.mrb[0].mxu0
    %v482 = vadd.f32 %v333, %v481
    %v483 = vpop.f32.mrb[0].mxu0
    %484 = vmatprep.mubr.f32.mxu0 0.0
    %485 = vmatmul.mubr.f32.gmra.mrb[0].mxu0 %v356
    %v486 = vpop.f32.mrb[0].mxu0
    %v487 = vadd.f32 %v333, %v486
    %v488 = vpop.f32.mrb[0].mxu0
    %489 = vmatprep.mubr.f32.mxu0 0.0
    %490 = vmatmul.mubr.f32.gmra.mrb[0].mxu0 %v359
    %v491 = vpop.f32.mrb[0].mxu0
    %v492 = vadd.f32 %v333, %v491
    %v493 = vpop.f32.mrb[0].mxu0
    %494 = vmatprep.mubr.f32.mxu0 0.0
    %495 = vmatmul.mubr.f32.gmra.mrb[0].mxu0 %v362
    %v496 = vpop.f32.mrb[0].mxu0
    %v497 = vadd.f32 %v333, %v496
    %v498 = vpop.f32.mrb[0].mxu0
    %499 = vmatprep.mubr.f32.mxu0 0.0
    %500 = vmatmul.mubr.f32.gmra.mrb[0].mxu0 %v365
    %v501 = vpop.f32.mrb[0].mxu0
    %v502 = vadd.f32 %v333, %v501
    %v503 = vpop.f32.mrb[0].mxu0
    %504 = vmatprep.mubr.f32.mxu0 0.0
    %505 = vmatmul.mubr.f32.gmra.mrb[0].mxu0 %v368
    %v506 = vpop.f32.mrb[0].mxu0
    %v507 = vadd.f32 %v333, %v506
    %v508 = vpop.f32.mrb[0].mxu0
    %509 = vmatprep.mubr.f32.mxu0 0.0
    %510 = vmatmul.mubr.f32.gmra.mrb[0].mxu0 %v371
    %v511 = vpop.f32.mrb[0].mxu0
    %v512 = vadd.f32 %v333, %v511
    %v513 = vpop.f32.mrb[0].mxu0
    %514 = vmatprep.mubr.f32.mxu0 0.0
    %515 = vmatmul.mubr.f32.gmra.mrb[0].mxu0 %v374
    %v516 = vpop.f32.mrb[0].mxu0
    %v517 = vadd.f32 %v333, %v516
    %v518 = vpop.f32.mrb[0].mxu0
    %519 = vmatprep.mubr.f32.mxu0 0.0
    %520 = vmatmul.mubr.f32.gmra.mrb[0].mxu0 %v377
    %v521 = vpop.f32.mrb[0].mxu0
    %v522 = vadd.f32 %v333, %v521
    %v523 = vpop.f32.mrb[0].mxu0
    %524 = vmatprep.mubr.f32.mxu0 0.0
    %525 = vmatmul.mubr.f32.gmra.mrb[0].mxu0 %v380
    %v526 = vpop.f32.mrb[0].mxu0
    %v527 = vadd.f32 %v333, %v526
    %v528 = vpop.f32.mrb[0].mxu0
    %529 = vdwg.mxu0
    %531 = vset.pattern.permute.xlu0 0
    %532 = vperm.xlu0 %531, %v312
    %v533 = vpop.permute.xlu0 %532
    %536 = vset.pattern.permute.xlu0 0
    %537 = vperm.xlu0 %536, %v313
    %v538 = vpop.permute.xlu0 %537
    %541 = vset.pattern.permute.xlu0 0
    %542 = vperm.xlu0 %541, %v314
    %v543 = vpop.permute.xlu0 %542
    %546 = vset.pattern.permute.xlu0 0
    %547 = vperm.xlu0 %546, %v315
    %v548 = vpop.permute.xlu0 %547
    %551 = vset.pattern.permute.xlu0 0
    %552 = vperm.xlu0 %551, %v316
    %v553 = vpop.permute.xlu0 %552
    %556 = vset.pattern.permute.xlu0 0
    %557 = vperm.xlu0 %556, %v317
    %v558 = vpop.permute.xlu0 %557
    %561 = vset.pattern.permute.xlu0 0
    %562 = vperm.xlu0 %561, %v318
    %v563 = vpop.permute.xlu0 %562
    %566 = vset.pattern.permute.xlu0 0
    %567 = vperm.xlu0 %566, %v319
    %v568 = vpop.permute.xlu0 %567
    %571 = vset.pattern.permute.xlu0 0
    %572 = vperm.xlu0 %571, %v320
    %v573 = vpop.permute.xlu0 %572
    %576 = vset.pattern.permute.xlu0 0
    %577 = vperm.xlu0 %576, %v321
    %v578 = vpop.permute.xlu0 %577
    %581 = vset.pattern.permute.xlu0 0
    %582 = vperm.xlu0 %581, %v322
    %v583 = vpop.permute.xlu0 %582
    %586 = vset.pattern.permute.xlu0 0
    %587 = vperm.xlu0 %586, %v323
    %v588 = vpop.permute.xlu0 %587
    %591 = vset.pattern.permute.xlu0 0
    %592 = vperm.xlu0 %591, %v324
    %v593 = vpop.permute.xlu0 %592
    %596 = vset.pattern.permute.xlu0 0
    %597 = vperm.xlu0 %596, %v325
    %v598 = vpop.permute.xlu0 %597
    %601 = vset.pattern.permute.xlu0 0
    %602 = vperm.xlu0 %601, %v326
    %v603 = vpop.permute.xlu0 %602
    %606 = vset.pattern.permute.xlu0 0
    %607 = vperm.xlu0 %606, %v327
    %v608 = vpop.permute.xlu0 %607
    %v610 = vmul.f32 %v452, %v533
    %v611 = vmul.f32 %v457, %v538
    %v612 = vmul.f32 %v462, %v543
    %v613 = vmul.f32 %v467, %v548
    %v614 = vmul.f32 %v472, %v553
    %v615 = vmul.f32 %v477, %v558
    %v616 = vmul.f32 %v482, %v563
    %v617 = vmul.f32 %v487, %v568
    %v618 = vmul.f32 %v492, %v573
    %v619 = vmul.f32 %v497, %v578
    %v620 = vmul.f32 %v502, %v583
    %v621 = vmul.f32 %v507, %v588
    %v622 = vmul.f32 %v512, %v593
    %v623 = vmul.f32 %v517, %v598
    %v624 = vmul.f32 %v522, %v603
    %v625 = vmul.f32 %v527, %v608
    %v626 = vmul.f32 %v610, %v610
    %v627 = vmul.f32 %v611, %v611
    %v628 = vmul.f32 %v612, %v612
    %v629 = vmul.f32 %v613, %v613
    %v630 = vmul.f32 %v614, %v614
    %v631 = vmul.f32 %v615, %v615
    %v632 = vmul.f32 %v616, %v616
    %v633 = vmul.f32 %v617, %v617
    %v634 = vmul.f32 %v618, %v618
    %v635 = vmul.f32 %v619, %v619
    %v636 = vmul.f32 %v620, %v620
    %v637 = vmul.f32 %v621, %v621
    %v638 = vmul.f32 %v622, %v622
    %v639 = vmul.f32 %v623, %v623
    %v640 = vmul.f32 %v624, %v624
    %v641 = vmul.f32 %v625, %v625
    %vm642 = vcmask 261120
    %v644 = vsel %vm642, %v626, 0
    %v647 = vsel %vm642, %v627, 0
    %v650 = vsel %vm642, %v628, 0
    %v653 = vsel %vm642, %v629, 0
    %v656 = vsel %vm642, %v630, 0
    %v659 = vsel %vm642, %v631, 0
    %v662 = vsel %vm642, %v632, 0
    %v665 = vsel %vm642, %v633, 0
    %v668 = vsel %vm642, %v634, 0
    %v671 = vsel %vm642, %v635, 0
    %v674 = vsel %vm642, %v636, 0
    %v677 = vsel %vm642, %v637, 0
    %v680 = vsel %vm642, %v638, 0
    %v683 = vsel %vm642, %v639, 0
    %v686 = vsel %vm642, %v640, 0
    %v689 = vsel %vm642, %v641, 0
    %691 = vmatprep.subr.mxu0 0.0
    %692 = vmatpush1.msra.mxu0 1.0
    %693 = vmatprep.subr.mxu0 0.0
    %694 = vmatpush1.msra.mxu0 1.0
    %695 = vmatprep.subr.mxu0 0.0
    %696 = vmatpush1.msra.mxu0 1.0
    %697 = vmatprep.subr.mxu0 0.0
    %698 = vmatpush1.msra.mxu0 1.0
    %699 = vmatprep.subr.mxu0 0.0
    %700 = vmatpush1.msra.mxu0 0.0
    %701 = vmatprep.subr.mxu0 0.0
    %702 = vmatpush1.msra.mxu0 0.0
    %703 = vmatprep.subr.mxu0 0.0
    %704 = vmatpush1.msra.mxu0 0.0
    %705 = vmatprep.subr.mxu0 0.0
    %706 = vmatpush1.msra.mxu0 0.0
    %707 = vmatprep.subr.mxu0 0.0
    %708 = vmatpush1.msra.mxu0 0.0
    %709 = vmatprep.subr.mxu0 0.0
    %710 = vmatpush1.msra.mxu0 0.0
    %711 = vmatprep.subr.mxu0 0.0
    %712 = vmatpush1.msra.mxu0 0.0
    %713 = vmatprep.subr.mxu0 0.0
    %714 = vmatpush1.msra.mxu0 0.0
    %715 = vmatprep.subr.mxu0 0.0
    %716 = vmatpush1.msra.mxu0 0.0
    %717 = vmatprep.subr.mxu0 0.0
    %718 = vmatpush1.msra.mxu0 0.0
    %719 = vmatprep.subr.mxu0 0.0
    %720 = vmatpush1.msra.mxu0 0.0
    %721 = vmatprep.subr.mxu0 0.0
    %722 = vmatpush1.msra.mxu0 0.0
    %723 = vmatprep.subr.mxu0 0.0
    %724 = vmatpush1.msra.mxu0 0.0
    %725 = vmatprep.subr.mxu0 0.0
    %726 = vmatpush1.msra.mxu0 0.0
    %727 = vmatprep.subr.mxu0 0.0
    %728 = vmatpush1.msra.mxu0 0.0
    %729 = vmatprep.subr.mxu0 0.0
    %730 = vmatpush1.msra.mxu0 0.0
    %731 = vmatprep.subr.mxu0 0.0
    %732 = vmatpush1.msra.mxu0 0.0
    %733 = vmatprep.subr.mxu0 0.0
    %734 = vmatpush1.msra.mxu0 0.0
    %735 = vmatprep.subr.mxu0 0.0
    %736 = vmatpush1.msra.mxu0 0.0
    %737 = vmatprep.subr.mxu0 0.0
    %738 = vmatpush1.msra.mxu0 0.0
    %739 = vmatprep.subr.mxu0 0.0
    %740 = vmatpush1.msra.mxu0 0.0
    %741 = vmatprep.subr.mxu0 0.0
    %742 = vmatpush1.msra.mxu0 0.0
    %743 = vmatprep.subr.mxu0 0.0
    %744 = vmatpush1.msra.mxu0 0.0
    %745 = vmatprep.subr.mxu0 0.0
    %746 = vmatpush1.msra.mxu0 0.0
    %747 = vmatprep.subr.mxu0 0.0
    %748 = vmatpush1.msra.mxu0 0.0
    %749 = vmatprep.subr.mxu0 0.0
    %750 = vmatpush1.msra.mxu0 0.0
    %751 = vmatprep.subr.mxu0 0.0
    %752 = vmatpush1.msra.mxu0 0.0
    %753 = vmatprep.subr.mxu0 0.0
    %754 = vmatpush1.msra.mxu0 0.0
    %755 = vmatprep.mubr.f32.mxu0 0.0
    %756 = vmatmul.mubr.f32.gmra.mrb[0].mxu0 %v644
    %v757 = vpop.f32.mrb[0].mxu0
    %v758 = vadd.f32 1e-08, %v757
    %v759 = vpop.f32.mrb[0].mxu0
    %760 = vmatprep.mubr.f32.mxu0 0.0
    %761 = vmatmul.mubr.f32.gmra.mrb[0].mxu0 %v647
    %v762 = vpop.f32.mrb[0].mxu0
    %v763 = vadd.f32 1e-08, %v762
    %v764 = vpop.f32.mrb[0].mxu0
    %765 = vmatprep.mubr.f32.mxu0 0.0
    %766 = vmatmul.mubr.f32.gmra.mrb[0].mxu0 %v650
    %v767 = vpop.f32.mrb[0].mxu0
    %v768 = vadd.f32 1e-08, %v767
    %v769 = vpop.f32.mrb[0].mxu0
    %770 = vmatprep.mubr.f32.mxu0 0.0
    %771 = vmatmul.mubr.f32.gmra.mrb[0].mxu0 %v653
    %v772 = vpop.f32.mrb[0].mxu0
    %v773 = vadd.f32 1e-08, %v772
    %v774 = vpop.f32.mrb[0].mxu0
    %775 = vmatprep.mubr.f32.mxu0 0.0
    %776 = vmatmul.mubr.f32.gmra.mrb[0].mxu0 %v656
    %v777 = vpop.f32.mrb[0].mxu0
    %v778 = vadd.f32 1e-08, %v777
    %v779 = vpop.f32.mrb[0].mxu0
    %780 = vmatprep.mubr.f32.mxu0 0.0
    %781 = vmatmul.mubr.f32.gmra.mrb[0].mxu0 %v659
    %v782 = vpop.f32.mrb[0].mxu0
    %v783 = vadd.f32 1e-08, %v782
    %v784 = vpop.f32.mrb[0].mxu0
    %785 = vmatprep.mubr.f32.mxu0 0.0
    %786 = vmatmul.mubr.f32.gmra.mrb[0].mxu0 %v662
    %v787 = vpop.f32.mrb[0].mxu0
    %v788 = vadd.f32 1e-08, %v787
    %v789 = vpop.f32.mrb[0].mxu0
    %790 = vmatprep.mubr.f32.mxu0 0.0
    %791 = vmatmul.mubr.f32.gmra.mrb[0].mxu0 %v665
    %v792 = vpop.f32.mrb[0].mxu0
    %v793 = vadd.f32 1e-08, %v792
    %v794 = vpop.f32.mrb[0].mxu0
    %795 = vmatprep.mubr.f32.mxu0 0.0
    %796 = vmatmul.mubr.f32.gmra.mrb[0].mxu0 %v668
    %v797 = vpop.f32.mrb[0].mxu0
    %v798 = vadd.f32 1e-08, %v797
    %v799 = vpop.f32.mrb[0].mxu0
    %800 = vmatprep.mubr.f32.mxu0 0.0
    %801 = vmatmul.mubr.f32.gmra.mrb[0].mxu0 %v671
    %v802 = vpop.f32.mrb[0].mxu0
    %v803 = vadd.f32 1e-08, %v802
    %v804 = vpop.f32.mrb[0].mxu0
    %805 = vmatprep.mubr.f32.mxu0 0.0
    %806 = vmatmul.mubr.f32.gmra.mrb[0].mxu0 %v674
    %v807 = vpop.f32.mrb[0].mxu0
    %v808 = vadd.f32 1e-08, %v807
    %v809 = vpop.f32.mrb[0].mxu0
    %810 = vmatprep.mubr.f32.mxu0 0.0
    %811 = vmatmul.mubr.f32.gmra.mrb[0].mxu0 %v677
    %v812 = vpop.f32.mrb[0].mxu0
    %v813 = vadd.f32 1e-08, %v812
    %v814 = vpop.f32.mrb[0].mxu0
    %815 = vmatprep.mubr.f32.mxu0 0.0
    %816 = vmatmul.mubr.f32.gmra.mrb[0].mxu0 %v680
    %v817 = vpop.f32.mrb[0].mxu0
    %v818 = vadd.f32 1e-08, %v817
    %v819 = vpop.f32.mrb[0].mxu0
    %820 = vmatprep.mubr.f32.mxu0 0.0
    %821 = vmatmul.mubr.f32.gmra.mrb[0].mxu0 %v683
    %v822 = vpop.f32.mrb[0].mxu0
    %v823 = vadd.f32 1e-08, %v822
    %v824 = vpop.f32.mrb[0].mxu0
    %825 = vmatprep.mubr.f32.mxu0 0.0
    %826 = vmatmul.mubr.f32.gmra.mrb[0].mxu0 %v686
    %v827 = vpop.f32.mrb[0].mxu0
    %v828 = vadd.f32 1e-08, %v827
    %v829 = vpop.f32.mrb[0].mxu0
    %830 = vmatprep.mubr.f32.mxu0 0.0
    %831 = vmatmul.mubr.f32.gmra.mrb[0].mxu0 %v689
    %v832 = vpop.f32.mrb[0].mxu0
    %v833 = vadd.f32 1e-08, %v832
    %v834 = vpop.f32.mrb[0].mxu0
    %835 = vdwg.mxu0
    %v836 = vrsqrt.pop %v758
    %v837 = vrsqrt.pop %v763
    %v838 = vrsqrt.pop %v768
    %v839 = vrsqrt.pop %v773
    %v840 = vrsqrt.pop %v778
    %v841 = vrsqrt.pop %v783
    %v842 = vrsqrt.pop %v788
    %v843 = vrsqrt.pop %v793
    %v844 = vrsqrt.pop %v798
    %v845 = vrsqrt.pop %v803
    %v846 = vrsqrt.pop %v808
    %v847 = vrsqrt.pop %v813
    %v848 = vrsqrt.pop %v818
    %v849 = vrsqrt.pop %v823
    %v850 = vrsqrt.pop %v828
    %v851 = vrsqrt.pop %v833
    %853 = vset.pattern.permute.xlu0 0
    %854 = vperm.xlu0 %853, %v836
    %v855 = vpop.permute.xlu0 %854
    %858 = vset.pattern.permute.xlu0 0
    %859 = vperm.xlu0 %858, %v837
    %v860 = vpop.permute.xlu0 %859
    %863 = vset.pattern.permute.xlu0 0
    %864 = vperm.xlu0 %863, %v838
    %v865 = vpop.permute.xlu0 %864
    %868 = vset.pattern.permute.xlu0 0
    %869 = vperm.xlu0 %868, %v839
    %v870 = vpop.permute.xlu0 %869
    %873 = vset.pattern.permute.xlu0 0
    %874 = vperm.xlu0 %873, %v840
    %v875 = vpop.permute.xlu0 %874
    %878 = vset.pattern.permute.xlu0 0
    %879 = vperm.xlu0 %878, %v841
    %v880 = vpop.permute.xlu0 %879
    %883 = vset.pattern.permute.xlu0 0
    %884 = vperm.xlu0 %883, %v842
    %v885 = vpop.permute.xlu0 %884
    %888 = vset.pattern.permute.xlu0 0
    %889 = vperm.xlu0 %888, %v843
    %v890 = vpop.permute.xlu0 %889
    %893 = vset.pattern.permute.xlu0 0
    %894 = vperm.xlu0 %893, %v844
    %v895 = vpop.permute.xlu0 %894
    %898 = vset.pattern.permute.xlu0 0
    %899 = vperm.xlu0 %898, %v845
    %v900 = vpop.permute.xlu0 %899
    %903 = vset.pattern.permute.xlu0 0
    %904 = vperm.xlu0 %903, %v846
    %v905 = vpop.permute.xlu0 %904
    %908 = vset.pattern.permute.xlu0 0
    %909 = vperm.xlu0 %908, %v847
    %v910 = vpop.permute.xlu0 %909
    %913 = vset.pattern.permute.xlu0 0
    %914 = vperm.xlu0 %913, %v848
    %v915 = vpop.permute.xlu0 %914
    %918 = vset.pattern.permute.xlu0 0
    %919 = vperm.xlu0 %918, %v849
    %v920 = vpop.permute.xlu0 %919
    %923 = vset.pattern.permute.xlu0 0
    %924 = vperm.xlu0 %923, %v850
    %v925 = vpop.permute.xlu0 %924
    %928 = vset.pattern.permute.xlu0 0
    %929 = vperm.xlu0 %928, %v851
    %v930 = vpop.permute.xlu0 %929
    %v932 = vmul.f32 %v610, %v855
    %v933 = vmul.f32 %v611, %v860
    %v934 = vmul.f32 %v612, %v865
    %v935 = vmul.f32 %v613, %v870
    %v936 = vmul.f32 %v614, %v875
    %v937 = vmul.f32 %v615, %v880
    %v938 = vmul.f32 %v616, %v885
    %v939 = vmul.f32 %v617, %v890
    %v940 = vmul.f32 %v618, %v895
    %v941 = vmul.f32 %v619, %v900
    %v942 = vmul.f32 %v620, %v905
    %v943 = vmul.f32 %v621, %v910
    %v944 = vmul.f32 %v622, %v915
    %v945 = vmul.f32 %v623, %v920
    %v946 = vmul.f32 %v624, %v925
    %v947 = vmul.f32 %v625, %v930
    %v948 = vld [vmem:[%s3] sm:$0xff]
    %v949 = vld [vmem:[%s3 + $0x8] sm:$0xff]
    %v950 = vld [vmem:[%s3 + $0x10] sm:$0xff]
    %v951 = vld [vmem:[%s3 + $0x18] sm:$0xff]
    %v953 = vsel %vm642, %v932, 0
    %v956 = vsel %vm642, %v933, 0
    %v959 = vsel %vm642, %v934, 0
    %v962 = vsel %vm642, %v935, 0
    %v965 = vsel %vm642, %v936, 0
    %v968 = vsel %vm642, %v937, 0
    %v971 = vsel %vm642, %v938, 0
    %v974 = vsel %vm642, %v939, 0
    %v977 = vsel %vm642, %v940, 0
    %v980 = vsel %vm642, %v941, 0
    %v983 = vsel %vm642, %v942, 0
    %v986 = vsel %vm642, %v943, 0
    %v989 = vsel %vm642, %v944, 0
    %v992 = vsel %vm642, %v945, 0
    %v995 = vsel %vm642, %v946, 0
    %v998 = vsel %vm642, %v947, 0
    %1000 = vmatprep.subr.mxu0 0.0
    %1001 = vmatpush1.msra.mxu0 %v948
    %1002 = vmatprep.subr.mxu0 0.0
    %1003 = vmatpush1.msra.mxu0 %v949
    %1004 = vmatprep.subr.mxu0 0.0
    %1005 = vmatpush1.msra.mxu0 %v950
    %1006 = vmatprep.subr.mxu0 0.0
    %1007 = vmatpush1.msra.mxu0 %v951
    %1008 = vmatprep.subr.mxu0 0.0
    %1009 = vmatpush1.msra.mxu0 0.0
    %1010 = vmatprep.subr.mxu0 0.0
    %1011 = vmatpush1.msra.mxu0 0.0
    %1012 = vmatprep.subr.mxu0 0.0
    %1013 = vmatpush1.msra.mxu0 0.0
    %1014 = vmatprep.subr.mxu0 0.0
    %1015 = vmatpush1.msra.mxu0 0.0
    %1016 = vmatprep.subr.mxu0 0.0
    %1017 = vmatpush1.msra.mxu0 0.0
    %1018 = vmatprep.subr.mxu0 0.0
    %1019 = vmatpush1.msra.mxu0 0.0
    %1020 = vmatprep.subr.mxu0 0.0
    %1021 = vmatpush1.msra.mxu0 0.0
    %1022 = vmatprep.subr.mxu0 0.0
    %1023 = vmatpush1.msra.mxu0 0.0
    %1024 = vmatprep.subr.mxu0 0.0
    %1025 = vmatpush1.msra.mxu0 0.0
    %1026 = vmatprep.subr.mxu0 0.0
    %1027 = vmatpush1.msra.mxu0 0.0
    %1028 = vmatprep.subr.mxu0 0.0
    %1029 = vmatpush1.msra.mxu0 0.0
    %1030 = vmatprep.subr.mxu0 0.0
    %1031 = vmatpush1.msra.mxu0 0.0
    %1032 = vmatprep.subr.mxu0 0.0
    %1033 = vmatpush1.msra.mxu0 0.0
    %1034 = vmatprep.subr.mxu0 0.0
    %1035 = vmatpush1.msra.mxu0 0.0
    %1036 = vmatprep.subr.mxu0 0.0
    %1037 = vmatpush1.msra.mxu0 0.0
    %1038 = vmatprep.subr.mxu0 0.0
    %1039 = vmatpush1.msra.mxu0 0.0
    %1040 = vmatprep.subr.mxu0 0.0
    %1041 = vmatpush1.msra.mxu0 0.0
    %1042 = vmatprep.subr.mxu0 0.0
    %1043 = vmatpush1.msra.mxu0 0.0
    %1044 = vmatprep.subr.mxu0 0.0
    %1045 = vmatpush1.msra.mxu0 0.0
    %1046 = vmatprep.subr.mxu0 0.0
    %1047 = vmatpush1.msra.mxu0 0.0
    %1048 = vmatprep.subr.mxu0 0.0
    %1049 = vmatpush1.msra.mxu0 0.0
    %1050 = vmatprep.subr.mxu0 0.0
    %1051 = vmatpush1.msra.mxu0 0.0
    %1052 = vmatprep.subr.mxu0 0.0
    %1053 = vmatpush1.msra.mxu0 0.0
    %1054 = vmatprep.subr.mxu0 0.0
    %1055 = vmatpush1.msra.mxu0 0.0
    %1056 = vmatprep.subr.mxu0 0.0
    %1057 = vmatpush1.msra.mxu0 0.0
    %1058 = vmatprep.subr.mxu0 0.0
    %1059 = vmatpush1.msra.mxu0 0.0
    %1060 = vmatprep.subr.mxu0 0.0
    %1061 = vmatpush1.msra.mxu0 0.0
    %1062 = vmatprep.subr.mxu0 0.0
    %1063 = vmatpush1.msra.mxu0 0.0
    %1064 = vmatprep.mubr.f32.mxu0 0.0
    %1065 = vmatmul.mubr.f32.gmra.mrb[0].mxu0 %v953
    %v1066 = vpop.f32.mrb[0].mxu0
    %v1067 = vadd.f32 0.0, %v1066
    %v1068 = vpop.f32.mrb[0].mxu0
    %1069 = vmatprep.mubr.f32.mxu0 0.0
    %1070 = vmatmul.mubr.f32.gmra.mrb[0].mxu0 %v956
    %v1071 = vpop.f32.mrb[0].mxu0
    %v1072 = vadd.f32 0.0, %v1071
    %v1073 = vpop.f32.mrb[0].mxu0
    %1074 = vmatprep.mubr.f32.mxu0 0.0
    %1075 = vmatmul.mubr.f32.gmra.mrb[0].mxu0 %v959
    %v1076 = vpop.f32.mrb[0].mxu0
    %v1077 = vadd.f32 0.0, %v1076
    %v1078 = vpop.f32.mrb[0].mxu0
    %1079 = vmatprep.mubr.f32.mxu0 0.0
    %1080 = vmatmul.mubr.f32.gmra.mrb[0].mxu0 %v962
    %v1081 = vpop.f32.mrb[0].mxu0
    %v1082 = vadd.f32 0.0, %v1081
    %v1083 = vpop.f32.mrb[0].mxu0
    %1084 = vmatprep.mubr.f32.mxu0 0.0
    %1085 = vmatmul.mubr.f32.gmra.mrb[0].mxu0 %v965
    %v1086 = vpop.f32.mrb[0].mxu0
    %v1087 = vadd.f32 0.0, %v1086
    %v1088 = vpop.f32.mrb[0].mxu0
    %1089 = vmatprep.mubr.f32.mxu0 0.0
    %1090 = vmatmul.mubr.f32.gmra.mrb[0].mxu0 %v968
    %v1091 = vpop.f32.mrb[0].mxu0
    %v1092 = vadd.f32 0.0, %v1091
    %v1093 = vpop.f32.mrb[0].mxu0
    %1094 = vmatprep.mubr.f32.mxu0 0.0
    %1095 = vmatmul.mubr.f32.gmra.mrb[0].mxu0 %v971
    %v1096 = vpop.f32.mrb[0].mxu0
    %v1097 = vadd.f32 0.0, %v1096
    %v1098 = vpop.f32.mrb[0].mxu0
    %1099 = vmatprep.mubr.f32.mxu0 0.0
    %1100 = vmatmul.mubr.f32.gmra.mrb[0].mxu0 %v974
    %v1101 = vpop.f32.mrb[0].mxu0
    %v1102 = vadd.f32 0.0, %v1101
    %v1103 = vpop.f32.mrb[0].mxu0
    %1104 = vmatprep.mubr.f32.mxu0 0.0
    %1105 = vmatmul.mubr.f32.gmra.mrb[0].mxu0 %v977
    %v1106 = vpop.f32.mrb[0].mxu0
    %v1107 = vadd.f32 0.0, %v1106
    %v1108 = vpop.f32.mrb[0].mxu0
    %1109 = vmatprep.mubr.f32.mxu0 0.0
    %1110 = vmatmul.mubr.f32.gmra.mrb[0].mxu0 %v980
    %v1111 = vpop.f32.mrb[0].mxu0
    %v1112 = vadd.f32 0.0, %v1111
    %v1113 = vpop.f32.mrb[0].mxu0
    %1114 = vmatprep.mubr.f32.mxu0 0.0
    %1115 = vmatmul.mubr.f32.gmra.mrb[0].mxu0 %v983
    %v1116 = vpop.f32.mrb[0].mxu0
    %v1117 = vadd.f32 0.0, %v1116
    %v1118 = vpop.f32.mrb[0].mxu0
    %1119 = vmatprep.mubr.f32.mxu0 0.0
    %1120 = vmatmul.mubr.f32.gmra.mrb[0].mxu0 %v986
    %v1121 = vpop.f32.mrb[0].mxu0
    %v1122 = vadd.f32 0.0, %v1121
    %v1123 = vpop.f32.mrb[0].mxu0
    %1124 = vmatprep.mubr.f32.mxu0 0.0
    %1125 = vmatmul.mubr.f32.gmra.mrb[0].mxu0 %v989
    %v1126 = vpop.f32.mrb[0].mxu0
    %v1127 = vadd.f32 0.0, %v1126
    %v1128 = vpop.f32.mrb[0].mxu0
    %1129 = vmatprep.mubr.f32.mxu0 0.0
    %1130 = vmatmul.mubr.f32.gmra.mrb[0].mxu0 %v992
    %v1131 = vpop.f32.mrb[0].mxu0
    %v1132 = vadd.f32 0.0, %v1131
    %v1133 = vpop.f32.mrb[0].mxu0
    %1134 = vmatprep.mubr.f32.mxu0 0.0
    %1135 = vmatmul.mubr.f32.gmra.mrb[0].mxu0 %v995
    %v1136 = vpop.f32.mrb[0].mxu0
    %v1137 = vadd.f32 0.0, %v1136
    %v1138 = vpop.f32.mrb[0].mxu0
    %1139 = vmatprep.mubr.f32.mxu0 0.0
    %1140 = vmatmul.mubr.f32.gmra.mrb[0].mxu0 %v998
    %v1141 = vpop.f32.mrb[0].mxu0
    %v1142 = vadd.f32 0.0, %v1141
    %v1143 = vpop.f32.mrb[0].mxu0
    %1144 = vdwg.mxu0
    %v1145 = vmax.f32 %v1067, 0.0
    %v1146 = vmax.f32 %v1072, 0.0
    %v1147 = vmax.f32 %v1077, 0.0
    %v1148 = vmax.f32 %v1082, 0.0
    %v1149 = vmax.f32 %v1087, 0.0
    %v1150 = vmax.f32 %v1092, 0.0
    %v1151 = vmax.f32 %v1097, 0.0
    %v1152 = vmax.f32 %v1102, 0.0
    %v1153 = vmax.f32 %v1107, 0.0
    %v1154 = vmax.f32 %v1112, 0.0
    %v1155 = vmax.f32 %v1117, 0.0
    %v1156 = vmax.f32 %v1122, 0.0
    %v1157 = vmax.f32 %v1127, 0.0
    %v1158 = vmax.f32 %v1132, 0.0
    %v1159 = vmax.f32 %v1137, 0.0
    %v1160 = vmax.f32 %v1142, 0.0
    %v1161 = vld [vmem:[%s4] sm:$0xff]
    %v1162 = vld [vmem:[%s4 + $0x8] sm:$0xff]
    %v1163 = vld [vmem:[%s4 + $0x10] sm:$0xff]
    %v1164 = vld [vmem:[%s4 + $0x18] sm:$0xff]
    %v1165 = vld [vmem:[%s4 + $0x20] sm:$0xff]
    %v1166 = vld [vmem:[%s4 + $0x28] sm:$0xff]
    %v1167 = vld [vmem:[%s4 + $0x30] sm:$0xff]
    %v1168 = vld [vmem:[%s4 + $0x38] sm:$0xff]
    %v1169 = vld [vmem:[%s4 + $0x40] sm:$0xff]
    %v1170 = vld [vmem:[%s4 + $0x48] sm:$0xff]
    %v1171 = vld [vmem:[%s4 + $0x50] sm:$0xff]
    %v1172 = vld [vmem:[%s4 + $0x58] sm:$0xff]
    %v1173 = vld [vmem:[%s4 + $0x60] sm:$0xff]
    %v1174 = vld [vmem:[%s4 + $0x68] sm:$0xff]
    %v1175 = vld [vmem:[%s4 + $0x70] sm:$0xff]
    %v1176 = vld [vmem:[%s4 + $0x78] sm:$0xff]
    %1177 = vmatprep.subr.mxu0 0.0
    %1178 = vmatpush1.msra.mxu0 %v1161
    %1179 = vmatprep.subr.mxu0 0.0
    %1180 = vmatpush1.msra.mxu0 %v1162
    %1181 = vmatprep.subr.mxu0 0.0
    %1182 = vmatpush1.msra.mxu0 %v1163
    %1183 = vmatprep.subr.mxu0 0.0
    %1184 = vmatpush1.msra.mxu0 %v1164
    %1185 = vmatprep.subr.mxu0 0.0
    %1186 = vmatpush1.msra.mxu0 %v1165
    %1187 = vmatprep.subr.mxu0 0.0
    %1188 = vmatpush1.msra.mxu0 %v1166
    %1189 = vmatprep.subr.mxu0 0.0
    %1190 = vmatpush1.msra.mxu0 %v1167
    %1191 = vmatprep.subr.mxu0 0.0
    %1192 = vmatpush1.msra.mxu0 %v1168
    %1193 = vmatprep.subr.mxu0 0.0
    %1194 = vmatpush1.msra.mxu0 %v1169
    %1195 = vmatprep.subr.mxu0 0.0
    %1196 = vmatpush1.msra.mxu0 %v1170
    %1197 = vmatprep.subr.mxu0 0.0
    %1198 = vmatpush1.msra.mxu0 %v1171
    %1199 = vmatprep.subr.mxu0 0.0
    %1200 = vmatpush1.msra.mxu0 %v1172
    %1201 = vmatprep.subr.mxu0 0.0
    %1202 = vmatpush1.msra.mxu0 %v1173
    %1203 = vmatprep.subr.mxu0 0.0
    %1204 = vmatpush1.msra.mxu0 %v1174
    %1205 = vmatprep.subr.mxu0 0.0
    %1206 = vmatpush1.msra.mxu0 %v1175
    %1207 = vmatprep.subr.mxu0 0.0
    %1208 = vmatpush1.msra.mxu0 %v1176
    %1209 = vmatprep.subr.mxu0 0.0
    %1210 = vmatpush1.msra.mxu0 0.0
    %1211 = vmatprep.subr.mxu0 0.0
    %1212 = vmatpush1.msra.mxu0 0.0
    %1213 = vmatprep.subr.mxu0 0.0
    %1214 = vmatpush1.msra.mxu0 0.0
    %1215 = vmatprep.subr.mxu0 0.0
    %1216 = vmatpush1.msra.mxu0 0.0
    %1217 = vmatprep.subr.mxu0 0.0
    %1218 = vmatpush1.msra.mxu0 0.0
    %1219 = vmatprep.subr.mxu0 0.0
    %1220 = vmatpush1.msra.mxu0 0.0
    %1221 = vmatprep.subr.mxu0 0.0
    %1222 = vmatpush1.msra.mxu0 0.0
    %1223 = vmatprep.subr.mxu0 0.0
    %1224 = vmatpush1.msra.mxu0 0.0
    %1225 = vmatprep.subr.mxu0 0.0
    %1226 = vmatpush1.msra.mxu0 0.0
    %1227 = vmatprep.subr.mxu0 0.0
    %1228 = vmatpush1.msra.mxu0 0.0
    %1229 = vmatprep.subr.mxu0 0.0
    %1230 = vmatpush1.msra.mxu0 0.0
    %1231 = vmatprep.subr.mxu0 0.0
    %1232 = vmatpush1.msra.mxu0 0.0
    %1233 = vmatprep.subr.mxu0 0.0
    %1234 = vmatpush1.msra.mxu0 0.0
    %1235 = vmatprep.subr.mxu0 0.0
    %1236 = vmatpush1.msra.mxu0 0.0
    %1237 = vmatprep.subr.mxu0 0.0
    %1238 = vmatpush1.msra.mxu0 0.0
    %1239 = vmatprep.subr.mxu0 0.0
    %1240 = vmatpush1.msra.mxu0 0.0
    %1241 = vmatprep.mubr.f32.mxu0 0.0
    %1242 = vmatmul.mubr.f32.gmra.mrb[0].mxu0 %v1145
    %v1243 = vpop.f32.mrb[0].mxu0
    %v1244 = vadd.f32 0.0, %v1243
    %v1245 = vpop.f32.mrb[0].mxu0
    %1246 = vmatprep.mubr.f32.mxu0 0.0
    %1247 = vmatmul.mubr.f32.gmra.mrb[0].mxu0 %v1146
    %v1248 = vpop.f32.mrb[0].mxu0
    %v1249 = vadd.f32 0.0, %v1248
    %v1250 = vpop.f32.mrb[0].mxu0
    %1251 = vmatprep.mubr.f32.mxu0 0.0
    %1252 = vmatmul.mubr.f32.gmra.mrb[0].mxu0 %v1147
    %v1253 = vpop.f32.mrb[0].mxu0
    %v1254 = vadd.f32 0.0, %v1253
    %v1255 = vpop.f32.mrb[0].mxu0
    %1256 = vmatprep.mubr.f32.mxu0 0.0
    %1257 = vmatmul.mubr.f32.gmra.mrb[0].mxu0 %v1148
    %v1258 = vpop.f32.mrb[0].mxu0
    %v1259 = vadd.f32 0.0, %v1258
    %v1260 = vpop.f32.mrb[0].mxu0
    %1261 = vmatprep.mubr.f32.mxu0 0.0
    %1262 = vmatmul.mubr.f32.gmra.mrb[0].mxu0 %v1149
    %v1263 = vpop.f32.mrb[0].mxu0
    %v1264 = vadd.f32 0.0, %v1263
    %v1265 = vpop.f32.mrb[0].mxu0
    %1266 = vmatprep.mubr.f32.mxu0 0.0
    %1267 = vmatmul.mubr.f32.gmra.mrb[0].mxu0 %v1150
    %v1268 = vpop.f32.mrb[0].mxu0
    %v1269 = vadd.f32 0.0, %v1268
    %v1270 = vpop.f32.mrb[0].mxu0
    %1271 = vmatprep.mubr.f32.mxu0 0.0
    %1272 = vmatmul.mubr.f32.gmra.mrb[0].mxu0 %v1151
    %v1273 = vpop.f32.mrb[0].mxu0
    %v1274 = vadd.f32 0.0, %v1273
    %v1275 = vpop.f32.mrb[0].mxu0
    %1276 = vmatprep.mubr.f32.mxu0 0.0
    %1277 = vmatmul.mubr.f32.gmra.mrb[0].mxu0 %v1152
    %v1278 = vpop.f32.mrb[0].mxu0
    %v1279 = vadd.f32 0.0, %v1278
    %v1280 = vpop.f32.mrb[0].mxu0
    %1281 = vmatprep.mubr.f32.mxu0 0.0
    %1282 = vmatmul.mubr.f32.gmra.mrb[0].mxu0 %v1153
    %v1283 = vpop.f32.mrb[0].mxu0
    %v1284 = vadd.f32 0.0, %v1283
    %v1285 = vpop.f32.mrb[0].mxu0
    %1286 = vmatprep.mubr.f32.mxu0 0.0
    %1287 = vmatmul.mubr.f32.gmra.mrb[0].mxu0 %v1154
    %v1288 = vpop.f32.mrb[0].mxu0
    %v1289 = vadd.f32 0.0, %v1288
    %v1290 = vpop.f32.mrb[0].mxu0
    %1291 = vmatprep.mubr.f32.mxu0 0.0
    %1292 = vmatmul.mubr.f32.gmra.mrb[0].mxu0 %v1155
    %v1293 = vpop.f32.mrb[0].mxu0
    %v1294 = vadd.f32 0.0, %v1293
    %v1295 = vpop.f32.mrb[0].mxu0
    %1296 = vmatprep.mubr.f32.mxu0 0.0
    %1297 = vmatmul.mubr.f32.gmra.mrb[0].mxu0 %v1156
    %v1298 = vpop.f32.mrb[0].mxu0
    %v1299 = vadd.f32 0.0, %v1298
    %v1300 = vpop.f32.mrb[0].mxu0
    %1301 = vmatprep.mubr.f32.mxu0 0.0
    %1302 = vmatmul.mubr.f32.gmra.mrb[0].mxu0 %v1157
    %v1303 = vpop.f32.mrb[0].mxu0
    %v1304 = vadd.f32 0.0, %v1303
    %v1305 = vpop.f32.mrb[0].mxu0
    %1306 = vmatprep.mubr.f32.mxu0 0.0
    %1307 = vmatmul.mubr.f32.gmra.mrb[0].mxu0 %v1158
    %v1308 = vpop.f32.mrb[0].mxu0
    %v1309 = vadd.f32 0.0, %v1308
    %v1310 = vpop.f32.mrb[0].mxu0
    %1311 = vmatprep.mubr.f32.mxu0 0.0
    %1312 = vmatmul.mubr.f32.gmra.mrb[0].mxu0 %v1159
    %v1313 = vpop.f32.mrb[0].mxu0
    %v1314 = vadd.f32 0.0, %v1313
    %v1315 = vpop.f32.mrb[0].mxu0
    %1316 = vmatprep.mubr.f32.mxu0 0.0
    %1317 = vmatmul.mubr.f32.gmra.mrb[0].mxu0 %v1160
    %v1318 = vpop.f32.mrb[0].mxu0
    %v1319 = vadd.f32 0.0, %v1318
    %v1320 = vpop.f32.mrb[0].mxu0
    %1321 = vdwg.mxu0
    %v1322 = vmul.f32 %v1244, %v1244
    %v1323 = vmul.f32 %v1249, %v1249
    %v1324 = vmul.f32 %v1254, %v1254
    %v1325 = vmul.f32 %v1259, %v1259
    %v1326 = vmul.f32 %v1264, %v1264
    %v1327 = vmul.f32 %v1269, %v1269
    %v1328 = vmul.f32 %v1274, %v1274
    %v1329 = vmul.f32 %v1279, %v1279
    %v1330 = vmul.f32 %v1284, %v1284
    %v1331 = vmul.f32 %v1289, %v1289
    %v1332 = vmul.f32 %v1294, %v1294
    %v1333 = vmul.f32 %v1299, %v1299
    %v1334 = vmul.f32 %v1304, %v1304
    %v1335 = vmul.f32 %v1309, %v1309
    %v1336 = vmul.f32 %v1314, %v1314
    %v1337 = vmul.f32 %v1319, %v1319
    %v1339 = vsel %vm642, %v1322, 0
    %v1342 = vsel %vm642, %v1323, 0
    %v1345 = vsel %vm642, %v1324, 0
    %v1348 = vsel %vm642, %v1325, 0
    %v1351 = vsel %vm642, %v1326, 0
    %v1354 = vsel %vm642, %v1327, 0
    %v1357 = vsel %vm642, %v1328, 0
    %v1360 = vsel %vm642, %v1329, 0
    %v1363 = vsel %vm642, %v1330, 0
    %v1366 = vsel %vm642, %v1331, 0
    %v1369 = vsel %vm642, %v1332, 0
    %v1372 = vsel %vm642, %v1333, 0
    %v1375 = vsel %vm642, %v1334, 0
    %v1378 = vsel %vm642, %v1335, 0
    %v1381 = vsel %vm642, %v1336, 0
    %v1384 = vsel %vm642, %v1337, 0
    %1386 = vmatprep.subr.mxu0 0.0
    %1387 = vmatpush1.msra.mxu0 1.0
    %1388 = vmatprep.subr.mxu0 0.0
    %1389 = vmatpush1.msra.mxu0 1.0
    %1390 = vmatprep.subr.mxu0 0.0
    %1391 = vmatpush1.msra.mxu0 1.0
    %1392 = vmatprep.subr.mxu0 0.0
    %1393 = vmatpush1.msra.mxu0 1.0
    %1394 = vmatprep.subr.mxu0 0.0
    %1395 = vmatpush1.msra.mxu0 0.0
    %1396 = vmatprep.subr.mxu0 0.0
    %1397 = vmatpush1.msra.mxu0 0.0
    %1398 = vmatprep.subr.mxu0 0.0
    %1399 = vmatpush1.msra.mxu0 0.0
    %1400 = vmatprep.subr.mxu0 0.0
    %1401 = vmatpush1.msra.mxu0 0.0
    %1402 = vmatprep.subr.mxu0 0.0
    %1403 = vmatpush1.msra.mxu0 0.0
    %1404 = vmatprep.subr.mxu0 0.0
    %1405 = vmatpush1.msra.mxu0 0.0
    %1406 = vmatprep.subr.mxu0 0.0
    %1407 = vmatpush1.msra.mxu0 0.0
    %1408 = vmatprep.subr.mxu0 0.0
    %1409 = vmatpush1.msra.mxu0 0.0
    %1410 = vmatprep.subr.mxu0 0.0
    %1411 = vmatpush1.msra.mxu0 0.0
    %1412 = vmatprep.subr.mxu0 0.0
    %1413 = vmatpush1.msra.mxu0 0.0
    %1414 = vmatprep.subr.mxu0 0.0
    %1415 = vmatpush1.msra.mxu0 0.0
    %1416 = vmatprep.subr.mxu0 0.0
    %1417 = vmatpush1.msra.mxu0 0.0
    %1418 = vmatprep.subr.mxu0 0.0
    %1419 = vmatpush1.msra.mxu0 0.0
    %1420 = vmatprep.subr.mxu0 0.0
    %1421 = vmatpush1.msra.mxu0 0.0
    %1422 = vmatprep.subr.mxu0 0.0
    %1423 = vmatpush1.msra.mxu0 0.0
    %1424 = vmatprep.subr.mxu0 0.0
    %1425 = vmatpush1.msra.mxu0 0.0
    %1426 = vmatprep.subr.mxu0 0.0
    %1427 = vmatpush1.msra.mxu0 0.0
    %1428 = vmatprep.subr.mxu0 0.0
    %1429 = vmatpush1.msra.mxu0 0.0
    %1430 = vmatprep.subr.mxu0 0.0
    %1431 = vmatpush1.msra.mxu0 0.0
    %1432 = vmatprep.subr.mxu0 0.0
    %1433 = vmatpush1.msra.mxu0 0.0
    %1434 = vmatprep.subr.mxu0 0.0
    %1435 = vmatpush1.msra.mxu0 0.0
    %1436 = vmatprep.subr.mxu0 0.0
    %1437 = vmatpush1.msra.mxu0 0.0
    %1438 = vmatprep.subr.mxu0 0.0
    %1439 = vmatpush1.msra.mxu0 0.0
    %1440 = vmatprep.subr.mxu0 0.0
    %1441 = vmatpush1.msra.mxu0 0.0
    %1442 = vmatprep.subr.mxu0 0.0
    %1443 = vmatpush1.msra.mxu0 0.0
    %1444 = vmatprep.subr.mxu0 0.0
    %1445 = vmatpush1.msra.mxu0 0.0
    %1446 = vmatprep.subr.mxu0 0.0
    %1447 = vmatpush1.msra.mxu0 0.0
    %1448 = vmatprep.subr.mxu0 0.0
    %1449 = vmatpush1.msra.mxu0 0.0
    %1450 = vmatprep.mubr.f32.mxu0 0.0
    %1451 = vmatmul.mubr.f32.gmra.mrb[0].mxu0 %v1339
    %v1452 = vpop.f32.mrb[0].mxu0
    %v1453 = vadd.f32 1e-08, %v1452
    %v1454 = vpop.f32.mrb[0].mxu0
    %1455 = vmatprep.mubr.f32.mxu0 0.0
    %1456 = vmatmul.mubr.f32.gmra.mrb[0].mxu0 %v1342
    %v1457 = vpop.f32.mrb[0].mxu0
    %v1458 = vadd.f32 1e-08, %v1457
    %v1459 = vpop.f32.mrb[0].mxu0
    %1460 = vmatprep.mubr.f32.mxu0 0.0
    %1461 = vmatmul.mubr.f32.gmra.mrb[0].mxu0 %v1345
    %v1462 = vpop.f32.mrb[0].mxu0
    %v1463 = vadd.f32 1e-08, %v1462
    %v1464 = vpop.f32.mrb[0].mxu0
    %1465 = vmatprep.mubr.f32.mxu0 0.0
    %1466 = vmatmul.mubr.f32.gmra.mrb[0].mxu0 %v1348
    %v1467 = vpop.f32.mrb[0].mxu0
    %v1468 = vadd.f32 1e-08, %v1467
    %v1469 = vpop.f32.mrb[0].mxu0
    %1470 = vmatprep.mubr.f32.mxu0 0.0
    %1471 = vmatmul.mubr.f32.gmra.mrb[0].mxu0 %v1351
    %v1472 = vpop.f32.mrb[0].mxu0
    %v1473 = vadd.f32 1e-08, %v1472
    %v1474 = vpop.f32.mrb[0].mxu0
    %1475 = vmatprep.mubr.f32.mxu0 0.0
    %1476 = vmatmul.mubr.f32.gmra.mrb[0].mxu0 %v1354
    %v1477 = vpop.f32.mrb[0].mxu0
    %v1478 = vadd.f32 1e-08, %v1477
    %v1479 = vpop.f32.mrb[0].mxu0
    %1480 = vmatprep.mubr.f32.mxu0 0.0
    %1481 = vmatmul.mubr.f32.gmra.mrb[0].mxu0 %v1357
    %v1482 = vpop.f32.mrb[0].mxu0
    %v1483 = vadd.f32 1e-08, %v1482
    %v1484 = vpop.f32.mrb[0].mxu0
    %1485 = vmatprep.mubr.f32.mxu0 0.0
    %1486 = vmatmul.mubr.f32.gmra.mrb[0].mxu0 %v1360
    %v1487 = vpop.f32.mrb[0].mxu0
    %v1488 = vadd.f32 1e-08, %v1487
    %v1489 = vpop.f32.mrb[0].mxu0
    %1490 = vmatprep.mubr.f32.mxu0 0.0
    %1491 = vmatmul.mubr.f32.gmra.mrb[0].mxu0 %v1363
    %v1492 = vpop.f32.mrb[0].mxu0
    %v1493 = vadd.f32 1e-08, %v1492
    %v1494 = vpop.f32.mrb[0].mxu0
    %1495 = vmatprep.mubr.f32.mxu0 0.0
    %1496 = vmatmul.mubr.f32.gmra.mrb[0].mxu0 %v1366
    %v1497 = vpop.f32.mrb[0].mxu0
    %v1498 = vadd.f32 1e-08, %v1497
    %v1499 = vpop.f32.mrb[0].mxu0
    %1500 = vmatprep.mubr.f32.mxu0 0.0
    %1501 = vmatmul.mubr.f32.gmra.mrb[0].mxu0 %v1369
    %v1502 = vpop.f32.mrb[0].mxu0
    %v1503 = vadd.f32 1e-08, %v1502
    %v1504 = vpop.f32.mrb[0].mxu0
    %1505 = vmatprep.mubr.f32.mxu0 0.0
    %1506 = vmatmul.mubr.f32.gmra.mrb[0].mxu0 %v1372
    %v1507 = vpop.f32.mrb[0].mxu0
    %v1508 = vadd.f32 1e-08, %v1507
    %v1509 = vpop.f32.mrb[0].mxu0
    %1510 = vmatprep.mubr.f32.mxu0 0.0
    %1511 = vmatmul.mubr.f32.gmra.mrb[0].mxu0 %v1375
    %v1512 = vpop.f32.mrb[0].mxu0
    %v1513 = vadd.f32 1e-08, %v1512
    %v1514 = vpop.f32.mrb[0].mxu0
    %1515 = vmatprep.mubr.f32.mxu0 0.0
    %1516 = vmatmul.mubr.f32.gmra.mrb[0].mxu0 %v1378
    %v1517 = vpop.f32.mrb[0].mxu0
    %v1518 = vadd.f32 1e-08, %v1517
    %v1519 = vpop.f32.mrb[0].mxu0
    %1520 = vmatprep.mubr.f32.mxu0 0.0
    %1521 = vmatmul.mubr.f32.gmra.mrb[0].mxu0 %v1381
    %v1522 = vpop.f32.mrb[0].mxu0
    %v1523 = vadd.f32 1e-08, %v1522
    %v1524 = vpop.f32.mrb[0].mxu0
    %1525 = vmatprep.mubr.f32.mxu0 0.0
    %1526 = vmatmul.mubr.f32.gmra.mrb[0].mxu0 %v1384
    %v1527 = vpop.f32.mrb[0].mxu0
    %v1528 = vadd.f32 1e-08, %v1527
    %v1529 = vpop.f32.mrb[0].mxu0
    %1530 = vdwg.mxu0
    %v1531 = vrsqrt.pop %v1453
    %v1532 = vrsqrt.pop %v1458
    %v1533 = vrsqrt.pop %v1463
    %v1534 = vrsqrt.pop %v1468
    %v1535 = vrsqrt.pop %v1473
    %v1536 = vrsqrt.pop %v1478
    %v1537 = vrsqrt.pop %v1483
    %v1538 = vrsqrt.pop %v1488
    %v1539 = vrsqrt.pop %v1493
    %v1540 = vrsqrt.pop %v1498
    %v1541 = vrsqrt.pop %v1503
    %v1542 = vrsqrt.pop %v1508
    %v1543 = vrsqrt.pop %v1513
    %v1544 = vrsqrt.pop %v1518
    %v1545 = vrsqrt.pop %v1523
    %v1546 = vrsqrt.pop %v1528
    %1548 = vset.pattern.permute.xlu0 0
    %1549 = vperm.xlu0 %1548, %v1531
    %v1550 = vpop.permute.xlu0 %1549
    %1553 = vset.pattern.permute.xlu0 0
    %1554 = vperm.xlu0 %1553, %v1532
    %v1555 = vpop.permute.xlu0 %1554
    %1558 = vset.pattern.permute.xlu0 0
    %1559 = vperm.xlu0 %1558, %v1533
    %v1560 = vpop.permute.xlu0 %1559
    %1563 = vset.pattern.permute.xlu0 0
    %1564 = vperm.xlu0 %1563, %v1534
    %v1565 = vpop.permute.xlu0 %1564
    %1568 = vset.pattern.permute.xlu0 0
    %1569 = vperm.xlu0 %1568, %v1535
    %v1570 = vpop.permute.xlu0 %1569
    %1573 = vset.pattern.permute.xlu0 0
    %1574 = vperm.xlu0 %1573, %v1536
    %v1575 = vpop.permute.xlu0 %1574
    %1578 = vset.pattern.permute.xlu0 0
    %1579 = vperm.xlu0 %1578, %v1537
    %v1580 = vpop.permute.xlu0 %1579
    %1583 = vset.pattern.permute.xlu0 0
    %1584 = vperm.xlu0 %1583, %v1538
    %v1585 = vpop.permute.xlu0 %1584
    %1588 = vset.pattern.permute.xlu0 0
    %1589 = vperm.xlu0 %1588, %v1539
    %v1590 = vpop.permute.xlu0 %1589
    %1593 = vset.pattern.permute.xlu0 0
    %1594 = vperm.xlu0 %1593, %v1540
    %v1595 = vpop.permute.xlu0 %1594
    %1598 = vset.pattern.permute.xlu0 0
    %1599 = vperm.xlu0 %1598, %v1541
    %v1600 = vpop.permute.xlu0 %1599
    %1603 = vset.pattern.permute.xlu0 0
    %1604 = vperm.xlu0 %1603, %v1542
    %v1605 = vpop.permute.xlu0 %1604
    %1608 = vset.pattern.permute.xlu0 0
    %1609 = vperm.xlu0 %1608, %v1543
    %v1610 = vpop.permute.xlu0 %1609
    %1613 = vset.pattern.permute.xlu0 0
    %1614 = vperm.xlu0 %1613, %v1544
    %v1615 = vpop.permute.xlu0 %1614
    %1618 = vset.pattern.permute.xlu0 0
    %1619 = vperm.xlu0 %1618, %v1545
    %v1620 = vpop.permute.xlu0 %1619
    %1623 = vset.pattern.permute.xlu0 0
    %1624 = vperm.xlu0 %1623, %v1546
    %v1625 = vpop.permute.xlu0 %1624
    %v1627 = vmul.f32 %v1244, %v1550
    %v1628 = vmul.f32 %v1249, %v1555
    %v1629 = vmul.f32 %v1254, %v1560
    %v1630 = vmul.f32 %v1259, %v1565
    %v1631 = vmul.f32 %v1264, %v1570
    %v1632 = vmul.f32 %v1269, %v1575
    %v1633 = vmul.f32 %v1274, %v1580
    %v1634 = vmul.f32 %v1279, %v1585
    %v1635 = vmul.f32 %v1284, %v1590
    %v1636 = vmul.f32 %v1289, %v1595
    %v1637 = vmul.f32 %v1294, %v1600
    %v1638 = vmul.f32 %v1299, %v1605
    %v1639 = vmul.f32 %v1304, %v1610
    %v1640 = vmul.f32 %v1309, %v1615
    %v1641 = vmul.f32 %v1314, %v1620
    %v1642 = vmul.f32 %v1319, %v1625
    %v1643 = vsub.f32 %v1627, %v932
    %v1644 = vsub.f32 %v1628, %v933
    %v1645 = vsub.f32 %v1629, %v934
    %v1646 = vsub.f32 %v1630, %v935
    %v1647 = vsub.f32 %v1631, %v936
    %v1648 = vsub.f32 %v1632, %v937
    %v1649 = vsub.f32 %v1633, %v938
    %v1650 = vsub.f32 %v1634, %v939
    %v1651 = vsub.f32 %v1635, %v940
    %v1652 = vsub.f32 %v1636, %v941
    %v1653 = vsub.f32 %v1637, %v942
    %v1654 = vsub.f32 %v1638, %v943
    %v1655 = vsub.f32 %v1639, %v944
    %v1656 = vsub.f32 %v1640, %v945
    %v1657 = vsub.f32 %v1641, %v946
    %v1658 = vsub.f32 %v1642, %v947
    %v1659 = vlaneseq
    %v1660 = vshrl.u32 %v1659, 7
    %v1661 = vsub.s32 0, %v1660
    %v1662 = vrot.slane %v24, %v1661
    %v1663 = vmul.f32 %v1662, %v1643
    %v1664 = vmul.f32 %v1662, %v1644
    %v1665 = vmul.f32 %v1662, %v1645
    %v1666 = vmul.f32 %v1662, %v1646
    %v1667 = vmul.f32 %v1662, %v1647
    %v1668 = vmul.f32 %v1662, %v1648
    %v1669 = vmul.f32 %v1662, %v1649
    %v1670 = vmul.f32 %v1662, %v1650
    %v1671 = vmul.f32 %v1662, %v1651
    %v1672 = vmul.f32 %v1662, %v1652
    %v1673 = vmul.f32 %v1662, %v1653
    %v1674 = vmul.f32 %v1662, %v1654
    %v1675 = vmul.f32 %v1662, %v1655
    %v1676 = vmul.f32 %v1662, %v1656
    %v1677 = vmul.f32 %v1662, %v1657
    %v1678 = vmul.f32 %v1662, %v1658
    %v1679 = vadd.f32 %v932, %v1663
    %v1680 = vadd.f32 %v933, %v1664
    %v1681 = vadd.f32 %v934, %v1665
    %v1682 = vadd.f32 %v935, %v1666
    %v1683 = vadd.f32 %v936, %v1667
    %v1684 = vadd.f32 %v937, %v1668
    %v1685 = vadd.f32 %v938, %v1669
    %v1686 = vadd.f32 %v939, %v1670
    %v1687 = vadd.f32 %v940, %v1671
    %v1688 = vadd.f32 %v941, %v1672
    %v1689 = vadd.f32 %v942, %v1673
    %v1690 = vadd.f32 %v943, %v1674
    %v1691 = vadd.f32 %v944, %v1675
    %v1692 = vadd.f32 %v945, %v1676
    %v1693 = vadd.f32 %v946, %v1677
    %v1694 = vadd.f32 %v947, %v1678
    %v1695 = vmul.f32 %v1679, %v1679
    %v1696 = vmul.f32 %v1680, %v1680
    %v1697 = vmul.f32 %v1681, %v1681
    %v1698 = vmul.f32 %v1682, %v1682
    %v1699 = vmul.f32 %v1683, %v1683
    %v1700 = vmul.f32 %v1684, %v1684
    %v1701 = vmul.f32 %v1685, %v1685
    %v1702 = vmul.f32 %v1686, %v1686
    %v1703 = vmul.f32 %v1687, %v1687
    %v1704 = vmul.f32 %v1688, %v1688
    %v1705 = vmul.f32 %v1689, %v1689
    %v1706 = vmul.f32 %v1690, %v1690
    %v1707 = vmul.f32 %v1691, %v1691
    %v1708 = vmul.f32 %v1692, %v1692
    %v1709 = vmul.f32 %v1693, %v1693
    %v1710 = vmul.f32 %v1694, %v1694
    %v1712 = vsel %vm642, %v1695, 0
    %v1715 = vsel %vm642, %v1696, 0
    %v1718 = vsel %vm642, %v1697, 0
    %v1721 = vsel %vm642, %v1698, 0
    %v1724 = vsel %vm642, %v1699, 0
    %v1727 = vsel %vm642, %v1700, 0
    %v1730 = vsel %vm642, %v1701, 0
    %v1733 = vsel %vm642, %v1702, 0
    %v1736 = vsel %vm642, %v1703, 0
    %v1739 = vsel %vm642, %v1704, 0
    %v1742 = vsel %vm642, %v1705, 0
    %v1745 = vsel %vm642, %v1706, 0
    %v1748 = vsel %vm642, %v1707, 0
    %v1751 = vsel %vm642, %v1708, 0
    %v1754 = vsel %vm642, %v1709, 0
    %v1757 = vsel %vm642, %v1710, 0
    %1759 = vmatprep.subr.mxu0 0.0
    %1760 = vmatpush1.msra.mxu0 1.0
    %1761 = vmatprep.subr.mxu0 0.0
    %1762 = vmatpush1.msra.mxu0 1.0
    %1763 = vmatprep.subr.mxu0 0.0
    %1764 = vmatpush1.msra.mxu0 1.0
    %1765 = vmatprep.subr.mxu0 0.0
    %1766 = vmatpush1.msra.mxu0 1.0
    %1767 = vmatprep.subr.mxu0 0.0
    %1768 = vmatpush1.msra.mxu0 0.0
    %1769 = vmatprep.subr.mxu0 0.0
    %1770 = vmatpush1.msra.mxu0 0.0
    %1771 = vmatprep.subr.mxu0 0.0
    %1772 = vmatpush1.msra.mxu0 0.0
    %1773 = vmatprep.subr.mxu0 0.0
    %1774 = vmatpush1.msra.mxu0 0.0
    %1775 = vmatprep.subr.mxu0 0.0
    %1776 = vmatpush1.msra.mxu0 0.0
    %1777 = vmatprep.subr.mxu0 0.0
    %1778 = vmatpush1.msra.mxu0 0.0
    %1779 = vmatprep.subr.mxu0 0.0
    %1780 = vmatpush1.msra.mxu0 0.0
    %1781 = vmatprep.subr.mxu0 0.0
    %1782 = vmatpush1.msra.mxu0 0.0
    %1783 = vmatprep.subr.mxu0 0.0
    %1784 = vmatpush1.msra.mxu0 0.0
    %1785 = vmatprep.subr.mxu0 0.0
    %1786 = vmatpush1.msra.mxu0 0.0
    %1787 = vmatprep.subr.mxu0 0.0
    %1788 = vmatpush1.msra.mxu0 0.0
    %1789 = vmatprep.subr.mxu0 0.0
    %1790 = vmatpush1.msra.mxu0 0.0
    %1791 = vmatprep.subr.mxu0 0.0
    %1792 = vmatpush1.msra.mxu0 0.0
    %1793 = vmatprep.subr.mxu0 0.0
    %1794 = vmatpush1.msra.mxu0 0.0
    %1795 = vmatprep.subr.mxu0 0.0
    %1796 = vmatpush1.msra.mxu0 0.0
    %1797 = vmatprep.subr.mxu0 0.0
    %1798 = vmatpush1.msra.mxu0 0.0
    %1799 = vmatprep.subr.mxu0 0.0
    %1800 = vmatpush1.msra.mxu0 0.0
    %1801 = vmatprep.subr.mxu0 0.0
    %1802 = vmatpush1.msra.mxu0 0.0
    %1803 = vmatprep.subr.mxu0 0.0
    %1804 = vmatpush1.msra.mxu0 0.0
    %1805 = vmatprep.subr.mxu0 0.0
    %1806 = vmatpush1.msra.mxu0 0.0
    %1807 = vmatprep.subr.mxu0 0.0
    %1808 = vmatpush1.msra.mxu0 0.0
    %1809 = vmatprep.subr.mxu0 0.0
    %1810 = vmatpush1.msra.mxu0 0.0
    %1811 = vmatprep.subr.mxu0 0.0
    %1812 = vmatpush1.msra.mxu0 0.0
    %1813 = vmatprep.subr.mxu0 0.0
    %1814 = vmatpush1.msra.mxu0 0.0
    %1815 = vmatprep.subr.mxu0 0.0
    %1816 = vmatpush1.msra.mxu0 0.0
    %1817 = vmatprep.subr.mxu0 0.0
    %1818 = vmatpush1.msra.mxu0 0.0
    %1819 = vmatprep.subr.mxu0 0.0
    %1820 = vmatpush1.msra.mxu0 0.0
    %1821 = vmatprep.subr.mxu0 0.0
    %1822 = vmatpush1.msra.mxu0 0.0
    %1823 = vmatprep.mubr.f32.mxu0 0.0
    %1824 = vmatmul.mubr.f32.gmra.mrb[0].mxu0 %v1712
    %v1825 = vpop.f32.mrb[0].mxu0
    %v1826 = vadd.f32 1e-08, %v1825
    %v1827 = vpop.f32.mrb[0].mxu0
    %1828 = vmatprep.mubr.f32.mxu0 0.0
    %1829 = vmatmul.mubr.f32.gmra.mrb[0].mxu0 %v1715
    %v1830 = vpop.f32.mrb[0].mxu0
    %v1831 = vadd.f32 1e-08, %v1830
    %v1832 = vpop.f32.mrb[0].mxu0
    %1833 = vmatprep.mubr.f32.mxu0 0.0
    %1834 = vmatmul.mubr.f32.gmra.mrb[0].mxu0 %v1718
    %v1835 = vpop.f32.mrb[0].mxu0
    %v1836 = vadd.f32 1e-08, %v1835
    %v1837 = vpop.f32.mrb[0].mxu0
    %1838 = vmatprep.mubr.f32.mxu0 0.0
    %1839 = vmatmul.mubr.f32.gmra.mrb[0].mxu0 %v1721
    %v1840 = vpop.f32.mrb[0].mxu0
    %v1841 = vadd.f32 1e-08, %v1840
    %v1842 = vpop.f32.mrb[0].mxu0
    %1843 = vmatprep.mubr.f32.mxu0 0.0
    %1844 = vmatmul.mubr.f32.gmra.mrb[0].mxu0 %v1724
    %v1845 = vpop.f32.mrb[0].mxu0
    %v1846 = vadd.f32 1e-08, %v1845
    %v1847 = vpop.f32.mrb[0].mxu0
    %1848 = vmatprep.mubr.f32.mxu0 0.0
    %1849 = vmatmul.mubr.f32.gmra.mrb[0].mxu0 %v1727
    %v1850 = vpop.f32.mrb[0].mxu0
    %v1851 = vadd.f32 1e-08, %v1850
    %v1852 = vpop.f32.mrb[0].mxu0
    %1853 = vmatprep.mubr.f32.mxu0 0.0
    %1854 = vmatmul.mubr.f32.gmra.mrb[0].mxu0 %v1730
    %v1855 = vpop.f32.mrb[0].mxu0
    %v1856 = vadd.f32 1e-08, %v1855
    %v1857 = vpop.f32.mrb[0].mxu0
    %1858 = vmatprep.mubr.f32.mxu0 0.0
    %1859 = vmatmul.mubr.f32.gmra.mrb[0].mxu0 %v1733
    %v1860 = vpop.f32.mrb[0].mxu0
    %v1861 = vadd.f32 1e-08, %v1860
    %v1862 = vpop.f32.mrb[0].mxu0
    %1863 = vmatprep.mubr.f32.mxu0 0.0
    %1864 = vmatmul.mubr.f32.gmra.mrb[0].mxu0 %v1736
    %v1865 = vpop.f32.mrb[0].mxu0
    %v1866 = vadd.f32 1e-08, %v1865
    %v1867 = vpop.f32.mrb[0].mxu0
    %1868 = vmatprep.mubr.f32.mxu0 0.0
    %1869 = vmatmul.mubr.f32.gmra.mrb[0].mxu0 %v1739
    %v1870 = vpop.f32.mrb[0].mxu0
    %v1871 = vadd.f32 1e-08, %v1870
    %v1872 = vpop.f32.mrb[0].mxu0
    %1873 = vmatprep.mubr.f32.mxu0 0.0
    %1874 = vmatmul.mubr.f32.gmra.mrb[0].mxu0 %v1742
    %v1875 = vpop.f32.mrb[0].mxu0
    %v1876 = vadd.f32 1e-08, %v1875
    %v1877 = vpop.f32.mrb[0].mxu0
    %1878 = vmatprep.mubr.f32.mxu0 0.0
    %1879 = vmatmul.mubr.f32.gmra.mrb[0].mxu0 %v1745
    %v1880 = vpop.f32.mrb[0].mxu0
    %v1881 = vadd.f32 1e-08, %v1880
    %v1882 = vpop.f32.mrb[0].mxu0
    %1883 = vmatprep.mubr.f32.mxu0 0.0
    %1884 = vmatmul.mubr.f32.gmra.mrb[0].mxu0 %v1748
    %v1885 = vpop.f32.mrb[0].mxu0
    %v1886 = vadd.f32 1e-08, %v1885
    %v1887 = vpop.f32.mrb[0].mxu0
    %1888 = vmatprep.mubr.f32.mxu0 0.0
    %1889 = vmatmul.mubr.f32.gmra.mrb[0].mxu0 %v1751
    %v1890 = vpop.f32.mrb[0].mxu0
    %v1891 = vadd.f32 1e-08, %v1890
    %v1892 = vpop.f32.mrb[0].mxu0
    %1893 = vmatprep.mubr.f32.mxu0 0.0
    %1894 = vmatmul.mubr.f32.gmra.mrb[0].mxu0 %v1754
    %v1895 = vpop.f32.mrb[0].mxu0
    %v1896 = vadd.f32 1e-08, %v1895
    %v1897 = vpop.f32.mrb[0].mxu0
    %1898 = vmatprep.mubr.f32.mxu0 0.0
    %1899 = vmatmul.mubr.f32.gmra.mrb[0].mxu0 %v1757
    %v1900 = vpop.f32.mrb[0].mxu0
    %v1901 = vadd.f32 1e-08, %v1900
    %v1902 = vpop.f32.mrb[0].mxu0
    %1903 = vdwg.mxu0
    %v1904 = vrsqrt.pop %v1826
    %v1905 = vrsqrt.pop %v1831
    %v1906 = vrsqrt.pop %v1836
    %v1907 = vrsqrt.pop %v1841
    %v1908 = vrsqrt.pop %v1846
    %v1909 = vrsqrt.pop %v1851
    %v1910 = vrsqrt.pop %v1856
    %v1911 = vrsqrt.pop %v1861
    %v1912 = vrsqrt.pop %v1866
    %v1913 = vrsqrt.pop %v1871
    %v1914 = vrsqrt.pop %v1876
    %v1915 = vrsqrt.pop %v1881
    %v1916 = vrsqrt.pop %v1886
    %v1917 = vrsqrt.pop %v1891
    %v1918 = vrsqrt.pop %v1896
    %v1919 = vrsqrt.pop %v1901
    %1921 = vset.pattern.permute.xlu0 0
    %1922 = vperm.xlu0 %1921, %v1904
    %v1923 = vpop.permute.xlu0 %1922
    %1926 = vset.pattern.permute.xlu0 0
    %1927 = vperm.xlu0 %1926, %v1905
    %v1928 = vpop.permute.xlu0 %1927
    %1931 = vset.pattern.permute.xlu0 0
    %1932 = vperm.xlu0 %1931, %v1906
    %v1933 = vpop.permute.xlu0 %1932
    %1936 = vset.pattern.permute.xlu0 0
    %1937 = vperm.xlu0 %1936, %v1907
    %v1938 = vpop.permute.xlu0 %1937
    %1941 = vset.pattern.permute.xlu0 0
    %1942 = vperm.xlu0 %1941, %v1908
    %v1943 = vpop.permute.xlu0 %1942
    %1946 = vset.pattern.permute.xlu0 0
    %1947 = vperm.xlu0 %1946, %v1909
    %v1948 = vpop.permute.xlu0 %1947
    %1951 = vset.pattern.permute.xlu0 0
    %1952 = vperm.xlu0 %1951, %v1910
    %v1953 = vpop.permute.xlu0 %1952
    %1956 = vset.pattern.permute.xlu0 0
    %1957 = vperm.xlu0 %1956, %v1911
    %v1958 = vpop.permute.xlu0 %1957
    %1961 = vset.pattern.permute.xlu0 0
    %1962 = vperm.xlu0 %1961, %v1912
    %v1963 = vpop.permute.xlu0 %1962
    %1966 = vset.pattern.permute.xlu0 0
    %1967 = vperm.xlu0 %1966, %v1913
    %v1968 = vpop.permute.xlu0 %1967
    %1971 = vset.pattern.permute.xlu0 0
    %1972 = vperm.xlu0 %1971, %v1914
    %v1973 = vpop.permute.xlu0 %1972
    %1976 = vset.pattern.permute.xlu0 0
    %1977 = vperm.xlu0 %1976, %v1915
    %v1978 = vpop.permute.xlu0 %1977
    %1981 = vset.pattern.permute.xlu0 0
    %1982 = vperm.xlu0 %1981, %v1916
    %v1983 = vpop.permute.xlu0 %1982
    %1986 = vset.pattern.permute.xlu0 0
    %1987 = vperm.xlu0 %1986, %v1917
    %v1988 = vpop.permute.xlu0 %1987
    %1991 = vset.pattern.permute.xlu0 0
    %1992 = vperm.xlu0 %1991, %v1918
    %v1993 = vpop.permute.xlu0 %1992
    %1996 = vset.pattern.permute.xlu0 0
    %1997 = vperm.xlu0 %1996, %v1919
    %v1998 = vpop.permute.xlu0 %1997
    %v2000 = vmul.f32 %v1679, %v1923
    %v2001 = vmul.f32 %v1680, %v1928
    %v2002 = vmul.f32 %v1681, %v1933
    %v2003 = vmul.f32 %v1682, %v1938
    %v2004 = vmul.f32 %v1683, %v1943
    %v2005 = vmul.f32 %v1684, %v1948
    %v2006 = vmul.f32 %v1685, %v1953
    %v2007 = vmul.f32 %v1686, %v1958
    %v2008 = vmul.f32 %v1687, %v1963
    %v2009 = vmul.f32 %v1688, %v1968
    %v2010 = vmul.f32 %v1689, %v1973
    %v2011 = vmul.f32 %v1690, %v1978
    %v2012 = vmul.f32 %v1691, %v1983
    %v2013 = vmul.f32 %v1692, %v1988
    %v2014 = vmul.f32 %v1693, %v1993
    %v2015 = vmul.f32 %v1694, %v1998
    %s2016 = scalar_lea.vmem %s3, 32
    %v2017 = vld [vmem:[%s2016] sm:$0xff]
    %v2018 = vld [vmem:[%s2016 + $0x8] sm:$0xff]
    %v2019 = vld [vmem:[%s2016 + $0x10] sm:$0xff]
    %v2020 = vld [vmem:[%s2016 + $0x18] sm:$0xff]
    %v2022 = vsel %vm642, %v2000, 0
    %v2025 = vsel %vm642, %v2001, 0
    %v2028 = vsel %vm642, %v2002, 0
    %v2031 = vsel %vm642, %v2003, 0
    %v2034 = vsel %vm642, %v2004, 0
    %v2037 = vsel %vm642, %v2005, 0
    %v2040 = vsel %vm642, %v2006, 0
    %v2043 = vsel %vm642, %v2007, 0
    %v2046 = vsel %vm642, %v2008, 0
    %v2049 = vsel %vm642, %v2009, 0
    %v2052 = vsel %vm642, %v2010, 0
    %v2055 = vsel %vm642, %v2011, 0
    %v2058 = vsel %vm642, %v2012, 0
    %v2061 = vsel %vm642, %v2013, 0
    %v2064 = vsel %vm642, %v2014, 0
    %v2067 = vsel %vm642, %v2015, 0
    %2069 = vmatprep.subr.mxu0 0.0
    %2070 = vmatpush1.msra.mxu0 %v2017
    %2071 = vmatprep.subr.mxu0 0.0
    %2072 = vmatpush1.msra.mxu0 %v2018
    %2073 = vmatprep.subr.mxu0 0.0
    %2074 = vmatpush1.msra.mxu0 %v2019
    %2075 = vmatprep.subr.mxu0 0.0
    %2076 = vmatpush1.msra.mxu0 %v2020
    %2077 = vmatprep.subr.mxu0 0.0
    %2078 = vmatpush1.msra.mxu0 0.0
    %2079 = vmatprep.subr.mxu0 0.0
    %2080 = vmatpush1.msra.mxu0 0.0
    %2081 = vmatprep.subr.mxu0 0.0
    %2082 = vmatpush1.msra.mxu0 0.0
    %2083 = vmatprep.subr.mxu0 0.0
    %2084 = vmatpush1.msra.mxu0 0.0
    %2085 = vmatprep.subr.mxu0 0.0
    %2086 = vmatpush1.msra.mxu0 0.0
    %2087 = vmatprep.subr.mxu0 0.0
    %2088 = vmatpush1.msra.mxu0 0.0
    %2089 = vmatprep.subr.mxu0 0.0
    %2090 = vmatpush1.msra.mxu0 0.0
    %2091 = vmatprep.subr.mxu0 0.0
    %2092 = vmatpush1.msra.mxu0 0.0
    %2093 = vmatprep.subr.mxu0 0.0
    %2094 = vmatpush1.msra.mxu0 0.0
    %2095 = vmatprep.subr.mxu0 0.0
    %2096 = vmatpush1.msra.mxu0 0.0
    %2097 = vmatprep.subr.mxu0 0.0
    %2098 = vmatpush1.msra.mxu0 0.0
    %2099 = vmatprep.subr.mxu0 0.0
    %2100 = vmatpush1.msra.mxu0 0.0
    %2101 = vmatprep.subr.mxu0 0.0
    %2102 = vmatpush1.msra.mxu0 0.0
    %2103 = vmatprep.subr.mxu0 0.0
    %2104 = vmatpush1.msra.mxu0 0.0
    %2105 = vmatprep.subr.mxu0 0.0
    %2106 = vmatpush1.msra.mxu0 0.0
    %2107 = vmatprep.subr.mxu0 0.0
    %2108 = vmatpush1.msra.mxu0 0.0
    %2109 = vmatprep.subr.mxu0 0.0
    %2110 = vmatpush1.msra.mxu0 0.0
    %2111 = vmatprep.subr.mxu0 0.0
    %2112 = vmatpush1.msra.mxu0 0.0
    %2113 = vmatprep.subr.mxu0 0.0
    %2114 = vmatpush1.msra.mxu0 0.0
    %2115 = vmatprep.subr.mxu0 0.0
    %2116 = vmatpush1.msra.mxu0 0.0
    %2117 = vmatprep.subr.mxu0 0.0
    %2118 = vmatpush1.msra.mxu0 0.0
    %2119 = vmatprep.subr.mxu0 0.0
    %2120 = vmatpush1.msra.mxu0 0.0
    %2121 = vmatprep.subr.mxu0 0.0
    %2122 = vmatpush1.msra.mxu0 0.0
    %2123 = vmatprep.subr.mxu0 0.0
    %2124 = vmatpush1.msra.mxu0 0.0
    %2125 = vmatprep.subr.mxu0 0.0
    %2126 = vmatpush1.msra.mxu0 0.0
    %2127 = vmatprep.subr.mxu0 0.0
    %2128 = vmatpush1.msra.mxu0 0.0
    %2129 = vmatprep.subr.mxu0 0.0
    %2130 = vmatpush1.msra.mxu0 0.0
    %2131 = vmatprep.subr.mxu0 0.0
    %2132 = vmatpush1.msra.mxu0 0.0
    %2133 = vmatprep.mubr.f32.mxu0 0.0
    %2134 = vmatmul.mubr.f32.gmra.mrb[0].mxu0 %v2022
    %v2135 = vpop.f32.mrb[0].mxu0
    %v2136 = vadd.f32 0.0, %v2135
    %v2137 = vpop.f32.mrb[0].mxu0
    %2138 = vmatprep.mubr.f32.mxu0 0.0
    %2139 = vmatmul.mubr.f32.gmra.mrb[0].mxu0 %v2025
    %v2140 = vpop.f32.mrb[0].mxu0
    %v2141 = vadd.f32 0.0, %v2140
    %v2142 = vpop.f32.mrb[0].mxu0
    %2143 = vmatprep.mubr.f32.mxu0 0.0
    %2144 = vmatmul.mubr.f32.gmra.mrb[0].mxu0 %v2028
    %v2145 = vpop.f32.mrb[0].mxu0
    %v2146 = vadd.f32 0.0, %v2145
    %v2147 = vpop.f32.mrb[0].mxu0
    %2148 = vmatprep.mubr.f32.mxu0 0.0
    %2149 = vmatmul.mubr.f32.gmra.mrb[0].mxu0 %v2031
    %v2150 = vpop.f32.mrb[0].mxu0
    %v2151 = vadd.f32 0.0, %v2150
    %v2152 = vpop.f32.mrb[0].mxu0
    %2153 = vmatprep.mubr.f32.mxu0 0.0
    %2154 = vmatmul.mubr.f32.gmra.mrb[0].mxu0 %v2034
    %v2155 = vpop.f32.mrb[0].mxu0
    %v2156 = vadd.f32 0.0, %v2155
    %v2157 = vpop.f32.mrb[0].mxu0
    %2158 = vmatprep.mubr.f32.mxu0 0.0
    %2159 = vmatmul.mubr.f32.gmra.mrb[0].mxu0 %v2037
    %v2160 = vpop.f32.mrb[0].mxu0
    %v2161 = vadd.f32 0.0, %v2160
    %v2162 = vpop.f32.mrb[0].mxu0
    %2163 = vmatprep.mubr.f32.mxu0 0.0
    %2164 = vmatmul.mubr.f32.gmra.mrb[0].mxu0 %v2040
    %v2165 = vpop.f32.mrb[0].mxu0
    %v2166 = vadd.f32 0.0, %v2165
    %v2167 = vpop.f32.mrb[0].mxu0
    %2168 = vmatprep.mubr.f32.mxu0 0.0
    %2169 = vmatmul.mubr.f32.gmra.mrb[0].mxu0 %v2043
    %v2170 = vpop.f32.mrb[0].mxu0
    %v2171 = vadd.f32 0.0, %v2170
    %v2172 = vpop.f32.mrb[0].mxu0
    %2173 = vmatprep.mubr.f32.mxu0 0.0
    %2174 = vmatmul.mubr.f32.gmra.mrb[0].mxu0 %v2046
    %v2175 = vpop.f32.mrb[0].mxu0
    %v2176 = vadd.f32 0.0, %v2175
    %v2177 = vpop.f32.mrb[0].mxu0
    %2178 = vmatprep.mubr.f32.mxu0 0.0
    %2179 = vmatmul.mubr.f32.gmra.mrb[0].mxu0 %v2049
    %v2180 = vpop.f32.mrb[0].mxu0
    %v2181 = vadd.f32 0.0, %v2180
    %v2182 = vpop.f32.mrb[0].mxu0
    %2183 = vmatprep.mubr.f32.mxu0 0.0
    %2184 = vmatmul.mubr.f32.gmra.mrb[0].mxu0 %v2052
    %v2185 = vpop.f32.mrb[0].mxu0
    %v2186 = vadd.f32 0.0, %v2185
    %v2187 = vpop.f32.mrb[0].mxu0
    %2188 = vmatprep.mubr.f32.mxu0 0.0
    %2189 = vmatmul.mubr.f32.gmra.mrb[0].mxu0 %v2055
    %v2190 = vpop.f32.mrb[0].mxu0
    %v2191 = vadd.f32 0.0, %v2190
    %v2192 = vpop.f32.mrb[0].mxu0
    %2193 = vmatprep.mubr.f32.mxu0 0.0
    %2194 = vmatmul.mubr.f32.gmra.mrb[0].mxu0 %v2058
    %v2195 = vpop.f32.mrb[0].mxu0
    %v2196 = vadd.f32 0.0, %v2195
    %v2197 = vpop.f32.mrb[0].mxu0
    %2198 = vmatprep.mubr.f32.mxu0 0.0
    %2199 = vmatmul.mubr.f32.gmra.mrb[0].mxu0 %v2061
    %v2200 = vpop.f32.mrb[0].mxu0
    %v2201 = vadd.f32 0.0, %v2200
    %v2202 = vpop.f32.mrb[0].mxu0
    %2203 = vmatprep.mubr.f32.mxu0 0.0
    %2204 = vmatmul.mubr.f32.gmra.mrb[0].mxu0 %v2064
    %v2205 = vpop.f32.mrb[0].mxu0
    %v2206 = vadd.f32 0.0, %v2205
    %v2207 = vpop.f32.mrb[0].mxu0
    %2208 = vmatprep.mubr.f32.mxu0 0.0
    %2209 = vmatmul.mubr.f32.gmra.mrb[0].mxu0 %v2067
    %v2210 = vpop.f32.mrb[0].mxu0
    %v2211 = vadd.f32 0.0, %v2210
    %v2212 = vpop.f32.mrb[0].mxu0
    %2213 = vdwg.mxu0
    %v2214 = vmax.f32 %v2136, 0.0
    %v2215 = vmax.f32 %v2141, 0.0
    %v2216 = vmax.f32 %v2146, 0.0
    %v2217 = vmax.f32 %v2151, 0.0
    %v2218 = vmax.f32 %v2156, 0.0
    %v2219 = vmax.f32 %v2161, 0.0
    %v2220 = vmax.f32 %v2166, 0.0
    %v2221 = vmax.f32 %v2171, 0.0
    %v2222 = vmax.f32 %v2176, 0.0
    %v2223 = vmax.f32 %v2181, 0.0
    %v2224 = vmax.f32 %v2186, 0.0
    %v2225 = vmax.f32 %v2191, 0.0
    %v2226 = vmax.f32 %v2196, 0.0
    %v2227 = vmax.f32 %v2201, 0.0
    %v2228 = vmax.f32 %v2206, 0.0
    %v2229 = vmax.f32 %v2211, 0.0
    %s2230 = scalar_lea.vmem %s4, 128
    %v2231 = vld [vmem:[%s2230] sm:$0xff]
    %v2232 = vld [vmem:[%s2230 + $0x8] sm:$0xff]
    %v2233 = vld [vmem:[%s2230 + $0x10] sm:$0xff]
    %v2234 = vld [vmem:[%s2230 + $0x18] sm:$0xff]
    %v2235 = vld [vmem:[%s2230 + $0x20] sm:$0xff]
    %v2236 = vld [vmem:[%s2230 + $0x28] sm:$0xff]
    %v2237 = vld [vmem:[%s2230 + $0x30] sm:$0xff]
    %v2238 = vld [vmem:[%s2230 + $0x38] sm:$0xff]
    %v2239 = vld [vmem:[%s2230 + $0x40] sm:$0xff]
    %v2240 = vld [vmem:[%s2230 + $0x48] sm:$0xff]
    %v2241 = vld [vmem:[%s2230 + $0x50] sm:$0xff]
    %v2242 = vld [vmem:[%s2230 + $0x58] sm:$0xff]
    %v2243 = vld [vmem:[%s2230 + $0x60] sm:$0xff]
    %v2244 = vld [vmem:[%s2230 + $0x68] sm:$0xff]
    %v2245 = vld [vmem:[%s2230 + $0x70] sm:$0xff]
    %v2246 = vld [vmem:[%s2230 + $0x78] sm:$0xff]
    %2247 = vmatprep.subr.mxu0 0.0
    %2248 = vmatpush1.msra.mxu0 %v2231
    %2249 = vmatprep.subr.mxu0 0.0
    %2250 = vmatpush1.msra.mxu0 %v2232
    %2251 = vmatprep.subr.mxu0 0.0
    %2252 = vmatpush1.msra.mxu0 %v2233
    %2253 = vmatprep.subr.mxu0 0.0
    %2254 = vmatpush1.msra.mxu0 %v2234
    %2255 = vmatprep.subr.mxu0 0.0
    %2256 = vmatpush1.msra.mxu0 %v2235
    %2257 = vmatprep.subr.mxu0 0.0
    %2258 = vmatpush1.msra.mxu0 %v2236
    %2259 = vmatprep.subr.mxu0 0.0
    %2260 = vmatpush1.msra.mxu0 %v2237
    %2261 = vmatprep.subr.mxu0 0.0
    %2262 = vmatpush1.msra.mxu0 %v2238
    %2263 = vmatprep.subr.mxu0 0.0
    %2264 = vmatpush1.msra.mxu0 %v2239
    %2265 = vmatprep.subr.mxu0 0.0
    %2266 = vmatpush1.msra.mxu0 %v2240
    %2267 = vmatprep.subr.mxu0 0.0
    %2268 = vmatpush1.msra.mxu0 %v2241
    %2269 = vmatprep.subr.mxu0 0.0
    %2270 = vmatpush1.msra.mxu0 %v2242
    %2271 = vmatprep.subr.mxu0 0.0
    %2272 = vmatpush1.msra.mxu0 %v2243
    %2273 = vmatprep.subr.mxu0 0.0
    %2274 = vmatpush1.msra.mxu0 %v2244
    %2275 = vmatprep.subr.mxu0 0.0
    %2276 = vmatpush1.msra.mxu0 %v2245
    %2277 = vmatprep.subr.mxu0 0.0
    %2278 = vmatpush1.msra.mxu0 %v2246
    %2279 = vmatprep.subr.mxu0 0.0
    %2280 = vmatpush1.msra.mxu0 0.0
    %2281 = vmatprep.subr.mxu0 0.0
    %2282 = vmatpush1.msra.mxu0 0.0
    %2283 = vmatprep.subr.mxu0 0.0
    %2284 = vmatpush1.msra.mxu0 0.0
    %2285 = vmatprep.subr.mxu0 0.0
    %2286 = vmatpush1.msra.mxu0 0.0
    %2287 = vmatprep.subr.mxu0 0.0
    %2288 = vmatpush1.msra.mxu0 0.0
    %2289 = vmatprep.subr.mxu0 0.0
    %2290 = vmatpush1.msra.mxu0 0.0
    %2291 = vmatprep.subr.mxu0 0.0
    %2292 = vmatpush1.msra.mxu0 0.0
    %2293 = vmatprep.subr.mxu0 0.0
    %2294 = vmatpush1.msra.mxu0 0.0
    %2295 = vmatprep.subr.mxu0 0.0
    %2296 = vmatpush1.msra.mxu0 0.0
    %2297 = vmatprep.subr.mxu0 0.0
    %2298 = vmatpush1.msra.mxu0 0.0
    %2299 = vmatprep.subr.mxu0 0.0
    %2300 = vmatpush1.msra.mxu0 0.0
    %2301 = vmatprep.subr.mxu0 0.0
    %2302 = vmatpush1.msra.mxu0 0.0
    %2303 = vmatprep.subr.mxu0 0.0
    %2304 = vmatpush1.msra.mxu0 0.0
    %2305 = vmatprep.subr.mxu0 0.0
    %2306 = vmatpush1.msra.mxu0 0.0
    %2307 = vmatprep.subr.mxu0 0.0
    %2308 = vmatpush1.msra.mxu0 0.0
    %2309 = vmatprep.subr.mxu0 0.0
    %2310 = vmatpush1.msra.mxu0 0.0
    %2311 = vmatprep.mubr.f32.mxu0 0.0
    %2312 = vmatmul.mubr.f32.gmra.mrb[0].mxu0 %v2214
    %v2313 = vpop.f32.mrb[0].mxu0
    %v2314 = vadd.f32 0.0, %v2313
    %v2315 = vpop.f32.mrb[0].mxu0
    %2316 = vmatprep.mubr.f32.mxu0 0.0
    %2317 = vmatmul.mubr.f32.gmra.mrb[0].mxu0 %v2215
    %v2318 = vpop.f32.mrb[0].mxu0
    %v2319 = vadd.f32 0.0, %v2318
    %v2320 = vpop.f32.mrb[0].mxu0
    %2321 = vmatprep.mubr.f32.mxu0 0.0
    %2322 = vmatmul.mubr.f32.gmra.mrb[0].mxu0 %v2216
    %v2323 = vpop.f32.mrb[0].mxu0
    %v2324 = vadd.f32 0.0, %v2323
    %v2325 = vpop.f32.mrb[0].mxu0
    %2326 = vmatprep.mubr.f32.mxu0 0.0
    %2327 = vmatmul.mubr.f32.gmra.mrb[0].mxu0 %v2217
    %v2328 = vpop.f32.mrb[0].mxu0
    %v2329 = vadd.f32 0.0, %v2328
    %v2330 = vpop.f32.mrb[0].mxu0
    %2331 = vmatprep.mubr.f32.mxu0 0.0
    %2332 = vmatmul.mubr.f32.gmra.mrb[0].mxu0 %v2218
    %v2333 = vpop.f32.mrb[0].mxu0
    %v2334 = vadd.f32 0.0, %v2333
    %v2335 = vpop.f32.mrb[0].mxu0
    %2336 = vmatprep.mubr.f32.mxu0 0.0
    %2337 = vmatmul.mubr.f32.gmra.mrb[0].mxu0 %v2219
    %v2338 = vpop.f32.mrb[0].mxu0
    %v2339 = vadd.f32 0.0, %v2338
    %v2340 = vpop.f32.mrb[0].mxu0
    %2341 = vmatprep.mubr.f32.mxu0 0.0
    %2342 = vmatmul.mubr.f32.gmra.mrb[0].mxu0 %v2220
    %v2343 = vpop.f32.mrb[0].mxu0
    %v2344 = vadd.f32 0.0, %v2343
    %v2345 = vpop.f32.mrb[0].mxu0
    %2346 = vmatprep.mubr.f32.mxu0 0.0
    %2347 = vmatmul.mubr.f32.gmra.mrb[0].mxu0 %v2221
    %v2348 = vpop.f32.mrb[0].mxu0
    %v2349 = vadd.f32 0.0, %v2348
    %v2350 = vpop.f32.mrb[0].mxu0
    %2351 = vmatprep.mubr.f32.mxu0 0.0
    %2352 = vmatmul.mubr.f32.gmra.mrb[0].mxu0 %v2222
    %v2353 = vpop.f32.mrb[0].mxu0
    %v2354 = vadd.f32 0.0, %v2353
    %v2355 = vpop.f32.mrb[0].mxu0
    %2356 = vmatprep.mubr.f32.mxu0 0.0
    %2357 = vmatmul.mubr.f32.gmra.mrb[0].mxu0 %v2223
    %v2358 = vpop.f32.mrb[0].mxu0
    %v2359 = vadd.f32 0.0, %v2358
    %v2360 = vpop.f32.mrb[0].mxu0
    %2361 = vmatprep.mubr.f32.mxu0 0.0
    %2362 = vmatmul.mubr.f32.gmra.mrb[0].mxu0 %v2224
    %v2363 = vpop.f32.mrb[0].mxu0
    %v2364 = vadd.f32 0.0, %v2363
    %v2365 = vpop.f32.mrb[0].mxu0
    %2366 = vmatprep.mubr.f32.mxu0 0.0
    %2367 = vmatmul.mubr.f32.gmra.mrb[0].mxu0 %v2225
    %v2368 = vpop.f32.mrb[0].mxu0
    %v2369 = vadd.f32 0.0, %v2368
    %v2370 = vpop.f32.mrb[0].mxu0
    %2371 = vmatprep.mubr.f32.mxu0 0.0
    %2372 = vmatmul.mubr.f32.gmra.mrb[0].mxu0 %v2226
    %v2373 = vpop.f32.mrb[0].mxu0
    %v2374 = vadd.f32 0.0, %v2373
    %v2375 = vpop.f32.mrb[0].mxu0
    %2376 = vmatprep.mubr.f32.mxu0 0.0
    %2377 = vmatmul.mubr.f32.gmra.mrb[0].mxu0 %v2227
    %v2378 = vpop.f32.mrb[0].mxu0
    %v2379 = vadd.f32 0.0, %v2378
    %v2380 = vpop.f32.mrb[0].mxu0
    %2381 = vmatprep.mubr.f32.mxu0 0.0
    %2382 = vmatmul.mubr.f32.gmra.mrb[0].mxu0 %v2228
    %v2383 = vpop.f32.mrb[0].mxu0
    %v2384 = vadd.f32 0.0, %v2383
    %v2385 = vpop.f32.mrb[0].mxu0
    %2386 = vmatprep.mubr.f32.mxu0 0.0
    %2387 = vmatmul.mubr.f32.gmra.mrb[0].mxu0 %v2229
    %v2388 = vpop.f32.mrb[0].mxu0
    %v2389 = vadd.f32 0.0, %v2388
    %v2390 = vpop.f32.mrb[0].mxu0
    %2391 = vdwg.mxu0
    %v2392 = vmul.f32 %v2314, %v2314
    %v2393 = vmul.f32 %v2319, %v2319
    %v2394 = vmul.f32 %v2324, %v2324
    %v2395 = vmul.f32 %v2329, %v2329
    %v2396 = vmul.f32 %v2334, %v2334
    %v2397 = vmul.f32 %v2339, %v2339
    %v2398 = vmul.f32 %v2344, %v2344
    %v2399 = vmul.f32 %v2349, %v2349
    %v2400 = vmul.f32 %v2354, %v2354
    %v2401 = vmul.f32 %v2359, %v2359
    %v2402 = vmul.f32 %v2364, %v2364
    %v2403 = vmul.f32 %v2369, %v2369
    %v2404 = vmul.f32 %v2374, %v2374
    %v2405 = vmul.f32 %v2379, %v2379
    %v2406 = vmul.f32 %v2384, %v2384
    %v2407 = vmul.f32 %v2389, %v2389
    %v2409 = vsel %vm642, %v2392, 0
    %v2412 = vsel %vm642, %v2393, 0
    %v2415 = vsel %vm642, %v2394, 0
    %v2418 = vsel %vm642, %v2395, 0
    %v2421 = vsel %vm642, %v2396, 0
    %v2424 = vsel %vm642, %v2397, 0
    %v2427 = vsel %vm642, %v2398, 0
    %v2430 = vsel %vm642, %v2399, 0
    %v2433 = vsel %vm642, %v2400, 0
    %v2436 = vsel %vm642, %v2401, 0
    %v2439 = vsel %vm642, %v2402, 0
    %v2442 = vsel %vm642, %v2403, 0
    %v2445 = vsel %vm642, %v2404, 0
    %v2448 = vsel %vm642, %v2405, 0
    %v2451 = vsel %vm642, %v2406, 0
    %v2454 = vsel %vm642, %v2407, 0
    %2456 = vmatprep.subr.mxu0 0.0
    %2457 = vmatpush1.msra.mxu0 1.0
    %2458 = vmatprep.subr.mxu0 0.0
    %2459 = vmatpush1.msra.mxu0 1.0
    %2460 = vmatprep.subr.mxu0 0.0
    %2461 = vmatpush1.msra.mxu0 1.0
    %2462 = vmatprep.subr.mxu0 0.0
    %2463 = vmatpush1.msra.mxu0 1.0
    %2464 = vmatprep.subr.mxu0 0.0
    %2465 = vmatpush1.msra.mxu0 0.0
    %2466 = vmatprep.subr.mxu0 0.0
    %2467 = vmatpush1.msra.mxu0 0.0
    %2468 = vmatprep.subr.mxu0 0.0
    %2469 = vmatpush1.msra.mxu0 0.0
    %2470 = vmatprep.subr.mxu0 0.0
    %2471 = vmatpush1.msra.mxu0 0.0
    %2472 = vmatprep.subr.mxu0 0.0
    %2473 = vmatpush1.msra.mxu0 0.0
    %2474 = vmatprep.subr.mxu0 0.0
    %2475 = vmatpush1.msra.mxu0 0.0
    %2476 = vmatprep.subr.mxu0 0.0
    %2477 = vmatpush1.msra.mxu0 0.0
    %2478 = vmatprep.subr.mxu0 0.0
    %2479 = vmatpush1.msra.mxu0 0.0
    %2480 = vmatprep.subr.mxu0 0.0
    %2481 = vmatpush1.msra.mxu0 0.0
    %2482 = vmatprep.subr.mxu0 0.0
    %2483 = vmatpush1.msra.mxu0 0.0
    %2484 = vmatprep.subr.mxu0 0.0
    %2485 = vmatpush1.msra.mxu0 0.0
    %2486 = vmatprep.subr.mxu0 0.0
    %2487 = vmatpush1.msra.mxu0 0.0
    %2488 = vmatprep.subr.mxu0 0.0
    %2489 = vmatpush1.msra.mxu0 0.0
    %2490 = vmatprep.subr.mxu0 0.0
    %2491 = vmatpush1.msra.mxu0 0.0
    %2492 = vmatprep.subr.mxu0 0.0
    %2493 = vmatpush1.msra.mxu0 0.0
    %2494 = vmatprep.subr.mxu0 0.0
    %2495 = vmatpush1.msra.mxu0 0.0
    %2496 = vmatprep.subr.mxu0 0.0
    %2497 = vmatpush1.msra.mxu0 0.0
    %2498 = vmatprep.subr.mxu0 0.0
    %2499 = vmatpush1.msra.mxu0 0.0
    %2500 = vmatprep.subr.mxu0 0.0
    %2501 = vmatpush1.msra.mxu0 0.0
    %2502 = vmatprep.subr.mxu0 0.0
    %2503 = vmatpush1.msra.mxu0 0.0
    %2504 = vmatprep.subr.mxu0 0.0
    %2505 = vmatpush1.msra.mxu0 0.0
    %2506 = vmatprep.subr.mxu0 0.0
    %2507 = vmatpush1.msra.mxu0 0.0
    %2508 = vmatprep.subr.mxu0 0.0
    %2509 = vmatpush1.msra.mxu0 0.0
    %2510 = vmatprep.subr.mxu0 0.0
    %2511 = vmatpush1.msra.mxu0 0.0
    %2512 = vmatprep.subr.mxu0 0.0
    %2513 = vmatpush1.msra.mxu0 0.0
    %2514 = vmatprep.subr.mxu0 0.0
    %2515 = vmatpush1.msra.mxu0 0.0
    %2516 = vmatprep.subr.mxu0 0.0
    %2517 = vmatpush1.msra.mxu0 0.0
    %2518 = vmatprep.subr.mxu0 0.0
    %2519 = vmatpush1.msra.mxu0 0.0
    %2520 = vmatprep.mubr.f32.mxu0 0.0
    %2521 = vmatmul.mubr.f32.gmra.mrb[0].mxu0 %v2409
    %v2522 = vpop.f32.mrb[0].mxu0
    %v2523 = vadd.f32 1e-08, %v2522
    %v2524 = vpop.f32.mrb[0].mxu0
    %2525 = vmatprep.mubr.f32.mxu0 0.0
    %2526 = vmatmul.mubr.f32.gmra.mrb[0].mxu0 %v2412
    %v2527 = vpop.f32.mrb[0].mxu0
    %v2528 = vadd.f32 1e-08, %v2527
    %v2529 = vpop.f32.mrb[0].mxu0
    %2530 = vmatprep.mubr.f32.mxu0 0.0
    %2531 = vmatmul.mubr.f32.gmra.mrb[0].mxu0 %v2415
    %v2532 = vpop.f32.mrb[0].mxu0
    %v2533 = vadd.f32 1e-08, %v2532
    %v2534 = vpop.f32.mrb[0].mxu0
    %2535 = vmatprep.mubr.f32.mxu0 0.0
    %2536 = vmatmul.mubr.f32.gmra.mrb[0].mxu0 %v2418
    %v2537 = vpop.f32.mrb[0].mxu0
    %v2538 = vadd.f32 1e-08, %v2537
    %v2539 = vpop.f32.mrb[0].mxu0
    %2540 = vmatprep.mubr.f32.mxu0 0.0
    %2541 = vmatmul.mubr.f32.gmra.mrb[0].mxu0 %v2421
    %v2542 = vpop.f32.mrb[0].mxu0
    %v2543 = vadd.f32 1e-08, %v2542
    %v2544 = vpop.f32.mrb[0].mxu0
    %2545 = vmatprep.mubr.f32.mxu0 0.0
    %2546 = vmatmul.mubr.f32.gmra.mrb[0].mxu0 %v2424
    %v2547 = vpop.f32.mrb[0].mxu0
    %v2548 = vadd.f32 1e-08, %v2547
    %v2549 = vpop.f32.mrb[0].mxu0
    %2550 = vmatprep.mubr.f32.mxu0 0.0
    %2551 = vmatmul.mubr.f32.gmra.mrb[0].mxu0 %v2427
    %v2552 = vpop.f32.mrb[0].mxu0
    %v2553 = vadd.f32 1e-08, %v2552
    %v2554 = vpop.f32.mrb[0].mxu0
    %2555 = vmatprep.mubr.f32.mxu0 0.0
    %2556 = vmatmul.mubr.f32.gmra.mrb[0].mxu0 %v2430
    %v2557 = vpop.f32.mrb[0].mxu0
    %v2558 = vadd.f32 1e-08, %v2557
    %v2559 = vpop.f32.mrb[0].mxu0
    %2560 = vmatprep.mubr.f32.mxu0 0.0
    %2561 = vmatmul.mubr.f32.gmra.mrb[0].mxu0 %v2433
    %v2562 = vpop.f32.mrb[0].mxu0
    %v2563 = vadd.f32 1e-08, %v2562
    %v2564 = vpop.f32.mrb[0].mxu0
    %2565 = vmatprep.mubr.f32.mxu0 0.0
    %2566 = vmatmul.mubr.f32.gmra.mrb[0].mxu0 %v2436
    %v2567 = vpop.f32.mrb[0].mxu0
    %v2568 = vadd.f32 1e-08, %v2567
    %v2569 = vpop.f32.mrb[0].mxu0
    %2570 = vmatprep.mubr.f32.mxu0 0.0
    %2571 = vmatmul.mubr.f32.gmra.mrb[0].mxu0 %v2439
    %v2572 = vpop.f32.mrb[0].mxu0
    %v2573 = vadd.f32 1e-08, %v2572
    %v2574 = vpop.f32.mrb[0].mxu0
    %2575 = vmatprep.mubr.f32.mxu0 0.0
    %2576 = vmatmul.mubr.f32.gmra.mrb[0].mxu0 %v2442
    %v2577 = vpop.f32.mrb[0].mxu0
    %v2578 = vadd.f32 1e-08, %v2577
    %v2579 = vpop.f32.mrb[0].mxu0
    %2580 = vmatprep.mubr.f32.mxu0 0.0
    %2581 = vmatmul.mubr.f32.gmra.mrb[0].mxu0 %v2445
    %v2582 = vpop.f32.mrb[0].mxu0
    %v2583 = vadd.f32 1e-08, %v2582
    %v2584 = vpop.f32.mrb[0].mxu0
    %2585 = vmatprep.mubr.f32.mxu0 0.0
    %2586 = vmatmul.mubr.f32.gmra.mrb[0].mxu0 %v2448
    %v2587 = vpop.f32.mrb[0].mxu0
    %v2588 = vadd.f32 1e-08, %v2587
    %v2589 = vpop.f32.mrb[0].mxu0
    %2590 = vmatprep.mubr.f32.mxu0 0.0
    %2591 = vmatmul.mubr.f32.gmra.mrb[0].mxu0 %v2451
    %v2592 = vpop.f32.mrb[0].mxu0
    %v2593 = vadd.f32 1e-08, %v2592
    %v2594 = vpop.f32.mrb[0].mxu0
    %2595 = vmatprep.mubr.f32.mxu0 0.0
    %2596 = vmatmul.mubr.f32.gmra.mrb[0].mxu0 %v2454
    %v2597 = vpop.f32.mrb[0].mxu0
    %v2598 = vadd.f32 1e-08, %v2597
    %v2599 = vpop.f32.mrb[0].mxu0
    %2600 = vdwg.mxu0
    %v2601 = vrsqrt.pop %v2523
    %v2602 = vrsqrt.pop %v2528
    %v2603 = vrsqrt.pop %v2533
    %v2604 = vrsqrt.pop %v2538
    %v2605 = vrsqrt.pop %v2543
    %v2606 = vrsqrt.pop %v2548
    %v2607 = vrsqrt.pop %v2553
    %v2608 = vrsqrt.pop %v2558
    %v2609 = vrsqrt.pop %v2563
    %v2610 = vrsqrt.pop %v2568
    %v2611 = vrsqrt.pop %v2573
    %v2612 = vrsqrt.pop %v2578
    %v2613 = vrsqrt.pop %v2583
    %v2614 = vrsqrt.pop %v2588
    %v2615 = vrsqrt.pop %v2593
    %v2616 = vrsqrt.pop %v2598
    %2618 = vset.pattern.permute.xlu0 0
    %2619 = vperm.xlu0 %2618, %v2601
    %v2620 = vpop.permute.xlu0 %2619
    %2623 = vset.pattern.permute.xlu0 0
    %2624 = vperm.xlu0 %2623, %v2602
    %v2625 = vpop.permute.xlu0 %2624
    %2628 = vset.pattern.permute.xlu0 0
    %2629 = vperm.xlu0 %2628, %v2603
    %v2630 = vpop.permute.xlu0 %2629
    %2633 = vset.pattern.permute.xlu0 0
    %2634 = vperm.xlu0 %2633, %v2604
    %v2635 = vpop.permute.xlu0 %2634
    %2638 = vset.pattern.permute.xlu0 0
    %2639 = vperm.xlu0 %2638, %v2605
    %v2640 = vpop.permute.xlu0 %2639
    %2643 = vset.pattern.permute.xlu0 0
    %2644 = vperm.xlu0 %2643, %v2606
    %v2645 = vpop.permute.xlu0 %2644
    %2648 = vset.pattern.permute.xlu0 0
    %2649 = vperm.xlu0 %2648, %v2607
    %v2650 = vpop.permute.xlu0 %2649
    %2653 = vset.pattern.permute.xlu0 0
    %2654 = vperm.xlu0 %2653, %v2608
    %v2655 = vpop.permute.xlu0 %2654
    %2658 = vset.pattern.permute.xlu0 0
    %2659 = vperm.xlu0 %2658, %v2609
    %v2660 = vpop.permute.xlu0 %2659
    %2663 = vset.pattern.permute.xlu0 0
    %2664 = vperm.xlu0 %2663, %v2610
    %v2665 = vpop.permute.xlu0 %2664
    %2668 = vset.pattern.permute.xlu0 0
    %2669 = vperm.xlu0 %2668, %v2611
    %v2670 = vpop.permute.xlu0 %2669
    %2673 = vset.pattern.permute.xlu0 0
    %2674 = vperm.xlu0 %2673, %v2612
    %v2675 = vpop.permute.xlu0 %2674
    %2678 = vset.pattern.permute.xlu0 0
    %2679 = vperm.xlu0 %2678, %v2613
    %v2680 = vpop.permute.xlu0 %2679
    %2683 = vset.pattern.permute.xlu0 0
    %2684 = vperm.xlu0 %2683, %v2614
    %v2685 = vpop.permute.xlu0 %2684
    %2688 = vset.pattern.permute.xlu0 0
    %2689 = vperm.xlu0 %2688, %v2615
    %v2690 = vpop.permute.xlu0 %2689
    %2693 = vset.pattern.permute.xlu0 0
    %2694 = vperm.xlu0 %2693, %v2616
    %v2695 = vpop.permute.xlu0 %2694
    %v2697 = vmul.f32 %v2314, %v2620
    %v2698 = vmul.f32 %v2319, %v2625
    %v2699 = vmul.f32 %v2324, %v2630
    %v2700 = vmul.f32 %v2329, %v2635
    %v2701 = vmul.f32 %v2334, %v2640
    %v2702 = vmul.f32 %v2339, %v2645
    %v2703 = vmul.f32 %v2344, %v2650
    %v2704 = vmul.f32 %v2349, %v2655
    %v2705 = vmul.f32 %v2354, %v2660
    %v2706 = vmul.f32 %v2359, %v2665
    %v2707 = vmul.f32 %v2364, %v2670
    %v2708 = vmul.f32 %v2369, %v2675
    %v2709 = vmul.f32 %v2374, %v2680
    %v2710 = vmul.f32 %v2379, %v2685
    %v2711 = vmul.f32 %v2384, %v2690
    %v2712 = vmul.f32 %v2389, %v2695
    %v2713 = vsub.f32 %v2697, %v2000
    %v2714 = vsub.f32 %v2698, %v2001
    %v2715 = vsub.f32 %v2699, %v2002
    %v2716 = vsub.f32 %v2700, %v2003
    %v2717 = vsub.f32 %v2701, %v2004
    %v2718 = vsub.f32 %v2702, %v2005
    %v2719 = vsub.f32 %v2703, %v2006
    %v2720 = vsub.f32 %v2704, %v2007
    %v2721 = vsub.f32 %v2705, %v2008
    %v2722 = vsub.f32 %v2706, %v2009
    %v2723 = vsub.f32 %v2707, %v2010
    %v2724 = vsub.f32 %v2708, %v2011
    %v2725 = vsub.f32 %v2709, %v2012
    %v2726 = vsub.f32 %v2710, %v2013
    %v2727 = vsub.f32 %v2711, %v2014
    %v2728 = vsub.f32 %v2712, %v2015
    %v2729 = vlaneseq
    %v2730 = vshrl.u32 %v2729, 7
    %v2731 = vsub.s32 0, %v2730
    %v2732 = vrot.slane %v25, %v2731
    %v2733 = vmul.f32 %v2732, %v2713
    %v2734 = vmul.f32 %v2732, %v2714
    %v2735 = vmul.f32 %v2732, %v2715
    %v2736 = vmul.f32 %v2732, %v2716
    %v2737 = vmul.f32 %v2732, %v2717
    %v2738 = vmul.f32 %v2732, %v2718
    %v2739 = vmul.f32 %v2732, %v2719
    %v2740 = vmul.f32 %v2732, %v2720
    %v2741 = vmul.f32 %v2732, %v2721
    %v2742 = vmul.f32 %v2732, %v2722
    %v2743 = vmul.f32 %v2732, %v2723
    %v2744 = vmul.f32 %v2732, %v2724
    %v2745 = vmul.f32 %v2732, %v2725
    %v2746 = vmul.f32 %v2732, %v2726
    %v2747 = vmul.f32 %v2732, %v2727
    %v2748 = vmul.f32 %v2732, %v2728
    %v2749 = vadd.f32 %v2000, %v2733
    %v2750 = vadd.f32 %v2001, %v2734
    %v2751 = vadd.f32 %v2002, %v2735
    %v2752 = vadd.f32 %v2003, %v2736
    %v2753 = vadd.f32 %v2004, %v2737
    %v2754 = vadd.f32 %v2005, %v2738
    %v2755 = vadd.f32 %v2006, %v2739
    %v2756 = vadd.f32 %v2007, %v2740
    %v2757 = vadd.f32 %v2008, %v2741
    %v2758 = vadd.f32 %v2009, %v2742
    %v2759 = vadd.f32 %v2010, %v2743
    %v2760 = vadd.f32 %v2011, %v2744
    %v2761 = vadd.f32 %v2012, %v2745
    %v2762 = vadd.f32 %v2013, %v2746
    %v2763 = vadd.f32 %v2014, %v2747
    %v2764 = vadd.f32 %v2015, %v2748
    %v2765 = vmul.f32 %v2749, %v2749
    %v2766 = vmul.f32 %v2750, %v2750
    %v2767 = vmul.f32 %v2751, %v2751
    %v2768 = vmul.f32 %v2752, %v2752
    %v2769 = vmul.f32 %v2753, %v2753
    %v2770 = vmul.f32 %v2754, %v2754
    %v2771 = vmul.f32 %v2755, %v2755
    %v2772 = vmul.f32 %v2756, %v2756
    %v2773 = vmul.f32 %v2757, %v2757
    %v2774 = vmul.f32 %v2758, %v2758
    %v2775 = vmul.f32 %v2759, %v2759
    %v2776 = vmul.f32 %v2760, %v2760
    %v2777 = vmul.f32 %v2761, %v2761
    %v2778 = vmul.f32 %v2762, %v2762
    %v2779 = vmul.f32 %v2763, %v2763
    %v2780 = vmul.f32 %v2764, %v2764
    %v2782 = vsel %vm642, %v2765, 0
    %v2785 = vsel %vm642, %v2766, 0
    %v2788 = vsel %vm642, %v2767, 0
    %v2791 = vsel %vm642, %v2768, 0
    %v2794 = vsel %vm642, %v2769, 0
    %v2797 = vsel %vm642, %v2770, 0
    %v2800 = vsel %vm642, %v2771, 0
    %v2803 = vsel %vm642, %v2772, 0
    %v2806 = vsel %vm642, %v2773, 0
    %v2809 = vsel %vm642, %v2774, 0
    %v2812 = vsel %vm642, %v2775, 0
    %v2815 = vsel %vm642, %v2776, 0
    %v2818 = vsel %vm642, %v2777, 0
    %v2821 = vsel %vm642, %v2778, 0
    %v2824 = vsel %vm642, %v2779, 0
    %v2827 = vsel %vm642, %v2780, 0
    %2829 = vmatprep.subr.mxu0 0.0
    %2830 = vmatpush1.msra.mxu0 1.0
    %2831 = vmatprep.subr.mxu0 0.0
    %2832 = vmatpush1.msra.mxu0 1.0
    %2833 = vmatprep.subr.mxu0 0.0
    %2834 = vmatpush1.msra.mxu0 1.0
    %2835 = vmatprep.subr.mxu0 0.0
    %2836 = vmatpush1.msra.mxu0 1.0
    %2837 = vmatprep.subr.mxu0 0.0
    %2838 = vmatpush1.msra.mxu0 0.0
    %2839 = vmatprep.subr.mxu0 0.0
    %2840 = vmatpush1.msra.mxu0 0.0
    %2841 = vmatprep.subr.mxu0 0.0
    %2842 = vmatpush1.msra.mxu0 0.0
    %2843 = vmatprep.subr.mxu0 0.0
    %2844 = vmatpush1.msra.mxu0 0.0
    %2845 = vmatprep.subr.mxu0 0.0
    %2846 = vmatpush1.msra.mxu0 0.0
    %2847 = vmatprep.subr.mxu0 0.0
    %2848 = vmatpush1.msra.mxu0 0.0
    %2849 = vmatprep.subr.mxu0 0.0
    %2850 = vmatpush1.msra.mxu0 0.0
    %2851 = vmatprep.subr.mxu0 0.0
    %2852 = vmatpush1.msra.mxu0 0.0
    %2853 = vmatprep.subr.mxu0 0.0
    %2854 = vmatpush1.msra.mxu0 0.0
    %2855 = vmatprep.subr.mxu0 0.0
    %2856 = vmatpush1.msra.mxu0 0.0
    %2857 = vmatprep.subr.mxu0 0.0
    %2858 = vmatpush1.msra.mxu0 0.0
    %2859 = vmatprep.subr.mxu0 0.0
    %2860 = vmatpush1.msra.mxu0 0.0
    %2861 = vmatprep.subr.mxu0 0.0
    %2862 = vmatpush1.msra.mxu0 0.0
    %2863 = vmatprep.subr.mxu0 0.0
    %2864 = vmatpush1.msra.mxu0 0.0
    %2865 = vmatprep.subr.mxu0 0.0
    %2866 = vmatpush1.msra.mxu0 0.0
    %2867 = vmatprep.subr.mxu0 0.0
    %2868 = vmatpush1.msra.mxu0 0.0
    %2869 = vmatprep.subr.mxu0 0.0
    %2870 = vmatpush1.msra.mxu0 0.0
    %2871 = vmatprep.subr.mxu0 0.0
    %2872 = vmatpush1.msra.mxu0 0.0
    %2873 = vmatprep.subr.mxu0 0.0
    %2874 = vmatpush1.msra.mxu0 0.0
    %2875 = vmatprep.subr.mxu0 0.0
    %2876 = vmatpush1.msra.mxu0 0.0
    %2877 = vmatprep.subr.mxu0 0.0
    %2878 = vmatpush1.msra.mxu0 0.0
    %2879 = vmatprep.subr.mxu0 0.0
    %2880 = vmatpush1.msra.mxu0 0.0
    %2881 = vmatprep.subr.mxu0 0.0
    %2882 = vmatpush1.msra.mxu0 0.0
    %2883 = vmatprep.subr.mxu0 0.0
    %2884 = vmatpush1.msra.mxu0 0.0
    %2885 = vmatprep.subr.mxu0 0.0
    %2886 = vmatpush1.msra.mxu0 0.0
    %2887 = vmatprep.subr.mxu0 0.0
    %2888 = vmatpush1.msra.mxu0 0.0
    %2889 = vmatprep.subr.mxu0 0.0
    %2890 = vmatpush1.msra.mxu0 0.0
    %2891 = vmatprep.subr.mxu0 0.0
    %2892 = vmatpush1.msra.mxu0 0.0
    %2893 = vmatprep.mubr.f32.mxu0 0.0
    %2894 = vmatmul.mubr.f32.gmra.mrb[0].mxu0 %v2782
    %v2895 = vpop.f32.mrb[0].mxu0
    %v2896 = vadd.f32 1e-08, %v2895
    %v2897 = vpop.f32.mrb[0].mxu0
    %2898 = vmatprep.mubr.f32.mxu0 0.0
    %2899 = vmatmul.mubr.f32.gmra.mrb[0].mxu0 %v2785
    %v2900 = vpop.f32.mrb[0].mxu0
    %v2901 = vadd.f32 1e-08, %v2900
    %v2902 = vpop.f32.mrb[0].mxu0
    %2903 = vmatprep.mubr.f32.mxu0 0.0
    %2904 = vmatmul.mubr.f32.gmra.mrb[0].mxu0 %v2788
    %v2905 = vpop.f32.mrb[0].mxu0
    %v2906 = vadd.f32 1e-08, %v2905
    %v2907 = vpop.f32.mrb[0].mxu0
    %2908 = vmatprep.mubr.f32.mxu0 0.0
    %2909 = vmatmul.mubr.f32.gmra.mrb[0].mxu0 %v2791
    %v2910 = vpop.f32.mrb[0].mxu0
    %v2911 = vadd.f32 1e-08, %v2910
    %v2912 = vpop.f32.mrb[0].mxu0
    %2913 = vmatprep.mubr.f32.mxu0 0.0
    %2914 = vmatmul.mubr.f32.gmra.mrb[0].mxu0 %v2794
    %v2915 = vpop.f32.mrb[0].mxu0
    %v2916 = vadd.f32 1e-08, %v2915
    %v2917 = vpop.f32.mrb[0].mxu0
    %2918 = vmatprep.mubr.f32.mxu0 0.0
    %2919 = vmatmul.mubr.f32.gmra.mrb[0].mxu0 %v2797
    %v2920 = vpop.f32.mrb[0].mxu0
    %v2921 = vadd.f32 1e-08, %v2920
    %v2922 = vpop.f32.mrb[0].mxu0
    %2923 = vmatprep.mubr.f32.mxu0 0.0
    %2924 = vmatmul.mubr.f32.gmra.mrb[0].mxu0 %v2800
    %v2925 = vpop.f32.mrb[0].mxu0
    %v2926 = vadd.f32 1e-08, %v2925
    %v2927 = vpop.f32.mrb[0].mxu0
    %2928 = vmatprep.mubr.f32.mxu0 0.0
    %2929 = vmatmul.mubr.f32.gmra.mrb[0].mxu0 %v2803
    %v2930 = vpop.f32.mrb[0].mxu0
    %v2931 = vadd.f32 1e-08, %v2930
    %v2932 = vpop.f32.mrb[0].mxu0
    %2933 = vmatprep.mubr.f32.mxu0 0.0
    %2934 = vmatmul.mubr.f32.gmra.mrb[0].mxu0 %v2806
    %v2935 = vpop.f32.mrb[0].mxu0
    %v2936 = vadd.f32 1e-08, %v2935
    %v2937 = vpop.f32.mrb[0].mxu0
    %2938 = vmatprep.mubr.f32.mxu0 0.0
    %2939 = vmatmul.mubr.f32.gmra.mrb[0].mxu0 %v2809
    %v2940 = vpop.f32.mrb[0].mxu0
    %v2941 = vadd.f32 1e-08, %v2940
    %v2942 = vpop.f32.mrb[0].mxu0
    %2943 = vmatprep.mubr.f32.mxu0 0.0
    %2944 = vmatmul.mubr.f32.gmra.mrb[0].mxu0 %v2812
    %v2945 = vpop.f32.mrb[0].mxu0
    %v2946 = vadd.f32 1e-08, %v2945
    %v2947 = vpop.f32.mrb[0].mxu0
    %2948 = vmatprep.mubr.f32.mxu0 0.0
    %2949 = vmatmul.mubr.f32.gmra.mrb[0].mxu0 %v2815
    %v2950 = vpop.f32.mrb[0].mxu0
    %v2951 = vadd.f32 1e-08, %v2950
    %v2952 = vpop.f32.mrb[0].mxu0
    %2953 = vmatprep.mubr.f32.mxu0 0.0
    %2954 = vmatmul.mubr.f32.gmra.mrb[0].mxu0 %v2818
    %v2955 = vpop.f32.mrb[0].mxu0
    %v2956 = vadd.f32 1e-08, %v2955
    %v2957 = vpop.f32.mrb[0].mxu0
    %2958 = vmatprep.mubr.f32.mxu0 0.0
    %2959 = vmatmul.mubr.f32.gmra.mrb[0].mxu0 %v2821
    %v2960 = vpop.f32.mrb[0].mxu0
    %v2961 = vadd.f32 1e-08, %v2960
    %v2962 = vpop.f32.mrb[0].mxu0
    %2963 = vmatprep.mubr.f32.mxu0 0.0
    %2964 = vmatmul.mubr.f32.gmra.mrb[0].mxu0 %v2824
    %v2965 = vpop.f32.mrb[0].mxu0
    %v2966 = vadd.f32 1e-08, %v2965
    %v2967 = vpop.f32.mrb[0].mxu0
    %2968 = vmatprep.mubr.f32.mxu0 0.0
    %2969 = vmatmul.mubr.f32.gmra.mrb[0].mxu0 %v2827
    %v2970 = vpop.f32.mrb[0].mxu0
    %v2971 = vadd.f32 1e-08, %v2970
    %v2972 = vpop.f32.mrb[0].mxu0
    %2973 = vdwg.mxu0
    %v2974 = vrsqrt.pop %v2896
    %v2975 = vrsqrt.pop %v2901
    %v2976 = vrsqrt.pop %v2906
    %v2977 = vrsqrt.pop %v2911
    %v2978 = vrsqrt.pop %v2916
    %v2979 = vrsqrt.pop %v2921
    %v2980 = vrsqrt.pop %v2926
    %v2981 = vrsqrt.pop %v2931
    %v2982 = vrsqrt.pop %v2936
    %v2983 = vrsqrt.pop %v2941
    %v2984 = vrsqrt.pop %v2946
    %v2985 = vrsqrt.pop %v2951
    %v2986 = vrsqrt.pop %v2956
    %v2987 = vrsqrt.pop %v2961
    %v2988 = vrsqrt.pop %v2966
    %v2989 = vrsqrt.pop %v2971
    %2991 = vset.pattern.permute.xlu0 0
    %2992 = vperm.xlu0 %2991, %v2974
    %v2993 = vpop.permute.xlu0 %2992
    %2996 = vset.pattern.permute.xlu0 0
    %2997 = vperm.xlu0 %2996, %v2975
    %v2998 = vpop.permute.xlu0 %2997
    %3001 = vset.pattern.permute.xlu0 0
    %3002 = vperm.xlu0 %3001, %v2976
    %v3003 = vpop.permute.xlu0 %3002
    %3006 = vset.pattern.permute.xlu0 0
    %3007 = vperm.xlu0 %3006, %v2977
    %v3008 = vpop.permute.xlu0 %3007
    %3011 = vset.pattern.permute.xlu0 0
    %3012 = vperm.xlu0 %3011, %v2978
    %v3013 = vpop.permute.xlu0 %3012
    %3016 = vset.pattern.permute.xlu0 0
    %3017 = vperm.xlu0 %3016, %v2979
    %v3018 = vpop.permute.xlu0 %3017
    %3021 = vset.pattern.permute.xlu0 0
    %3022 = vperm.xlu0 %3021, %v2980
    %v3023 = vpop.permute.xlu0 %3022
    %3026 = vset.pattern.permute.xlu0 0
    %3027 = vperm.xlu0 %3026, %v2981
    %v3028 = vpop.permute.xlu0 %3027
    %3031 = vset.pattern.permute.xlu0 0
    %3032 = vperm.xlu0 %3031, %v2982
    %v3033 = vpop.permute.xlu0 %3032
    %3036 = vset.pattern.permute.xlu0 0
    %3037 = vperm.xlu0 %3036, %v2983
    %v3038 = vpop.permute.xlu0 %3037
    %3041 = vset.pattern.permute.xlu0 0
    %3042 = vperm.xlu0 %3041, %v2984
    %v3043 = vpop.permute.xlu0 %3042
    %3046 = vset.pattern.permute.xlu0 0
    %3047 = vperm.xlu0 %3046, %v2985
    %v3048 = vpop.permute.xlu0 %3047
    %3051 = vset.pattern.permute.xlu0 0
    %3052 = vperm.xlu0 %3051, %v2986
    %v3053 = vpop.permute.xlu0 %3052
    %3056 = vset.pattern.permute.xlu0 0
    %3057 = vperm.xlu0 %3056, %v2987
    %v3058 = vpop.permute.xlu0 %3057
    %3061 = vset.pattern.permute.xlu0 0
    %3062 = vperm.xlu0 %3061, %v2988
    %v3063 = vpop.permute.xlu0 %3062
    %3066 = vset.pattern.permute.xlu0 0
    %3067 = vperm.xlu0 %3066, %v2989
    %v3068 = vpop.permute.xlu0 %3067
    %v3070 = vmul.f32 %v2749, %v2993
    %v3071 = vmul.f32 %v2750, %v2998
    %v3072 = vmul.f32 %v2751, %v3003
    %v3073 = vmul.f32 %v2752, %v3008
    %v3074 = vmul.f32 %v2753, %v3013
    %v3075 = vmul.f32 %v2754, %v3018
    %v3076 = vmul.f32 %v2755, %v3023
    %v3077 = vmul.f32 %v2756, %v3028
    %v3078 = vmul.f32 %v2757, %v3033
    %v3079 = vmul.f32 %v2758, %v3038
    %v3080 = vmul.f32 %v2759, %v3043
    %v3081 = vmul.f32 %v2760, %v3048
    %v3082 = vmul.f32 %v2761, %v3053
    %v3083 = vmul.f32 %v2762, %v3058
    %v3084 = vmul.f32 %v2763, %v3063
    %v3085 = vmul.f32 %v2764, %v3068
    %s3086 = scalar_lea.vmem %s3, 64
    %v3087 = vld [vmem:[%s3086] sm:$0xff]
    %v3088 = vld [vmem:[%s3086 + $0x8] sm:$0xff]
    %v3089 = vld [vmem:[%s3086 + $0x10] sm:$0xff]
    %v3090 = vld [vmem:[%s3086 + $0x18] sm:$0xff]
    %v3092 = vsel %vm642, %v3070, 0
    %v3095 = vsel %vm642, %v3071, 0
    %v3098 = vsel %vm642, %v3072, 0
    %v3101 = vsel %vm642, %v3073, 0
    %v3104 = vsel %vm642, %v3074, 0
    %v3107 = vsel %vm642, %v3075, 0
    %v3110 = vsel %vm642, %v3076, 0
    %v3113 = vsel %vm642, %v3077, 0
    %v3116 = vsel %vm642, %v3078, 0
    %v3119 = vsel %vm642, %v3079, 0
    %v3122 = vsel %vm642, %v3080, 0
    %v3125 = vsel %vm642, %v3081, 0
    %v3128 = vsel %vm642, %v3082, 0
    %v3131 = vsel %vm642, %v3083, 0
    %v3134 = vsel %vm642, %v3084, 0
    %v3137 = vsel %vm642, %v3085, 0
    %3139 = vmatprep.subr.mxu0 0.0
    %3140 = vmatpush1.msra.mxu0 %v3087
    %3141 = vmatprep.subr.mxu0 0.0
    %3142 = vmatpush1.msra.mxu0 %v3088
    %3143 = vmatprep.subr.mxu0 0.0
    %3144 = vmatpush1.msra.mxu0 %v3089
    %3145 = vmatprep.subr.mxu0 0.0
    %3146 = vmatpush1.msra.mxu0 %v3090
    %3147 = vmatprep.subr.mxu0 0.0
    %3148 = vmatpush1.msra.mxu0 0.0
    %3149 = vmatprep.subr.mxu0 0.0
    %3150 = vmatpush1.msra.mxu0 0.0
    %3151 = vmatprep.subr.mxu0 0.0
    %3152 = vmatpush1.msra.mxu0 0.0
    %3153 = vmatprep.subr.mxu0 0.0
    %3154 = vmatpush1.msra.mxu0 0.0
    %3155 = vmatprep.subr.mxu0 0.0
    %3156 = vmatpush1.msra.mxu0 0.0
    %3157 = vmatprep.subr.mxu0 0.0
    %3158 = vmatpush1.msra.mxu0 0.0
    %3159 = vmatprep.subr.mxu0 0.0
    %3160 = vmatpush1.msra.mxu0 0.0
    %3161 = vmatprep.subr.mxu0 0.0
    %3162 = vmatpush1.msra.mxu0 0.0
    %3163 = vmatprep.subr.mxu0 0.0
    %3164 = vmatpush1.msra.mxu0 0.0
    %3165 = vmatprep.subr.mxu0 0.0
    %3166 = vmatpush1.msra.mxu0 0.0
    %3167 = vmatprep.subr.mxu0 0.0
    %3168 = vmatpush1.msra.mxu0 0.0
    %3169 = vmatprep.subr.mxu0 0.0
    %3170 = vmatpush1.msra.mxu0 0.0
    %3171 = vmatprep.subr.mxu0 0.0
    %3172 = vmatpush1.msra.mxu0 0.0
    %3173 = vmatprep.subr.mxu0 0.0
    %3174 = vmatpush1.msra.mxu0 0.0
    %3175 = vmatprep.subr.mxu0 0.0
    %3176 = vmatpush1.msra.mxu0 0.0
    %3177 = vmatprep.subr.mxu0 0.0
    %3178 = vmatpush1.msra.mxu0 0.0
    %3179 = vmatprep.subr.mxu0 0.0
    %3180 = vmatpush1.msra.mxu0 0.0
    %3181 = vmatprep.subr.mxu0 0.0
    %3182 = vmatpush1.msra.mxu0 0.0
    %3183 = vmatprep.subr.mxu0 0.0
    %3184 = vmatpush1.msra.mxu0 0.0
    %3185 = vmatprep.subr.mxu0 0.0
    %3186 = vmatpush1.msra.mxu0 0.0
    %3187 = vmatprep.subr.mxu0 0.0
    %3188 = vmatpush1.msra.mxu0 0.0
    %3189 = vmatprep.subr.mxu0 0.0
    %3190 = vmatpush1.msra.mxu0 0.0
    %3191 = vmatprep.subr.mxu0 0.0
    %3192 = vmatpush1.msra.mxu0 0.0
    %3193 = vmatprep.subr.mxu0 0.0
    %3194 = vmatpush1.msra.mxu0 0.0
    %3195 = vmatprep.subr.mxu0 0.0
    %3196 = vmatpush1.msra.mxu0 0.0
    %3197 = vmatprep.subr.mxu0 0.0
    %3198 = vmatpush1.msra.mxu0 0.0
    %3199 = vmatprep.subr.mxu0 0.0
    %3200 = vmatpush1.msra.mxu0 0.0
    %3201 = vmatprep.subr.mxu0 0.0
    %3202 = vmatpush1.msra.mxu0 0.0
    %3203 = vmatprep.mubr.f32.mxu0 0.0
    %3204 = vmatmul.mubr.f32.gmra.mrb[0].mxu0 %v3092
    %v3205 = vpop.f32.mrb[0].mxu0
    %v3206 = vadd.f32 0.0, %v3205
    %v3207 = vpop.f32.mrb[0].mxu0
    %3208 = vmatprep.mubr.f32.mxu0 0.0
    %3209 = vmatmul.mubr.f32.gmra.mrb[0].mxu0 %v3095
    %v3210 = vpop.f32.mrb[0].mxu0
    %v3211 = vadd.f32 0.0, %v3210
    %v3212 = vpop.f32.mrb[0].mxu0
    %3213 = vmatprep.mubr.f32.mxu0 0.0
    %3214 = vmatmul.mubr.f32.gmra.mrb[0].mxu0 %v3098
    %v3215 = vpop.f32.mrb[0].mxu0
    %v3216 = vadd.f32 0.0, %v3215
    %v3217 = vpop.f32.mrb[0].mxu0
    %3218 = vmatprep.mubr.f32.mxu0 0.0
    %3219 = vmatmul.mubr.f32.gmra.mrb[0].mxu0 %v3101
    %v3220 = vpop.f32.mrb[0].mxu0
    %v3221 = vadd.f32 0.0, %v3220
    %v3222 = vpop.f32.mrb[0].mxu0
    %3223 = vmatprep.mubr.f32.mxu0 0.0
    %3224 = vmatmul.mubr.f32.gmra.mrb[0].mxu0 %v3104
    %v3225 = vpop.f32.mrb[0].mxu0
    %v3226 = vadd.f32 0.0, %v3225
    %v3227 = vpop.f32.mrb[0].mxu0
    %3228 = vmatprep.mubr.f32.mxu0 0.0
    %3229 = vmatmul.mubr.f32.gmra.mrb[0].mxu0 %v3107
    %v3230 = vpop.f32.mrb[0].mxu0
    %v3231 = vadd.f32 0.0, %v3230
    %v3232 = vpop.f32.mrb[0].mxu0
    %3233 = vmatprep.mubr.f32.mxu0 0.0
    %3234 = vmatmul.mubr.f32.gmra.mrb[0].mxu0 %v3110
    %v3235 = vpop.f32.mrb[0].mxu0
    %v3236 = vadd.f32 0.0, %v3235
    %v3237 = vpop.f32.mrb[0].mxu0
    %3238 = vmatprep.mubr.f32.mxu0 0.0
    %3239 = vmatmul.mubr.f32.gmra.mrb[0].mxu0 %v3113
    %v3240 = vpop.f32.mrb[0].mxu0
    %v3241 = vadd.f32 0.0, %v3240
    %v3242 = vpop.f32.mrb[0].mxu0
    %3243 = vmatprep.mubr.f32.mxu0 0.0
    %3244 = vmatmul.mubr.f32.gmra.mrb[0].mxu0 %v3116
    %v3245 = vpop.f32.mrb[0].mxu0
    %v3246 = vadd.f32 0.0, %v3245
    %v3247 = vpop.f32.mrb[0].mxu0
    %3248 = vmatprep.mubr.f32.mxu0 0.0
    %3249 = vmatmul.mubr.f32.gmra.mrb[0].mxu0 %v3119
    %v3250 = vpop.f32.mrb[0].mxu0
    %v3251 = vadd.f32 0.0, %v3250
    %v3252 = vpop.f32.mrb[0].mxu0
    %3253 = vmatprep.mubr.f32.mxu0 0.0
    %3254 = vmatmul.mubr.f32.gmra.mrb[0].mxu0 %v3122
    %v3255 = vpop.f32.mrb[0].mxu0
    %v3256 = vadd.f32 0.0, %v3255
    %v3257 = vpop.f32.mrb[0].mxu0
    %3258 = vmatprep.mubr.f32.mxu0 0.0
    %3259 = vmatmul.mubr.f32.gmra.mrb[0].mxu0 %v3125
    %v3260 = vpop.f32.mrb[0].mxu0
    %v3261 = vadd.f32 0.0, %v3260
    %v3262 = vpop.f32.mrb[0].mxu0
    %3263 = vmatprep.mubr.f32.mxu0 0.0
    %3264 = vmatmul.mubr.f32.gmra.mrb[0].mxu0 %v3128
    %v3265 = vpop.f32.mrb[0].mxu0
    %v3266 = vadd.f32 0.0, %v3265
    %v3267 = vpop.f32.mrb[0].mxu0
    %3268 = vmatprep.mubr.f32.mxu0 0.0
    %3269 = vmatmul.mubr.f32.gmra.mrb[0].mxu0 %v3131
    %v3270 = vpop.f32.mrb[0].mxu0
    %v3271 = vadd.f32 0.0, %v3270
    %v3272 = vpop.f32.mrb[0].mxu0
    %3273 = vmatprep.mubr.f32.mxu0 0.0
    %3274 = vmatmul.mubr.f32.gmra.mrb[0].mxu0 %v3134
    %v3275 = vpop.f32.mrb[0].mxu0
    %v3276 = vadd.f32 0.0, %v3275
    %v3277 = vpop.f32.mrb[0].mxu0
    %3278 = vmatprep.mubr.f32.mxu0 0.0
    %3279 = vmatmul.mubr.f32.gmra.mrb[0].mxu0 %v3137
    %v3280 = vpop.f32.mrb[0].mxu0
    %v3281 = vadd.f32 0.0, %v3280
    %v3282 = vpop.f32.mrb[0].mxu0
    %3283 = vdwg.mxu0
    %3284 = vst [vmem:[#allocation2] sm:$0xff] %v3206
    %3285 = vst [vmem:[#allocation2 + $0x8] sm:$0xff] %v3211
    %3286 = vst [vmem:[#allocation2 + $0x10] sm:$0xff] %v3216
    %3287 = vst [vmem:[#allocation2 + $0x18] sm:$0xff] %v3221
    %3288 = vst [vmem:[#allocation2 + $0x20] sm:$0xff] %v3226
    %3289 = vst [vmem:[#allocation2 + $0x28] sm:$0xff] %v3231
    %3290 = vst [vmem:[#allocation2 + $0x30] sm:$0xff] %v3236
    %3291 = vst [vmem:[#allocation2 + $0x38] sm:$0xff] %v3241
    %3292 = vst [vmem:[#allocation2 + $0x40] sm:$0xff] %v3246
    %3293 = vst [vmem:[#allocation2 + $0x48] sm:$0xff] %v3251
    %3294 = vst [vmem:[#allocation2 + $0x50] sm:$0xff] %v3256
    %3295 = vst [vmem:[#allocation2 + $0x58] sm:$0xff] %v3261
    %3296 = vst [vmem:[#allocation2 + $0x60] sm:$0xff] %v3266
    %3297 = vst [vmem:[#allocation2 + $0x68] sm:$0xff] %v3271
    %3298 = vst [vmem:[#allocation2 + $0x70] sm:$0xff] %v3276
    %3299 = vst [vmem:[#allocation2 + $0x78] sm:$0xff] %v3281
    %s3300 = scalar_lea.vmem %s0, 128
    %v3301 = vld [vmem:[%s3300] sm:$0xff]
    %v3302 = vld [vmem:[%s3300 + $0x8] sm:$0xff]
    %v3303 = vld [vmem:[%s3300 + $0x10] sm:$0xff]
    %v3304 = vld [vmem:[%s3300 + $0x18] sm:$0xff]
    %v3305 = vld [vmem:[%s3300 + $0x20] sm:$0xff]
    %v3306 = vld [vmem:[%s3300 + $0x28] sm:$0xff]
    %v3307 = vld [vmem:[%s3300 + $0x30] sm:$0xff]
    %v3308 = vld [vmem:[%s3300 + $0x38] sm:$0xff]
    %v3309 = vld [vmem:[%s3300 + $0x40] sm:$0xff]
    %v3310 = vld [vmem:[%s3300 + $0x48] sm:$0xff]
    %v3311 = vld [vmem:[%s3300 + $0x50] sm:$0xff]
    %v3312 = vld [vmem:[%s3300 + $0x58] sm:$0xff]
    %v3313 = vld [vmem:[%s3300 + $0x60] sm:$0xff]
    %v3314 = vld [vmem:[%s3300 + $0x68] sm:$0xff]
    %v3315 = vld [vmem:[%s3300 + $0x70] sm:$0xff]
    %v3316 = vld [vmem:[%s3300 + $0x78] sm:$0xff]
    %v3317 = vmul.f32 %v3301, %v45
    %v3318 = vmul.f32 %v3302, %v45
    %v3319 = vmul.f32 %v3303, %v45
    %v3320 = vmul.f32 %v3304, %v45
    %v3321 = vmul.f32 %v3305, %v45
    %v3322 = vmul.f32 %v3306, %v45
    %v3323 = vmul.f32 %v3307, %v45
    %v3324 = vmul.f32 %v3308, %v45
    %v3325 = vmul.f32 %v3309, %v45
    %v3326 = vmul.f32 %v3310, %v45
    %v3327 = vmul.f32 %v3311, %v45
    %v3328 = vmul.f32 %v3312, %v45
    %v3329 = vmul.f32 %v3313, %v45
    %v3330 = vmul.f32 %v3314, %v45
    %v3331 = vmul.f32 %v3315, %v45
    %v3332 = vmul.f32 %v3316, %v45
    %v3333 = vadd.f32 %v3317, %v65
    %v3334 = vadd.f32 %v3318, %v65
    %v3335 = vadd.f32 %v3319, %v65
    %v3336 = vadd.f32 %v3320, %v65
    %v3337 = vadd.f32 %v3321, %v65
    %v3338 = vadd.f32 %v3322, %v65
    %v3339 = vadd.f32 %v3323, %v65
    %v3340 = vadd.f32 %v3324, %v65
    %v3341 = vadd.f32 %v3325, %v65
    %v3342 = vadd.f32 %v3326, %v65
    %v3343 = vadd.f32 %v3327, %v65
    %v3344 = vadd.f32 %v3328, %v65
    %v3345 = vadd.f32 %v3329, %v65
    %v3346 = vadd.f32 %v3330, %v65
    %v3347 = vadd.f32 %v3331, %v65
    %v3348 = vadd.f32 %v3332, %v65
    %v3349 = vmul.f32 %v3333, %v3333
    %v3350 = vmul.f32 %v3334, %v3334
    %v3351 = vmul.f32 %v3335, %v3335
    %v3352 = vmul.f32 %v3336, %v3336
    %v3353 = vmul.f32 %v3337, %v3337
    %v3354 = vmul.f32 %v3338, %v3338
    %v3355 = vmul.f32 %v3339, %v3339
    %v3356 = vmul.f32 %v3340, %v3340
    %v3357 = vmul.f32 %v3341, %v3341
    %v3358 = vmul.f32 %v3342, %v3342
    %v3359 = vmul.f32 %v3343, %v3343
    %v3360 = vmul.f32 %v3344, %v3344
    %v3361 = vmul.f32 %v3345, %v3345
    %v3362 = vmul.f32 %v3346, %v3346
    %v3363 = vmul.f32 %v3347, %v3347
    %v3364 = vmul.f32 %v3348, %v3348
    %v3366 = vsel %vm98, %v3349, 0
    %v3369 = vsel %vm98, %v3350, 0
    %v3372 = vsel %vm98, %v3351, 0
    %v3375 = vsel %vm98, %v3352, 0
    %v3378 = vsel %vm98, %v3353, 0
    %v3381 = vsel %vm98, %v3354, 0
    %v3384 = vsel %vm98, %v3355, 0
    %v3387 = vsel %vm98, %v3356, 0
    %v3390 = vsel %vm98, %v3357, 0
    %v3393 = vsel %vm98, %v3358, 0
    %v3396 = vsel %vm98, %v3359, 0
    %v3399 = vsel %vm98, %v3360, 0
    %v3402 = vsel %vm98, %v3361, 0
    %v3405 = vsel %vm98, %v3362, 0
    %v3408 = vsel %vm98, %v3363, 0
    %v3411 = vsel %vm98, %v3364, 0
    %3413 = vmatprep.subr.mxu0 0.0
    %3414 = vmatpush1.msra.mxu0 1.0
    %3415 = vmatprep.subr.mxu0 0.0
    %3416 = vmatpush1.msra.mxu0 %v149
    %3417 = vmatprep.subr.mxu0 0.0
    %3418 = vmatpush1.msra.mxu0 0.0
    %3419 = vmatprep.subr.mxu0 0.0
    %3420 = vmatpush1.msra.mxu0 0.0
    %3421 = vmatprep.subr.mxu0 0.0
    %3422 = vmatpush1.msra.mxu0 0.0
    %3423 = vmatprep.subr.mxu0 0.0
    %3424 = vmatpush1.msra.mxu0 0.0
    %3425 = vmatprep.subr.mxu0 0.0
    %3426 = vmatpush1.msra.mxu0 0.0
    %3427 = vmatprep.subr.mxu0 0.0
    %3428 = vmatpush1.msra.mxu0 0.0
    %3429 = vmatprep.subr.mxu0 0.0
    %3430 = vmatpush1.msra.mxu0 0.0
    %3431 = vmatprep.subr.mxu0 0.0
    %3432 = vmatpush1.msra.mxu0 0.0
    %3433 = vmatprep.subr.mxu0 0.0
    %3434 = vmatpush1.msra.mxu0 0.0
    %3435 = vmatprep.subr.mxu0 0.0
    %3436 = vmatpush1.msra.mxu0 0.0
    %3437 = vmatprep.subr.mxu0 0.0
    %3438 = vmatpush1.msra.mxu0 0.0
    %3439 = vmatprep.subr.mxu0 0.0
    %3440 = vmatpush1.msra.mxu0 0.0
    %3441 = vmatprep.subr.mxu0 0.0
    %3442 = vmatpush1.msra.mxu0 0.0
    %3443 = vmatprep.subr.mxu0 0.0
    %3444 = vmatpush1.msra.mxu0 0.0
    %3445 = vmatprep.subr.mxu0 0.0
    %3446 = vmatpush1.msra.mxu0 0.0
    %3447 = vmatprep.subr.mxu0 0.0
    %3448 = vmatpush1.msra.mxu0 0.0
    %3449 = vmatprep.subr.mxu0 0.0
    %3450 = vmatpush1.msra.mxu0 0.0
    %3451 = vmatprep.subr.mxu0 0.0
    %3452 = vmatpush1.msra.mxu0 0.0
    %3453 = vmatprep.subr.mxu0 0.0
    %3454 = vmatpush1.msra.mxu0 0.0
    %3455 = vmatprep.subr.mxu0 0.0
    %3456 = vmatpush1.msra.mxu0 0.0
    %3457 = vmatprep.subr.mxu0 0.0
    %3458 = vmatpush1.msra.mxu0 0.0
    %3459 = vmatprep.subr.mxu0 0.0
    %3460 = vmatpush1.msra.mxu0 0.0
    %3461 = vmatprep.subr.mxu0 0.0
    %3462 = vmatpush1.msra.mxu0 0.0
    %3463 = vmatprep.subr.mxu0 0.0
    %3464 = vmatpush1.msra.mxu0 0.0
    %3465 = vmatprep.subr.mxu0 0.0
    %3466 = vmatpush1.msra.mxu0 0.0
    %3467 = vmatprep.subr.mxu0 0.0
    %3468 = vmatpush1.msra.mxu0 0.0
    %3469 = vmatprep.subr.mxu0 0.0
    %3470 = vmatpush1.msra.mxu0 0.0
    %3471 = vmatprep.subr.mxu0 0.0
    %3472 = vmatpush1.msra.mxu0 0.0
    %3473 = vmatprep.subr.mxu0 0.0
    %3474 = vmatpush1.msra.mxu0 0.0
    %3475 = vmatprep.subr.mxu0 0.0
    %3476 = vmatpush1.msra.mxu0 0.0
    %3477 = vmatprep.mubr.f32.mxu0 0.0
    %3478 = vmatmul.mubr.f32.gmra.mrb[0].mxu0 %v3366
    %v3479 = vpop.f32.mrb[0].mxu0
    %v3480 = vadd.f32 9.0, %v3479
    %v3481 = vpop.f32.mrb[0].mxu0
    %3482 = vmatprep.mubr.f32.mxu0 0.0
    %3483 = vmatmul.mubr.f32.gmra.mrb[0].mxu0 %v3369
    %v3484 = vpop.f32.mrb[0].mxu0
    %v3485 = vadd.f32 9.0, %v3484
    %v3486 = vpop.f32.mrb[0].mxu0
    %3487 = vmatprep.mubr.f32.mxu0 0.0
    %3488 = vmatmul.mubr.f32.gmra.mrb[0].mxu0 %v3372
    %v3489 = vpop.f32.mrb[0].mxu0
    %v3490 = vadd.f32 9.0, %v3489
    %v3491 = vpop.f32.mrb[0].mxu0
    %3492 = vmatprep.mubr.f32.mxu0 0.0
    %3493 = vmatmul.mubr.f32.gmra.mrb[0].mxu0 %v3375
    %v3494 = vpop.f32.mrb[0].mxu0
    %v3495 = vadd.f32 9.0, %v3494
    %v3496 = vpop.f32.mrb[0].mxu0
    %3497 = vmatprep.mubr.f32.mxu0 0.0
    %3498 = vmatmul.mubr.f32.gmra.mrb[0].mxu0 %v3378
    %v3499 = vpop.f32.mrb[0].mxu0
    %v3500 = vadd.f32 9.0, %v3499
    %v3501 = vpop.f32.mrb[0].mxu0
    %3502 = vmatprep.mubr.f32.mxu0 0.0
    %3503 = vmatmul.mubr.f32.gmra.mrb[0].mxu0 %v3381
    %v3504 = vpop.f32.mrb[0].mxu0
    %v3505 = vadd.f32 9.0, %v3504
    %v3506 = vpop.f32.mrb[0].mxu0
    %3507 = vmatprep.mubr.f32.mxu0 0.0
    %3508 = vmatmul.mubr.f32.gmra.mrb[0].mxu0 %v3384
    %v3509 = vpop.f32.mrb[0].mxu0
    %v3510 = vadd.f32 9.0, %v3509
    %v3511 = vpop.f32.mrb[0].mxu0
    %3512 = vmatprep.mubr.f32.mxu0 0.0
    %3513 = vmatmul.mubr.f32.gmra.mrb[0].mxu0 %v3387
    %v3514 = vpop.f32.mrb[0].mxu0
    %v3515 = vadd.f32 9.0, %v3514
    %v3516 = vpop.f32.mrb[0].mxu0
    %3517 = vmatprep.mubr.f32.mxu0 0.0
    %3518 = vmatmul.mubr.f32.gmra.mrb[0].mxu0 %v3390
    %v3519 = vpop.f32.mrb[0].mxu0
    %v3520 = vadd.f32 9.0, %v3519
    %v3521 = vpop.f32.mrb[0].mxu0
    %3522 = vmatprep.mubr.f32.mxu0 0.0
    %3523 = vmatmul.mubr.f32.gmra.mrb[0].mxu0 %v3393
    %v3524 = vpop.f32.mrb[0].mxu0
    %v3525 = vadd.f32 9.0, %v3524
    %v3526 = vpop.f32.mrb[0].mxu0
    %3527 = vmatprep.mubr.f32.mxu0 0.0
    %3528 = vmatmul.mubr.f32.gmra.mrb[0].mxu0 %v3396
    %v3529 = vpop.f32.mrb[0].mxu0
    %v3530 = vadd.f32 9.0, %v3529
    %v3531 = vpop.f32.mrb[0].mxu0
    %3532 = vmatprep.mubr.f32.mxu0 0.0
    %3533 = vmatmul.mubr.f32.gmra.mrb[0].mxu0 %v3399
    %v3534 = vpop.f32.mrb[0].mxu0
    %v3535 = vadd.f32 9.0, %v3534
    %v3536 = vpop.f32.mrb[0].mxu0
    %3537 = vmatprep.mubr.f32.mxu0 0.0
    %3538 = vmatmul.mubr.f32.gmra.mrb[0].mxu0 %v3402
    %v3539 = vpop.f32.mrb[0].mxu0
    %v3540 = vadd.f32 9.0, %v3539
    %v3541 = vpop.f32.mrb[0].mxu0
    %3542 = vmatprep.mubr.f32.mxu0 0.0
    %3543 = vmatmul.mubr.f32.gmra.mrb[0].mxu0 %v3405
    %v3544 = vpop.f32.mrb[0].mxu0
    %v3545 = vadd.f32 9.0, %v3544
    %v3546 = vpop.f32.mrb[0].mxu0
    %3547 = vmatprep.mubr.f32.mxu0 0.0
    %3548 = vmatmul.mubr.f32.gmra.mrb[0].mxu0 %v3408
    %v3549 = vpop.f32.mrb[0].mxu0
    %v3550 = vadd.f32 9.0, %v3549
    %v3551 = vpop.f32.mrb[0].mxu0
    %3552 = vmatprep.mubr.f32.mxu0 0.0
    %3553 = vmatmul.mubr.f32.gmra.mrb[0].mxu0 %v3411
    %v3554 = vpop.f32.mrb[0].mxu0
    %v3555 = vadd.f32 9.0, %v3554
    %v3556 = vpop.f32.mrb[0].mxu0
    %3557 = vdwg.mxu0
    %v3558 = vadd.f32 %v3480, 1e-08
    %v3559 = vadd.f32 %v3485, 1e-08
    %v3560 = vadd.f32 %v3490, 1e-08
    %v3561 = vadd.f32 %v3495, 1e-08
    %v3562 = vadd.f32 %v3500, 1e-08
    %v3563 = vadd.f32 %v3505, 1e-08
    %v3564 = vadd.f32 %v3510, 1e-08
    %v3565 = vadd.f32 %v3515, 1e-08
    %v3566 = vadd.f32 %v3520, 1e-08
    %v3567 = vadd.f32 %v3525, 1e-08
    %v3568 = vadd.f32 %v3530, 1e-08
    %v3569 = vadd.f32 %v3535, 1e-08
    %v3570 = vadd.f32 %v3540, 1e-08
    %v3571 = vadd.f32 %v3545, 1e-08
    %v3572 = vadd.f32 %v3550, 1e-08
    %v3573 = vadd.f32 %v3555, 1e-08
    %v3574 = vrsqrt.pop %v3558
    %v3575 = vrsqrt.pop %v3559
    %v3576 = vrsqrt.pop %v3560
    %v3577 = vrsqrt.pop %v3561
    %v3578 = vrsqrt.pop %v3562
    %v3579 = vrsqrt.pop %v3563
    %v3580 = vrsqrt.pop %v3564
    %v3581 = vrsqrt.pop %v3565
    %v3582 = vrsqrt.pop %v3566
    %v3583 = vrsqrt.pop %v3567
    %v3584 = vrsqrt.pop %v3568
    %v3585 = vrsqrt.pop %v3569
    %v3586 = vrsqrt.pop %v3570
    %v3587 = vrsqrt.pop %v3571
    %v3588 = vrsqrt.pop %v3572
    %v3589 = vrsqrt.pop %v3573
    %v3590 = vld [vmem:[%s2] sm:$0xff]
    %v3591 = vld [vmem:[%s2 + $0x8] sm:$0xf]
    %v3593 = vsel %vm98, %v3333, 0
    %v3596 = vsel %vm98, %v3334, 0
    %v3599 = vsel %vm98, %v3335, 0
    %v3602 = vsel %vm98, %v3336, 0
    %v3605 = vsel %vm98, %v3337, 0
    %v3608 = vsel %vm98, %v3338, 0
    %v3611 = vsel %vm98, %v3339, 0
    %v3614 = vsel %vm98, %v3340, 0
    %v3617 = vsel %vm98, %v3341, 0
    %v3620 = vsel %vm98, %v3342, 0
    %v3623 = vsel %vm98, %v3343, 0
    %v3626 = vsel %vm98, %v3344, 0
    %v3629 = vsel %vm98, %v3345, 0
    %v3632 = vsel %vm98, %v3346, 0
    %v3635 = vsel %vm98, %v3347, 0
    %v3638 = vsel %vm98, %v3348, 0
    %v3641 = vsel %vm147, %v3591, 0
    %3643 = vmatprep.subr.mxu0 0.0
    %3644 = vmatpush1.msra.mxu0 %v3590
    %3645 = vmatprep.subr.mxu0 0.0
    %3646 = vmatpush1.msra.mxu0 %v3641
    %3647 = vmatprep.subr.mxu0 0.0
    %3648 = vmatpush1.msra.mxu0 0.0
    %3649 = vmatprep.subr.mxu0 0.0
    %3650 = vmatpush1.msra.mxu0 0.0
    %3651 = vmatprep.subr.mxu0 0.0
    %3652 = vmatpush1.msra.mxu0 0.0
    %3653 = vmatprep.subr.mxu0 0.0
    %3654 = vmatpush1.msra.mxu0 0.0
    %3655 = vmatprep.subr.mxu0 0.0
    %3656 = vmatpush1.msra.mxu0 0.0
    %3657 = vmatprep.subr.mxu0 0.0
    %3658 = vmatpush1.msra.mxu0 0.0
    %3659 = vmatprep.subr.mxu0 0.0
    %3660 = vmatpush1.msra.mxu0 0.0
    %3661 = vmatprep.subr.mxu0 0.0
    %3662 = vmatpush1.msra.mxu0 0.0
    %3663 = vmatprep.subr.mxu0 0.0
    %3664 = vmatpush1.msra.mxu0 0.0
    %3665 = vmatprep.subr.mxu0 0.0
    %3666 = vmatpush1.msra.mxu0 0.0
    %3667 = vmatprep.subr.mxu0 0.0
    %3668 = vmatpush1.msra.mxu0 0.0
    %3669 = vmatprep.subr.mxu0 0.0
    %3670 = vmatpush1.msra.mxu0 0.0
    %3671 = vmatprep.subr.mxu0 0.0
    %3672 = vmatpush1.msra.mxu0 0.0
    %3673 = vmatprep.subr.mxu0 0.0
    %3674 = vmatpush1.msra.mxu0 0.0
    %3675 = vmatprep.subr.mxu0 0.0
    %3676 = vmatpush1.msra.mxu0 0.0
    %3677 = vmatprep.subr.mxu0 0.0
    %3678 = vmatpush1.msra.mxu0 0.0
    %3679 = vmatprep.subr.mxu0 0.0
    %3680 = vmatpush1.msra.mxu0 0.0
    %3681 = vmatprep.subr.mxu0 0.0
    %3682 = vmatpush1.msra.mxu0 0.0
    %3683 = vmatprep.subr.mxu0 0.0
    %3684 = vmatpush1.msra.mxu0 0.0
    %3685 = vmatprep.subr.mxu0 0.0
    %3686 = vmatpush1.msra.mxu0 0.0
    %3687 = vmatprep.subr.mxu0 0.0
    %3688 = vmatpush1.msra.mxu0 0.0
    %3689 = vmatprep.subr.mxu0 0.0
    %3690 = vmatpush1.msra.mxu0 0.0
    %3691 = vmatprep.subr.mxu0 0.0
    %3692 = vmatpush1.msra.mxu0 0.0
    %3693 = vmatprep.subr.mxu0 0.0
    %3694 = vmatpush1.msra.mxu0 0.0
    %3695 = vmatprep.subr.mxu0 0.0
    %3696 = vmatpush1.msra.mxu0 0.0
    %3697 = vmatprep.subr.mxu0 0.0
    %3698 = vmatpush1.msra.mxu0 0.0
    %3699 = vmatprep.subr.mxu0 0.0
    %3700 = vmatpush1.msra.mxu0 0.0
    %3701 = vmatprep.subr.mxu0 0.0
    %3702 = vmatpush1.msra.mxu0 0.0
    %3703 = vmatprep.subr.mxu0 0.0
    %3704 = vmatpush1.msra.mxu0 0.0
    %3705 = vmatprep.subr.mxu0 0.0
    %3706 = vmatpush1.msra.mxu0 0.0
    %3707 = vmatprep.mubr.f32.mxu0 0.0
    %3708 = vmatmul.mubr.f32.gmra.mrb[0].mxu0 %v3593
    %v3709 = vpop.f32.mrb[0].mxu0
    %v3710 = vadd.f32 %v333, %v3709
    %v3711 = vpop.f32.mrb[0].mxu0
    %3712 = vmatprep.mubr.f32.mxu0 0.0
    %3713 = vmatmul.mubr.f32.gmra.mrb[0].mxu0 %v3596
    %v3714 = vpop.f32.mrb[0].mxu0
    %v3715 = vadd.f32 %v333, %v3714
    %v3716 = vpop.f32.mrb[0].mxu0
    %3717 = vmatprep.mubr.f32.mxu0 0.0
    %3718 = vmatmul.mubr.f32.gmra.mrb[0].mxu0 %v3599
    %v3719 = vpop.f32.mrb[0].mxu0
    %v3720 = vadd.f32 %v333, %v3719
    %v3721 = vpop.f32.mrb[0].mxu0
    %3722 = vmatprep.mubr.f32.mxu0 0.0
    %3723 = vmatmul.mubr.f32.gmra.mrb[0].mxu0 %v3602
    %v3724 = vpop.f32.mrb[0].mxu0
    %v3725 = vadd.f32 %v333, %v3724
    %v3726 = vpop.f32.mrb[0].mxu0
    %3727 = vmatprep.mubr.f32.mxu0 0.0
    %3728 = vmatmul.mubr.f32.gmra.mrb[0].mxu0 %v3605
    %v3729 = vpop.f32.mrb[0].mxu0
    %v3730 = vadd.f32 %v333, %v3729
    %v3731 = vpop.f32.mrb[0].mxu0
    %3732 = vmatprep.mubr.f32.mxu0 0.0
    %3733 = vmatmul.mubr.f32.gmra.mrb[0].mxu0 %v3608
    %v3734 = vpop.f32.mrb[0].mxu0
    %v3735 = vadd.f32 %v333, %v3734
    %v3736 = vpop.f32.mrb[0].mxu0
    %3737 = vmatprep.mubr.f32.mxu0 0.0
    %3738 = vmatmul.mubr.f32.gmra.mrb[0].mxu0 %v3611
    %v3739 = vpop.f32.mrb[0].mxu0
    %v3740 = vadd.f32 %v333, %v3739
    %v3741 = vpop.f32.mrb[0].mxu0
    %3742 = vmatprep.mubr.f32.mxu0 0.0
    %3743 = vmatmul.mubr.f32.gmra.mrb[0].mxu0 %v3614
    %v3744 = vpop.f32.mrb[0].mxu0
    %v3745 = vadd.f32 %v333, %v3744
    %v3746 = vpop.f32.mrb[0].mxu0
    %3747 = vmatprep.mubr.f32.mxu0 0.0
    %3748 = vmatmul.mubr.f32.gmra.mrb[0].mxu0 %v3617
    %v3749 = vpop.f32.mrb[0].mxu0
    %v3750 = vadd.f32 %v333, %v3749
    %v3751 = vpop.f32.mrb[0].mxu0
    %3752 = vmatprep.mubr.f32.mxu0 0.0
    %3753 = vmatmul.mubr.f32.gmra.mrb[0].mxu0 %v3620
    %v3754 = vpop.f32.mrb[0].mxu0
    %v3755 = vadd.f32 %v333, %v3754
    %v3756 = vpop.f32.mrb[0].mxu0
    %3757 = vmatprep.mubr.f32.mxu0 0.0
    %3758 = vmatmul.mubr.f32.gmra.mrb[0].mxu0 %v3623
    %v3759 = vpop.f32.mrb[0].mxu0
    %v3760 = vadd.f32 %v333, %v3759
    %v3761 = vpop.f32.mrb[0].mxu0
    %3762 = vmatprep.mubr.f32.mxu0 0.0
    %3763 = vmatmul.mubr.f32.gmra.mrb[0].mxu0 %v3626
    %v3764 = vpop.f32.mrb[0].mxu0
    %v3765 = vadd.f32 %v333, %v3764
    %v3766 = vpop.f32.mrb[0].mxu0
    %3767 = vmatprep.mubr.f32.mxu0 0.0
    %3768 = vmatmul.mubr.f32.gmra.mrb[0].mxu0 %v3629
    %v3769 = vpop.f32.mrb[0].mxu0
    %v3770 = vadd.f32 %v333, %v3769
    %v3771 = vpop.f32.mrb[0].mxu0
    %3772 = vmatprep.mubr.f32.mxu0 0.0
    %3773 = vmatmul.mubr.f32.gmra.mrb[0].mxu0 %v3632
    %v3774 = vpop.f32.mrb[0].mxu0
    %v3775 = vadd.f32 %v333, %v3774
    %v3776 = vpop.f32.mrb[0].mxu0
    %3777 = vmatprep.mubr.f32.mxu0 0.0
    %3778 = vmatmul.mubr.f32.gmra.mrb[0].mxu0 %v3635
    %v3779 = vpop.f32.mrb[0].mxu0
    %v3780 = vadd.f32 %v333, %v3779
    %v3781 = vpop.f32.mrb[0].mxu0
    %3782 = vmatprep.mubr.f32.mxu0 0.0
    %3783 = vmatmul.mubr.f32.gmra.mrb[0].mxu0 %v3638
    %v3784 = vpop.f32.mrb[0].mxu0
    %v3785 = vadd.f32 %v333, %v3784
    %v3786 = vpop.f32.mrb[0].mxu0
    %3787 = vdwg.mxu0
    %3789 = vset.pattern.permute.xlu0 0
    %3790 = vperm.xlu0 %3789, %v3574
    %v3791 = vpop.permute.xlu0 %3790
    %3794 = vset.pattern.permute.xlu0 0
    %3795 = vperm.xlu0 %3794, %v3575
    %v3796 = vpop.permute.xlu0 %3795
    %3799 = vset.pattern.permute.xlu0 0
    %3800 = vperm.xlu0 %3799, %v3576
    %v3801 = vpop.permute.xlu0 %3800
    %3804 = vset.pattern.permute.xlu0 0
    %3805 = vperm.xlu0 %3804, %v3577
    %v3806 = vpop.permute.xlu0 %3805
    %3809 = vset.pattern.permute.xlu0 0
    %3810 = vperm.xlu0 %3809, %v3578
    %v3811 = vpop.permute.xlu0 %3810
    %3814 = vset.pattern.permute.xlu0 0
    %3815 = vperm.xlu0 %3814, %v3579
    %v3816 = vpop.permute.xlu0 %3815
    %3819 = vset.pattern.permute.xlu0 0
    %3820 = vperm.xlu0 %3819, %v3580
    %v3821 = vpop.permute.xlu0 %3820
    %3824 = vset.pattern.permute.xlu0 0
    %3825 = vperm.xlu0 %3824, %v3581
    %v3826 = vpop.permute.xlu0 %3825
    %3829 = vset.pattern.permute.xlu0 0
    %3830 = vperm.xlu0 %3829, %v3582
    %v3831 = vpop.permute.xlu0 %3830
    %3834 = vset.pattern.permute.xlu0 0
    %3835 = vperm.xlu0 %3834, %v3583
    %v3836 = vpop.permute.xlu0 %3835
    %3839 = vset.pattern.permute.xlu0 0
    %3840 = vperm.xlu0 %3839, %v3584
    %v3841 = vpop.permute.xlu0 %3840
    %3844 = vset.pattern.permute.xlu0 0
    %3845 = vperm.xlu0 %3844, %v3585
    %v3846 = vpop.permute.xlu0 %3845
    %3849 = vset.pattern.permute.xlu0 0
    %3850 = vperm.xlu0 %3849, %v3586
    %v3851 = vpop.permute.xlu0 %3850
    %3854 = vset.pattern.permute.xlu0 0
    %3855 = vperm.xlu0 %3854, %v3587
    %v3856 = vpop.permute.xlu0 %3855
    %3859 = vset.pattern.permute.xlu0 0
    %3860 = vperm.xlu0 %3859, %v3588
    %v3861 = vpop.permute.xlu0 %3860
    %3864 = vset.pattern.permute.xlu0 0
    %3865 = vperm.xlu0 %3864, %v3589
    %v3866 = vpop.permute.xlu0 %3865
    %v3868 = vmul.f32 %v3710, %v3791
    %v3869 = vmul.f32 %v3715, %v3796
    %v3870 = vmul.f32 %v3720, %v3801
    %v3871 = vmul.f32 %v3725, %v3806
    %v3872 = vmul.f32 %v3730, %v3811
    %v3873 = vmul.f32 %v3735, %v3816
    %v3874 = vmul.f32 %v3740, %v3821
    %v3875 = vmul.f32 %v3745, %v3826
    %v3876 = vmul.f32 %v3750, %v3831
    %v3877 = vmul.f32 %v3755, %v3836
    %v3878 = vmul.f32 %v3760, %v3841
    %v3879 = vmul.f32 %v3765, %v3846
    %v3880 = vmul.f32 %v3770, %v3851
    %v3881 = vmul.f32 %v3775, %v3856
    %v3882 = vmul.f32 %v3780, %v3861
    %v3883 = vmul.f32 %v3785, %v3866
    %v3884 = vmul.f32 %v3868, %v3868
    %v3885 = vmul.f32 %v3869, %v3869
    %v3886 = vmul.f32 %v3870, %v3870
    %v3887 = vmul.f32 %v3871, %v3871
    %v3888 = vmul.f32 %v3872, %v3872
    %v3889 = vmul.f32 %v3873, %v3873
    %v3890 = vmul.f32 %v3874, %v3874
    %v3891 = vmul.f32 %v3875, %v3875
    %v3892 = vmul.f32 %v3876, %v3876
    %v3893 = vmul.f32 %v3877, %v3877
    %v3894 = vmul.f32 %v3878, %v3878
    %v3895 = vmul.f32 %v3879, %v3879
    %v3896 = vmul.f32 %v3880, %v3880
    %v3897 = vmul.f32 %v3881, %v3881
    %v3898 = vmul.f32 %v3882, %v3882
    %v3899 = vmul.f32 %v3883, %v3883
    %v3901 = vsel %vm642, %v3884, 0
    %v3904 = vsel %vm642, %v3885, 0
    %v3907 = vsel %vm642, %v3886, 0
    %v3910 = vsel %vm642, %v3887, 0
    %v3913 = vsel %vm642, %v3888, 0
    %v3916 = vsel %vm642, %v3889, 0
    %v3919 = vsel %vm642, %v3890, 0
    %v3922 = vsel %vm642, %v3891, 0
    %v3925 = vsel %vm642, %v3892, 0
    %v3928 = vsel %vm642, %v3893, 0
    %v3931 = vsel %vm642, %v3894, 0
    %v3934 = vsel %vm642, %v3895, 0
    %v3937 = vsel %vm642, %v3896, 0
    %v3940 = vsel %vm642, %v3897, 0
    %v3943 = vsel %vm642, %v3898, 0
    %v3946 = vsel %vm642, %v3899, 0
    %3948 = vmatprep.subr.mxu0 0.0
    %3949 = vmatpush1.msra.mxu0 1.0
    %3950 = vmatprep.subr.mxu0 0.0
    %3951 = vmatpush1.msra.mxu0 1.0
    %3952 = vmatprep.subr.mxu0 0.0
    %3953 = vmatpush1.msra.mxu0 1.0
    %3954 = vmatprep.subr.mxu0 0.0
    %3955 = vmatpush1.msra.mxu0 1.0
    %3956 = vmatprep.subr.mxu0 0.0
    %3957 = vmatpush1.msra.mxu0 0.0
    %3958 = vmatprep.subr.mxu0 0.0
    %3959 = vmatpush1.msra.mxu0 0.0
    %3960 = vmatprep.subr.mxu0 0.0
    %3961 = vmatpush1.msra.mxu0 0.0
    %3962 = vmatprep.subr.mxu0 0.0
    %3963 = vmatpush1.msra.mxu0 0.0
    %3964 = vmatprep.subr.mxu0 0.0
    %3965 = vmatpush1.msra.mxu0 0.0
    %3966 = vmatprep.subr.mxu0 0.0
    %3967 = vmatpush1.msra.mxu0 0.0
    %3968 = vmatprep.subr.mxu0 0.0
    %3969 = vmatpush1.msra.mxu0 0.0
    %3970 = vmatprep.subr.mxu0 0.0
    %3971 = vmatpush1.msra.mxu0 0.0
    %3972 = vmatprep.subr.mxu0 0.0
    %3973 = vmatpush1.msra.mxu0 0.0
    %3974 = vmatprep.subr.mxu0 0.0
    %3975 = vmatpush1.msra.mxu0 0.0
    %3976 = vmatprep.subr.mxu0 0.0
    %3977 = vmatpush1.msra.mxu0 0.0
    %3978 = vmatprep.subr.mxu0 0.0
    %3979 = vmatpush1.msra.mxu0 0.0
    %3980 = vmatprep.subr.mxu0 0.0
    %3981 = vmatpush1.msra.mxu0 0.0
    %3982 = vmatprep.subr.mxu0 0.0
    %3983 = vmatpush1.msra.mxu0 0.0
    %3984 = vmatprep.subr.mxu0 0.0
    %3985 = vmatpush1.msra.mxu0 0.0
    %3986 = vmatprep.subr.mxu0 0.0
    %3987 = vmatpush1.msra.mxu0 0.0
    %3988 = vmatprep.subr.mxu0 0.0
    %3989 = vmatpush1.msra.mxu0 0.0
    %3990 = vmatprep.subr.mxu0 0.0
    %3991 = vmatpush1.msra.mxu0 0.0
    %3992 = vmatprep.subr.mxu0 0.0
    %3993 = vmatpush1.msra.mxu0 0.0
    %3994 = vmatprep.subr.mxu0 0.0
    %3995 = vmatpush1.msra.mxu0 0.0
    %3996 = vmatprep.subr.mxu0 0.0
    %3997 = vmatpush1.msra.mxu0 0.0
    %3998 = vmatprep.subr.mxu0 0.0
    %3999 = vmatpush1.msra.mxu0 0.0
    %4000 = vmatprep.subr.mxu0 0.0
    %4001 = vmatpush1.msra.mxu0 0.0
    %4002 = vmatprep.subr.mxu0 0.0
    %4003 = vmatpush1.msra.mxu0 0.0
    %4004 = vmatprep.subr.mxu0 0.0
    %4005 = vmatpush1.msra.mxu0 0.0
    %4006 = vmatprep.subr.mxu0 0.0
    %4007 = vmatpush1.msra.mxu0 0.0
    %4008 = vmatprep.subr.mxu0 0.0
    %4009 = vmatpush1.msra.mxu0 0.0
    %4010 = vmatprep.subr.mxu0 0.0
    %4011 = vmatpush1.msra.mxu0 0.0
    %4012 = vmatprep.mubr.f32.mxu0 0.0
    %4013 = vmatmul.mubr.f32.gmra.mrb[0].mxu0 %v3901
    %v4014 = vpop.f32.mrb[0].mxu0
    %v4015 = vadd.f32 1e-08, %v4014
    %v4016 = vpop.f32.mrb[0].mxu0
    %4017 = vmatprep.mubr.f32.mxu0 0.0
    %4018 = vmatmul.mubr.f32.gmra.mrb[0].mxu0 %v3904
    %v4019 = vpop.f32.mrb[0].mxu0
    %v4020 = vadd.f32 1e-08, %v4019
    %v4021 = vpop.f32.mrb[0].mxu0
    %4022 = vmatprep.mubr.f32.mxu0 0.0
    %4023 = vmatmul.mubr.f32.gmra.mrb[0].mxu0 %v3907
    %v4024 = vpop.f32.mrb[0].mxu0
    %v4025 = vadd.f32 1e-08, %v4024
    %v4026 = vpop.f32.mrb[0].mxu0
    %4027 = vmatprep.mubr.f32.mxu0 0.0
    %4028 = vmatmul.mubr.f32.gmra.mrb[0].mxu0 %v3910
    %v4029 = vpop.f32.mrb[0].mxu0
    %v4030 = vadd.f32 1e-08, %v4029
    %v4031 = vpop.f32.mrb[0].mxu0
    %4032 = vmatprep.mubr.f32.mxu0 0.0
    %4033 = vmatmul.mubr.f32.gmra.mrb[0].mxu0 %v3913
    %v4034 = vpop.f32.mrb[0].mxu0
    %v4035 = vadd.f32 1e-08, %v4034
    %v4036 = vpop.f32.mrb[0].mxu0
    %4037 = vmatprep.mubr.f32.mxu0 0.0
    %4038 = vmatmul.mubr.f32.gmra.mrb[0].mxu0 %v3916
    %v4039 = vpop.f32.mrb[0].mxu0
    %v4040 = vadd.f32 1e-08, %v4039
    %v4041 = vpop.f32.mrb[0].mxu0
    %4042 = vmatprep.mubr.f32.mxu0 0.0
    %4043 = vmatmul.mubr.f32.gmra.mrb[0].mxu0 %v3919
    %v4044 = vpop.f32.mrb[0].mxu0
    %v4045 = vadd.f32 1e-08, %v4044
    %v4046 = vpop.f32.mrb[0].mxu0
    %4047 = vmatprep.mubr.f32.mxu0 0.0
    %4048 = vmatmul.mubr.f32.gmra.mrb[0].mxu0 %v3922
    %v4049 = vpop.f32.mrb[0].mxu0
    %v4050 = vadd.f32 1e-08, %v4049
    %v4051 = vpop.f32.mrb[0].mxu0
    %4052 = vmatprep.mubr.f32.mxu0 0.0
    %4053 = vmatmul.mubr.f32.gmra.mrb[0].mxu0 %v3925
    %v4054 = vpop.f32.mrb[0].mxu0
    %v4055 = vadd.f32 1e-08, %v4054
    %v4056 = vpop.f32.mrb[0].mxu0
    %4057 = vmatprep.mubr.f32.mxu0 0.0
    %4058 = vmatmul.mubr.f32.gmra.mrb[0].mxu0 %v3928
    %v4059 = vpop.f32.mrb[0].mxu0
    %v4060 = vadd.f32 1e-08, %v4059
    %v4061 = vpop.f32.mrb[0].mxu0
    %4062 = vmatprep.mubr.f32.mxu0 0.0
    %4063 = vmatmul.mubr.f32.gmra.mrb[0].mxu0 %v3931
    %v4064 = vpop.f32.mrb[0].mxu0
    %v4065 = vadd.f32 1e-08, %v4064
    %v4066 = vpop.f32.mrb[0].mxu0
    %4067 = vmatprep.mubr.f32.mxu0 0.0
    %4068 = vmatmul.mubr.f32.gmra.mrb[0].mxu0 %v3934
    %v4069 = vpop.f32.mrb[0].mxu0
    %v4070 = vadd.f32 1e-08, %v4069
    %v4071 = vpop.f32.mrb[0].mxu0
    %4072 = vmatprep.mubr.f32.mxu0 0.0
    %4073 = vmatmul.mubr.f32.gmra.mrb[0].mxu0 %v3937
    %v4074 = vpop.f32.mrb[0].mxu0
    %v4075 = vadd.f32 1e-08, %v4074
    %v4076 = vpop.f32.mrb[0].mxu0
    %4077 = vmatprep.mubr.f32.mxu0 0.0
    %4078 = vmatmul.mubr.f32.gmra.mrb[0].mxu0 %v3940
    %v4079 = vpop.f32.mrb[0].mxu0
    %v4080 = vadd.f32 1e-08, %v4079
    %v4081 = vpop.f32.mrb[0].mxu0
    %4082 = vmatprep.mubr.f32.mxu0 0.0
    %4083 = vmatmul.mubr.f32.gmra.mrb[0].mxu0 %v3943
    %v4084 = vpop.f32.mrb[0].mxu0
    %v4085 = vadd.f32 1e-08, %v4084
    %v4086 = vpop.f32.mrb[0].mxu0
    %4087 = vmatprep.mubr.f32.mxu0 0.0
    %4088 = vmatmul.mubr.f32.gmra.mrb[0].mxu0 %v3946
    %v4089 = vpop.f32.mrb[0].mxu0
    %v4090 = vadd.f32 1e-08, %v4089
    %v4091 = vpop.f32.mrb[0].mxu0
    %4092 = vdwg.mxu0
    %v4093 = vrsqrt.pop %v4015
    %v4094 = vrsqrt.pop %v4020
    %v4095 = vrsqrt.pop %v4025
    %v4096 = vrsqrt.pop %v4030
    %v4097 = vrsqrt.pop %v4035
    %v4098 = vrsqrt.pop %v4040
    %v4099 = vrsqrt.pop %v4045
    %v4100 = vrsqrt.pop %v4050
    %v4101 = vrsqrt.pop %v4055
    %v4102 = vrsqrt.pop %v4060
    %v4103 = vrsqrt.pop %v4065
    %v4104 = vrsqrt.pop %v4070
    %v4105 = vrsqrt.pop %v4075
    %v4106 = vrsqrt.pop %v4080
    %v4107 = vrsqrt.pop %v4085
    %v4108 = vrsqrt.pop %v4090
    %4110 = vset.pattern.permute.xlu0 0
    %4111 = vperm.xlu0 %4110, %v4093
    %v4112 = vpop.permute.xlu0 %4111
    %4115 = vset.pattern.permute.xlu0 0
    %4116 = vperm.xlu0 %4115, %v4094
    %v4117 = vpop.permute.xlu0 %4116
    %4120 = vset.pattern.permute.xlu0 0
    %4121 = vperm.xlu0 %4120, %v4095
    %v4122 = vpop.permute.xlu0 %4121
    %4125 = vset.pattern.permute.xlu0 0
    %4126 = vperm.xlu0 %4125, %v4096
    %v4127 = vpop.permute.xlu0 %4126
    %4130 = vset.pattern.permute.xlu0 0
    %4131 = vperm.xlu0 %4130, %v4097
    %v4132 = vpop.permute.xlu0 %4131
    %4135 = vset.pattern.permute.xlu0 0
    %4136 = vperm.xlu0 %4135, %v4098
    %v4137 = vpop.permute.xlu0 %4136
    %4140 = vset.pattern.permute.xlu0 0
    %4141 = vperm.xlu0 %4140, %v4099
    %v4142 = vpop.permute.xlu0 %4141
    %4145 = vset.pattern.permute.xlu0 0
    %4146 = vperm.xlu0 %4145, %v4100
    %v4147 = vpop.permute.xlu0 %4146
    %4150 = vset.pattern.permute.xlu0 0
    %4151 = vperm.xlu0 %4150, %v4101
    %v4152 = vpop.permute.xlu0 %4151
    %4155 = vset.pattern.permute.xlu0 0
    %4156 = vperm.xlu0 %4155, %v4102
    %v4157 = vpop.permute.xlu0 %4156
    %4160 = vset.pattern.permute.xlu0 0
    %4161 = vperm.xlu0 %4160, %v4103
    %v4162 = vpop.permute.xlu0 %4161
    %4165 = vset.pattern.permute.xlu0 0
    %4166 = vperm.xlu0 %4165, %v4104
    %v4167 = vpop.permute.xlu0 %4166
    %4170 = vset.pattern.permute.xlu0 0
    %4171 = vperm.xlu0 %4170, %v4105
    %v4172 = vpop.permute.xlu0 %4171
    %4175 = vset.pattern.permute.xlu0 0
    %4176 = vperm.xlu0 %4175, %v4106
    %v4177 = vpop.permute.xlu0 %4176
    %4180 = vset.pattern.permute.xlu0 0
    %4181 = vperm.xlu0 %4180, %v4107
    %v4182 = vpop.permute.xlu0 %4181
    %4185 = vset.pattern.permute.xlu0 0
    %4186 = vperm.xlu0 %4185, %v4108
    %v4187 = vpop.permute.xlu0 %4186
    %v4189 = vmul.f32 %v3868, %v4112
    %v4190 = vmul.f32 %v3869, %v4117
    %v4191 = vmul.f32 %v3870, %v4122
    %v4192 = vmul.f32 %v3871, %v4127
    %v4193 = vmul.f32 %v3872, %v4132
    %v4194 = vmul.f32 %v3873, %v4137
    %v4195 = vmul.f32 %v3874, %v4142
    %v4196 = vmul.f32 %v3875, %v4147
    %v4197 = vmul.f32 %v3876, %v4152
    %v4198 = vmul.f32 %v3877, %v4157
    %v4199 = vmul.f32 %v3878, %v4162
    %v4200 = vmul.f32 %v3879, %v4167
    %v4201 = vmul.f32 %v3880, %v4172
    %v4202 = vmul.f32 %v3881, %v4177
    %v4203 = vmul.f32 %v3882, %v4182
    %v4204 = vmul.f32 %v3883, %v4187
    %v4205 = vld [vmem:[%s3] sm:$0xff]
    %v4206 = vld [vmem:[%s3 + $0x8] sm:$0xff]
    %v4207 = vld [vmem:[%s3 + $0x10] sm:$0xff]
    %v4208 = vld [vmem:[%s3 + $0x18] sm:$0xff]
    %v4210 = vsel %vm642, %v4189, 0
    %v4213 = vsel %vm642, %v4190, 0
    %v4216 = vsel %vm642, %v4191, 0
    %v4219 = vsel %vm642, %v4192, 0
    %v4222 = vsel %vm642, %v4193, 0
    %v4225 = vsel %vm642, %v4194, 0
    %v4228 = vsel %vm642, %v4195, 0
    %v4231 = vsel %vm642, %v4196, 0
    %v4234 = vsel %vm642, %v4197, 0
    %v4237 = vsel %vm642, %v4198, 0
    %v4240 = vsel %vm642, %v4199, 0
    %v4243 = vsel %vm642, %v4200, 0
    %v4246 = vsel %vm642, %v4201, 0
    %v4249 = vsel %vm642, %v4202, 0
    %v4252 = vsel %vm642, %v4203, 0
    %v4255 = vsel %vm642, %v4204, 0
    %4257 = vmatprep.subr.mxu0 0.0
    %4258 = vmatpush1.msra.mxu0 %v4205
    %4259 = vmatprep.subr.mxu0 0.0
    %4260 = vmatpush1.msra.mxu0 %v4206
    %4261 = vmatprep.subr.mxu0 0.0
    %4262 = vmatpush1.msra.mxu0 %v4207
    %4263 = vmatprep.subr.mxu0 0.0
    %4264 = vmatpush1.msra.mxu0 %v4208
    %4265 = vmatprep.subr.mxu0 0.0
    %4266 = vmatpush1.msra.mxu0 0.0
    %4267 = vmatprep.subr.mxu0 0.0
    %4268 = vmatpush1.msra.mxu0 0.0
    %4269 = vmatprep.subr.mxu0 0.0
    %4270 = vmatpush1.msra.mxu0 0.0
    %4271 = vmatprep.subr.mxu0 0.0
    %4272 = vmatpush1.msra.mxu0 0.0
    %4273 = vmatprep.subr.mxu0 0.0
    %4274 = vmatpush1.msra.mxu0 0.0
    %4275 = vmatprep.subr.mxu0 0.0
    %4276 = vmatpush1.msra.mxu0 0.0
    %4277 = vmatprep.subr.mxu0 0.0
    %4278 = vmatpush1.msra.mxu0 0.0
    %4279 = vmatprep.subr.mxu0 0.0
    %4280 = vmatpush1.msra.mxu0 0.0
    %4281 = vmatprep.subr.mxu0 0.0
    %4282 = vmatpush1.msra.mxu0 0.0
    %4283 = vmatprep.subr.mxu0 0.0
    %4284 = vmatpush1.msra.mxu0 0.0
    %4285 = vmatprep.subr.mxu0 0.0
    %4286 = vmatpush1.msra.mxu0 0.0
    %4287 = vmatprep.subr.mxu0 0.0
    %4288 = vmatpush1.msra.mxu0 0.0
    %4289 = vmatprep.subr.mxu0 0.0
    %4290 = vmatpush1.msra.mxu0 0.0
    %4291 = vmatprep.subr.mxu0 0.0
    %4292 = vmatpush1.msra.mxu0 0.0
    %4293 = vmatprep.subr.mxu0 0.0
    %4294 = vmatpush1.msra.mxu0 0.0
    %4295 = vmatprep.subr.mxu0 0.0
    %4296 = vmatpush1.msra.mxu0 0.0
    %4297 = vmatprep.subr.mxu0 0.0
    %4298 = vmatpush1.msra.mxu0 0.0
    %4299 = vmatprep.subr.mxu0 0.0
    %4300 = vmatpush1.msra.mxu0 0.0
    %4301 = vmatprep.subr.mxu0 0.0
    %4302 = vmatpush1.msra.mxu0 0.0
    %4303 = vmatprep.subr.mxu0 0.0
    %4304 = vmatpush1.msra.mxu0 0.0
    %4305 = vmatprep.subr.mxu0 0.0
    %4306 = vmatpush1.msra.mxu0 0.0
    %4307 = vmatprep.subr.mxu0 0.0
    %4308 = vmatpush1.msra.mxu0 0.0
    %4309 = vmatprep.subr.mxu0 0.0
    %4310 = vmatpush1.msra.mxu0 0.0
    %4311 = vmatprep.subr.mxu0 0.0
    %4312 = vmatpush1.msra.mxu0 0.0
    %4313 = vmatprep.subr.mxu0 0.0
    %4314 = vmatpush1.msra.mxu0 0.0
    %4315 = vmatprep.subr.mxu0 0.0
    %4316 = vmatpush1.msra.mxu0 0.0
    %4317 = vmatprep.subr.mxu0 0.0
    %4318 = vmatpush1.msra.mxu0 0.0
    %4319 = vmatprep.subr.mxu0 0.0
    %4320 = vmatpush1.msra.mxu0 0.0
    %4321 = vmatprep.mubr.f32.mxu0 0.0
    %4322 = vmatmul.mubr.f32.gmra.mrb[0].mxu0 %v4210
    %v4323 = vpop.f32.mrb[0].mxu0
    %v4324 = vadd.f32 0.0, %v4323
    %v4325 = vpop.f32.mrb[0].mxu0
    %4326 = vmatprep.mubr.f32.mxu0 0.0
    %4327 = vmatmul.mubr.f32.gmra.mrb[0].mxu0 %v4213
    %v4328 = vpop.f32.mrb[0].mxu0
    %v4329 = vadd.f32 0.0, %v4328
    %v4330 = vpop.f32.mrb[0].mxu0
    %4331 = vmatprep.mubr.f32.mxu0 0.0
    %4332 = vmatmul.mubr.f32.gmra.mrb[0].mxu0 %v4216
    %v4333 = vpop.f32.mrb[0].mxu0
    %v4334 = vadd.f32 0.0, %v4333
    %v4335 = vpop.f32.mrb[0].mxu0
    %4336 = vmatprep.mubr.f32.mxu0 0.0
    %4337 = vmatmul.mubr.f32.gmra.mrb[0].mxu0 %v4219
    %v4338 = vpop.f32.mrb[0].mxu0
    %v4339 = vadd.f32 0.0, %v4338
    %v4340 = vpop.f32.mrb[0].mxu0
    %4341 = vmatprep.mubr.f32.mxu0 0.0
    %4342 = vmatmul.mubr.f32.gmra.mrb[0].mxu0 %v4222
    %v4343 = vpop.f32.mrb[0].mxu0
    %v4344 = vadd.f32 0.0, %v4343
    %v4345 = vpop.f32.mrb[0].mxu0
    %4346 = vmatprep.mubr.f32.mxu0 0.0
    %4347 = vmatmul.mubr.f32.gmra.mrb[0].mxu0 %v4225
    %v4348 = vpop.f32.mrb[0].mxu0
    %v4349 = vadd.f32 0.0, %v4348
    %v4350 = vpop.f32.mrb[0].mxu0
    %4351 = vmatprep.mubr.f32.mxu0 0.0
    %4352 = vmatmul.mubr.f32.gmra.mrb[0].mxu0 %v4228
    %v4353 = vpop.f32.mrb[0].mxu0
    %v4354 = vadd.f32 0.0, %v4353
    %v4355 = vpop.f32.mrb[0].mxu0
    %4356 = vmatprep.mubr.f32.mxu0 0.0
    %4357 = vmatmul.mubr.f32.gmra.mrb[0].mxu0 %v4231
    %v4358 = vpop.f32.mrb[0].mxu0
    %v4359 = vadd.f32 0.0, %v4358
    %v4360 = vpop.f32.mrb[0].mxu0
    %4361 = vmatprep.mubr.f32.mxu0 0.0
    %4362 = vmatmul.mubr.f32.gmra.mrb[0].mxu0 %v4234
    %v4363 = vpop.f32.mrb[0].mxu0
    %v4364 = vadd.f32 0.0, %v4363
    %v4365 = vpop.f32.mrb[0].mxu0
    %4366 = vmatprep.mubr.f32.mxu0 0.0
    %4367 = vmatmul.mubr.f32.gmra.mrb[0].mxu0 %v4237
    %v4368 = vpop.f32.mrb[0].mxu0
    %v4369 = vadd.f32 0.0, %v4368
    %v4370 = vpop.f32.mrb[0].mxu0
    %4371 = vmatprep.mubr.f32.mxu0 0.0
    %4372 = vmatmul.mubr.f32.gmra.mrb[0].mxu0 %v4240
    %v4373 = vpop.f32.mrb[0].mxu0
    %v4374 = vadd.f32 0.0, %v4373
    %v4375 = vpop.f32.mrb[0].mxu0
    %4376 = vmatprep.mubr.f32.mxu0 0.0
    %4377 = vmatmul.mubr.f32.gmra.mrb[0].mxu0 %v4243
    %v4378 = vpop.f32.mrb[0].mxu0
    %v4379 = vadd.f32 0.0, %v4378
    %v4380 = vpop.f32.mrb[0].mxu0
    %4381 = vmatprep.mubr.f32.mxu0 0.0
    %4382 = vmatmul.mubr.f32.gmra.mrb[0].mxu0 %v4246
    %v4383 = vpop.f32.mrb[0].mxu0
    %v4384 = vadd.f32 0.0, %v4383
    %v4385 = vpop.f32.mrb[0].mxu0
    %4386 = vmatprep.mubr.f32.mxu0 0.0
    %4387 = vmatmul.mubr.f32.gmra.mrb[0].mxu0 %v4249
    %v4388 = vpop.f32.mrb[0].mxu0
    %v4389 = vadd.f32 0.0, %v4388
    %v4390 = vpop.f32.mrb[0].mxu0
    %4391 = vmatprep.mubr.f32.mxu0 0.0
    %4392 = vmatmul.mubr.f32.gmra.mrb[0].mxu0 %v4252
    %v4393 = vpop.f32.mrb[0].mxu0
    %v4394 = vadd.f32 0.0, %v4393
    %v4395 = vpop.f32.mrb[0].mxu0
    %4396 = vmatprep.mubr.f32.mxu0 0.0
    %4397 = vmatmul.mubr.f32.gmra.mrb[0].mxu0 %v4255
    %v4398 = vpop.f32.mrb[0].mxu0
    %v4399 = vadd.f32 0.0, %v4398
    %v4400 = vpop.f32.mrb[0].mxu0
    %4401 = vdwg.mxu0
    %v4402 = vmax.f32 %v4324, 0.0
    %v4403 = vmax.f32 %v4329, 0.0
    %v4404 = vmax.f32 %v4334, 0.0
    %v4405 = vmax.f32 %v4339, 0.0
    %v4406 = vmax.f32 %v4344, 0.0
    %v4407 = vmax.f32 %v4349, 0.0
    %v4408 = vmax.f32 %v4354, 0.0
    %v4409 = vmax.f32 %v4359, 0.0
    %v4410 = vmax.f32 %v4364, 0.0
    %v4411 = vmax.f32 %v4369, 0.0
    %v4412 = vmax.f32 %v4374, 0.0
    %v4413 = vmax.f32 %v4379, 0.0
    %v4414 = vmax.f32 %v4384, 0.0
    %v4415 = vmax.f32 %v4389, 0.0
    %v4416 = vmax.f32 %v4394, 0.0
    %v4417 = vmax.f32 %v4399, 0.0
    %v4418 = vld [vmem:[%s4] sm:$0xff]
    %v4419 = vld [vmem:[%s4 + $0x8] sm:$0xff]
    %v4420 = vld [vmem:[%s4 + $0x10] sm:$0xff]
    %v4421 = vld [vmem:[%s4 + $0x18] sm:$0xff]
    %v4422 = vld [vmem:[%s4 + $0x20] sm:$0xff]
    %v4423 = vld [vmem:[%s4 + $0x28] sm:$0xff]
    %v4424 = vld [vmem:[%s4 + $0x30] sm:$0xff]
    %v4425 = vld [vmem:[%s4 + $0x38] sm:$0xff]
    %v4426 = vld [vmem:[%s4 + $0x40] sm:$0xff]
    %v4427 = vld [vmem:[%s4 + $0x48] sm:$0xff]
    %v4428 = vld [vmem:[%s4 + $0x50] sm:$0xff]
    %v4429 = vld [vmem:[%s4 + $0x58] sm:$0xff]
    %v4430 = vld [vmem:[%s4 + $0x60] sm:$0xff]
    %v4431 = vld [vmem:[%s4 + $0x68] sm:$0xff]
    %v4432 = vld [vmem:[%s4 + $0x70] sm:$0xff]
    %v4433 = vld [vmem:[%s4 + $0x78] sm:$0xff]
    %4434 = vmatprep.subr.mxu0 0.0
    %4435 = vmatpush1.msra.mxu0 %v4418
    %4436 = vmatprep.subr.mxu0 0.0
    %4437 = vmatpush1.msra.mxu0 %v4419
    %4438 = vmatprep.subr.mxu0 0.0
    %4439 = vmatpush1.msra.mxu0 %v4420
    %4440 = vmatprep.subr.mxu0 0.0
    %4441 = vmatpush1.msra.mxu0 %v4421
    %4442 = vmatprep.subr.mxu0 0.0
    %4443 = vmatpush1.msra.mxu0 %v4422
    %4444 = vmatprep.subr.mxu0 0.0
    %4445 = vmatpush1.msra.mxu0 %v4423
    %4446 = vmatprep.subr.mxu0 0.0
    %4447 = vmatpush1.msra.mxu0 %v4424
    %4448 = vmatprep.subr.mxu0 0.0
    %4449 = vmatpush1.msra.mxu0 %v4425
    %4450 = vmatprep.subr.mxu0 0.0
    %4451 = vmatpush1.msra.mxu0 %v4426
    %4452 = vmatprep.subr.mxu0 0.0
    %4453 = vmatpush1.msra.mxu0 %v4427
    %4454 = vmatprep.subr.mxu0 0.0
    %4455 = vmatpush1.msra.mxu0 %v4428
    %4456 = vmatprep.subr.mxu0 0.0
    %4457 = vmatpush1.msra.mxu0 %v4429
    %4458 = vmatprep.subr.mxu0 0.0
    %4459 = vmatpush1.msra.mxu0 %v4430
    %4460 = vmatprep.subr.mxu0 0.0
    %4461 = vmatpush1.msra.mxu0 %v4431
    %4462 = vmatprep.subr.mxu0 0.0
    %4463 = vmatpush1.msra.mxu0 %v4432
    %4464 = vmatprep.subr.mxu0 0.0
    %4465 = vmatpush1.msra.mxu0 %v4433
    %4466 = vmatprep.subr.mxu0 0.0
    %4467 = vmatpush1.msra.mxu0 0.0
    %4468 = vmatprep.subr.mxu0 0.0
    %4469 = vmatpush1.msra.mxu0 0.0
    %4470 = vmatprep.subr.mxu0 0.0
    %4471 = vmatpush1.msra.mxu0 0.0
    %4472 = vmatprep.subr.mxu0 0.0
    %4473 = vmatpush1.msra.mxu0 0.0
    %4474 = vmatprep.subr.mxu0 0.0
    %4475 = vmatpush1.msra.mxu0 0.0
    %4476 = vmatprep.subr.mxu0 0.0
    %4477 = vmatpush1.msra.mxu0 0.0
    %4478 = vmatprep.subr.mxu0 0.0
    %4479 = vmatpush1.msra.mxu0 0.0
    %4480 = vmatprep.subr.mxu0 0.0
    %4481 = vmatpush1.msra.mxu0 0.0
    %4482 = vmatprep.subr.mxu0 0.0
    %4483 = vmatpush1.msra.mxu0 0.0
    %4484 = vmatprep.subr.mxu0 0.0
    %4485 = vmatpush1.msra.mxu0 0.0
    %4486 = vmatprep.subr.mxu0 0.0
    %4487 = vmatpush1.msra.mxu0 0.0
    %4488 = vmatprep.subr.mxu0 0.0
    %4489 = vmatpush1.msra.mxu0 0.0
    %4490 = vmatprep.subr.mxu0 0.0
    %4491 = vmatpush1.msra.mxu0 0.0
    %4492 = vmatprep.subr.mxu0 0.0
    %4493 = vmatpush1.msra.mxu0 0.0
    %4494 = vmatprep.subr.mxu0 0.0
    %4495 = vmatpush1.msra.mxu0 0.0
    %4496 = vmatprep.subr.mxu0 0.0
    %4497 = vmatpush1.msra.mxu0 0.0
    %4498 = vmatprep.mubr.f32.mxu0 0.0
    %4499 = vmatmul.mubr.f32.gmra.mrb[0].mxu0 %v4402
    %v4500 = vpop.f32.mrb[0].mxu0
    %v4501 = vadd.f32 0.0, %v4500
    %v4502 = vpop.f32.mrb[0].mxu0
    %4503 = vmatprep.mubr.f32.mxu0 0.0
    %4504 = vmatmul.mubr.f32.gmra.mrb[0].mxu0 %v4403
    %v4505 = vpop.f32.mrb[0].mxu0
    %v4506 = vadd.f32 0.0, %v4505
    %v4507 = vpop.f32.mrb[0].mxu0
    %4508 = vmatprep.mubr.f32.mxu0 0.0
    %4509 = vmatmul.mubr.f32.gmra.mrb[0].mxu0 %v4404
    %v4510 = vpop.f32.mrb[0].mxu0
    %v4511 = vadd.f32 0.0, %v4510
    %v4512 = vpop.f32.mrb[0].mxu0
    %4513 = vmatprep.mubr.f32.mxu0 0.0
    %4514 = vmatmul.mubr.f32.gmra.mrb[0].mxu0 %v4405
    %v4515 = vpop.f32.mrb[0].mxu0
    %v4516 = vadd.f32 0.0, %v4515
    %v4517 = vpop.f32.mrb[0].mxu0
    %4518 = vmatprep.mubr.f32.mxu0 0.0
    %4519 = vmatmul.mubr.f32.gmra.mrb[0].mxu0 %v4406
    %v4520 = vpop.f32.mrb[0].mxu0
    %v4521 = vadd.f32 0.0, %v4520
    %v4522 = vpop.f32.mrb[0].mxu0
    %4523 = vmatprep.mubr.f32.mxu0 0.0
    %4524 = vmatmul.mubr.f32.gmra.mrb[0].mxu0 %v4407
    %v4525 = vpop.f32.mrb[0].mxu0
    %v4526 = vadd.f32 0.0, %v4525
    %v4527 = vpop.f32.mrb[0].mxu0
    %4528 = vmatprep.mubr.f32.mxu0 0.0
    %4529 = vmatmul.mubr.f32.gmra.mrb[0].mxu0 %v4408
    %v4530 = vpop.f32.mrb[0].mxu0
    %v4531 = vadd.f32 0.0, %v4530
    %v4532 = vpop.f32.mrb[0].mxu0
    %4533 = vmatprep.mubr.f32.mxu0 0.0
    %4534 = vmatmul.mubr.f32.gmra.mrb[0].mxu0 %v4409
    %v4535 = vpop.f32.mrb[0].mxu0
    %v4536 = vadd.f32 0.0, %v4535
    %v4537 = vpop.f32.mrb[0].mxu0
    %4538 = vmatprep.mubr.f32.mxu0 0.0
    %4539 = vmatmul.mubr.f32.gmra.mrb[0].mxu0 %v4410
    %v4540 = vpop.f32.mrb[0].mxu0
    %v4541 = vadd.f32 0.0, %v4540
    %v4542 = vpop.f32.mrb[0].mxu0
    %4543 = vmatprep.mubr.f32.mxu0 0.0
    %4544 = vmatmul.mubr.f32.gmra.mrb[0].mxu0 %v4411
    %v4545 = vpop.f32.mrb[0].mxu0
    %v4546 = vadd.f32 0.0, %v4545
    %v4547 = vpop.f32.mrb[0].mxu0
    %4548 = vmatprep.mubr.f32.mxu0 0.0
    %4549 = vmatmul.mubr.f32.gmra.mrb[0].mxu0 %v4412
    %v4550 = vpop.f32.mrb[0].mxu0
    %v4551 = vadd.f32 0.0, %v4550
    %v4552 = vpop.f32.mrb[0].mxu0
    %4553 = vmatprep.mubr.f32.mxu0 0.0
    %4554 = vmatmul.mubr.f32.gmra.mrb[0].mxu0 %v4413
    %v4555 = vpop.f32.mrb[0].mxu0
    %v4556 = vadd.f32 0.0, %v4555
    %v4557 = vpop.f32.mrb[0].mxu0
    %4558 = vmatprep.mubr.f32.mxu0 0.0
    %4559 = vmatmul.mubr.f32.gmra.mrb[0].mxu0 %v4414
    %v4560 = vpop.f32.mrb[0].mxu0
    %v4561 = vadd.f32 0.0, %v4560
    %v4562 = vpop.f32.mrb[0].mxu0
    %4563 = vmatprep.mubr.f32.mxu0 0.0
    %4564 = vmatmul.mubr.f32.gmra.mrb[0].mxu0 %v4415
    %v4565 = vpop.f32.mrb[0].mxu0
    %v4566 = vadd.f32 0.0, %v4565
    %v4567 = vpop.f32.mrb[0].mxu0
    %4568 = vmatprep.mubr.f32.mxu0 0.0
    %4569 = vmatmul.mubr.f32.gmra.mrb[0].mxu0 %v4416
    %v4570 = vpop.f32.mrb[0].mxu0
    %v4571 = vadd.f32 0.0, %v4570
    %v4572 = vpop.f32.mrb[0].mxu0
    %4573 = vmatprep.mubr.f32.mxu0 0.0
    %4574 = vmatmul.mubr.f32.gmra.mrb[0].mxu0 %v4417
    %v4575 = vpop.f32.mrb[0].mxu0
    %v4576 = vadd.f32 0.0, %v4575
    %v4577 = vpop.f32.mrb[0].mxu0
    %4578 = vdwg.mxu0
    %v4579 = vmul.f32 %v4501, %v4501
    %v4580 = vmul.f32 %v4506, %v4506
    %v4581 = vmul.f32 %v4511, %v4511
    %v4582 = vmul.f32 %v4516, %v4516
    %v4583 = vmul.f32 %v4521, %v4521
    %v4584 = vmul.f32 %v4526, %v4526
    %v4585 = vmul.f32 %v4531, %v4531
    %v4586 = vmul.f32 %v4536, %v4536
    %v4587 = vmul.f32 %v4541, %v4541
    %v4588 = vmul.f32 %v4546, %v4546
    %v4589 = vmul.f32 %v4551, %v4551
    %v4590 = vmul.f32 %v4556, %v4556
    %v4591 = vmul.f32 %v4561, %v4561
    %v4592 = vmul.f32 %v4566, %v4566
    %v4593 = vmul.f32 %v4571, %v4571
    %v4594 = vmul.f32 %v4576, %v4576
    %v4596 = vsel %vm642, %v4579, 0
    %v4599 = vsel %vm642, %v4580, 0
    %v4602 = vsel %vm642, %v4581, 0
    %v4605 = vsel %vm642, %v4582, 0
    %v4608 = vsel %vm642, %v4583, 0
    %v4611 = vsel %vm642, %v4584, 0
    %v4614 = vsel %vm642, %v4585, 0
    %v4617 = vsel %vm642, %v4586, 0
    %v4620 = vsel %vm642, %v4587, 0
    %v4623 = vsel %vm642, %v4588, 0
    %v4626 = vsel %vm642, %v4589, 0
    %v4629 = vsel %vm642, %v4590, 0
    %v4632 = vsel %vm642, %v4591, 0
    %v4635 = vsel %vm642, %v4592, 0
    %v4638 = vsel %vm642, %v4593, 0
    %v4641 = vsel %vm642, %v4594, 0
    %4643 = vmatprep.subr.mxu0 0.0
    %4644 = vmatpush1.msra.mxu0 1.0
    %4645 = vmatprep.subr.mxu0 0.0
    %4646 = vmatpush1.msra.mxu0 1.0
    %4647 = vmatprep.subr.mxu0 0.0
    %4648 = vmatpush1.msra.mxu0 1.0
    %4649 = vmatprep.subr.mxu0 0.0
    %4650 = vmatpush1.msra.mxu0 1.0
    %4651 = vmatprep.subr.mxu0 0.0
    %4652 = vmatpush1.msra.mxu0 0.0
    %4653 = vmatprep.subr.mxu0 0.0
    %4654 = vmatpush1.msra.mxu0 0.0
    %4655 = vmatprep.subr.mxu0 0.0
    %4656 = vmatpush1.msra.mxu0 0.0
    %4657 = vmatprep.subr.mxu0 0.0
    %4658 = vmatpush1.msra.mxu0 0.0
    %4659 = vmatprep.subr.mxu0 0.0
    %4660 = vmatpush1.msra.mxu0 0.0
    %4661 = vmatprep.subr.mxu0 0.0
    %4662 = vmatpush1.msra.mxu0 0.0
    %4663 = vmatprep.subr.mxu0 0.0
    %4664 = vmatpush1.msra.mxu0 0.0
    %4665 = vmatprep.subr.mxu0 0.0
    %4666 = vmatpush1.msra.mxu0 0.0
    %4667 = vmatprep.subr.mxu0 0.0
    %4668 = vmatpush1.msra.mxu0 0.0
    %4669 = vmatprep.subr.mxu0 0.0
    %4670 = vmatpush1.msra.mxu0 0.0
    %4671 = vmatprep.subr.mxu0 0.0
    %4672 = vmatpush1.msra.mxu0 0.0
    %4673 = vmatprep.subr.mxu0 0.0
    %4674 = vmatpush1.msra.mxu0 0.0
    %4675 = vmatprep.subr.mxu0 0.0
    %4676 = vmatpush1.msra.mxu0 0.0
    %4677 = vmatprep.subr.mxu0 0.0
    %4678 = vmatpush1.msra.mxu0 0.0
    %4679 = vmatprep.subr.mxu0 0.0
    %4680 = vmatpush1.msra.mxu0 0.0
    %4681 = vmatprep.subr.mxu0 0.0
    %4682 = vmatpush1.msra.mxu0 0.0
    %4683 = vmatprep.subr.mxu0 0.0
    %4684 = vmatpush1.msra.mxu0 0.0
    %4685 = vmatprep.subr.mxu0 0.0
    %4686 = vmatpush1.msra.mxu0 0.0
    %4687 = vmatprep.subr.mxu0 0.0
    %4688 = vmatpush1.msra.mxu0 0.0
    %4689 = vmatprep.subr.mxu0 0.0
    %4690 = vmatpush1.msra.mxu0 0.0
    %4691 = vmatprep.subr.mxu0 0.0
    %4692 = vmatpush1.msra.mxu0 0.0
    %4693 = vmatprep.subr.mxu0 0.0
    %4694 = vmatpush1.msra.mxu0 0.0
    %4695 = vmatprep.subr.mxu0 0.0
    %4696 = vmatpush1.msra.mxu0 0.0
    %4697 = vmatprep.subr.mxu0 0.0
    %4698 = vmatpush1.msra.mxu0 0.0
    %4699 = vmatprep.subr.mxu0 0.0
    %4700 = vmatpush1.msra.mxu0 0.0
    %4701 = vmatprep.subr.mxu0 0.0
    %4702 = vmatpush1.msra.mxu0 0.0
    %4703 = vmatprep.subr.mxu0 0.0
    %4704 = vmatpush1.msra.mxu0 0.0
    %4705 = vmatprep.subr.mxu0 0.0
    %4706 = vmatpush1.msra.mxu0 0.0
    %4707 = vmatprep.mubr.f32.mxu0 0.0
    %4708 = vmatmul.mubr.f32.gmra.mrb[0].mxu0 %v4596
    %v4709 = vpop.f32.mrb[0].mxu0
    %v4710 = vadd.f32 1e-08, %v4709
    %v4711 = vpop.f32.mrb[0].mxu0
    %4712 = vmatprep.mubr.f32.mxu0 0.0
    %4713 = vmatmul.mubr.f32.gmra.mrb[0].mxu0 %v4599
    %v4714 = vpop.f32.mrb[0].mxu0
    %v4715 = vadd.f32 1e-08, %v4714
    %v4716 = vpop.f32.mrb[0].mxu0
    %4717 = vmatprep.mubr.f32.mxu0 0.0
    %4718 = vmatmul.mubr.f32.gmra.mrb[0].mxu0 %v4602
    %v4719 = vpop.f32.mrb[0].mxu0
    %v4720 = vadd.f32 1e-08, %v4719
    %v4721 = vpop.f32.mrb[0].mxu0
    %4722 = vmatprep.mubr.f32.mxu0 0.0
    %4723 = vmatmul.mubr.f32.gmra.mrb[0].mxu0 %v4605
    %v4724 = vpop.f32.mrb[0].mxu0
    %v4725 = vadd.f32 1e-08, %v4724
    %v4726 = vpop.f32.mrb[0].mxu0
    %4727 = vmatprep.mubr.f32.mxu0 0.0
    %4728 = vmatmul.mubr.f32.gmra.mrb[0].mxu0 %v4608
    %v4729 = vpop.f32.mrb[0].mxu0
    %v4730 = vadd.f32 1e-08, %v4729
    %v4731 = vpop.f32.mrb[0].mxu0
    %4732 = vmatprep.mubr.f32.mxu0 0.0
    %4733 = vmatmul.mubr.f32.gmra.mrb[0].mxu0 %v4611
    %v4734 = vpop.f32.mrb[0].mxu0
    %v4735 = vadd.f32 1e-08, %v4734
    %v4736 = vpop.f32.mrb[0].mxu0
    %4737 = vmatprep.mubr.f32.mxu0 0.0
    %4738 = vmatmul.mubr.f32.gmra.mrb[0].mxu0 %v4614
    %v4739 = vpop.f32.mrb[0].mxu0
    %v4740 = vadd.f32 1e-08, %v4739
    %v4741 = vpop.f32.mrb[0].mxu0
    %4742 = vmatprep.mubr.f32.mxu0 0.0
    %4743 = vmatmul.mubr.f32.gmra.mrb[0].mxu0 %v4617
    %v4744 = vpop.f32.mrb[0].mxu0
    %v4745 = vadd.f32 1e-08, %v4744
    %v4746 = vpop.f32.mrb[0].mxu0
    %4747 = vmatprep.mubr.f32.mxu0 0.0
    %4748 = vmatmul.mubr.f32.gmra.mrb[0].mxu0 %v4620
    %v4749 = vpop.f32.mrb[0].mxu0
    %v4750 = vadd.f32 1e-08, %v4749
    %v4751 = vpop.f32.mrb[0].mxu0
    %4752 = vmatprep.mubr.f32.mxu0 0.0
    %4753 = vmatmul.mubr.f32.gmra.mrb[0].mxu0 %v4623
    %v4754 = vpop.f32.mrb[0].mxu0
    %v4755 = vadd.f32 1e-08, %v4754
    %v4756 = vpop.f32.mrb[0].mxu0
    %4757 = vmatprep.mubr.f32.mxu0 0.0
    %4758 = vmatmul.mubr.f32.gmra.mrb[0].mxu0 %v4626
    %v4759 = vpop.f32.mrb[0].mxu0
    %v4760 = vadd.f32 1e-08, %v4759
    %v4761 = vpop.f32.mrb[0].mxu0
    %4762 = vmatprep.mubr.f32.mxu0 0.0
    %4763 = vmatmul.mubr.f32.gmra.mrb[0].mxu0 %v4629
    %v4764 = vpop.f32.mrb[0].mxu0
    %v4765 = vadd.f32 1e-08, %v4764
    %v4766 = vpop.f32.mrb[0].mxu0
    %4767 = vmatprep.mubr.f32.mxu0 0.0
    %4768 = vmatmul.mubr.f32.gmra.mrb[0].mxu0 %v4632
    %v4769 = vpop.f32.mrb[0].mxu0
    %v4770 = vadd.f32 1e-08, %v4769
    %v4771 = vpop.f32.mrb[0].mxu0
    %4772 = vmatprep.mubr.f32.mxu0 0.0
    %4773 = vmatmul.mubr.f32.gmra.mrb[0].mxu0 %v4635
    %v4774 = vpop.f32.mrb[0].mxu0
    %v4775 = vadd.f32 1e-08, %v4774
    %v4776 = vpop.f32.mrb[0].mxu0
    %4777 = vmatprep.mubr.f32.mxu0 0.0
    %4778 = vmatmul.mubr.f32.gmra.mrb[0].mxu0 %v4638
    %v4779 = vpop.f32.mrb[0].mxu0
    %v4780 = vadd.f32 1e-08, %v4779
    %v4781 = vpop.f32.mrb[0].mxu0
    %4782 = vmatprep.mubr.f32.mxu0 0.0
    %4783 = vmatmul.mubr.f32.gmra.mrb[0].mxu0 %v4641
    %v4784 = vpop.f32.mrb[0].mxu0
    %v4785 = vadd.f32 1e-08, %v4784
    %v4786 = vpop.f32.mrb[0].mxu0
    %4787 = vdwg.mxu0
    %v4788 = vrsqrt.pop %v4710
    %v4789 = vrsqrt.pop %v4715
    %v4790 = vrsqrt.pop %v4720
    %v4791 = vrsqrt.pop %v4725
    %v4792 = vrsqrt.pop %v4730
    %v4793 = vrsqrt.pop %v4735
    %v4794 = vrsqrt.pop %v4740
    %v4795 = vrsqrt.pop %v4745
    %v4796 = vrsqrt.pop %v4750
    %v4797 = vrsqrt.pop %v4755
    %v4798 = vrsqrt.pop %v4760
    %v4799 = vrsqrt.pop %v4765
    %v4800 = vrsqrt.pop %v4770
    %v4801 = vrsqrt.pop %v4775
    %v4802 = vrsqrt.pop %v4780
    %v4803 = vrsqrt.pop %v4785
    %4805 = vset.pattern.permute.xlu0 0
    %4806 = vperm.xlu0 %4805, %v4788
    %v4807 = vpop.permute.xlu0 %4806
    %4810 = vset.pattern.permute.xlu0 0
    %4811 = vperm.xlu0 %4810, %v4789
    %v4812 = vpop.permute.xlu0 %4811
    %4815 = vset.pattern.permute.xlu0 0
    %4816 = vperm.xlu0 %4815, %v4790
    %v4817 = vpop.permute.xlu0 %4816
    %4820 = vset.pattern.permute.xlu0 0
    %4821 = vperm.xlu0 %4820, %v4791
    %v4822 = vpop.permute.xlu0 %4821
    %4825 = vset.pattern.permute.xlu0 0
    %4826 = vperm.xlu0 %4825, %v4792
    %v4827 = vpop.permute.xlu0 %4826
    %4830 = vset.pattern.permute.xlu0 0
    %4831 = vperm.xlu0 %4830, %v4793
    %v4832 = vpop.permute.xlu0 %4831
    %4835 = vset.pattern.permute.xlu0 0
    %4836 = vperm.xlu0 %4835, %v4794
    %v4837 = vpop.permute.xlu0 %4836
    %4840 = vset.pattern.permute.xlu0 0
    %4841 = vperm.xlu0 %4840, %v4795
    %v4842 = vpop.permute.xlu0 %4841
    %4845 = vset.pattern.permute.xlu0 0
    %4846 = vperm.xlu0 %4845, %v4796
    %v4847 = vpop.permute.xlu0 %4846
    %4850 = vset.pattern.permute.xlu0 0
    %4851 = vperm.xlu0 %4850, %v4797
    %v4852 = vpop.permute.xlu0 %4851
    %4855 = vset.pattern.permute.xlu0 0
    %4856 = vperm.xlu0 %4855, %v4798
    %v4857 = vpop.permute.xlu0 %4856
    %4860 = vset.pattern.permute.xlu0 0
    %4861 = vperm.xlu0 %4860, %v4799
    %v4862 = vpop.permute.xlu0 %4861
    %4865 = vset.pattern.permute.xlu0 0
    %4866 = vperm.xlu0 %4865, %v4800
    %v4867 = vpop.permute.xlu0 %4866
    %4870 = vset.pattern.permute.xlu0 0
    %4871 = vperm.xlu0 %4870, %v4801
    %v4872 = vpop.permute.xlu0 %4871
    %4875 = vset.pattern.permute.xlu0 0
    %4876 = vperm.xlu0 %4875, %v4802
    %v4877 = vpop.permute.xlu0 %4876
    %4880 = vset.pattern.permute.xlu0 0
    %4881 = vperm.xlu0 %4880, %v4803
    %v4882 = vpop.permute.xlu0 %4881
    %v4884 = vmul.f32 %v4501, %v4807
    %v4885 = vmul.f32 %v4506, %v4812
    %v4886 = vmul.f32 %v4511, %v4817
    %v4887 = vmul.f32 %v4516, %v4822
    %v4888 = vmul.f32 %v4521, %v4827
    %v4889 = vmul.f32 %v4526, %v4832
    %v4890 = vmul.f32 %v4531, %v4837
    %v4891 = vmul.f32 %v4536, %v4842
    %v4892 = vmul.f32 %v4541, %v4847
    %v4893 = vmul.f32 %v4546, %v4852
    %v4894 = vmul.f32 %v4551, %v4857
    %v4895 = vmul.f32 %v4556, %v4862
    %v4896 = vmul.f32 %v4561, %v4867
    %v4897 = vmul.f32 %v4566, %v4872
    %v4898 = vmul.f32 %v4571, %v4877
    %v4899 = vmul.f32 %v4576, %v4882
    %v4900 = vsub.f32 %v4884, %v4189
    %v4901 = vsub.f32 %v4885, %v4190
    %v4902 = vsub.f32 %v4886, %v4191
    %v4903 = vsub.f32 %v4887, %v4192
    %v4904 = vsub.f32 %v4888, %v4193
    %v4905 = vsub.f32 %v4889, %v4194
    %v4906 = vsub.f32 %v4890, %v4195
    %v4907 = vsub.f32 %v4891, %v4196
    %v4908 = vsub.f32 %v4892, %v4197
    %v4909 = vsub.f32 %v4893, %v4198
    %v4910 = vsub.f32 %v4894, %v4199
    %v4911 = vsub.f32 %v4895, %v4200
    %v4912 = vsub.f32 %v4896, %v4201
    %v4913 = vsub.f32 %v4897, %v4202
    %v4914 = vsub.f32 %v4898, %v4203
    %v4915 = vsub.f32 %v4899, %v4204
    %v4916 = vmul.f32 %v1662, %v4900
    %v4917 = vmul.f32 %v1662, %v4901
    %v4918 = vmul.f32 %v1662, %v4902
    %v4919 = vmul.f32 %v1662, %v4903
    %v4920 = vmul.f32 %v1662, %v4904
    %v4921 = vmul.f32 %v1662, %v4905
    %v4922 = vmul.f32 %v1662, %v4906
    %v4923 = vmul.f32 %v1662, %v4907
    %v4924 = vmul.f32 %v1662, %v4908
    %v4925 = vmul.f32 %v1662, %v4909
    %v4926 = vmul.f32 %v1662, %v4910
    %v4927 = vmul.f32 %v1662, %v4911
    %v4928 = vmul.f32 %v1662, %v4912
    %v4929 = vmul.f32 %v1662, %v4913
    %v4930 = vmul.f32 %v1662, %v4914
    %v4931 = vmul.f32 %v1662, %v4915
    %v4932 = vadd.f32 %v4189, %v4916
    %v4933 = vadd.f32 %v4190, %v4917
    %v4934 = vadd.f32 %v4191, %v4918
    %v4935 = vadd.f32 %v4192, %v4919
    %v4936 = vadd.f32 %v4193, %v4920
    %v4937 = vadd.f32 %v4194, %v4921
    %v4938 = vadd.f32 %v4195, %v4922
    %v4939 = vadd.f32 %v4196, %v4923
    %v4940 = vadd.f32 %v4197, %v4924
    %v4941 = vadd.f32 %v4198, %v4925
    %v4942 = vadd.f32 %v4199, %v4926
    %v4943 = vadd.f32 %v4200, %v4927
    %v4944 = vadd.f32 %v4201, %v4928
    %v4945 = vadd.f32 %v4202, %v4929
    %v4946 = vadd.f32 %v4203, %v4930
    %v4947 = vadd.f32 %v4204, %v4931
    %v4948 = vmul.f32 %v4932, %v4932
    %v4949 = vmul.f32 %v4933, %v4933
    %v4950 = vmul.f32 %v4934, %v4934
    %v4951 = vmul.f32 %v4935, %v4935
    %v4952 = vmul.f32 %v4936, %v4936
    %v4953 = vmul.f32 %v4937, %v4937
    %v4954 = vmul.f32 %v4938, %v4938
    %v4955 = vmul.f32 %v4939, %v4939
    %v4956 = vmul.f32 %v4940, %v4940
    %v4957 = vmul.f32 %v4941, %v4941
    %v4958 = vmul.f32 %v4942, %v4942
    %v4959 = vmul.f32 %v4943, %v4943
    %v4960 = vmul.f32 %v4944, %v4944
    %v4961 = vmul.f32 %v4945, %v4945
    %v4962 = vmul.f32 %v4946, %v4946
    %v4963 = vmul.f32 %v4947, %v4947
    %v4965 = vsel %vm642, %v4948, 0
    %v4968 = vsel %vm642, %v4949, 0
    %v4971 = vsel %vm642, %v4950, 0
    %v4974 = vsel %vm642, %v4951, 0
    %v4977 = vsel %vm642, %v4952, 0
    %v4980 = vsel %vm642, %v4953, 0
    %v4983 = vsel %vm642, %v4954, 0
    %v4986 = vsel %vm642, %v4955, 0
    %v4989 = vsel %vm642, %v4956, 0
    %v4992 = vsel %vm642, %v4957, 0
    %v4995 = vsel %vm642, %v4958, 0
    %v4998 = vsel %vm642, %v4959, 0
    %v5001 = vsel %vm642, %v4960, 0
    %v5004 = vsel %vm642, %v4961, 0
    %v5007 = vsel %vm642, %v4962, 0
    %v5010 = vsel %vm642, %v4963, 0
    %5012 = vmatprep.subr.mxu0 0.0
    %5013 = vmatpush1.msra.mxu0 1.0
    %5014 = vmatprep.subr.mxu0 0.0
    %5015 = vmatpush1.msra.mxu0 1.0
    %5016 = vmatprep.subr.mxu0 0.0
    %5017 = vmatpush1.msra.mxu0 1.0
    %5018 = vmatprep.subr.mxu0 0.0
    %5019 = vmatpush1.msra.mxu0 1.0
    %5020 = vmatprep.subr.mxu0 0.0
    %5021 = vmatpush1.msra.mxu0 0.0
    %5022 = vmatprep.subr.mxu0 0.0
    %5023 = vmatpush1.msra.mxu0 0.0
    %5024 = vmatprep.subr.mxu0 0.0
    %5025 = vmatpush1.msra.mxu0 0.0
    %5026 = vmatprep.subr.mxu0 0.0
    %5027 = vmatpush1.msra.mxu0 0.0
    %5028 = vmatprep.subr.mxu0 0.0
    %5029 = vmatpush1.msra.mxu0 0.0
    %5030 = vmatprep.subr.mxu0 0.0
    %5031 = vmatpush1.msra.mxu0 0.0
    %5032 = vmatprep.subr.mxu0 0.0
    %5033 = vmatpush1.msra.mxu0 0.0
    %5034 = vmatprep.subr.mxu0 0.0
    %5035 = vmatpush1.msra.mxu0 0.0
    %5036 = vmatprep.subr.mxu0 0.0
    %5037 = vmatpush1.msra.mxu0 0.0
    %5038 = vmatprep.subr.mxu0 0.0
    %5039 = vmatpush1.msra.mxu0 0.0
    %5040 = vmatprep.subr.mxu0 0.0
    %5041 = vmatpush1.msra.mxu0 0.0
    %5042 = vmatprep.subr.mxu0 0.0
    %5043 = vmatpush1.msra.mxu0 0.0
    %5044 = vmatprep.subr.mxu0 0.0
    %5045 = vmatpush1.msra.mxu0 0.0
    %5046 = vmatprep.subr.mxu0 0.0
    %5047 = vmatpush1.msra.mxu0 0.0
    %5048 = vmatprep.subr.mxu0 0.0
    %5049 = vmatpush1.msra.mxu0 0.0
    %5050 = vmatprep.subr.mxu0 0.0
    %5051 = vmatpush1.msra.mxu0 0.0
    %5052 = vmatprep.subr.mxu0 0.0
    %5053 = vmatpush1.msra.mxu0 0.0
    %5054 = vmatprep.subr.mxu0 0.0
    %5055 = vmatpush1.msra.mxu0 0.0
    %5056 = vmatprep.subr.mxu0 0.0
    %5057 = vmatpush1.msra.mxu0 0.0
    %5058 = vmatprep.subr.mxu0 0.0
    %5059 = vmatpush1.msra.mxu0 0.0
    %5060 = vmatprep.subr.mxu0 0.0
    %5061 = vmatpush1.msra.mxu0 0.0
    %5062 = vmatprep.subr.mxu0 0.0
    %5063 = vmatpush1.msra.mxu0 0.0
    %5064 = vmatprep.subr.mxu0 0.0
    %5065 = vmatpush1.msra.mxu0 0.0
    %5066 = vmatprep.subr.mxu0 0.0
    %5067 = vmatpush1.msra.mxu0 0.0
    %5068 = vmatprep.subr.mxu0 0.0
    %5069 = vmatpush1.msra.mxu0 0.0
    %5070 = vmatprep.subr.mxu0 0.0
    %5071 = vmatpush1.msra.mxu0 0.0
    %5072 = vmatprep.subr.mxu0 0.0
    %5073 = vmatpush1.msra.mxu0 0.0
    %5074 = vmatprep.subr.mxu0 0.0
    %5075 = vmatpush1.msra.mxu0 0.0
    %5076 = vmatprep.mubr.f32.mxu0 0.0
    %5077 = vmatmul.mubr.f32.gmra.mrb[0].mxu0 %v4965
    %v5078 = vpop.f32.mrb[0].mxu0
    %v5079 = vadd.f32 1e-08, %v5078
    %v5080 = vpop.f32.mrb[0].mxu0
    %5081 = vmatprep.mubr.f32.mxu0 0.0
    %5082 = vmatmul.mubr.f32.gmra.mrb[0].mxu0 %v4968
    %v5083 = vpop.f32.mrb[0].mxu0
    %v5084 = vadd.f32 1e-08, %v5083
    %v5085 = vpop.f32.mrb[0].mxu0
    %5086 = vmatprep.mubr.f32.mxu0 0.0
    %5087 = vmatmul.mubr.f32.gmra.mrb[0].mxu0 %v4971
    %v5088 = vpop.f32.mrb[0].mxu0
    %v5089 = vadd.f32 1e-08, %v5088
    %v5090 = vpop.f32.mrb[0].mxu0
    %5091 = vmatprep.mubr.f32.mxu0 0.0
    %5092 = vmatmul.mubr.f32.gmra.mrb[0].mxu0 %v4974
    %v5093 = vpop.f32.mrb[0].mxu0
    %v5094 = vadd.f32 1e-08, %v5093
    %v5095 = vpop.f32.mrb[0].mxu0
    %5096 = vmatprep.mubr.f32.mxu0 0.0
    %5097 = vmatmul.mubr.f32.gmra.mrb[0].mxu0 %v4977
    %v5098 = vpop.f32.mrb[0].mxu0
    %v5099 = vadd.f32 1e-08, %v5098
    %v5100 = vpop.f32.mrb[0].mxu0
    %5101 = vmatprep.mubr.f32.mxu0 0.0
    %5102 = vmatmul.mubr.f32.gmra.mrb[0].mxu0 %v4980
    %v5103 = vpop.f32.mrb[0].mxu0
    %v5104 = vadd.f32 1e-08, %v5103
    %v5105 = vpop.f32.mrb[0].mxu0
    %5106 = vmatprep.mubr.f32.mxu0 0.0
    %5107 = vmatmul.mubr.f32.gmra.mrb[0].mxu0 %v4983
    %v5108 = vpop.f32.mrb[0].mxu0
    %v5109 = vadd.f32 1e-08, %v5108
    %v5110 = vpop.f32.mrb[0].mxu0
    %5111 = vmatprep.mubr.f32.mxu0 0.0
    %5112 = vmatmul.mubr.f32.gmra.mrb[0].mxu0 %v4986
    %v5113 = vpop.f32.mrb[0].mxu0
    %v5114 = vadd.f32 1e-08, %v5113
    %v5115 = vpop.f32.mrb[0].mxu0
    %5116 = vmatprep.mubr.f32.mxu0 0.0
    %5117 = vmatmul.mubr.f32.gmra.mrb[0].mxu0 %v4989
    %v5118 = vpop.f32.mrb[0].mxu0
    %v5119 = vadd.f32 1e-08, %v5118
    %v5120 = vpop.f32.mrb[0].mxu0
    %5121 = vmatprep.mubr.f32.mxu0 0.0
    %5122 = vmatmul.mubr.f32.gmra.mrb[0].mxu0 %v4992
    %v5123 = vpop.f32.mrb[0].mxu0
    %v5124 = vadd.f32 1e-08, %v5123
    %v5125 = vpop.f32.mrb[0].mxu0
    %5126 = vmatprep.mubr.f32.mxu0 0.0
    %5127 = vmatmul.mubr.f32.gmra.mrb[0].mxu0 %v4995
    %v5128 = vpop.f32.mrb[0].mxu0
    %v5129 = vadd.f32 1e-08, %v5128
    %v5130 = vpop.f32.mrb[0].mxu0
    %5131 = vmatprep.mubr.f32.mxu0 0.0
    %5132 = vmatmul.mubr.f32.gmra.mrb[0].mxu0 %v4998
    %v5133 = vpop.f32.mrb[0].mxu0
    %v5134 = vadd.f32 1e-08, %v5133
    %v5135 = vpop.f32.mrb[0].mxu0
    %5136 = vmatprep.mubr.f32.mxu0 0.0
    %5137 = vmatmul.mubr.f32.gmra.mrb[0].mxu0 %v5001
    %v5138 = vpop.f32.mrb[0].mxu0
    %v5139 = vadd.f32 1e-08, %v5138
    %v5140 = vpop.f32.mrb[0].mxu0
    %5141 = vmatprep.mubr.f32.mxu0 0.0
    %5142 = vmatmul.mubr.f32.gmra.mrb[0].mxu0 %v5004
    %v5143 = vpop.f32.mrb[0].mxu0
    %v5144 = vadd.f32 1e-08, %v5143
    %v5145 = vpop.f32.mrb[0].mxu0
    %5146 = vmatprep.mubr.f32.mxu0 0.0
    %5147 = vmatmul.mubr.f32.gmra.mrb[0].mxu0 %v5007
    %v5148 = vpop.f32.mrb[0].mxu0
    %v5149 = vadd.f32 1e-08, %v5148
    %v5150 = vpop.f32.mrb[0].mxu0
    %5151 = vmatprep.mubr.f32.mxu0 0.0
    %5152 = vmatmul.mubr.f32.gmra.mrb[0].mxu0 %v5010
    %v5153 = vpop.f32.mrb[0].mxu0
    %v5154 = vadd.f32 1e-08, %v5153
    %v5155 = vpop.f32.mrb[0].mxu0
    %5156 = vdwg.mxu0
    %v5157 = vrsqrt.pop %v5079
    %v5158 = vrsqrt.pop %v5084
    %v5159 = vrsqrt.pop %v5089
    %v5160 = vrsqrt.pop %v5094
    %v5161 = vrsqrt.pop %v5099
    %v5162 = vrsqrt.pop %v5104
    %v5163 = vrsqrt.pop %v5109
    %v5164 = vrsqrt.pop %v5114
    %v5165 = vrsqrt.pop %v5119
    %v5166 = vrsqrt.pop %v5124
    %v5167 = vrsqrt.pop %v5129
    %v5168 = vrsqrt.pop %v5134
    %v5169 = vrsqrt.pop %v5139
    %v5170 = vrsqrt.pop %v5144
    %v5171 = vrsqrt.pop %v5149
    %v5172 = vrsqrt.pop %v5154
    %5174 = vset.pattern.permute.xlu0 0
    %5175 = vperm.xlu0 %5174, %v5157
    %v5176 = vpop.permute.xlu0 %5175
    %5179 = vset.pattern.permute.xlu0 0
    %5180 = vperm.xlu0 %5179, %v5158
    %v5181 = vpop.permute.xlu0 %5180
    %5184 = vset.pattern.permute.xlu0 0
    %5185 = vperm.xlu0 %5184, %v5159
    %v5186 = vpop.permute.xlu0 %5185
    %5189 = vset.pattern.permute.xlu0 0
    %5190 = vperm.xlu0 %5189, %v5160
    %v5191 = vpop.permute.xlu0 %5190
    %5194 = vset.pattern.permute.xlu0 0
    %5195 = vperm.xlu0 %5194, %v5161
    %v5196 = vpop.permute.xlu0 %5195
    %5199 = vset.pattern.permute.xlu0 0
    %5200 = vperm.xlu0 %5199, %v5162
    %v5201 = vpop.permute.xlu0 %5200
    %5204 = vset.pattern.permute.xlu0 0
    %5205 = vperm.xlu0 %5204, %v5163
    %v5206 = vpop.permute.xlu0 %5205
    %5209 = vset.pattern.permute.xlu0 0
    %5210 = vperm.xlu0 %5209, %v5164
    %v5211 = vpop.permute.xlu0 %5210
    %5214 = vset.pattern.permute.xlu0 0
    %5215 = vperm.xlu0 %5214, %v5165
    %v5216 = vpop.permute.xlu0 %5215
    %5219 = vset.pattern.permute.xlu0 0
    %5220 = vperm.xlu0 %5219, %v5166
    %v5221 = vpop.permute.xlu0 %5220
    %5224 = vset.pattern.permute.xlu0 0
    %5225 = vperm.xlu0 %5224, %v5167
    %v5226 = vpop.permute.xlu0 %5225
    %5229 = vset.pattern.permute.xlu0 0
    %5230 = vperm.xlu0 %5229, %v5168
    %v5231 = vpop.permute.xlu0 %5230
    %5234 = vset.pattern.permute.xlu0 0
    %5235 = vperm.xlu0 %5234, %v5169
    %v5236 = vpop.permute.xlu0 %5235
    %5239 = vset.pattern.permute.xlu0 0
    %5240 = vperm.xlu0 %5239, %v5170
    %v5241 = vpop.permute.xlu0 %5240
    %5244 = vset.pattern.permute.xlu0 0
    %5245 = vperm.xlu0 %5244, %v5171
    %v5246 = vpop.permute.xlu0 %5245
    %5249 = vset.pattern.permute.xlu0 0
    %5250 = vperm.xlu0 %5249, %v5172
    %v5251 = vpop.permute.xlu0 %5250
    %v5253 = vmul.f32 %v4932, %v5176
    %v5254 = vmul.f32 %v4933, %v5181
    %v5255 = vmul.f32 %v4934, %v5186
    %v5256 = vmul.f32 %v4935, %v5191
    %v5257 = vmul.f32 %v4936, %v5196
    %v5258 = vmul.f32 %v4937, %v5201
    %v5259 = vmul.f32 %v4938, %v5206
    %v5260 = vmul.f32 %v4939, %v5211
    %v5261 = vmul.f32 %v4940, %v5216
    %v5262 = vmul.f32 %v4941, %v5221
    %v5263 = vmul.f32 %v4942, %v5226
    %v5264 = vmul.f32 %v4943, %v5231
    %v5265 = vmul.f32 %v4944, %v5236
    %v5266 = vmul.f32 %v4945, %v5241
    %v5267 = vmul.f32 %v4946, %v5246
    %v5268 = vmul.f32 %v4947, %v5251
    %v5269 = vld [vmem:[%s2016] sm:$0xff]
    %v5270 = vld [vmem:[%s2016 + $0x8] sm:$0xff]
    %v5271 = vld [vmem:[%s2016 + $0x10] sm:$0xff]
    %v5272 = vld [vmem:[%s2016 + $0x18] sm:$0xff]
    %v5274 = vsel %vm642, %v5253, 0
    %v5277 = vsel %vm642, %v5254, 0
    %v5280 = vsel %vm642, %v5255, 0
    %v5283 = vsel %vm642, %v5256, 0
    %v5286 = vsel %vm642, %v5257, 0
    %v5289 = vsel %vm642, %v5258, 0
    %v5292 = vsel %vm642, %v5259, 0
    %v5295 = vsel %vm642, %v5260, 0
    %v5298 = vsel %vm642, %v5261, 0
    %v5301 = vsel %vm642, %v5262, 0
    %v5304 = vsel %vm642, %v5263, 0
    %v5307 = vsel %vm642, %v5264, 0
    %v5310 = vsel %vm642, %v5265, 0
    %v5313 = vsel %vm642, %v5266, 0
    %v5316 = vsel %vm642, %v5267, 0
    %v5319 = vsel %vm642, %v5268, 0
    %5321 = vmatprep.subr.mxu0 0.0
    %5322 = vmatpush1.msra.mxu0 %v5269
    %5323 = vmatprep.subr.mxu0 0.0
    %5324 = vmatpush1.msra.mxu0 %v5270
    %5325 = vmatprep.subr.mxu0 0.0
    %5326 = vmatpush1.msra.mxu0 %v5271
    %5327 = vmatprep.subr.mxu0 0.0
    %5328 = vmatpush1.msra.mxu0 %v5272
    %5329 = vmatprep.subr.mxu0 0.0
    %5330 = vmatpush1.msra.mxu0 0.0
    %5331 = vmatprep.subr.mxu0 0.0
    %5332 = vmatpush1.msra.mxu0 0.0
    %5333 = vmatprep.subr.mxu0 0.0
    %5334 = vmatpush1.msra.mxu0 0.0
    %5335 = vmatprep.subr.mxu0 0.0
    %5336 = vmatpush1.msra.mxu0 0.0
    %5337 = vmatprep.subr.mxu0 0.0
    %5338 = vmatpush1.msra.mxu0 0.0
    %5339 = vmatprep.subr.mxu0 0.0
    %5340 = vmatpush1.msra.mxu0 0.0
    %5341 = vmatprep.subr.mxu0 0.0
    %5342 = vmatpush1.msra.mxu0 0.0
    %5343 = vmatprep.subr.mxu0 0.0
    %5344 = vmatpush1.msra.mxu0 0.0
    %5345 = vmatprep.subr.mxu0 0.0
    %5346 = vmatpush1.msra.mxu0 0.0
    %5347 = vmatprep.subr.mxu0 0.0
    %5348 = vmatpush1.msra.mxu0 0.0
    %5349 = vmatprep.subr.mxu0 0.0
    %5350 = vmatpush1.msra.mxu0 0.0
    %5351 = vmatprep.subr.mxu0 0.0
    %5352 = vmatpush1.msra.mxu0 0.0
    %5353 = vmatprep.subr.mxu0 0.0
    %5354 = vmatpush1.msra.mxu0 0.0
    %5355 = vmatprep.subr.mxu0 0.0
    %5356 = vmatpush1.msra.mxu0 0.0
    %5357 = vmatprep.subr.mxu0 0.0
    %5358 = vmatpush1.msra.mxu0 0.0
    %5359 = vmatprep.subr.mxu0 0.0
    %5360 = vmatpush1.msra.mxu0 0.0
    %5361 = vmatprep.subr.mxu0 0.0
    %5362 = vmatpush1.msra.mxu0 0.0
    %5363 = vmatprep.subr.mxu0 0.0
    %5364 = vmatpush1.msra.mxu0 0.0
    %5365 = vmatprep.subr.mxu0 0.0
    %5366 = vmatpush1.msra.mxu0 0.0
    %5367 = vmatprep.subr.mxu0 0.0
    %5368 = vmatpush1.msra.mxu0 0.0
    %5369 = vmatprep.subr.mxu0 0.0
    %5370 = vmatpush1.msra.mxu0 0.0
    %5371 = vmatprep.subr.mxu0 0.0
    %5372 = vmatpush1.msra.mxu0 0.0
    %5373 = vmatprep.subr.mxu0 0.0
    %5374 = vmatpush1.msra.mxu0 0.0
    %5375 = vmatprep.subr.mxu0 0.0
    %5376 = vmatpush1.msra.mxu0 0.0
    %5377 = vmatprep.subr.mxu0 0.0
    %5378 = vmatpush1.msra.mxu0 0.0
    %5379 = vmatprep.subr.mxu0 0.0
    %5380 = vmatpush1.msra.mxu0 0.0
    %5381 = vmatprep.subr.mxu0 0.0
    %5382 = vmatpush1.msra.mxu0 0.0
    %5383 = vmatprep.subr.mxu0 0.0
    %5384 = vmatpush1.msra.mxu0 0.0
    %5385 = vmatprep.mubr.f32.mxu0 0.0
    %5386 = vmatmul.mubr.f32.gmra.mrb[0].mxu0 %v5274
    %v5387 = vpop.f32.mrb[0].mxu0
    %v5388 = vadd.f32 0.0, %v5387
    %v5389 = vpop.f32.mrb[0].mxu0
    %5390 = vmatprep.mubr.f32.mxu0 0.0
    %5391 = vmatmul.mubr.f32.gmra.mrb[0].mxu0 %v5277
    %v5392 = vpop.f32.mrb[0].mxu0
    %v5393 = vadd.f32 0.0, %v5392
    %v5394 = vpop.f32.mrb[0].mxu0
    %5395 = vmatprep.mubr.f32.mxu0 0.0
    %5396 = vmatmul.mubr.f32.gmra.mrb[0].mxu0 %v5280
    %v5397 = vpop.f32.mrb[0].mxu0
    %v5398 = vadd.f32 0.0, %v5397
    %v5399 = vpop.f32.mrb[0].mxu0
    %5400 = vmatprep.mubr.f32.mxu0 0.0
    %5401 = vmatmul.mubr.f32.gmra.mrb[0].mxu0 %v5283
    %v5402 = vpop.f32.mrb[0].mxu0
    %v5403 = vadd.f32 0.0, %v5402
    %v5404 = vpop.f32.mrb[0].mxu0
    %5405 = vmatprep.mubr.f32.mxu0 0.0
    %5406 = vmatmul.mubr.f32.gmra.mrb[0].mxu0 %v5286
    %v5407 = vpop.f32.mrb[0].mxu0
    %v5408 = vadd.f32 0.0, %v5407
    %v5409 = vpop.f32.mrb[0].mxu0
    %5410 = vmatprep.mubr.f32.mxu0 0.0
    %5411 = vmatmul.mubr.f32.gmra.mrb[0].mxu0 %v5289
    %v5412 = vpop.f32.mrb[0].mxu0
    %v5413 = vadd.f32 0.0, %v5412
    %v5414 = vpop.f32.mrb[0].mxu0
    %5415 = vmatprep.mubr.f32.mxu0 0.0
    %5416 = vmatmul.mubr.f32.gmra.mrb[0].mxu0 %v5292
    %v5417 = vpop.f32.mrb[0].mxu0
    %v5418 = vadd.f32 0.0, %v5417
    %v5419 = vpop.f32.mrb[0].mxu0
    %5420 = vmatprep.mubr.f32.mxu0 0.0
    %5421 = vmatmul.mubr.f32.gmra.mrb[0].mxu0 %v5295
    %v5422 = vpop.f32.mrb[0].mxu0
    %v5423 = vadd.f32 0.0, %v5422
    %v5424 = vpop.f32.mrb[0].mxu0
    %5425 = vmatprep.mubr.f32.mxu0 0.0
    %5426 = vmatmul.mubr.f32.gmra.mrb[0].mxu0 %v5298
    %v5427 = vpop.f32.mrb[0].mxu0
    %v5428 = vadd.f32 0.0, %v5427
    %v5429 = vpop.f32.mrb[0].mxu0
    %5430 = vmatprep.mubr.f32.mxu0 0.0
    %5431 = vmatmul.mubr.f32.gmra.mrb[0].mxu0 %v5301
    %v5432 = vpop.f32.mrb[0].mxu0
    %v5433 = vadd.f32 0.0, %v5432
    %v5434 = vpop.f32.mrb[0].mxu0
    %5435 = vmatprep.mubr.f32.mxu0 0.0
    %5436 = vmatmul.mubr.f32.gmra.mrb[0].mxu0 %v5304
    %v5437 = vpop.f32.mrb[0].mxu0
    %v5438 = vadd.f32 0.0, %v5437
    %v5439 = vpop.f32.mrb[0].mxu0
    %5440 = vmatprep.mubr.f32.mxu0 0.0
    %5441 = vmatmul.mubr.f32.gmra.mrb[0].mxu0 %v5307
    %v5442 = vpop.f32.mrb[0].mxu0
    %v5443 = vadd.f32 0.0, %v5442
    %v5444 = vpop.f32.mrb[0].mxu0
    %5445 = vmatprep.mubr.f32.mxu0 0.0
    %5446 = vmatmul.mubr.f32.gmra.mrb[0].mxu0 %v5310
    %v5447 = vpop.f32.mrb[0].mxu0
    %v5448 = vadd.f32 0.0, %v5447
    %v5449 = vpop.f32.mrb[0].mxu0
    %5450 = vmatprep.mubr.f32.mxu0 0.0
    %5451 = vmatmul.mubr.f32.gmra.mrb[0].mxu0 %v5313
    %v5452 = vpop.f32.mrb[0].mxu0
    %v5453 = vadd.f32 0.0, %v5452
    %v5454 = vpop.f32.mrb[0].mxu0
    %5455 = vmatprep.mubr.f32.mxu0 0.0
    %5456 = vmatmul.mubr.f32.gmra.mrb[0].mxu0 %v5316
    %v5457 = vpop.f32.mrb[0].mxu0
    %v5458 = vadd.f32 0.0, %v5457
    %v5459 = vpop.f32.mrb[0].mxu0
    %5460 = vmatprep.mubr.f32.mxu0 0.0
    %5461 = vmatmul.mubr.f32.gmra.mrb[0].mxu0 %v5319
    %v5462 = vpop.f32.mrb[0].mxu0
    %v5463 = vadd.f32 0.0, %v5462
    %v5464 = vpop.f32.mrb[0].mxu0
    %5465 = vdwg.mxu0
    %v5466 = vmax.f32 %v5388, 0.0
    %v5467 = vmax.f32 %v5393, 0.0
    %v5468 = vmax.f32 %v5398, 0.0
    %v5469 = vmax.f32 %v5403, 0.0
    %v5470 = vmax.f32 %v5408, 0.0
    %v5471 = vmax.f32 %v5413, 0.0
    %v5472 = vmax.f32 %v5418, 0.0
    %v5473 = vmax.f32 %v5423, 0.0
    %v5474 = vmax.f32 %v5428, 0.0
    %v5475 = vmax.f32 %v5433, 0.0
    %v5476 = vmax.f32 %v5438, 0.0
    %v5477 = vmax.f32 %v5443, 0.0
    %v5478 = vmax.f32 %v5448, 0.0
    %v5479 = vmax.f32 %v5453, 0.0
    %v5480 = vmax.f32 %v5458, 0.0
    %v5481 = vmax.f32 %v5463, 0.0
    %v5482 = vld [vmem:[%s2230] sm:$0xff]
    %v5483 = vld [vmem:[%s2230 + $0x8] sm:$0xff]
    %v5484 = vld [vmem:[%s2230 + $0x10] sm:$0xff]
    %v5485 = vld [vmem:[%s2230 + $0x18] sm:$0xff]
    %v5486 = vld [vmem:[%s2230 + $0x20] sm:$0xff]
    %v5487 = vld [vmem:[%s2230 + $0x28] sm:$0xff]
    %v5488 = vld [vmem:[%s2230 + $0x30] sm:$0xff]
    %v5489 = vld [vmem:[%s2230 + $0x38] sm:$0xff]
    %v5490 = vld [vmem:[%s2230 + $0x40] sm:$0xff]
    %v5491 = vld [vmem:[%s2230 + $0x48] sm:$0xff]
    %v5492 = vld [vmem:[%s2230 + $0x50] sm:$0xff]
    %v5493 = vld [vmem:[%s2230 + $0x58] sm:$0xff]
    %v5494 = vld [vmem:[%s2230 + $0x60] sm:$0xff]
    %v5495 = vld [vmem:[%s2230 + $0x68] sm:$0xff]
    %v5496 = vld [vmem:[%s2230 + $0x70] sm:$0xff]
    %v5497 = vld [vmem:[%s2230 + $0x78] sm:$0xff]
    %5498 = vmatprep.subr.mxu0 0.0
    %5499 = vmatpush1.msra.mxu0 %v5482
    %5500 = vmatprep.subr.mxu0 0.0
    %5501 = vmatpush1.msra.mxu0 %v5483
    %5502 = vmatprep.subr.mxu0 0.0
    %5503 = vmatpush1.msra.mxu0 %v5484
    %5504 = vmatprep.subr.mxu0 0.0
    %5505 = vmatpush1.msra.mxu0 %v5485
    %5506 = vmatprep.subr.mxu0 0.0
    %5507 = vmatpush1.msra.mxu0 %v5486
    %5508 = vmatprep.subr.mxu0 0.0
    %5509 = vmatpush1.msra.mxu0 %v5487
    %5510 = vmatprep.subr.mxu0 0.0
    %5511 = vmatpush1.msra.mxu0 %v5488
    %5512 = vmatprep.subr.mxu0 0.0
    %5513 = vmatpush1.msra.mxu0 %v5489
    %5514 = vmatprep.subr.mxu0 0.0
    %5515 = vmatpush1.msra.mxu0 %v5490
    %5516 = vmatprep.subr.mxu0 0.0
    %5517 = vmatpush1.msra.mxu0 %v5491
    %5518 = vmatprep.subr.mxu0 0.0
    %5519 = vmatpush1.msra.mxu0 %v5492
    %5520 = vmatprep.subr.mxu0 0.0
    %5521 = vmatpush1.msra.mxu0 %v5493
    %5522 = vmatprep.subr.mxu0 0.0
    %5523 = vmatpush1.msra.mxu0 %v5494
    %5524 = vmatprep.subr.mxu0 0.0
    %5525 = vmatpush1.msra.mxu0 %v5495
    %5526 = vmatprep.subr.mxu0 0.0
    %5527 = vmatpush1.msra.mxu0 %v5496
    %5528 = vmatprep.subr.mxu0 0.0
    %5529 = vmatpush1.msra.mxu0 %v5497
    %5530 = vmatprep.subr.mxu0 0.0
    %5531 = vmatpush1.msra.mxu0 0.0
    %5532 = vmatprep.subr.mxu0 0.0
    %5533 = vmatpush1.msra.mxu0 0.0
    %5534 = vmatprep.subr.mxu0 0.0
    %5535 = vmatpush1.msra.mxu0 0.0
    %5536 = vmatprep.subr.mxu0 0.0
    %5537 = vmatpush1.msra.mxu0 0.0
    %5538 = vmatprep.subr.mxu0 0.0
    %5539 = vmatpush1.msra.mxu0 0.0
    %5540 = vmatprep.subr.mxu0 0.0
    %5541 = vmatpush1.msra.mxu0 0.0
    %5542 = vmatprep.subr.mxu0 0.0
    %5543 = vmatpush1.msra.mxu0 0.0
    %5544 = vmatprep.subr.mxu0 0.0
    %5545 = vmatpush1.msra.mxu0 0.0
    %5546 = vmatprep.subr.mxu0 0.0
    %5547 = vmatpush1.msra.mxu0 0.0
    %5548 = vmatprep.subr.mxu0 0.0
    %5549 = vmatpush1.msra.mxu0 0.0
    %5550 = vmatprep.subr.mxu0 0.0
    %5551 = vmatpush1.msra.mxu0 0.0
    %5552 = vmatprep.subr.mxu0 0.0
    %5553 = vmatpush1.msra.mxu0 0.0
    %5554 = vmatprep.subr.mxu0 0.0
    %5555 = vmatpush1.msra.mxu0 0.0
    %5556 = vmatprep.subr.mxu0 0.0
    %5557 = vmatpush1.msra.mxu0 0.0
    %5558 = vmatprep.subr.mxu0 0.0
    %5559 = vmatpush1.msra.mxu0 0.0
    %5560 = vmatprep.subr.mxu0 0.0
    %5561 = vmatpush1.msra.mxu0 0.0
    %5562 = vmatprep.mubr.f32.mxu0 0.0
    %5563 = vmatmul.mubr.f32.gmra.mrb[0].mxu0 %v5466
    %v5564 = vpop.f32.mrb[0].mxu0
    %v5565 = vadd.f32 0.0, %v5564
    %v5566 = vpop.f32.mrb[0].mxu0
    %5567 = vmatprep.mubr.f32.mxu0 0.0
    %5568 = vmatmul.mubr.f32.gmra.mrb[0].mxu0 %v5467
    %v5569 = vpop.f32.mrb[0].mxu0
    %v5570 = vadd.f32 0.0, %v5569
    %v5571 = vpop.f32.mrb[0].mxu0
    %5572 = vmatprep.mubr.f32.mxu0 0.0
    %5573 = vmatmul.mubr.f32.gmra.mrb[0].mxu0 %v5468
    %v5574 = vpop.f32.mrb[0].mxu0
    %v5575 = vadd.f32 0.0, %v5574
    %v5576 = vpop.f32.mrb[0].mxu0
    %5577 = vmatprep.mubr.f32.mxu0 0.0
    %5578 = vmatmul.mubr.f32.gmra.mrb[0].mxu0 %v5469
    %v5579 = vpop.f32.mrb[0].mxu0
    %v5580 = vadd.f32 0.0, %v5579
    %v5581 = vpop.f32.mrb[0].mxu0
    %5582 = vmatprep.mubr.f32.mxu0 0.0
    %5583 = vmatmul.mubr.f32.gmra.mrb[0].mxu0 %v5470
    %v5584 = vpop.f32.mrb[0].mxu0
    %v5585 = vadd.f32 0.0, %v5584
    %v5586 = vpop.f32.mrb[0].mxu0
    %5587 = vmatprep.mubr.f32.mxu0 0.0
    %5588 = vmatmul.mubr.f32.gmra.mrb[0].mxu0 %v5471
    %v5589 = vpop.f32.mrb[0].mxu0
    %v5590 = vadd.f32 0.0, %v5589
    %v5591 = vpop.f32.mrb[0].mxu0
    %5592 = vmatprep.mubr.f32.mxu0 0.0
    %5593 = vmatmul.mubr.f32.gmra.mrb[0].mxu0 %v5472
    %v5594 = vpop.f32.mrb[0].mxu0
    %v5595 = vadd.f32 0.0, %v5594
    %v5596 = vpop.f32.mrb[0].mxu0
    %5597 = vmatprep.mubr.f32.mxu0 0.0
    %5598 = vmatmul.mubr.f32.gmra.mrb[0].mxu0 %v5473
    %v5599 = vpop.f32.mrb[0].mxu0
    %v5600 = vadd.f32 0.0, %v5599
    %v5601 = vpop.f32.mrb[0].mxu0
    %5602 = vmatprep.mubr.f32.mxu0 0.0
    %5603 = vmatmul.mubr.f32.gmra.mrb[0].mxu0 %v5474
    %v5604 = vpop.f32.mrb[0].mxu0
    %v5605 = vadd.f32 0.0, %v5604
    %v5606 = vpop.f32.mrb[0].mxu0
    %5607 = vmatprep.mubr.f32.mxu0 0.0
    %5608 = vmatmul.mubr.f32.gmra.mrb[0].mxu0 %v5475
    %v5609 = vpop.f32.mrb[0].mxu0
    %v5610 = vadd.f32 0.0, %v5609
    %v5611 = vpop.f32.mrb[0].mxu0
    %5612 = vmatprep.mubr.f32.mxu0 0.0
    %5613 = vmatmul.mubr.f32.gmra.mrb[0].mxu0 %v5476
    %v5614 = vpop.f32.mrb[0].mxu0
    %v5615 = vadd.f32 0.0, %v5614
    %v5616 = vpop.f32.mrb[0].mxu0
    %5617 = vmatprep.mubr.f32.mxu0 0.0
    %5618 = vmatmul.mubr.f32.gmra.mrb[0].mxu0 %v5477
    %v5619 = vpop.f32.mrb[0].mxu0
    %v5620 = vadd.f32 0.0, %v5619
    %v5621 = vpop.f32.mrb[0].mxu0
    %5622 = vmatprep.mubr.f32.mxu0 0.0
    %5623 = vmatmul.mubr.f32.gmra.mrb[0].mxu0 %v5478
    %v5624 = vpop.f32.mrb[0].mxu0
    %v5625 = vadd.f32 0.0, %v5624
    %v5626 = vpop.f32.mrb[0].mxu0
    %5627 = vmatprep.mubr.f32.mxu0 0.0
    %5628 = vmatmul.mubr.f32.gmra.mrb[0].mxu0 %v5479
    %v5629 = vpop.f32.mrb[0].mxu0
    %v5630 = vadd.f32 0.0, %v5629
    %v5631 = vpop.f32.mrb[0].mxu0
    %5632 = vmatprep.mubr.f32.mxu0 0.0
    %5633 = vmatmul.mubr.f32.gmra.mrb[0].mxu0 %v5480
    %v5634 = vpop.f32.mrb[0].mxu0
    %v5635 = vadd.f32 0.0, %v5634
    %v5636 = vpop.f32.mrb[0].mxu0
    %5637 = vmatprep.mubr.f32.mxu0 0.0
    %5638 = vmatmul.mubr.f32.gmra.mrb[0].mxu0 %v5481
    %v5639 = vpop.f32.mrb[0].mxu0
    %v5640 = vadd.f32 0.0, %v5639
    %v5641 = vpop.f32.mrb[0].mxu0
    %5642 = vdwg.mxu0
    %v5643 = vmul.f32 %v5565, %v5565
    %v5644 = vmul.f32 %v5570, %v5570
    %v5645 = vmul.f32 %v5575, %v5575
    %v5646 = vmul.f32 %v5580, %v5580
    %v5647 = vmul.f32 %v5585, %v5585
    %v5648 = vmul.f32 %v5590, %v5590
    %v5649 = vmul.f32 %v5595, %v5595
    %v5650 = vmul.f32 %v5600, %v5600
    %v5651 = vmul.f32 %v5605, %v5605
    %v5652 = vmul.f32 %v5610, %v5610
    %v5653 = vmul.f32 %v5615, %v5615
    %v5654 = vmul.f32 %v5620, %v5620
    %v5655 = vmul.f32 %v5625, %v5625
    %v5656 = vmul.f32 %v5630, %v5630
    %v5657 = vmul.f32 %v5635, %v5635
    %v5658 = vmul.f32 %v5640, %v5640
    %v5660 = vsel %vm642, %v5643, 0
    %v5663 = vsel %vm642, %v5644, 0
    %v5666 = vsel %vm642, %v5645, 0
    %v5669 = vsel %vm642, %v5646, 0
    %v5672 = vsel %vm642, %v5647, 0
    %v5675 = vsel %vm642, %v5648, 0
    %v5678 = vsel %vm642, %v5649, 0
    %v5681 = vsel %vm642, %v5650, 0
    %v5684 = vsel %vm642, %v5651, 0
    %v5687 = vsel %vm642, %v5652, 0
    %v5690 = vsel %vm642, %v5653, 0
    %v5693 = vsel %vm642, %v5654, 0
    %v5696 = vsel %vm642, %v5655, 0
    %v5699 = vsel %vm642, %v5656, 0
    %v5702 = vsel %vm642, %v5657, 0
    %v5705 = vsel %vm642, %v5658, 0
    %5707 = vmatprep.subr.mxu0 0.0
    %5708 = vmatpush1.msra.mxu0 1.0
    %5709 = vmatprep.subr.mxu0 0.0
    %5710 = vmatpush1.msra.mxu0 1.0
    %5711 = vmatprep.subr.mxu0 0.0
    %5712 = vmatpush1.msra.mxu0 1.0
    %5713 = vmatprep.subr.mxu0 0.0
    %5714 = vmatpush1.msra.mxu0 1.0
    %5715 = vmatprep.subr.mxu0 0.0
    %5716 = vmatpush1.msra.mxu0 0.0
    %5717 = vmatprep.subr.mxu0 0.0
    %5718 = vmatpush1.msra.mxu0 0.0
    %5719 = vmatprep.subr.mxu0 0.0
    %5720 = vmatpush1.msra.mxu0 0.0
    %5721 = vmatprep.subr.mxu0 0.0
    %5722 = vmatpush1.msra.mxu0 0.0
    %5723 = vmatprep.subr.mxu0 0.0
    %5724 = vmatpush1.msra.mxu0 0.0
    %5725 = vmatprep.subr.mxu0 0.0
    %5726 = vmatpush1.msra.mxu0 0.0
    %5727 = vmatprep.subr.mxu0 0.0
    %5728 = vmatpush1.msra.mxu0 0.0
    %5729 = vmatprep.subr.mxu0 0.0
    %5730 = vmatpush1.msra.mxu0 0.0
    %5731 = vmatprep.subr.mxu0 0.0
    %5732 = vmatpush1.msra.mxu0 0.0
    %5733 = vmatprep.subr.mxu0 0.0
    %5734 = vmatpush1.msra.mxu0 0.0
    %5735 = vmatprep.subr.mxu0 0.0
    %5736 = vmatpush1.msra.mxu0 0.0
    %5737 = vmatprep.subr.mxu0 0.0
    %5738 = vmatpush1.msra.mxu0 0.0
    %5739 = vmatprep.subr.mxu0 0.0
    %5740 = vmatpush1.msra.mxu0 0.0
    %5741 = vmatprep.subr.mxu0 0.0
    %5742 = vmatpush1.msra.mxu0 0.0
    %5743 = vmatprep.subr.mxu0 0.0
    %5744 = vmatpush1.msra.mxu0 0.0
    %5745 = vmatprep.subr.mxu0 0.0
    %5746 = vmatpush1.msra.mxu0 0.0
    %5747 = vmatprep.subr.mxu0 0.0
    %5748 = vmatpush1.msra.mxu0 0.0
    %5749 = vmatprep.subr.mxu0 0.0
    %5750 = vmatpush1.msra.mxu0 0.0
    %5751 = vmatprep.subr.mxu0 0.0
    %5752 = vmatpush1.msra.mxu0 0.0
    %5753 = vmatprep.subr.mxu0 0.0
    %5754 = vmatpush1.msra.mxu0 0.0
    %5755 = vmatprep.subr.mxu0 0.0
    %5756 = vmatpush1.msra.mxu0 0.0
    %5757 = vmatprep.subr.mxu0 0.0
    %5758 = vmatpush1.msra.mxu0 0.0
    %5759 = vmatprep.subr.mxu0 0.0
    %5760 = vmatpush1.msra.mxu0 0.0
    %5761 = vmatprep.subr.mxu0 0.0
    %5762 = vmatpush1.msra.mxu0 0.0
    %5763 = vmatprep.subr.mxu0 0.0
    %5764 = vmatpush1.msra.mxu0 0.0
    %5765 = vmatprep.subr.mxu0 0.0
    %5766 = vmatpush1.msra.mxu0 0.0
    %5767 = vmatprep.subr.mxu0 0.0
    %5768 = vmatpush1.msra.mxu0 0.0
    %5769 = vmatprep.subr.mxu0 0.0
    %5770 = vmatpush1.msra.mxu0 0.0
    %5771 = vmatprep.mubr.f32.mxu0 0.0
    %5772 = vmatmul.mubr.f32.gmra.mrb[0].mxu0 %v5660
    %v5773 = vpop.f32.mrb[0].mxu0
    %v5774 = vadd.f32 1e-08, %v5773
    %v5775 = vpop.f32.mrb[0].mxu0
    %5776 = vmatprep.mubr.f32.mxu0 0.0
    %5777 = vmatmul.mubr.f32.gmra.mrb[0].mxu0 %v5663
    %v5778 = vpop.f32.mrb[0].mxu0
    %v5779 = vadd.f32 1e-08, %v5778
    %v5780 = vpop.f32.mrb[0].mxu0
    %5781 = vmatprep.mubr.f32.mxu0 0.0
    %5782 = vmatmul.mubr.f32.gmra.mrb[0].mxu0 %v5666
    %v5783 = vpop.f32.mrb[0].mxu0
    %v5784 = vadd.f32 1e-08, %v5783
    %v5785 = vpop.f32.mrb[0].mxu0
    %5786 = vmatprep.mubr.f32.mxu0 0.0
    %5787 = vmatmul.mubr.f32.gmra.mrb[0].mxu0 %v5669
    %v5788 = vpop.f32.mrb[0].mxu0
    %v5789 = vadd.f32 1e-08, %v5788
    %v5790 = vpop.f32.mrb[0].mxu0
    %5791 = vmatprep.mubr.f32.mxu0 0.0
    %5792 = vmatmul.mubr.f32.gmra.mrb[0].mxu0 %v5672
    %v5793 = vpop.f32.mrb[0].mxu0
    %v5794 = vadd.f32 1e-08, %v5793
    %v5795 = vpop.f32.mrb[0].mxu0
    %5796 = vmatprep.mubr.f32.mxu0 0.0
    %5797 = vmatmul.mubr.f32.gmra.mrb[0].mxu0 %v5675
    %v5798 = vpop.f32.mrb[0].mxu0
    %v5799 = vadd.f32 1e-08, %v5798
    %v5800 = vpop.f32.mrb[0].mxu0
    %5801 = vmatprep.mubr.f32.mxu0 0.0
    %5802 = vmatmul.mubr.f32.gmra.mrb[0].mxu0 %v5678
    %v5803 = vpop.f32.mrb[0].mxu0
    %v5804 = vadd.f32 1e-08, %v5803
    %v5805 = vpop.f32.mrb[0].mxu0
    %5806 = vmatprep.mubr.f32.mxu0 0.0
    %5807 = vmatmul.mubr.f32.gmra.mrb[0].mxu0 %v5681
    %v5808 = vpop.f32.mrb[0].mxu0
    %v5809 = vadd.f32 1e-08, %v5808
    %v5810 = vpop.f32.mrb[0].mxu0
    %5811 = vmatprep.mubr.f32.mxu0 0.0
    %5812 = vmatmul.mubr.f32.gmra.mrb[0].mxu0 %v5684
    %v5813 = vpop.f32.mrb[0].mxu0
    %v5814 = vadd.f32 1e-08, %v5813
    %v5815 = vpop.f32.mrb[0].mxu0
    %5816 = vmatprep.mubr.f32.mxu0 0.0
    %5817 = vmatmul.mubr.f32.gmra.mrb[0].mxu0 %v5687
    %v5818 = vpop.f32.mrb[0].mxu0
    %v5819 = vadd.f32 1e-08, %v5818
    %v5820 = vpop.f32.mrb[0].mxu0
    %5821 = vmatprep.mubr.f32.mxu0 0.0
    %5822 = vmatmul.mubr.f32.gmra.mrb[0].mxu0 %v5690
    %v5823 = vpop.f32.mrb[0].mxu0
    %v5824 = vadd.f32 1e-08, %v5823
    %v5825 = vpop.f32.mrb[0].mxu0
    %5826 = vmatprep.mubr.f32.mxu0 0.0
    %5827 = vmatmul.mubr.f32.gmra.mrb[0].mxu0 %v5693
    %v5828 = vpop.f32.mrb[0].mxu0
    %v5829 = vadd.f32 1e-08, %v5828
    %v5830 = vpop.f32.mrb[0].mxu0
    %5831 = vmatprep.mubr.f32.mxu0 0.0
    %5832 = vmatmul.mubr.f32.gmra.mrb[0].mxu0 %v5696
    %v5833 = vpop.f32.mrb[0].mxu0
    %v5834 = vadd.f32 1e-08, %v5833
    %v5835 = vpop.f32.mrb[0].mxu0
    %5836 = vmatprep.mubr.f32.mxu0 0.0
    %5837 = vmatmul.mubr.f32.gmra.mrb[0].mxu0 %v5699
    %v5838 = vpop.f32.mrb[0].mxu0
    %v5839 = vadd.f32 1e-08, %v5838
    %v5840 = vpop.f32.mrb[0].mxu0
    %5841 = vmatprep.mubr.f32.mxu0 0.0
    %5842 = vmatmul.mubr.f32.gmra.mrb[0].mxu0 %v5702
    %v5843 = vpop.f32.mrb[0].mxu0
    %v5844 = vadd.f32 1e-08, %v5843
    %v5845 = vpop.f32.mrb[0].mxu0
    %5846 = vmatprep.mubr.f32.mxu0 0.0
    %5847 = vmatmul.mubr.f32.gmra.mrb[0].mxu0 %v5705
    %v5848 = vpop.f32.mrb[0].mxu0
    %v5849 = vadd.f32 1e-08, %v5848
    %v5850 = vpop.f32.mrb[0].mxu0
    %5851 = vdwg.mxu0
    %v5852 = vrsqrt.pop %v5774
    %v5853 = vrsqrt.pop %v5779
    %v5854 = vrsqrt.pop %v5784
    %v5855 = vrsqrt.pop %v5789
    %v5856 = vrsqrt.pop %v5794
    %v5857 = vrsqrt.pop %v5799
    %v5858 = vrsqrt.pop %v5804
    %v5859 = vrsqrt.pop %v5809
    %v5860 = vrsqrt.pop %v5814
    %v5861 = vrsqrt.pop %v5819
    %v5862 = vrsqrt.pop %v5824
    %v5863 = vrsqrt.pop %v5829
    %v5864 = vrsqrt.pop %v5834
    %v5865 = vrsqrt.pop %v5839
    %v5866 = vrsqrt.pop %v5844
    %v5867 = vrsqrt.pop %v5849
    %5869 = vset.pattern.permute.xlu0 0
    %5870 = vperm.xlu0 %5869, %v5852
    %v5871 = vpop.permute.xlu0 %5870
    %5874 = vset.pattern.permute.xlu0 0
    %5875 = vperm.xlu0 %5874, %v5853
    %v5876 = vpop.permute.xlu0 %5875
    %5879 = vset.pattern.permute.xlu0 0
    %5880 = vperm.xlu0 %5879, %v5854
    %v5881 = vpop.permute.xlu0 %5880
    %5884 = vset.pattern.permute.xlu0 0
    %5885 = vperm.xlu0 %5884, %v5855
    %v5886 = vpop.permute.xlu0 %5885
    %5889 = vset.pattern.permute.xlu0 0
    %5890 = vperm.xlu0 %5889, %v5856
    %v5891 = vpop.permute.xlu0 %5890
    %5894 = vset.pattern.permute.xlu0 0
    %5895 = vperm.xlu0 %5894, %v5857
    %v5896 = vpop.permute.xlu0 %5895
    %5899 = vset.pattern.permute.xlu0 0
    %5900 = vperm.xlu0 %5899, %v5858
    %v5901 = vpop.permute.xlu0 %5900
    %5904 = vset.pattern.permute.xlu0 0
    %5905 = vperm.xlu0 %5904, %v5859
    %v5906 = vpop.permute.xlu0 %5905
    %5909 = vset.pattern.permute.xlu0 0
    %5910 = vperm.xlu0 %5909, %v5860
    %v5911 = vpop.permute.xlu0 %5910
    %5914 = vset.pattern.permute.xlu0 0
    %5915 = vperm.xlu0 %5914, %v5861
    %v5916 = vpop.permute.xlu0 %5915
    %5919 = vset.pattern.permute.xlu0 0
    %5920 = vperm.xlu0 %5919, %v5862
    %v5921 = vpop.permute.xlu0 %5920
    %5924 = vset.pattern.permute.xlu0 0
    %5925 = vperm.xlu0 %5924, %v5863
    %v5926 = vpop.permute.xlu0 %5925
    %5929 = vset.pattern.permute.xlu0 0
    %5930 = vperm.xlu0 %5929, %v5864
    %v5931 = vpop.permute.xlu0 %5930
    %5934 = vset.pattern.permute.xlu0 0
    %5935 = vperm.xlu0 %5934, %v5865
    %v5936 = vpop.permute.xlu0 %5935
    %5939 = vset.pattern.permute.xlu0 0
    %5940 = vperm.xlu0 %5939, %v5866
    %v5941 = vpop.permute.xlu0 %5940
    %5944 = vset.pattern.permute.xlu0 0
    %5945 = vperm.xlu0 %5944, %v5867
    %v5946 = vpop.permute.xlu0 %5945
    %v5948 = vmul.f32 %v5565, %v5871
    %v5949 = vmul.f32 %v5570, %v5876
    %v5950 = vmul.f32 %v5575, %v5881
    %v5951 = vmul.f32 %v5580, %v5886
    %v5952 = vmul.f32 %v5585, %v5891
    %v5953 = vmul.f32 %v5590, %v5896
    %v5954 = vmul.f32 %v5595, %v5901
    %v5955 = vmul.f32 %v5600, %v5906
    %v5956 = vmul.f32 %v5605, %v5911
    %v5957 = vmul.f32 %v5610, %v5916
    %v5958 = vmul.f32 %v5615, %v5921
    %v5959 = vmul.f32 %v5620, %v5926
    %v5960 = vmul.f32 %v5625, %v5931
    %v5961 = vmul.f32 %v5630, %v5936
    %v5962 = vmul.f32 %v5635, %v5941
    %v5963 = vmul.f32 %v5640, %v5946
    %v5964 = vsub.f32 %v5948, %v5253
    %v5965 = vsub.f32 %v5949, %v5254
    %v5966 = vsub.f32 %v5950, %v5255
    %v5967 = vsub.f32 %v5951, %v5256
    %v5968 = vsub.f32 %v5952, %v5257
    %v5969 = vsub.f32 %v5953, %v5258
    %v5970 = vsub.f32 %v5954, %v5259
    %v5971 = vsub.f32 %v5955, %v5260
    %v5972 = vsub.f32 %v5956, %v5261
    %v5973 = vsub.f32 %v5957, %v5262
    %v5974 = vsub.f32 %v5958, %v5263
    %v5975 = vsub.f32 %v5959, %v5264
    %v5976 = vsub.f32 %v5960, %v5265
    %v5977 = vsub.f32 %v5961, %v5266
    %v5978 = vsub.f32 %v5962, %v5267
    %v5979 = vsub.f32 %v5963, %v5268
    %v5980 = vmul.f32 %v2732, %v5964
    %v5981 = vmul.f32 %v2732, %v5965
    %v5982 = vmul.f32 %v2732, %v5966
    %v5983 = vmul.f32 %v2732, %v5967
    %v5984 = vmul.f32 %v2732, %v5968
    %v5985 = vmul.f32 %v2732, %v5969
    %v5986 = vmul.f32 %v2732, %v5970
    %v5987 = vmul.f32 %v2732, %v5971
    %v5988 = vmul.f32 %v2732, %v5972
    %v5989 = vmul.f32 %v2732, %v5973
    %v5990 = vmul.f32 %v2732, %v5974
    %v5991 = vmul.f32 %v2732, %v5975
    %v5992 = vmul.f32 %v2732, %v5976
    %v5993 = vmul.f32 %v2732, %v5977
    %v5994 = vmul.f32 %v2732, %v5978
    %v5995 = vmul.f32 %v2732, %v5979
    %v5996 = vadd.f32 %v5253, %v5980
    %v5997 = vadd.f32 %v5254, %v5981
    %v5998 = vadd.f32 %v5255, %v5982
    %v5999 = vadd.f32 %v5256, %v5983
    %v6000 = vadd.f32 %v5257, %v5984
    %v6001 = vadd.f32 %v5258, %v5985
    %v6002 = vadd.f32 %v5259, %v5986
    %v6003 = vadd.f32 %v5260, %v5987
    %v6004 = vadd.f32 %v5261, %v5988
    %v6005 = vadd.f32 %v5262, %v5989
    %v6006 = vadd.f32 %v5263, %v5990
    %v6007 = vadd.f32 %v5264, %v5991
    %v6008 = vadd.f32 %v5265, %v5992
    %v6009 = vadd.f32 %v5266, %v5993
    %v6010 = vadd.f32 %v5267, %v5994
    %v6011 = vadd.f32 %v5268, %v5995
    %v6012 = vmul.f32 %v5996, %v5996
    %v6013 = vmul.f32 %v5997, %v5997
    %v6014 = vmul.f32 %v5998, %v5998
    %v6015 = vmul.f32 %v5999, %v5999
    %v6016 = vmul.f32 %v6000, %v6000
    %v6017 = vmul.f32 %v6001, %v6001
    %v6018 = vmul.f32 %v6002, %v6002
    %v6019 = vmul.f32 %v6003, %v6003
    %v6020 = vmul.f32 %v6004, %v6004
    %v6021 = vmul.f32 %v6005, %v6005
    %v6022 = vmul.f32 %v6006, %v6006
    %v6023 = vmul.f32 %v6007, %v6007
    %v6024 = vmul.f32 %v6008, %v6008
    %v6025 = vmul.f32 %v6009, %v6009
    %v6026 = vmul.f32 %v6010, %v6010
    %v6027 = vmul.f32 %v6011, %v6011
    %v6029 = vsel %vm642, %v6012, 0
    %v6032 = vsel %vm642, %v6013, 0
    %v6035 = vsel %vm642, %v6014, 0
    %v6038 = vsel %vm642, %v6015, 0
    %v6041 = vsel %vm642, %v6016, 0
    %v6044 = vsel %vm642, %v6017, 0
    %v6047 = vsel %vm642, %v6018, 0
    %v6050 = vsel %vm642, %v6019, 0
    %v6053 = vsel %vm642, %v6020, 0
    %v6056 = vsel %vm642, %v6021, 0
    %v6059 = vsel %vm642, %v6022, 0
    %v6062 = vsel %vm642, %v6023, 0
    %v6065 = vsel %vm642, %v6024, 0
    %v6068 = vsel %vm642, %v6025, 0
    %v6071 = vsel %vm642, %v6026, 0
    %v6074 = vsel %vm642, %v6027, 0
    %6076 = vmatprep.subr.mxu0 0.0
    %6077 = vmatpush1.msra.mxu0 1.0
    %6078 = vmatprep.subr.mxu0 0.0
    %6079 = vmatpush1.msra.mxu0 1.0
    %6080 = vmatprep.subr.mxu0 0.0
    %6081 = vmatpush1.msra.mxu0 1.0
    %6082 = vmatprep.subr.mxu0 0.0
    %6083 = vmatpush1.msra.mxu0 1.0
    %6084 = vmatprep.subr.mxu0 0.0
    %6085 = vmatpush1.msra.mxu0 0.0
    %6086 = vmatprep.subr.mxu0 0.0
    %6087 = vmatpush1.msra.mxu0 0.0
    %6088 = vmatprep.subr.mxu0 0.0
    %6089 = vmatpush1.msra.mxu0 0.0
    %6090 = vmatprep.subr.mxu0 0.0
    %6091 = vmatpush1.msra.mxu0 0.0
    %6092 = vmatprep.subr.mxu0 0.0
    %6093 = vmatpush1.msra.mxu0 0.0
    %6094 = vmatprep.subr.mxu0 0.0
    %6095 = vmatpush1.msra.mxu0 0.0
    %6096 = vmatprep.subr.mxu0 0.0
    %6097 = vmatpush1.msra.mxu0 0.0
    %6098 = vmatprep.subr.mxu0 0.0
    %6099 = vmatpush1.msra.mxu0 0.0
    %6100 = vmatprep.subr.mxu0 0.0
    %6101 = vmatpush1.msra.mxu0 0.0
    %6102 = vmatprep.subr.mxu0 0.0
    %6103 = vmatpush1.msra.mxu0 0.0
    %6104 = vmatprep.subr.mxu0 0.0
    %6105 = vmatpush1.msra.mxu0 0.0
    %6106 = vmatprep.subr.mxu0 0.0
    %6107 = vmatpush1.msra.mxu0 0.0
    %6108 = vmatprep.subr.mxu0 0.0
    %6109 = vmatpush1.msra.mxu0 0.0
    %6110 = vmatprep.subr.mxu0 0.0
    %6111 = vmatpush1.msra.mxu0 0.0
    %6112 = vmatprep.subr.mxu0 0.0
    %6113 = vmatpush1.msra.mxu0 0.0
    %6114 = vmatprep.subr.mxu0 0.0
    %6115 = vmatpush1.msra.mxu0 0.0
    %6116 = vmatprep.subr.mxu0 0.0
    %6117 = vmatpush1.msra.mxu0 0.0
    %6118 = vmatprep.subr.mxu0 0.0
    %6119 = vmatpush1.msra.mxu0 0.0
    %6120 = vmatprep.subr.mxu0 0.0
    %6121 = vmatpush1.msra.mxu0 0.0
    %6122 = vmatprep.subr.mxu0 0.0
    %6123 = vmatpush1.msra.mxu0 0.0
    %6124 = vmatprep.subr.mxu0 0.0
    %6125 = vmatpush1.msra.mxu0 0.0
    %6126 = vmatprep.subr.mxu0 0.0
    %6127 = vmatpush1.msra.mxu0 0.0
    %6128 = vmatprep.subr.mxu0 0.0
    %6129 = vmatpush1.msra.mxu0 0.0
    %6130 = vmatprep.subr.mxu0 0.0
    %6131 = vmatpush1.msra.mxu0 0.0
    %6132 = vmatprep.subr.mxu0 0.0
    %6133 = vmatpush1.msra.mxu0 0.0
    %6134 = vmatprep.subr.mxu0 0.0
    %6135 = vmatpush1.msra.mxu0 0.0
    %6136 = vmatprep.subr.mxu0 0.0
    %6137 = vmatpush1.msra.mxu0 0.0
    %6138 = vmatprep.subr.mxu0 0.0
    %6139 = vmatpush1.msra.mxu0 0.0
    %6140 = vmatprep.mubr.f32.mxu0 0.0
    %6141 = vmatmul.mubr.f32.gmra.mrb[0].mxu0 %v6029
    %v6142 = vpop.f32.mrb[0].mxu0
    %v6143 = vadd.f32 1e-08, %v6142
    %v6144 = vpop.f32.mrb[0].mxu0
    %6145 = vmatprep.mubr.f32.mxu0 0.0
    %6146 = vmatmul.mubr.f32.gmra.mrb[0].mxu0 %v6032
    %v6147 = vpop.f32.mrb[0].mxu0
    %v6148 = vadd.f32 1e-08, %v6147
    %v6149 = vpop.f32.mrb[0].mxu0
    %6150 = vmatprep.mubr.f32.mxu0 0.0
    %6151 = vmatmul.mubr.f32.gmra.mrb[0].mxu0 %v6035
    %v6152 = vpop.f32.mrb[0].mxu0
    %v6153 = vadd.f32 1e-08, %v6152
    %v6154 = vpop.f32.mrb[0].mxu0
    %6155 = vmatprep.mubr.f32.mxu0 0.0
    %6156 = vmatmul.mubr.f32.gmra.mrb[0].mxu0 %v6038
    %v6157 = vpop.f32.mrb[0].mxu0
    %v6158 = vadd.f32 1e-08, %v6157
    %v6159 = vpop.f32.mrb[0].mxu0
    %6160 = vmatprep.mubr.f32.mxu0 0.0
    %6161 = vmatmul.mubr.f32.gmra.mrb[0].mxu0 %v6041
    %v6162 = vpop.f32.mrb[0].mxu0
    %v6163 = vadd.f32 1e-08, %v6162
    %v6164 = vpop.f32.mrb[0].mxu0
    %6165 = vmatprep.mubr.f32.mxu0 0.0
    %6166 = vmatmul.mubr.f32.gmra.mrb[0].mxu0 %v6044
    %v6167 = vpop.f32.mrb[0].mxu0
    %v6168 = vadd.f32 1e-08, %v6167
    %v6169 = vpop.f32.mrb[0].mxu0
    %6170 = vmatprep.mubr.f32.mxu0 0.0
    %6171 = vmatmul.mubr.f32.gmra.mrb[0].mxu0 %v6047
    %v6172 = vpop.f32.mrb[0].mxu0
    %v6173 = vadd.f32 1e-08, %v6172
    %v6174 = vpop.f32.mrb[0].mxu0
    %6175 = vmatprep.mubr.f32.mxu0 0.0
    %6176 = vmatmul.mubr.f32.gmra.mrb[0].mxu0 %v6050
    %v6177 = vpop.f32.mrb[0].mxu0
    %v6178 = vadd.f32 1e-08, %v6177
    %v6179 = vpop.f32.mrb[0].mxu0
    %6180 = vmatprep.mubr.f32.mxu0 0.0
    %6181 = vmatmul.mubr.f32.gmra.mrb[0].mxu0 %v6053
    %v6182 = vpop.f32.mrb[0].mxu0
    %v6183 = vadd.f32 1e-08, %v6182
    %v6184 = vpop.f32.mrb[0].mxu0
    %6185 = vmatprep.mubr.f32.mxu0 0.0
    %6186 = vmatmul.mubr.f32.gmra.mrb[0].mxu0 %v6056
    %v6187 = vpop.f32.mrb[0].mxu0
    %v6188 = vadd.f32 1e-08, %v6187
    %v6189 = vpop.f32.mrb[0].mxu0
    %6190 = vmatprep.mubr.f32.mxu0 0.0
    %6191 = vmatmul.mubr.f32.gmra.mrb[0].mxu0 %v6059
    %v6192 = vpop.f32.mrb[0].mxu0
    %v6193 = vadd.f32 1e-08, %v6192
    %v6194 = vpop.f32.mrb[0].mxu0
    %6195 = vmatprep.mubr.f32.mxu0 0.0
    %6196 = vmatmul.mubr.f32.gmra.mrb[0].mxu0 %v6062
    %v6197 = vpop.f32.mrb[0].mxu0
    %v6198 = vadd.f32 1e-08, %v6197
    %v6199 = vpop.f32.mrb[0].mxu0
    %6200 = vmatprep.mubr.f32.mxu0 0.0
    %6201 = vmatmul.mubr.f32.gmra.mrb[0].mxu0 %v6065
    %v6202 = vpop.f32.mrb[0].mxu0
    %v6203 = vadd.f32 1e-08, %v6202
    %v6204 = vpop.f32.mrb[0].mxu0
    %6205 = vmatprep.mubr.f32.mxu0 0.0
    %6206 = vmatmul.mubr.f32.gmra.mrb[0].mxu0 %v6068
    %v6207 = vpop.f32.mrb[0].mxu0
    %v6208 = vadd.f32 1e-08, %v6207
    %v6209 = vpop.f32.mrb[0].mxu0
    %6210 = vmatprep.mubr.f32.mxu0 0.0
    %6211 = vmatmul.mubr.f32.gmra.mrb[0].mxu0 %v6071
    %v6212 = vpop.f32.mrb[0].mxu0
    %v6213 = vadd.f32 1e-08, %v6212
    %v6214 = vpop.f32.mrb[0].mxu0
    %6215 = vmatprep.mubr.f32.mxu0 0.0
    %6216 = vmatmul.mubr.f32.gmra.mrb[0].mxu0 %v6074
    %v6217 = vpop.f32.mrb[0].mxu0
    %v6218 = vadd.f32 1e-08, %v6217
    %v6219 = vpop.f32.mrb[0].mxu0
    %6220 = vdwg.mxu0
    %v6221 = vrsqrt.pop %v6143
    %v6222 = vrsqrt.pop %v6148
    %v6223 = vrsqrt.pop %v6153
    %v6224 = vrsqrt.pop %v6158
    %v6225 = vrsqrt.pop %v6163
    %v6226 = vrsqrt.pop %v6168
    %v6227 = vrsqrt.pop %v6173
    %v6228 = vrsqrt.pop %v6178
    %v6229 = vrsqrt.pop %v6183
    %v6230 = vrsqrt.pop %v6188
    %v6231 = vrsqrt.pop %v6193
    %v6232 = vrsqrt.pop %v6198
    %v6233 = vrsqrt.pop %v6203
    %v6234 = vrsqrt.pop %v6208
    %v6235 = vrsqrt.pop %v6213
    %v6236 = vrsqrt.pop %v6218
    %6238 = vset.pattern.permute.xlu0 0
    %6239 = vperm.xlu0 %6238, %v6221
    %v6240 = vpop.permute.xlu0 %6239
    %6243 = vset.pattern.permute.xlu0 0
    %6244 = vperm.xlu0 %6243, %v6222
    %v6245 = vpop.permute.xlu0 %6244
    %6248 = vset.pattern.permute.xlu0 0
    %6249 = vperm.xlu0 %6248, %v6223
    %v6250 = vpop.permute.xlu0 %6249
    %6253 = vset.pattern.permute.xlu0 0
    %6254 = vperm.xlu0 %6253, %v6224
    %v6255 = vpop.permute.xlu0 %6254
    %6258 = vset.pattern.permute.xlu0 0
    %6259 = vperm.xlu0 %6258, %v6225
    %v6260 = vpop.permute.xlu0 %6259
    %6263 = vset.pattern.permute.xlu0 0
    %6264 = vperm.xlu0 %6263, %v6226
    %v6265 = vpop.permute.xlu0 %6264
    %6268 = vset.pattern.permute.xlu0 0
    %6269 = vperm.xlu0 %6268, %v6227
    %v6270 = vpop.permute.xlu0 %6269
    %6273 = vset.pattern.permute.xlu0 0
    %6274 = vperm.xlu0 %6273, %v6228
    %v6275 = vpop.permute.xlu0 %6274
    %6278 = vset.pattern.permute.xlu0 0
    %6279 = vperm.xlu0 %6278, %v6229
    %v6280 = vpop.permute.xlu0 %6279
    %6283 = vset.pattern.permute.xlu0 0
    %6284 = vperm.xlu0 %6283, %v6230
    %v6285 = vpop.permute.xlu0 %6284
    %6288 = vset.pattern.permute.xlu0 0
    %6289 = vperm.xlu0 %6288, %v6231
    %v6290 = vpop.permute.xlu0 %6289
    %6293 = vset.pattern.permute.xlu0 0
    %6294 = vperm.xlu0 %6293, %v6232
    %v6295 = vpop.permute.xlu0 %6294
    %6298 = vset.pattern.permute.xlu0 0
    %6299 = vperm.xlu0 %6298, %v6233
    %v6300 = vpop.permute.xlu0 %6299
    %6303 = vset.pattern.permute.xlu0 0
    %6304 = vperm.xlu0 %6303, %v6234
    %v6305 = vpop.permute.xlu0 %6304
    %6308 = vset.pattern.permute.xlu0 0
    %6309 = vperm.xlu0 %6308, %v6235
    %v6310 = vpop.permute.xlu0 %6309
    %6313 = vset.pattern.permute.xlu0 0
    %6314 = vperm.xlu0 %6313, %v6236
    %v6315 = vpop.permute.xlu0 %6314
    %v6317 = vmul.f32 %v5996, %v6240
    %v6318 = vmul.f32 %v5997, %v6245
    %v6319 = vmul.f32 %v5998, %v6250
    %v6320 = vmul.f32 %v5999, %v6255
    %v6321 = vmul.f32 %v6000, %v6260
    %v6322 = vmul.f32 %v6001, %v6265
    %v6323 = vmul.f32 %v6002, %v6270
    %v6324 = vmul.f32 %v6003, %v6275
    %v6325 = vmul.f32 %v6004, %v6280
    %v6326 = vmul.f32 %v6005, %v6285
    %v6327 = vmul.f32 %v6006, %v6290
    %v6328 = vmul.f32 %v6007, %v6295
    %v6329 = vmul.f32 %v6008, %v6300
    %v6330 = vmul.f32 %v6009, %v6305
    %v6331 = vmul.f32 %v6010, %v6310
    %v6332 = vmul.f32 %v6011, %v6315
    %v6333 = vld [vmem:[%s3086] sm:$0xff]
    %v6334 = vld [vmem:[%s3086 + $0x8] sm:$0xff]
    %v6335 = vld [vmem:[%s3086 + $0x10] sm:$0xff]
    %v6336 = vld [vmem:[%s3086 + $0x18] sm:$0xff]
    %v6338 = vsel %vm642, %v6317, 0
    %v6341 = vsel %vm642, %v6318, 0
    %v6344 = vsel %vm642, %v6319, 0
    %v6347 = vsel %vm642, %v6320, 0
    %v6350 = vsel %vm642, %v6321, 0
    %v6353 = vsel %vm642, %v6322, 0
    %v6356 = vsel %vm642, %v6323, 0
    %v6359 = vsel %vm642, %v6324, 0
    %v6362 = vsel %vm642, %v6325, 0
    %v6365 = vsel %vm642, %v6326, 0
    %v6368 = vsel %vm642, %v6327, 0
    %v6371 = vsel %vm642, %v6328, 0
    %v6374 = vsel %vm642, %v6329, 0
    %v6377 = vsel %vm642, %v6330, 0
    %v6380 = vsel %vm642, %v6331, 0
    %v6383 = vsel %vm642, %v6332, 0
    %6385 = vmatprep.subr.mxu0 0.0
    %6386 = vmatpush1.msra.mxu0 %v6333
    %6387 = vmatprep.subr.mxu0 0.0
    %6388 = vmatpush1.msra.mxu0 %v6334
    %6389 = vmatprep.subr.mxu0 0.0
    %6390 = vmatpush1.msra.mxu0 %v6335
    %6391 = vmatprep.subr.mxu0 0.0
    %6392 = vmatpush1.msra.mxu0 %v6336
    %6393 = vmatprep.subr.mxu0 0.0
    %6394 = vmatpush1.msra.mxu0 0.0
    %6395 = vmatprep.subr.mxu0 0.0
    %6396 = vmatpush1.msra.mxu0 0.0
    %6397 = vmatprep.subr.mxu0 0.0
    %6398 = vmatpush1.msra.mxu0 0.0
    %6399 = vmatprep.subr.mxu0 0.0
    %6400 = vmatpush1.msra.mxu0 0.0
    %6401 = vmatprep.subr.mxu0 0.0
    %6402 = vmatpush1.msra.mxu0 0.0
    %6403 = vmatprep.subr.mxu0 0.0
    %6404 = vmatpush1.msra.mxu0 0.0
    %6405 = vmatprep.subr.mxu0 0.0
    %6406 = vmatpush1.msra.mxu0 0.0
    %6407 = vmatprep.subr.mxu0 0.0
    %6408 = vmatpush1.msra.mxu0 0.0
    %6409 = vmatprep.subr.mxu0 0.0
    %6410 = vmatpush1.msra.mxu0 0.0
    %6411 = vmatprep.subr.mxu0 0.0
    %6412 = vmatpush1.msra.mxu0 0.0
    %6413 = vmatprep.subr.mxu0 0.0
    %6414 = vmatpush1.msra.mxu0 0.0
    %6415 = vmatprep.subr.mxu0 0.0
    %6416 = vmatpush1.msra.mxu0 0.0
    %6417 = vmatprep.subr.mxu0 0.0
    %6418 = vmatpush1.msra.mxu0 0.0
    %6419 = vmatprep.subr.mxu0 0.0
    %6420 = vmatpush1.msra.mxu0 0.0
    %6421 = vmatprep.subr.mxu0 0.0
    %6422 = vmatpush1.msra.mxu0 0.0
    %6423 = vmatprep.subr.mxu0 0.0
    %6424 = vmatpush1.msra.mxu0 0.0
    %6425 = vmatprep.subr.mxu0 0.0
    %6426 = vmatpush1.msra.mxu0 0.0
    %6427 = vmatprep.subr.mxu0 0.0
    %6428 = vmatpush1.msra.mxu0 0.0
    %6429 = vmatprep.subr.mxu0 0.0
    %6430 = vmatpush1.msra.mxu0 0.0
    %6431 = vmatprep.subr.mxu0 0.0
    %6432 = vmatpush1.msra.mxu0 0.0
    %6433 = vmatprep.subr.mxu0 0.0
    %6434 = vmatpush1.msra.mxu0 0.0
    %6435 = vmatprep.subr.mxu0 0.0
    %6436 = vmatpush1.msra.mxu0 0.0
    %6437 = vmatprep.subr.mxu0 0.0
    %6438 = vmatpush1.msra.mxu0 0.0
    %6439 = vmatprep.subr.mxu0 0.0
    %6440 = vmatpush1.msra.mxu0 0.0
    %6441 = vmatprep.subr.mxu0 0.0
    %6442 = vmatpush1.msra.mxu0 0.0
    %6443 = vmatprep.subr.mxu0 0.0
    %6444 = vmatpush1.msra.mxu0 0.0
    %6445 = vmatprep.subr.mxu0 0.0
    %6446 = vmatpush1.msra.mxu0 0.0
    %6447 = vmatprep.subr.mxu0 0.0
    %6448 = vmatpush1.msra.mxu0 0.0
    %6449 = vmatprep.mubr.f32.mxu0 0.0
    %6450 = vmatmul.mubr.f32.gmra.mrb[0].mxu0 %v6338
    %v6451 = vpop.f32.mrb[0].mxu0
    %v6452 = vadd.f32 0.0, %v6451
    %v6453 = vpop.f32.mrb[0].mxu0
    %6454 = vmatprep.mubr.f32.mxu0 0.0
    %6455 = vmatmul.mubr.f32.gmra.mrb[0].mxu0 %v6341
    %v6456 = vpop.f32.mrb[0].mxu0
    %v6457 = vadd.f32 0.0, %v6456
    %v6458 = vpop.f32.mrb[0].mxu0
    %6459 = vmatprep.mubr.f32.mxu0 0.0
    %6460 = vmatmul.mubr.f32.gmra.mrb[0].mxu0 %v6344
    %v6461 = vpop.f32.mrb[0].mxu0
    %v6462 = vadd.f32 0.0, %v6461
    %v6463 = vpop.f32.mrb[0].mxu0
    %6464 = vmatprep.mubr.f32.mxu0 0.0
    %6465 = vmatmul.mubr.f32.gmra.mrb[0].mxu0 %v6347
    %v6466 = vpop.f32.mrb[0].mxu0
    %v6467 = vadd.f32 0.0, %v6466
    %v6468 = vpop.f32.mrb[0].mxu0
    %6469 = vmatprep.mubr.f32.mxu0 0.0
    %6470 = vmatmul.mubr.f32.gmra.mrb[0].mxu0 %v6350
    %v6471 = vpop.f32.mrb[0].mxu0
    %v6472 = vadd.f32 0.0, %v6471
    %v6473 = vpop.f32.mrb[0].mxu0
    %6474 = vmatprep.mubr.f32.mxu0 0.0
    %6475 = vmatmul.mubr.f32.gmra.mrb[0].mxu0 %v6353
    %v6476 = vpop.f32.mrb[0].mxu0
    %v6477 = vadd.f32 0.0, %v6476
    %v6478 = vpop.f32.mrb[0].mxu0
    %6479 = vmatprep.mubr.f32.mxu0 0.0
    %6480 = vmatmul.mubr.f32.gmra.mrb[0].mxu0 %v6356
    %v6481 = vpop.f32.mrb[0].mxu0
    %v6482 = vadd.f32 0.0, %v6481
    %v6483 = vpop.f32.mrb[0].mxu0
    %6484 = vmatprep.mubr.f32.mxu0 0.0
    %6485 = vmatmul.mubr.f32.gmra.mrb[0].mxu0 %v6359
    %v6486 = vpop.f32.mrb[0].mxu0
    %v6487 = vadd.f32 0.0, %v6486
    %v6488 = vpop.f32.mrb[0].mxu0
    %6489 = vmatprep.mubr.f32.mxu0 0.0
    %6490 = vmatmul.mubr.f32.gmra.mrb[0].mxu0 %v6362
    %v6491 = vpop.f32.mrb[0].mxu0
    %v6492 = vadd.f32 0.0, %v6491
    %v6493 = vpop.f32.mrb[0].mxu0
    %6494 = vmatprep.mubr.f32.mxu0 0.0
    %6495 = vmatmul.mubr.f32.gmra.mrb[0].mxu0 %v6365
    %v6496 = vpop.f32.mrb[0].mxu0
    %v6497 = vadd.f32 0.0, %v6496
    %v6498 = vpop.f32.mrb[0].mxu0
    %6499 = vmatprep.mubr.f32.mxu0 0.0
    %6500 = vmatmul.mubr.f32.gmra.mrb[0].mxu0 %v6368
    %v6501 = vpop.f32.mrb[0].mxu0
    %v6502 = vadd.f32 0.0, %v6501
    %v6503 = vpop.f32.mrb[0].mxu0
    %6504 = vmatprep.mubr.f32.mxu0 0.0
    %6505 = vmatmul.mubr.f32.gmra.mrb[0].mxu0 %v6371
    %v6506 = vpop.f32.mrb[0].mxu0
    %v6507 = vadd.f32 0.0, %v6506
    %v6508 = vpop.f32.mrb[0].mxu0
    %6509 = vmatprep.mubr.f32.mxu0 0.0
    %6510 = vmatmul.mubr.f32.gmra.mrb[0].mxu0 %v6374
    %v6511 = vpop.f32.mrb[0].mxu0
    %v6512 = vadd.f32 0.0, %v6511
    %v6513 = vpop.f32.mrb[0].mxu0
    %6514 = vmatprep.mubr.f32.mxu0 0.0
    %6515 = vmatmul.mubr.f32.gmra.mrb[0].mxu0 %v6377
    %v6516 = vpop.f32.mrb[0].mxu0
    %v6517 = vadd.f32 0.0, %v6516
    %v6518 = vpop.f32.mrb[0].mxu0
    %6519 = vmatprep.mubr.f32.mxu0 0.0
    %6520 = vmatmul.mubr.f32.gmra.mrb[0].mxu0 %v6380
    %v6521 = vpop.f32.mrb[0].mxu0
    %v6522 = vadd.f32 0.0, %v6521
    %v6523 = vpop.f32.mrb[0].mxu0
    %6524 = vmatprep.mubr.f32.mxu0 0.0
    %6525 = vmatmul.mubr.f32.gmra.mrb[0].mxu0 %v6383
    %v6526 = vpop.f32.mrb[0].mxu0
    %v6527 = vadd.f32 0.0, %v6526
    %v6528 = vpop.f32.mrb[0].mxu0
    %6529 = vdwg.mxu0
    %s6530 = scalar_lea.vmem [#allocation2], 128
    %6531 = vst [vmem:[%s6530] sm:$0xff] %v6452
    %6532 = vst [vmem:[%s6530 + $0x8] sm:$0xff] %v6457
    %6533 = vst [vmem:[%s6530 + $0x10] sm:$0xff] %v6462
    %6534 = vst [vmem:[%s6530 + $0x18] sm:$0xff] %v6467
    %6535 = vst [vmem:[%s6530 + $0x20] sm:$0xff] %v6472
    %6536 = vst [vmem:[%s6530 + $0x28] sm:$0xff] %v6477
    %6537 = vst [vmem:[%s6530 + $0x30] sm:$0xff] %v6482
    %6538 = vst [vmem:[%s6530 + $0x38] sm:$0xff] %v6487
    %6539 = vst [vmem:[%s6530 + $0x40] sm:$0xff] %v6492
    %6540 = vst [vmem:[%s6530 + $0x48] sm:$0xff] %v6497
    %6541 = vst [vmem:[%s6530 + $0x50] sm:$0xff] %v6502
    %6542 = vst [vmem:[%s6530 + $0x58] sm:$0xff] %v6507
    %6543 = vst [vmem:[%s6530 + $0x60] sm:$0xff] %v6512
    %6544 = vst [vmem:[%s6530 + $0x68] sm:$0xff] %v6517
    %6545 = vst [vmem:[%s6530 + $0x70] sm:$0xff] %v6522
    %6546 = vst [vmem:[%s6530 + $0x78] sm:$0xff] %v6527
    %s6547 = scalar_lea.vmem %s0, 256
    %v6548 = vld [vmem:[%s6547] sm:$0xff]
    %v6549 = vld [vmem:[%s6547 + $0x8] sm:$0xff]
    %v6550 = vld [vmem:[%s6547 + $0x10] sm:$0xff]
    %v6551 = vld [vmem:[%s6547 + $0x18] sm:$0xff]
    %v6552 = vld [vmem:[%s6547 + $0x20] sm:$0xff]
    %v6553 = vld [vmem:[%s6547 + $0x28] sm:$0xff]
    %v6554 = vld [vmem:[%s6547 + $0x30] sm:$0xff]
    %v6555 = vld [vmem:[%s6547 + $0x38] sm:$0xff]
    %v6556 = vld [vmem:[%s6547 + $0x40] sm:$0xff]
    %v6557 = vld [vmem:[%s6547 + $0x48] sm:$0xff]
    %v6558 = vld [vmem:[%s6547 + $0x50] sm:$0xff]
    %v6559 = vld [vmem:[%s6547 + $0x58] sm:$0xff]
    %v6560 = vld [vmem:[%s6547 + $0x60] sm:$0xff]
    %v6561 = vld [vmem:[%s6547 + $0x68] sm:$0xff]
    %v6562 = vld [vmem:[%s6547 + $0x70] sm:$0xff]
    %v6563 = vld [vmem:[%s6547 + $0x78] sm:$0xff]
    %v6564 = vmul.f32 %v6548, %v45
    %v6565 = vmul.f32 %v6549, %v45
    %v6566 = vmul.f32 %v6550, %v45
    %v6567 = vmul.f32 %v6551, %v45
    %v6568 = vmul.f32 %v6552, %v45
    %v6569 = vmul.f32 %v6553, %v45
    %v6570 = vmul.f32 %v6554, %v45
    %v6571 = vmul.f32 %v6555, %v45
    %v6572 = vmul.f32 %v6556, %v45
    %v6573 = vmul.f32 %v6557, %v45
    %v6574 = vmul.f32 %v6558, %v45
    %v6575 = vmul.f32 %v6559, %v45
    %v6576 = vmul.f32 %v6560, %v45
    %v6577 = vmul.f32 %v6561, %v45
    %v6578 = vmul.f32 %v6562, %v45
    %v6579 = vmul.f32 %v6563, %v45
    %v6580 = vadd.f32 %v6564, %v65
    %v6581 = vadd.f32 %v6565, %v65
    %v6582 = vadd.f32 %v6566, %v65
    %v6583 = vadd.f32 %v6567, %v65
    %v6584 = vadd.f32 %v6568, %v65
    %v6585 = vadd.f32 %v6569, %v65
    %v6586 = vadd.f32 %v6570, %v65
    %v6587 = vadd.f32 %v6571, %v65
    %v6588 = vadd.f32 %v6572, %v65
    %v6589 = vadd.f32 %v6573, %v65
    %v6590 = vadd.f32 %v6574, %v65
    %v6591 = vadd.f32 %v6575, %v65
    %v6592 = vadd.f32 %v6576, %v65
    %v6593 = vadd.f32 %v6577, %v65
    %v6594 = vadd.f32 %v6578, %v65
    %v6595 = vadd.f32 %v6579, %v65
    %v6596 = vmul.f32 %v6580, %v6580
    %v6597 = vmul.f32 %v6581, %v6581
    %v6598 = vmul.f32 %v6582, %v6582
    %v6599 = vmul.f32 %v6583, %v6583
    %v6600 = vmul.f32 %v6584, %v6584
    %v6601 = vmul.f32 %v6585, %v6585
    %v6602 = vmul.f32 %v6586, %v6586
    %v6603 = vmul.f32 %v6587, %v6587
    %v6604 = vmul.f32 %v6588, %v6588
    %v6605 = vmul.f32 %v6589, %v6589
    %v6606 = vmul.f32 %v6590, %v6590
    %v6607 = vmul.f32 %v6591, %v6591
    %v6608 = vmul.f32 %v6592, %v6592
    %v6609 = vmul.f32 %v6593, %v6593
    %v6610 = vmul.f32 %v6594, %v6594
    %v6611 = vmul.f32 %v6595, %v6595
    %v6613 = vsel %vm98, %v6596, 0
    %v6616 = vsel %vm98, %v6597, 0
    %v6619 = vsel %vm98, %v6598, 0
    %v6622 = vsel %vm98, %v6599, 0
    %v6625 = vsel %vm98, %v6600, 0
    %v6628 = vsel %vm98, %v6601, 0
    %v6631 = vsel %vm98, %v6602, 0
    %v6634 = vsel %vm98, %v6603, 0
    %v6637 = vsel %vm98, %v6604, 0
    %v6640 = vsel %vm98, %v6605, 0
    %v6643 = vsel %vm98, %v6606, 0
    %v6646 = vsel %vm98, %v6607, 0
    %v6649 = vsel %vm98, %v6608, 0
    %v6652 = vsel %vm98, %v6609, 0
    %v6655 = vsel %vm98, %v6610, 0
    %v6658 = vsel %vm98, %v6611, 0
    %6660 = vmatprep.subr.mxu0 0.0
    %6661 = vmatpush1.msra.mxu0 1.0
    %6662 = vmatprep.subr.mxu0 0.0
    %6663 = vmatpush1.msra.mxu0 %v149
    %6664 = vmatprep.subr.mxu0 0.0
    %6665 = vmatpush1.msra.mxu0 0.0
    %6666 = vmatprep.subr.mxu0 0.0
    %6667 = vmatpush1.msra.mxu0 0.0
    %6668 = vmatprep.subr.mxu0 0.0
    %6669 = vmatpush1.msra.mxu0 0.0
    %6670 = vmatprep.subr.mxu0 0.0
    %6671 = vmatpush1.msra.mxu0 0.0
    %6672 = vmatprep.subr.mxu0 0.0
    %6673 = vmatpush1.msra.mxu0 0.0
    %6674 = vmatprep.subr.mxu0 0.0
    %6675 = vmatpush1.msra.mxu0 0.0
    %6676 = vmatprep.subr.mxu0 0.0
    %6677 = vmatpush1.msra.mxu0 0.0
    %6678 = vmatprep.subr.mxu0 0.0
    %6679 = vmatpush1.msra.mxu0 0.0
    %6680 = vmatprep.subr.mxu0 0.0
    %6681 = vmatpush1.msra.mxu0 0.0
    %6682 = vmatprep.subr.mxu0 0.0
    %6683 = vmatpush1.msra.mxu0 0.0
    %6684 = vmatprep.subr.mxu0 0.0
    %6685 = vmatpush1.msra.mxu0 0.0
    %6686 = vmatprep.subr.mxu0 0.0
    %6687 = vmatpush1.msra.mxu0 0.0
    %6688 = vmatprep.subr.mxu0 0.0
    %6689 = vmatpush1.msra.mxu0 0.0
    %6690 = vmatprep.subr.mxu0 0.0
    %6691 = vmatpush1.msra.mxu0 0.0
    %6692 = vmatprep.subr.mxu0 0.0
    %6693 = vmatpush1.msra.mxu0 0.0
    %6694 = vmatprep.subr.mxu0 0.0
    %6695 = vmatpush1.msra.mxu0 0.0
    %6696 = vmatprep.subr.mxu0 0.0
    %6697 = vmatpush1.msra.mxu0 0.0
    %6698 = vmatprep.subr.mxu0 0.0
    %6699 = vmatpush1.msra.mxu0 0.0
    %6700 = vmatprep.subr.mxu0 0.0
    %6701 = vmatpush1.msra.mxu0 0.0
    %6702 = vmatprep.subr.mxu0 0.0
    %6703 = vmatpush1.msra.mxu0 0.0
    %6704 = vmatprep.subr.mxu0 0.0
    %6705 = vmatpush1.msra.mxu0 0.0
    %6706 = vmatprep.subr.mxu0 0.0
    %6707 = vmatpush1.msra.mxu0 0.0
    %6708 = vmatprep.subr.mxu0 0.0
    %6709 = vmatpush1.msra.mxu0 0.0
    %6710 = vmatprep.subr.mxu0 0.0
    %6711 = vmatpush1.msra.mxu0 0.0
    %6712 = vmatprep.subr.mxu0 0.0
    %6713 = vmatpush1.msra.mxu0 0.0
    %6714 = vmatprep.subr.mxu0 0.0
    %6715 = vmatpush1.msra.mxu0 0.0
    %6716 = vmatprep.subr.mxu0 0.0
    %6717 = vmatpush1.msra.mxu0 0.0
    %6718 = vmatprep.subr.mxu0 0.0
    %6719 = vmatpush1.msra.mxu0 0.0
    %6720 = vmatprep.subr.mxu0 0.0
    %6721 = vmatpush1.msra.mxu0 0.0
    %6722 = vmatprep.subr.mxu0 0.0
    %6723 = vmatpush1.msra.mxu0 0.0
    %6724 = vmatprep.mubr.f32.mxu0 0.0
    %6725 = vmatmul.mubr.f32.gmra.mrb[0].mxu0 %v6613
    %v6726 = vpop.f32.mrb[0].mxu0
    %v6727 = vadd.f32 9.0, %v6726
    %v6728 = vpop.f32.mrb[0].mxu0
    %6729 = vmatprep.mubr.f32.mxu0 0.0
    %6730 = vmatmul.mubr.f32.gmra.mrb[0].mxu0 %v6616
    %v6731 = vpop.f32.mrb[0].mxu0
    %v6732 = vadd.f32 9.0, %v6731
    %v6733 = vpop.f32.mrb[0].mxu0
    %6734 = vmatprep.mubr.f32.mxu0 0.0
    %6735 = vmatmul.mubr.f32.gmra.mrb[0].mxu0 %v6619
    %v6736 = vpop.f32.mrb[0].mxu0
    %v6737 = vadd.f32 9.0, %v6736
    %v6738 = vpop.f32.mrb[0].mxu0
    %6739 = vmatprep.mubr.f32.mxu0 0.0
    %6740 = vmatmul.mubr.f32.gmra.mrb[0].mxu0 %v6622
    %v6741 = vpop.f32.mrb[0].mxu0
    %v6742 = vadd.f32 9.0, %v6741
    %v6743 = vpop.f32.mrb[0].mxu0
    %6744 = vmatprep.mubr.f32.mxu0 0.0
    %6745 = vmatmul.mubr.f32.gmra.mrb[0].mxu0 %v6625
    %v6746 = vpop.f32.mrb[0].mxu0
    %v6747 = vadd.f32 9.0, %v6746
    %v6748 = vpop.f32.mrb[0].mxu0
    %6749 = vmatprep.mubr.f32.mxu0 0.0
    %6750 = vmatmul.mubr.f32.gmra.mrb[0].mxu0 %v6628
    %v6751 = vpop.f32.mrb[0].mxu0
    %v6752 = vadd.f32 9.0, %v6751
    %v6753 = vpop.f32.mrb[0].mxu0
    %6754 = vmatprep.mubr.f32.mxu0 0.0
    %6755 = vmatmul.mubr.f32.gmra.mrb[0].mxu0 %v6631
    %v6756 = vpop.f32.mrb[0].mxu0
    %v6757 = vadd.f32 9.0, %v6756
    %v6758 = vpop.f32.mrb[0].mxu0
    %6759 = vmatprep.mubr.f32.mxu0 0.0
    %6760 = vmatmul.mubr.f32.gmra.mrb[0].mxu0 %v6634
    %v6761 = vpop.f32.mrb[0].mxu0
    %v6762 = vadd.f32 9.0, %v6761
    %v6763 = vpop.f32.mrb[0].mxu0
    %6764 = vmatprep.mubr.f32.mxu0 0.0
    %6765 = vmatmul.mubr.f32.gmra.mrb[0].mxu0 %v6637
    %v6766 = vpop.f32.mrb[0].mxu0
    %v6767 = vadd.f32 9.0, %v6766
    %v6768 = vpop.f32.mrb[0].mxu0
    %6769 = vmatprep.mubr.f32.mxu0 0.0
    %6770 = vmatmul.mubr.f32.gmra.mrb[0].mxu0 %v6640
    %v6771 = vpop.f32.mrb[0].mxu0
    %v6772 = vadd.f32 9.0, %v6771
    %v6773 = vpop.f32.mrb[0].mxu0
    %6774 = vmatprep.mubr.f32.mxu0 0.0
    %6775 = vmatmul.mubr.f32.gmra.mrb[0].mxu0 %v6643
    %v6776 = vpop.f32.mrb[0].mxu0
    %v6777 = vadd.f32 9.0, %v6776
    %v6778 = vpop.f32.mrb[0].mxu0
    %6779 = vmatprep.mubr.f32.mxu0 0.0
    %6780 = vmatmul.mubr.f32.gmra.mrb[0].mxu0 %v6646
    %v6781 = vpop.f32.mrb[0].mxu0
    %v6782 = vadd.f32 9.0, %v6781
    %v6783 = vpop.f32.mrb[0].mxu0
    %6784 = vmatprep.mubr.f32.mxu0 0.0
    %6785 = vmatmul.mubr.f32.gmra.mrb[0].mxu0 %v6649
    %v6786 = vpop.f32.mrb[0].mxu0
    %v6787 = vadd.f32 9.0, %v6786
    %v6788 = vpop.f32.mrb[0].mxu0
    %6789 = vmatprep.mubr.f32.mxu0 0.0
    %6790 = vmatmul.mubr.f32.gmra.mrb[0].mxu0 %v6652
    %v6791 = vpop.f32.mrb[0].mxu0
    %v6792 = vadd.f32 9.0, %v6791
    %v6793 = vpop.f32.mrb[0].mxu0
    %6794 = vmatprep.mubr.f32.mxu0 0.0
    %6795 = vmatmul.mubr.f32.gmra.mrb[0].mxu0 %v6655
    %v6796 = vpop.f32.mrb[0].mxu0
    %v6797 = vadd.f32 9.0, %v6796
    %v6798 = vpop.f32.mrb[0].mxu0
    %6799 = vmatprep.mubr.f32.mxu0 0.0
    %6800 = vmatmul.mubr.f32.gmra.mrb[0].mxu0 %v6658
    %v6801 = vpop.f32.mrb[0].mxu0
    %v6802 = vadd.f32 9.0, %v6801
    %v6803 = vpop.f32.mrb[0].mxu0
    %6804 = vdwg.mxu0
    %v6805 = vadd.f32 %v6727, 1e-08
    %v6806 = vadd.f32 %v6732, 1e-08
    %v6807 = vadd.f32 %v6737, 1e-08
    %v6808 = vadd.f32 %v6742, 1e-08
    %v6809 = vadd.f32 %v6747, 1e-08
    %v6810 = vadd.f32 %v6752, 1e-08
    %v6811 = vadd.f32 %v6757, 1e-08
    %v6812 = vadd.f32 %v6762, 1e-08
    %v6813 = vadd.f32 %v6767, 1e-08
    %v6814 = vadd.f32 %v6772, 1e-08
    %v6815 = vadd.f32 %v6777, 1e-08
    %v6816 = vadd.f32 %v6782, 1e-08
    %v6817 = vadd.f32 %v6787, 1e-08
    %v6818 = vadd.f32 %v6792, 1e-08
    %v6819 = vadd.f32 %v6797, 1e-08
    %v6820 = vadd.f32 %v6802, 1e-08
    %v6821 = vrsqrt.pop %v6805
    %v6822 = vrsqrt.pop %v6806
    %v6823 = vrsqrt.pop %v6807
    %v6824 = vrsqrt.pop %v6808
    %v6825 = vrsqrt.pop %v6809
    %v6826 = vrsqrt.pop %v6810
    %v6827 = vrsqrt.pop %v6811
    %v6828 = vrsqrt.pop %v6812
    %v6829 = vrsqrt.pop %v6813
    %v6830 = vrsqrt.pop %v6814
    %v6831 = vrsqrt.pop %v6815
    %v6832 = vrsqrt.pop %v6816
    %v6833 = vrsqrt.pop %v6817
    %v6834 = vrsqrt.pop %v6818
    %v6835 = vrsqrt.pop %v6819
    %v6836 = vrsqrt.pop %v6820
    %v6837 = vld [vmem:[%s2] sm:$0xff]
    %v6838 = vld [vmem:[%s2 + $0x8] sm:$0xf]
    %v6840 = vsel %vm98, %v6580, 0
    %v6843 = vsel %vm98, %v6581, 0
    %v6846 = vsel %vm98, %v6582, 0
    %v6849 = vsel %vm98, %v6583, 0
    %v6852 = vsel %vm98, %v6584, 0
    %v6855 = vsel %vm98, %v6585, 0
    %v6858 = vsel %vm98, %v6586, 0
    %v6861 = vsel %vm98, %v6587, 0
    %v6864 = vsel %vm98, %v6588, 0
    %v6867 = vsel %vm98, %v6589, 0
    %v6870 = vsel %vm98, %v6590, 0
    %v6873 = vsel %vm98, %v6591, 0
    %v6876 = vsel %vm98, %v6592, 0
    %v6879 = vsel %vm98, %v6593, 0
    %v6882 = vsel %vm98, %v6594, 0
    %v6885 = vsel %vm98, %v6595, 0
    %v6888 = vsel %vm147, %v6838, 0
    %6890 = vmatprep.subr.mxu0 0.0
    %6891 = vmatpush1.msra.mxu0 %v6837
    %6892 = vmatprep.subr.mxu0 0.0
    %6893 = vmatpush1.msra.mxu0 %v6888
    %6894 = vmatprep.subr.mxu0 0.0
    %6895 = vmatpush1.msra.mxu0 0.0
    %6896 = vmatprep.subr.mxu0 0.0
    %6897 = vmatpush1.msra.mxu0 0.0
    %6898 = vmatprep.subr.mxu0 0.0
    %6899 = vmatpush1.msra.mxu0 0.0
    %6900 = vmatprep.subr.mxu0 0.0
    %6901 = vmatpush1.msra.mxu0 0.0
    %6902 = vmatprep.subr.mxu0 0.0
    %6903 = vmatpush1.msra.mxu0 0.0
    %6904 = vmatprep.subr.mxu0 0.0
    %6905 = vmatpush1.msra.mxu0 0.0
    %6906 = vmatprep.subr.mxu0 0.0
    %6907 = vmatpush1.msra.mxu0 0.0
    %6908 = vmatprep.subr.mxu0 0.0
    %6909 = vmatpush1.msra.mxu0 0.0
    %6910 = vmatprep.subr.mxu0 0.0
    %6911 = vmatpush1.msra.mxu0 0.0
    %6912 = vmatprep.subr.mxu0 0.0
    %6913 = vmatpush1.msra.mxu0 0.0
    %6914 = vmatprep.subr.mxu0 0.0
    %6915 = vmatpush1.msra.mxu0 0.0
    %6916 = vmatprep.subr.mxu0 0.0
    %6917 = vmatpush1.msra.mxu0 0.0
    %6918 = vmatprep.subr.mxu0 0.0
    %6919 = vmatpush1.msra.mxu0 0.0
    %6920 = vmatprep.subr.mxu0 0.0
    %6921 = vmatpush1.msra.mxu0 0.0
    %6922 = vmatprep.subr.mxu0 0.0
    %6923 = vmatpush1.msra.mxu0 0.0
    %6924 = vmatprep.subr.mxu0 0.0
    %6925 = vmatpush1.msra.mxu0 0.0
    %6926 = vmatprep.subr.mxu0 0.0
    %6927 = vmatpush1.msra.mxu0 0.0
    %6928 = vmatprep.subr.mxu0 0.0
    %6929 = vmatpush1.msra.mxu0 0.0
    %6930 = vmatprep.subr.mxu0 0.0
    %6931 = vmatpush1.msra.mxu0 0.0
    %6932 = vmatprep.subr.mxu0 0.0
    %6933 = vmatpush1.msra.mxu0 0.0
    %6934 = vmatprep.subr.mxu0 0.0
    %6935 = vmatpush1.msra.mxu0 0.0
    %6936 = vmatprep.subr.mxu0 0.0
    %6937 = vmatpush1.msra.mxu0 0.0
    %6938 = vmatprep.subr.mxu0 0.0
    %6939 = vmatpush1.msra.mxu0 0.0
    %6940 = vmatprep.subr.mxu0 0.0
    %6941 = vmatpush1.msra.mxu0 0.0
    %6942 = vmatprep.subr.mxu0 0.0
    %6943 = vmatpush1.msra.mxu0 0.0
    %6944 = vmatprep.subr.mxu0 0.0
    %6945 = vmatpush1.msra.mxu0 0.0
    %6946 = vmatprep.subr.mxu0 0.0
    %6947 = vmatpush1.msra.mxu0 0.0
    %6948 = vmatprep.subr.mxu0 0.0
    %6949 = vmatpush1.msra.mxu0 0.0
    %6950 = vmatprep.subr.mxu0 0.0
    %6951 = vmatpush1.msra.mxu0 0.0
    %6952 = vmatprep.subr.mxu0 0.0
    %6953 = vmatpush1.msra.mxu0 0.0
    %6954 = vmatprep.mubr.f32.mxu0 0.0
    %6955 = vmatmul.mubr.f32.gmra.mrb[0].mxu0 %v6840
    %v6956 = vpop.f32.mrb[0].mxu0
    %v6957 = vadd.f32 %v333, %v6956
    %v6958 = vpop.f32.mrb[0].mxu0
    %6959 = vmatprep.mubr.f32.mxu0 0.0
    %6960 = vmatmul.mubr.f32.gmra.mrb[0].mxu0 %v6843
    %v6961 = vpop.f32.mrb[0].mxu0
    %v6962 = vadd.f32 %v333, %v6961
    %v6963 = vpop.f32.mrb[0].mxu0
    %6964 = vmatprep.mubr.f32.mxu0 0.0
    %6965 = vmatmul.mubr.f32.gmra.mrb[0].mxu0 %v6846
    %v6966 = vpop.f32.mrb[0].mxu0
    %v6967 = vadd.f32 %v333, %v6966
    %v6968 = vpop.f32.mrb[0].mxu0
    %6969 = vmatprep.mubr.f32.mxu0 0.0
    %6970 = vmatmul.mubr.f32.gmra.mrb[0].mxu0 %v6849
    %v6971 = vpop.f32.mrb[0].mxu0
    %v6972 = vadd.f32 %v333, %v6971
    %v6973 = vpop.f32.mrb[0].mxu0
    %6974 = vmatprep.mubr.f32.mxu0 0.0
    %6975 = vmatmul.mubr.f32.gmra.mrb[0].mxu0 %v6852
    %v6976 = vpop.f32.mrb[0].mxu0
    %v6977 = vadd.f32 %v333, %v6976
    %v6978 = vpop.f32.mrb[0].mxu0
    %6979 = vmatprep.mubr.f32.mxu0 0.0
    %6980 = vmatmul.mubr.f32.gmra.mrb[0].mxu0 %v6855
    %v6981 = vpop.f32.mrb[0].mxu0
    %v6982 = vadd.f32 %v333, %v6981
    %v6983 = vpop.f32.mrb[0].mxu0
    %6984 = vmatprep.mubr.f32.mxu0 0.0
    %6985 = vmatmul.mubr.f32.gmra.mrb[0].mxu0 %v6858
    %v6986 = vpop.f32.mrb[0].mxu0
    %v6987 = vadd.f32 %v333, %v6986
    %v6988 = vpop.f32.mrb[0].mxu0
    %6989 = vmatprep.mubr.f32.mxu0 0.0
    %6990 = vmatmul.mubr.f32.gmra.mrb[0].mxu0 %v6861
    %v6991 = vpop.f32.mrb[0].mxu0
    %v6992 = vadd.f32 %v333, %v6991
    %v6993 = vpop.f32.mrb[0].mxu0
    %6994 = vmatprep.mubr.f32.mxu0 0.0
    %6995 = vmatmul.mubr.f32.gmra.mrb[0].mxu0 %v6864
    %v6996 = vpop.f32.mrb[0].mxu0
    %v6997 = vadd.f32 %v333, %v6996
    %v6998 = vpop.f32.mrb[0].mxu0
    %6999 = vmatprep.mubr.f32.mxu0 0.0
    %7000 = vmatmul.mubr.f32.gmra.mrb[0].mxu0 %v6867
    %v7001 = vpop.f32.mrb[0].mxu0
    %v7002 = vadd.f32 %v333, %v7001
    %v7003 = vpop.f32.mrb[0].mxu0
    %7004 = vmatprep.mubr.f32.mxu0 0.0
    %7005 = vmatmul.mubr.f32.gmra.mrb[0].mxu0 %v6870
    %v7006 = vpop.f32.mrb[0].mxu0
    %v7007 = vadd.f32 %v333, %v7006
    %v7008 = vpop.f32.mrb[0].mxu0
    %7009 = vmatprep.mubr.f32.mxu0 0.0
    %7010 = vmatmul.mubr.f32.gmra.mrb[0].mxu0 %v6873
    %v7011 = vpop.f32.mrb[0].mxu0
    %v7012 = vadd.f32 %v333, %v7011
    %v7013 = vpop.f32.mrb[0].mxu0
    %7014 = vmatprep.mubr.f32.mxu0 0.0
    %7015 = vmatmul.mubr.f32.gmra.mrb[0].mxu0 %v6876
    %v7016 = vpop.f32.mrb[0].mxu0
    %v7017 = vadd.f32 %v333, %v7016
    %v7018 = vpop.f32.mrb[0].mxu0
    %7019 = vmatprep.mubr.f32.mxu0 0.0
    %7020 = vmatmul.mubr.f32.gmra.mrb[0].mxu0 %v6879
    %v7021 = vpop.f32.mrb[0].mxu0
    %v7022 = vadd.f32 %v333, %v7021
    %v7023 = vpop.f32.mrb[0].mxu0
    %7024 = vmatprep.mubr.f32.mxu0 0.0
    %7025 = vmatmul.mubr.f32.gmra.mrb[0].mxu0 %v6882
    %v7026 = vpop.f32.mrb[0].mxu0
    %v7027 = vadd.f32 %v333, %v7026
    %v7028 = vpop.f32.mrb[0].mxu0
    %7029 = vmatprep.mubr.f32.mxu0 0.0
    %7030 = vmatmul.mubr.f32.gmra.mrb[0].mxu0 %v6885
    %v7031 = vpop.f32.mrb[0].mxu0
    %v7032 = vadd.f32 %v333, %v7031
    %v7033 = vpop.f32.mrb[0].mxu0
    %7034 = vdwg.mxu0
    %7036 = vset.pattern.permute.xlu0 0
    %7037 = vperm.xlu0 %7036, %v6821
    %v7038 = vpop.permute.xlu0 %7037
    %7041 = vset.pattern.permute.xlu0 0
    %7042 = vperm.xlu0 %7041, %v6822
    %v7043 = vpop.permute.xlu0 %7042
    %7046 = vset.pattern.permute.xlu0 0
    %7047 = vperm.xlu0 %7046, %v6823
    %v7048 = vpop.permute.xlu0 %7047
    %7051 = vset.pattern.permute.xlu0 0
    %7052 = vperm.xlu0 %7051, %v6824
    %v7053 = vpop.permute.xlu0 %7052
    %7056 = vset.pattern.permute.xlu0 0
    %7057 = vperm.xlu0 %7056, %v6825
    %v7058 = vpop.permute.xlu0 %7057
    %7061 = vset.pattern.permute.xlu0 0
    %7062 = vperm.xlu0 %7061, %v6826
    %v7063 = vpop.permute.xlu0 %7062
    %7066 = vset.pattern.permute.xlu0 0
    %7067 = vperm.xlu0 %7066, %v6827
    %v7068 = vpop.permute.xlu0 %7067
    %7071 = vset.pattern.permute.xlu0 0
    %7072 = vperm.xlu0 %7071, %v6828
    %v7073 = vpop.permute.xlu0 %7072
    %7076 = vset.pattern.permute.xlu0 0
    %7077 = vperm.xlu0 %7076, %v6829
    %v7078 = vpop.permute.xlu0 %7077
    %7081 = vset.pattern.permute.xlu0 0
    %7082 = vperm.xlu0 %7081, %v6830
    %v7083 = vpop.permute.xlu0 %7082
    %7086 = vset.pattern.permute.xlu0 0
    %7087 = vperm.xlu0 %7086, %v6831
    %v7088 = vpop.permute.xlu0 %7087
    %7091 = vset.pattern.permute.xlu0 0
    %7092 = vperm.xlu0 %7091, %v6832
    %v7093 = vpop.permute.xlu0 %7092
    %7096 = vset.pattern.permute.xlu0 0
    %7097 = vperm.xlu0 %7096, %v6833
    %v7098 = vpop.permute.xlu0 %7097
    %7101 = vset.pattern.permute.xlu0 0
    %7102 = vperm.xlu0 %7101, %v6834
    %v7103 = vpop.permute.xlu0 %7102
    %7106 = vset.pattern.permute.xlu0 0
    %7107 = vperm.xlu0 %7106, %v6835
    %v7108 = vpop.permute.xlu0 %7107
    %7111 = vset.pattern.permute.xlu0 0
    %7112 = vperm.xlu0 %7111, %v6836
    %v7113 = vpop.permute.xlu0 %7112
    %v7115 = vmul.f32 %v6957, %v7038
    %v7116 = vmul.f32 %v6962, %v7043
    %v7117 = vmul.f32 %v6967, %v7048
    %v7118 = vmul.f32 %v6972, %v7053
    %v7119 = vmul.f32 %v6977, %v7058
    %v7120 = vmul.f32 %v6982, %v7063
    %v7121 = vmul.f32 %v6987, %v7068
    %v7122 = vmul.f32 %v6992, %v7073
    %v7123 = vmul.f32 %v6997, %v7078
    %v7124 = vmul.f32 %v7002, %v7083
    %v7125 = vmul.f32 %v7007, %v7088
    %v7126 = vmul.f32 %v7012, %v7093
    %v7127 = vmul.f32 %v7017, %v7098
    %v7128 = vmul.f32 %v7022, %v7103
    %v7129 = vmul.f32 %v7027, %v7108
    %v7130 = vmul.f32 %v7032, %v7113
    %v7131 = vmul.f32 %v7115, %v7115
    %v7132 = vmul.f32 %v7116, %v7116
    %v7133 = vmul.f32 %v7117, %v7117
    %v7134 = vmul.f32 %v7118, %v7118
    %v7135 = vmul.f32 %v7119, %v7119
    %v7136 = vmul.f32 %v7120, %v7120
    %v7137 = vmul.f32 %v7121, %v7121
    %v7138 = vmul.f32 %v7122, %v7122
    %v7139 = vmul.f32 %v7123, %v7123
    %v7140 = vmul.f32 %v7124, %v7124
    %v7141 = vmul.f32 %v7125, %v7125
    %v7142 = vmul.f32 %v7126, %v7126
    %v7143 = vmul.f32 %v7127, %v7127
    %v7144 = vmul.f32 %v7128, %v7128
    %v7145 = vmul.f32 %v7129, %v7129
    %v7146 = vmul.f32 %v7130, %v7130
    %v7148 = vsel %vm642, %v7131, 0
    %v7151 = vsel %vm642, %v7132, 0
    %v7154 = vsel %vm642, %v7133, 0
    %v7157 = vsel %vm642, %v7134, 0
    %v7160 = vsel %vm642, %v7135, 0
    %v7163 = vsel %vm642, %v7136, 0
    %v7166 = vsel %vm642, %v7137, 0
    %v7169 = vsel %vm642, %v7138, 0
    %v7172 = vsel %vm642, %v7139, 0
    %v7175 = vsel %vm642, %v7140, 0
    %v7178 = vsel %vm642, %v7141, 0
    %v7181 = vsel %vm642, %v7142, 0
    %v7184 = vsel %vm642, %v7143, 0
    %v7187 = vsel %vm642, %v7144, 0
    %v7190 = vsel %vm642, %v7145, 0
    %v7193 = vsel %vm642, %v7146, 0
    %7195 = vmatprep.subr.mxu0 0.0
    %7196 = vmatpush1.msra.mxu0 1.0
    %7197 = vmatprep.subr.mxu0 0.0
    %7198 = vmatpush1.msra.mxu0 1.0
    %7199 = vmatprep.subr.mxu0 0.0
    %7200 = vmatpush1.msra.mxu0 1.0
    %7201 = vmatprep.subr.mxu0 0.0
    %7202 = vmatpush1.msra.mxu0 1.0
    %7203 = vmatprep.subr.mxu0 0.0
    %7204 = vmatpush1.msra.mxu0 0.0
    %7205 = vmatprep.subr.mxu0 0.0
    %7206 = vmatpush1.msra.mxu0 0.0
    %7207 = vmatprep.subr.mxu0 0.0
    %7208 = vmatpush1.msra.mxu0 0.0
    %7209 = vmatprep.subr.mxu0 0.0
    %7210 = vmatpush1.msra.mxu0 0.0
    %7211 = vmatprep.subr.mxu0 0.0
    %7212 = vmatpush1.msra.mxu0 0.0
    %7213 = vmatprep.subr.mxu0 0.0
    %7214 = vmatpush1.msra.mxu0 0.0
    %7215 = vmatprep.subr.mxu0 0.0
    %7216 = vmatpush1.msra.mxu0 0.0
    %7217 = vmatprep.subr.mxu0 0.0
    %7218 = vmatpush1.msra.mxu0 0.0
    %7219 = vmatprep.subr.mxu0 0.0
    %7220 = vmatpush1.msra.mxu0 0.0
    %7221 = vmatprep.subr.mxu0 0.0
    %7222 = vmatpush1.msra.mxu0 0.0
    %7223 = vmatprep.subr.mxu0 0.0
    %7224 = vmatpush1.msra.mxu0 0.0
    %7225 = vmatprep.subr.mxu0 0.0
    %7226 = vmatpush1.msra.mxu0 0.0
    %7227 = vmatprep.subr.mxu0 0.0
    %7228 = vmatpush1.msra.mxu0 0.0
    %7229 = vmatprep.subr.mxu0 0.0
    %7230 = vmatpush1.msra.mxu0 0.0
    %7231 = vmatprep.subr.mxu0 0.0
    %7232 = vmatpush1.msra.mxu0 0.0
    %7233 = vmatprep.subr.mxu0 0.0
    %7234 = vmatpush1.msra.mxu0 0.0
    %7235 = vmatprep.subr.mxu0 0.0
    %7236 = vmatpush1.msra.mxu0 0.0
    %7237 = vmatprep.subr.mxu0 0.0
    %7238 = vmatpush1.msra.mxu0 0.0
    %7239 = vmatprep.subr.mxu0 0.0
    %7240 = vmatpush1.msra.mxu0 0.0
    %7241 = vmatprep.subr.mxu0 0.0
    %7242 = vmatpush1.msra.mxu0 0.0
    %7243 = vmatprep.subr.mxu0 0.0
    %7244 = vmatpush1.msra.mxu0 0.0
    %7245 = vmatprep.subr.mxu0 0.0
    %7246 = vmatpush1.msra.mxu0 0.0
    %7247 = vmatprep.subr.mxu0 0.0
    %7248 = vmatpush1.msra.mxu0 0.0
    %7249 = vmatprep.subr.mxu0 0.0
    %7250 = vmatpush1.msra.mxu0 0.0
    %7251 = vmatprep.subr.mxu0 0.0
    %7252 = vmatpush1.msra.mxu0 0.0
    %7253 = vmatprep.subr.mxu0 0.0
    %7254 = vmatpush1.msra.mxu0 0.0
    %7255 = vmatprep.subr.mxu0 0.0
    %7256 = vmatpush1.msra.mxu0 0.0
    %7257 = vmatprep.subr.mxu0 0.0
    %7258 = vmatpush1.msra.mxu0 0.0
    %7259 = vmatprep.mubr.f32.mxu0 0.0
    %7260 = vmatmul.mubr.f32.gmra.mrb[0].mxu0 %v7148
    %v7261 = vpop.f32.mrb[0].mxu0
    %v7262 = vadd.f32 1e-08, %v7261
    %v7263 = vpop.f32.mrb[0].mxu0
    %7264 = vmatprep.mubr.f32.mxu0 0.0
    %7265 = vmatmul.mubr.f32.gmra.mrb[0].mxu0 %v7151
    %v7266 = vpop.f32.mrb[0].mxu0
    %v7267 = vadd.f32 1e-08, %v7266
    %v7268 = vpop.f32.mrb[0].mxu0
    %7269 = vmatprep.mubr.f32.mxu0 0.0
    %7270 = vmatmul.mubr.f32.gmra.mrb[0].mxu0 %v7154
    %v7271 = vpop.f32.mrb[0].mxu0
    %v7272 = vadd.f32 1e-08, %v7271
    %v7273 = vpop.f32.mrb[0].mxu0
    %7274 = vmatprep.mubr.f32.mxu0 0.0
    %7275 = vmatmul.mubr.f32.gmra.mrb[0].mxu0 %v7157
    %v7276 = vpop.f32.mrb[0].mxu0
    %v7277 = vadd.f32 1e-08, %v7276
    %v7278 = vpop.f32.mrb[0].mxu0
    %7279 = vmatprep.mubr.f32.mxu0 0.0
    %7280 = vmatmul.mubr.f32.gmra.mrb[0].mxu0 %v7160
    %v7281 = vpop.f32.mrb[0].mxu0
    %v7282 = vadd.f32 1e-08, %v7281
    %v7283 = vpop.f32.mrb[0].mxu0
    %7284 = vmatprep.mubr.f32.mxu0 0.0
    %7285 = vmatmul.mubr.f32.gmra.mrb[0].mxu0 %v7163
    %v7286 = vpop.f32.mrb[0].mxu0
    %v7287 = vadd.f32 1e-08, %v7286
    %v7288 = vpop.f32.mrb[0].mxu0
    %7289 = vmatprep.mubr.f32.mxu0 0.0
    %7290 = vmatmul.mubr.f32.gmra.mrb[0].mxu0 %v7166
    %v7291 = vpop.f32.mrb[0].mxu0
    %v7292 = vadd.f32 1e-08, %v7291
    %v7293 = vpop.f32.mrb[0].mxu0
    %7294 = vmatprep.mubr.f32.mxu0 0.0
    %7295 = vmatmul.mubr.f32.gmra.mrb[0].mxu0 %v7169
    %v7296 = vpop.f32.mrb[0].mxu0
    %v7297 = vadd.f32 1e-08, %v7296
    %v7298 = vpop.f32.mrb[0].mxu0
    %7299 = vmatprep.mubr.f32.mxu0 0.0
    %7300 = vmatmul.mubr.f32.gmra.mrb[0].mxu0 %v7172
    %v7301 = vpop.f32.mrb[0].mxu0
    %v7302 = vadd.f32 1e-08, %v7301
    %v7303 = vpop.f32.mrb[0].mxu0
    %7304 = vmatprep.mubr.f32.mxu0 0.0
    %7305 = vmatmul.mubr.f32.gmra.mrb[0].mxu0 %v7175
    %v7306 = vpop.f32.mrb[0].mxu0
    %v7307 = vadd.f32 1e-08, %v7306
    %v7308 = vpop.f32.mrb[0].mxu0
    %7309 = vmatprep.mubr.f32.mxu0 0.0
    %7310 = vmatmul.mubr.f32.gmra.mrb[0].mxu0 %v7178
    %v7311 = vpop.f32.mrb[0].mxu0
    %v7312 = vadd.f32 1e-08, %v7311
    %v7313 = vpop.f32.mrb[0].mxu0
    %7314 = vmatprep.mubr.f32.mxu0 0.0
    %7315 = vmatmul.mubr.f32.gmra.mrb[0].mxu0 %v7181
    %v7316 = vpop.f32.mrb[0].mxu0
    %v7317 = vadd.f32 1e-08, %v7316
    %v7318 = vpop.f32.mrb[0].mxu0
    %7319 = vmatprep.mubr.f32.mxu0 0.0
    %7320 = vmatmul.mubr.f32.gmra.mrb[0].mxu0 %v7184
    %v7321 = vpop.f32.mrb[0].mxu0
    %v7322 = vadd.f32 1e-08, %v7321
    %v7323 = vpop.f32.mrb[0].mxu0
    %7324 = vmatprep.mubr.f32.mxu0 0.0
    %7325 = vmatmul.mubr.f32.gmra.mrb[0].mxu0 %v7187
    %v7326 = vpop.f32.mrb[0].mxu0
    %v7327 = vadd.f32 1e-08, %v7326
    %v7328 = vpop.f32.mrb[0].mxu0
    %7329 = vmatprep.mubr.f32.mxu0 0.0
    %7330 = vmatmul.mubr.f32.gmra.mrb[0].mxu0 %v7190
    %v7331 = vpop.f32.mrb[0].mxu0
    %v7332 = vadd.f32 1e-08, %v7331
    %v7333 = vpop.f32.mrb[0].mxu0
    %7334 = vmatprep.mubr.f32.mxu0 0.0
    %7335 = vmatmul.mubr.f32.gmra.mrb[0].mxu0 %v7193
    %v7336 = vpop.f32.mrb[0].mxu0
    %v7337 = vadd.f32 1e-08, %v7336
    %v7338 = vpop.f32.mrb[0].mxu0
    %7339 = vdwg.mxu0
    %v7340 = vrsqrt.pop %v7262
    %v7341 = vrsqrt.pop %v7267
    %v7342 = vrsqrt.pop %v7272
    %v7343 = vrsqrt.pop %v7277
    %v7344 = vrsqrt.pop %v7282
    %v7345 = vrsqrt.pop %v7287
    %v7346 = vrsqrt.pop %v7292
    %v7347 = vrsqrt.pop %v7297
    %v7348 = vrsqrt.pop %v7302
    %v7349 = vrsqrt.pop %v7307
    %v7350 = vrsqrt.pop %v7312
    %v7351 = vrsqrt.pop %v7317
    %v7352 = vrsqrt.pop %v7322
    %v7353 = vrsqrt.pop %v7327
    %v7354 = vrsqrt.pop %v7332
    %v7355 = vrsqrt.pop %v7337
    %7357 = vset.pattern.permute.xlu0 0
    %7358 = vperm.xlu0 %7357, %v7340
    %v7359 = vpop.permute.xlu0 %7358
    %7362 = vset.pattern.permute.xlu0 0
    %7363 = vperm.xlu0 %7362, %v7341
    %v7364 = vpop.permute.xlu0 %7363
    %7367 = vset.pattern.permute.xlu0 0
    %7368 = vperm.xlu0 %7367, %v7342
    %v7369 = vpop.permute.xlu0 %7368
    %7372 = vset.pattern.permute.xlu0 0
    %7373 = vperm.xlu0 %7372, %v7343
    %v7374 = vpop.permute.xlu0 %7373
    %7377 = vset.pattern.permute.xlu0 0
    %7378 = vperm.xlu0 %7377, %v7344
    %v7379 = vpop.permute.xlu0 %7378
    %7382 = vset.pattern.permute.xlu0 0
    %7383 = vperm.xlu0 %7382, %v7345
    %v7384 = vpop.permute.xlu0 %7383
    %7387 = vset.pattern.permute.xlu0 0
    %7388 = vperm.xlu0 %7387, %v7346
    %v7389 = vpop.permute.xlu0 %7388
    %7392 = vset.pattern.permute.xlu0 0
    %7393 = vperm.xlu0 %7392, %v7347
    %v7394 = vpop.permute.xlu0 %7393
    %7397 = vset.pattern.permute.xlu0 0
    %7398 = vperm.xlu0 %7397, %v7348
    %v7399 = vpop.permute.xlu0 %7398
    %7402 = vset.pattern.permute.xlu0 0
    %7403 = vperm.xlu0 %7402, %v7349
    %v7404 = vpop.permute.xlu0 %7403
    %7407 = vset.pattern.permute.xlu0 0
    %7408 = vperm.xlu0 %7407, %v7350
    %v7409 = vpop.permute.xlu0 %7408
    %7412 = vset.pattern.permute.xlu0 0
    %7413 = vperm.xlu0 %7412, %v7351
    %v7414 = vpop.permute.xlu0 %7413
    %7417 = vset.pattern.permute.xlu0 0
    %7418 = vperm.xlu0 %7417, %v7352
    %v7419 = vpop.permute.xlu0 %7418
    %7422 = vset.pattern.permute.xlu0 0
    %7423 = vperm.xlu0 %7422, %v7353
    %v7424 = vpop.permute.xlu0 %7423
    %7427 = vset.pattern.permute.xlu0 0
    %7428 = vperm.xlu0 %7427, %v7354
    %v7429 = vpop.permute.xlu0 %7428
    %7432 = vset.pattern.permute.xlu0 0
    %7433 = vperm.xlu0 %7432, %v7355
    %v7434 = vpop.permute.xlu0 %7433
    %v7436 = vmul.f32 %v7115, %v7359
    %v7437 = vmul.f32 %v7116, %v7364
    %v7438 = vmul.f32 %v7117, %v7369
    %v7439 = vmul.f32 %v7118, %v7374
    %v7440 = vmul.f32 %v7119, %v7379
    %v7441 = vmul.f32 %v7120, %v7384
    %v7442 = vmul.f32 %v7121, %v7389
    %v7443 = vmul.f32 %v7122, %v7394
    %v7444 = vmul.f32 %v7123, %v7399
    %v7445 = vmul.f32 %v7124, %v7404
    %v7446 = vmul.f32 %v7125, %v7409
    %v7447 = vmul.f32 %v7126, %v7414
    %v7448 = vmul.f32 %v7127, %v7419
    %v7449 = vmul.f32 %v7128, %v7424
    %v7450 = vmul.f32 %v7129, %v7429
    %v7451 = vmul.f32 %v7130, %v7434
    %v7452 = vld [vmem:[%s3] sm:$0xff]
    %v7453 = vld [vmem:[%s3 + $0x8] sm:$0xff]
    %v7454 = vld [vmem:[%s3 + $0x10] sm:$0xff]
    %v7455 = vld [vmem:[%s3 + $0x18] sm:$0xff]
    %v7457 = vsel %vm642, %v7436, 0
    %v7460 = vsel %vm642, %v7437, 0
    %v7463 = vsel %vm642, %v7438, 0
    %v7466 = vsel %vm642, %v7439, 0
    %v7469 = vsel %vm642, %v7440, 0
    %v7472 = vsel %vm642, %v7441, 0
    %v7475 = vsel %vm642, %v7442, 0
    %v7478 = vsel %vm642, %v7443, 0
    %v7481 = vsel %vm642, %v7444, 0
    %v7484 = vsel %vm642, %v7445, 0
    %v7487 = vsel %vm642, %v7446, 0
    %v7490 = vsel %vm642, %v7447, 0
    %v7493 = vsel %vm642, %v7448, 0
    %v7496 = vsel %vm642, %v7449, 0
    %v7499 = vsel %vm642, %v7450, 0
    %v7502 = vsel %vm642, %v7451, 0
    %7504 = vmatprep.subr.mxu0 0.0
    %7505 = vmatpush1.msra.mxu0 %v7452
    %7506 = vmatprep.subr.mxu0 0.0
    %7507 = vmatpush1.msra.mxu0 %v7453
    %7508 = vmatprep.subr.mxu0 0.0
    %7509 = vmatpush1.msra.mxu0 %v7454
    %7510 = vmatprep.subr.mxu0 0.0
    %7511 = vmatpush1.msra.mxu0 %v7455
    %7512 = vmatprep.subr.mxu0 0.0
    %7513 = vmatpush1.msra.mxu0 0.0
    %7514 = vmatprep.subr.mxu0 0.0
    %7515 = vmatpush1.msra.mxu0 0.0
    %7516 = vmatprep.subr.mxu0 0.0
    %7517 = vmatpush1.msra.mxu0 0.0
    %7518 = vmatprep.subr.mxu0 0.0
    %7519 = vmatpush1.msra.mxu0 0.0
    %7520 = vmatprep.subr.mxu0 0.0
    %7521 = vmatpush1.msra.mxu0 0.0
    %7522 = vmatprep.subr.mxu0 0.0
    %7523 = vmatpush1.msra.mxu0 0.0
    %7524 = vmatprep.subr.mxu0 0.0
    %7525 = vmatpush1.msra.mxu0 0.0
    %7526 = vmatprep.subr.mxu0 0.0
    %7527 = vmatpush1.msra.mxu0 0.0
    %7528 = vmatprep.subr.mxu0 0.0
    %7529 = vmatpush1.msra.mxu0 0.0
    %7530 = vmatprep.subr.mxu0 0.0
    %7531 = vmatpush1.msra.mxu0 0.0
    %7532 = vmatprep.subr.mxu0 0.0
    %7533 = vmatpush1.msra.mxu0 0.0
    %7534 = vmatprep.subr.mxu0 0.0
    %7535 = vmatpush1.msra.mxu0 0.0
    %7536 = vmatprep.subr.mxu0 0.0
    %7537 = vmatpush1.msra.mxu0 0.0
    %7538 = vmatprep.subr.mxu0 0.0
    %7539 = vmatpush1.msra.mxu0 0.0
    %7540 = vmatprep.subr.mxu0 0.0
    %7541 = vmatpush1.msra.mxu0 0.0
    %7542 = vmatprep.subr.mxu0 0.0
    %7543 = vmatpush1.msra.mxu0 0.0
    %7544 = vmatprep.subr.mxu0 0.0
    %7545 = vmatpush1.msra.mxu0 0.0
    %7546 = vmatprep.subr.mxu0 0.0
    %7547 = vmatpush1.msra.mxu0 0.0
    %7548 = vmatprep.subr.mxu0 0.0
    %7549 = vmatpush1.msra.mxu0 0.0
    %7550 = vmatprep.subr.mxu0 0.0
    %7551 = vmatpush1.msra.mxu0 0.0
    %7552 = vmatprep.subr.mxu0 0.0
    %7553 = vmatpush1.msra.mxu0 0.0
    %7554 = vmatprep.subr.mxu0 0.0
    %7555 = vmatpush1.msra.mxu0 0.0
    %7556 = vmatprep.subr.mxu0 0.0
    %7557 = vmatpush1.msra.mxu0 0.0
    %7558 = vmatprep.subr.mxu0 0.0
    %7559 = vmatpush1.msra.mxu0 0.0
    %7560 = vmatprep.subr.mxu0 0.0
    %7561 = vmatpush1.msra.mxu0 0.0
    %7562 = vmatprep.subr.mxu0 0.0
    %7563 = vmatpush1.msra.mxu0 0.0
    %7564 = vmatprep.subr.mxu0 0.0
    %7565 = vmatpush1.msra.mxu0 0.0
    %7566 = vmatprep.subr.mxu0 0.0
    %7567 = vmatpush1.msra.mxu0 0.0
    %7568 = vmatprep.mubr.f32.mxu0 0.0
    %7569 = vmatmul.mubr.f32.gmra.mrb[0].mxu0 %v7457
    %v7570 = vpop.f32.mrb[0].mxu0
    %v7571 = vadd.f32 0.0, %v7570
    %v7572 = vpop.f32.mrb[0].mxu0
    %7573 = vmatprep.mubr.f32.mxu0 0.0
    %7574 = vmatmul.mubr.f32.gmra.mrb[0].mxu0 %v7460
    %v7575 = vpop.f32.mrb[0].mxu0
    %v7576 = vadd.f32 0.0, %v7575
    %v7577 = vpop.f32.mrb[0].mxu0
    %7578 = vmatprep.mubr.f32.mxu0 0.0
    %7579 = vmatmul.mubr.f32.gmra.mrb[0].mxu0 %v7463
    %v7580 = vpop.f32.mrb[0].mxu0
    %v7581 = vadd.f32 0.0, %v7580
    %v7582 = vpop.f32.mrb[0].mxu0
    %7583 = vmatprep.mubr.f32.mxu0 0.0
    %7584 = vmatmul.mubr.f32.gmra.mrb[0].mxu0 %v7466
    %v7585 = vpop.f32.mrb[0].mxu0
    %v7586 = vadd.f32 0.0, %v7585
    %v7587 = vpop.f32.mrb[0].mxu0
    %7588 = vmatprep.mubr.f32.mxu0 0.0
    %7589 = vmatmul.mubr.f32.gmra.mrb[0].mxu0 %v7469
    %v7590 = vpop.f32.mrb[0].mxu0
    %v7591 = vadd.f32 0.0, %v7590
    %v7592 = vpop.f32.mrb[0].mxu0
    %7593 = vmatprep.mubr.f32.mxu0 0.0
    %7594 = vmatmul.mubr.f32.gmra.mrb[0].mxu0 %v7472
    %v7595 = vpop.f32.mrb[0].mxu0
    %v7596 = vadd.f32 0.0, %v7595
    %v7597 = vpop.f32.mrb[0].mxu0
    %7598 = vmatprep.mubr.f32.mxu0 0.0
    %7599 = vmatmul.mubr.f32.gmra.mrb[0].mxu0 %v7475
    %v7600 = vpop.f32.mrb[0].mxu0
    %v7601 = vadd.f32 0.0, %v7600
    %v7602 = vpop.f32.mrb[0].mxu0
    %7603 = vmatprep.mubr.f32.mxu0 0.0
    %7604 = vmatmul.mubr.f32.gmra.mrb[0].mxu0 %v7478
    %v7605 = vpop.f32.mrb[0].mxu0
    %v7606 = vadd.f32 0.0, %v7605
    %v7607 = vpop.f32.mrb[0].mxu0
    %7608 = vmatprep.mubr.f32.mxu0 0.0
    %7609 = vmatmul.mubr.f32.gmra.mrb[0].mxu0 %v7481
    %v7610 = vpop.f32.mrb[0].mxu0
    %v7611 = vadd.f32 0.0, %v7610
    %v7612 = vpop.f32.mrb[0].mxu0
    %7613 = vmatprep.mubr.f32.mxu0 0.0
    %7614 = vmatmul.mubr.f32.gmra.mrb[0].mxu0 %v7484
    %v7615 = vpop.f32.mrb[0].mxu0
    %v7616 = vadd.f32 0.0, %v7615
    %v7617 = vpop.f32.mrb[0].mxu0
    %7618 = vmatprep.mubr.f32.mxu0 0.0
    %7619 = vmatmul.mubr.f32.gmra.mrb[0].mxu0 %v7487
    %v7620 = vpop.f32.mrb[0].mxu0
    %v7621 = vadd.f32 0.0, %v7620
    %v7622 = vpop.f32.mrb[0].mxu0
    %7623 = vmatprep.mubr.f32.mxu0 0.0
    %7624 = vmatmul.mubr.f32.gmra.mrb[0].mxu0 %v7490
    %v7625 = vpop.f32.mrb[0].mxu0
    %v7626 = vadd.f32 0.0, %v7625
    %v7627 = vpop.f32.mrb[0].mxu0
    %7628 = vmatprep.mubr.f32.mxu0 0.0
    %7629 = vmatmul.mubr.f32.gmra.mrb[0].mxu0 %v7493
    %v7630 = vpop.f32.mrb[0].mxu0
    %v7631 = vadd.f32 0.0, %v7630
    %v7632 = vpop.f32.mrb[0].mxu0
    %7633 = vmatprep.mubr.f32.mxu0 0.0
    %7634 = vmatmul.mubr.f32.gmra.mrb[0].mxu0 %v7496
    %v7635 = vpop.f32.mrb[0].mxu0
    %v7636 = vadd.f32 0.0, %v7635
    %v7637 = vpop.f32.mrb[0].mxu0
    %7638 = vmatprep.mubr.f32.mxu0 0.0
    %7639 = vmatmul.mubr.f32.gmra.mrb[0].mxu0 %v7499
    %v7640 = vpop.f32.mrb[0].mxu0
    %v7641 = vadd.f32 0.0, %v7640
    %v7642 = vpop.f32.mrb[0].mxu0
    %7643 = vmatprep.mubr.f32.mxu0 0.0
    %7644 = vmatmul.mubr.f32.gmra.mrb[0].mxu0 %v7502
    %v7645 = vpop.f32.mrb[0].mxu0
    %v7646 = vadd.f32 0.0, %v7645
    %v7647 = vpop.f32.mrb[0].mxu0
    %7648 = vdwg.mxu0
    %v7649 = vmax.f32 %v7571, 0.0
    %v7650 = vmax.f32 %v7576, 0.0
    %v7651 = vmax.f32 %v7581, 0.0
    %v7652 = vmax.f32 %v7586, 0.0
    %v7653 = vmax.f32 %v7591, 0.0
    %v7654 = vmax.f32 %v7596, 0.0
    %v7655 = vmax.f32 %v7601, 0.0
    %v7656 = vmax.f32 %v7606, 0.0
    %v7657 = vmax.f32 %v7611, 0.0
    %v7658 = vmax.f32 %v7616, 0.0
    %v7659 = vmax.f32 %v7621, 0.0
    %v7660 = vmax.f32 %v7626, 0.0
    %v7661 = vmax.f32 %v7631, 0.0
    %v7662 = vmax.f32 %v7636, 0.0
    %v7663 = vmax.f32 %v7641, 0.0
    %v7664 = vmax.f32 %v7646, 0.0
    %v7665 = vld [vmem:[%s4] sm:$0xff]
    %v7666 = vld [vmem:[%s4 + $0x8] sm:$0xff]
    %v7667 = vld [vmem:[%s4 + $0x10] sm:$0xff]
    %v7668 = vld [vmem:[%s4 + $0x18] sm:$0xff]
    %v7669 = vld [vmem:[%s4 + $0x20] sm:$0xff]
    %v7670 = vld [vmem:[%s4 + $0x28] sm:$0xff]
    %v7671 = vld [vmem:[%s4 + $0x30] sm:$0xff]
    %v7672 = vld [vmem:[%s4 + $0x38] sm:$0xff]
    %v7673 = vld [vmem:[%s4 + $0x40] sm:$0xff]
    %v7674 = vld [vmem:[%s4 + $0x48] sm:$0xff]
    %v7675 = vld [vmem:[%s4 + $0x50] sm:$0xff]
    %v7676 = vld [vmem:[%s4 + $0x58] sm:$0xff]
    %v7677 = vld [vmem:[%s4 + $0x60] sm:$0xff]
    %v7678 = vld [vmem:[%s4 + $0x68] sm:$0xff]
    %v7679 = vld [vmem:[%s4 + $0x70] sm:$0xff]
    %v7680 = vld [vmem:[%s4 + $0x78] sm:$0xff]
    %7681 = vmatprep.subr.mxu0 0.0
    %7682 = vmatpush1.msra.mxu0 %v7665
    %7683 = vmatprep.subr.mxu0 0.0
    %7684 = vmatpush1.msra.mxu0 %v7666
    %7685 = vmatprep.subr.mxu0 0.0
    %7686 = vmatpush1.msra.mxu0 %v7667
    %7687 = vmatprep.subr.mxu0 0.0
    %7688 = vmatpush1.msra.mxu0 %v7668
    %7689 = vmatprep.subr.mxu0 0.0
    %7690 = vmatpush1.msra.mxu0 %v7669
    %7691 = vmatprep.subr.mxu0 0.0
    %7692 = vmatpush1.msra.mxu0 %v7670
    %7693 = vmatprep.subr.mxu0 0.0
    %7694 = vmatpush1.msra.mxu0 %v7671
    %7695 = vmatprep.subr.mxu0 0.0
    %7696 = vmatpush1.msra.mxu0 %v7672
    %7697 = vmatprep.subr.mxu0 0.0
    %7698 = vmatpush1.msra.mxu0 %v7673
    %7699 = vmatprep.subr.mxu0 0.0
    %7700 = vmatpush1.msra.mxu0 %v7674
    %7701 = vmatprep.subr.mxu0 0.0
    %7702 = vmatpush1.msra.mxu0 %v7675
    %7703 = vmatprep.subr.mxu0 0.0
    %7704 = vmatpush1.msra.mxu0 %v7676
    %7705 = vmatprep.subr.mxu0 0.0
    %7706 = vmatpush1.msra.mxu0 %v7677
    %7707 = vmatprep.subr.mxu0 0.0
    %7708 = vmatpush1.msra.mxu0 %v7678
    %7709 = vmatprep.subr.mxu0 0.0
    %7710 = vmatpush1.msra.mxu0 %v7679
    %7711 = vmatprep.subr.mxu0 0.0
    %7712 = vmatpush1.msra.mxu0 %v7680
    %7713 = vmatprep.subr.mxu0 0.0
    %7714 = vmatpush1.msra.mxu0 0.0
    %7715 = vmatprep.subr.mxu0 0.0
    %7716 = vmatpush1.msra.mxu0 0.0
    %7717 = vmatprep.subr.mxu0 0.0
    %7718 = vmatpush1.msra.mxu0 0.0
    %7719 = vmatprep.subr.mxu0 0.0
    %7720 = vmatpush1.msra.mxu0 0.0
    %7721 = vmatprep.subr.mxu0 0.0
    %7722 = vmatpush1.msra.mxu0 0.0
    %7723 = vmatprep.subr.mxu0 0.0
    %7724 = vmatpush1.msra.mxu0 0.0
    %7725 = vmatprep.subr.mxu0 0.0
    %7726 = vmatpush1.msra.mxu0 0.0
    %7727 = vmatprep.subr.mxu0 0.0
    %7728 = vmatpush1.msra.mxu0 0.0
    %7729 = vmatprep.subr.mxu0 0.0
    %7730 = vmatpush1.msra.mxu0 0.0
    %7731 = vmatprep.subr.mxu0 0.0
    %7732 = vmatpush1.msra.mxu0 0.0
    %7733 = vmatprep.subr.mxu0 0.0
    %7734 = vmatpush1.msra.mxu0 0.0
    %7735 = vmatprep.subr.mxu0 0.0
    %7736 = vmatpush1.msra.mxu0 0.0
    %7737 = vmatprep.subr.mxu0 0.0
    %7738 = vmatpush1.msra.mxu0 0.0
    %7739 = vmatprep.subr.mxu0 0.0
    %7740 = vmatpush1.msra.mxu0 0.0
    %7741 = vmatprep.subr.mxu0 0.0
    %7742 = vmatpush1.msra.mxu0 0.0
    %7743 = vmatprep.subr.mxu0 0.0
    %7744 = vmatpush1.msra.mxu0 0.0
    %7745 = vmatprep.mubr.f32.mxu0 0.0
    %7746 = vmatmul.mubr.f32.gmra.mrb[0].mxu0 %v7649
    %v7747 = vpop.f32.mrb[0].mxu0
    %v7748 = vadd.f32 0.0, %v7747
    %v7749 = vpop.f32.mrb[0].mxu0
    %7750 = vmatprep.mubr.f32.mxu0 0.0
    %7751 = vmatmul.mubr.f32.gmra.mrb[0].mxu0 %v7650
    %v7752 = vpop.f32.mrb[0].mxu0
    %v7753 = vadd.f32 0.0, %v7752
    %v7754 = vpop.f32.mrb[0].mxu0
    %7755 = vmatprep.mubr.f32.mxu0 0.0
    %7756 = vmatmul.mubr.f32.gmra.mrb[0].mxu0 %v7651
    %v7757 = vpop.f32.mrb[0].mxu0
    %v7758 = vadd.f32 0.0, %v7757
    %v7759 = vpop.f32.mrb[0].mxu0
    %7760 = vmatprep.mubr.f32.mxu0 0.0
    %7761 = vmatmul.mubr.f32.gmra.mrb[0].mxu0 %v7652
    %v7762 = vpop.f32.mrb[0].mxu0
    %v7763 = vadd.f32 0.0, %v7762
    %v7764 = vpop.f32.mrb[0].mxu0
    %7765 = vmatprep.mubr.f32.mxu0 0.0
    %7766 = vmatmul.mubr.f32.gmra.mrb[0].mxu0 %v7653
    %v7767 = vpop.f32.mrb[0].mxu0
    %v7768 = vadd.f32 0.0, %v7767
    %v7769 = vpop.f32.mrb[0].mxu0
    %7770 = vmatprep.mubr.f32.mxu0 0.0
    %7771 = vmatmul.mubr.f32.gmra.mrb[0].mxu0 %v7654
    %v7772 = vpop.f32.mrb[0].mxu0
    %v7773 = vadd.f32 0.0, %v7772
    %v7774 = vpop.f32.mrb[0].mxu0
    %7775 = vmatprep.mubr.f32.mxu0 0.0
    %7776 = vmatmul.mubr.f32.gmra.mrb[0].mxu0 %v7655
    %v7777 = vpop.f32.mrb[0].mxu0
    %v7778 = vadd.f32 0.0, %v7777
    %v7779 = vpop.f32.mrb[0].mxu0
    %7780 = vmatprep.mubr.f32.mxu0 0.0
    %7781 = vmatmul.mubr.f32.gmra.mrb[0].mxu0 %v7656
    %v7782 = vpop.f32.mrb[0].mxu0
    %v7783 = vadd.f32 0.0, %v7782
    %v7784 = vpop.f32.mrb[0].mxu0
    %7785 = vmatprep.mubr.f32.mxu0 0.0
    %7786 = vmatmul.mubr.f32.gmra.mrb[0].mxu0 %v7657
    %v7787 = vpop.f32.mrb[0].mxu0
    %v7788 = vadd.f32 0.0, %v7787
    %v7789 = vpop.f32.mrb[0].mxu0
    %7790 = vmatprep.mubr.f32.mxu0 0.0
    %7791 = vmatmul.mubr.f32.gmra.mrb[0].mxu0 %v7658
    %v7792 = vpop.f32.mrb[0].mxu0
    %v7793 = vadd.f32 0.0, %v7792
    %v7794 = vpop.f32.mrb[0].mxu0
    %7795 = vmatprep.mubr.f32.mxu0 0.0
    %7796 = vmatmul.mubr.f32.gmra.mrb[0].mxu0 %v7659
    %v7797 = vpop.f32.mrb[0].mxu0
    %v7798 = vadd.f32 0.0, %v7797
    %v7799 = vpop.f32.mrb[0].mxu0
    %7800 = vmatprep.mubr.f32.mxu0 0.0
    %7801 = vmatmul.mubr.f32.gmra.mrb[0].mxu0 %v7660
    %v7802 = vpop.f32.mrb[0].mxu0
    %v7803 = vadd.f32 0.0, %v7802
    %v7804 = vpop.f32.mrb[0].mxu0
    %7805 = vmatprep.mubr.f32.mxu0 0.0
    %7806 = vmatmul.mubr.f32.gmra.mrb[0].mxu0 %v7661
    %v7807 = vpop.f32.mrb[0].mxu0
    %v7808 = vadd.f32 0.0, %v7807
    %v7809 = vpop.f32.mrb[0].mxu0
    %7810 = vmatprep.mubr.f32.mxu0 0.0
    %7811 = vmatmul.mubr.f32.gmra.mrb[0].mxu0 %v7662
    %v7812 = vpop.f32.mrb[0].mxu0
    %v7813 = vadd.f32 0.0, %v7812
    %v7814 = vpop.f32.mrb[0].mxu0
    %7815 = vmatprep.mubr.f32.mxu0 0.0
    %7816 = vmatmul.mubr.f32.gmra.mrb[0].mxu0 %v7663
    %v7817 = vpop.f32.mrb[0].mxu0
    %v7818 = vadd.f32 0.0, %v7817
    %v7819 = vpop.f32.mrb[0].mxu0
    %7820 = vmatprep.mubr.f32.mxu0 0.0
    %7821 = vmatmul.mubr.f32.gmra.mrb[0].mxu0 %v7664
    %v7822 = vpop.f32.mrb[0].mxu0
    %v7823 = vadd.f32 0.0, %v7822
    %v7824 = vpop.f32.mrb[0].mxu0
    %7825 = vdwg.mxu0
    %v7826 = vmul.f32 %v7748, %v7748
    %v7827 = vmul.f32 %v7753, %v7753
    %v7828 = vmul.f32 %v7758, %v7758
    %v7829 = vmul.f32 %v7763, %v7763
    %v7830 = vmul.f32 %v7768, %v7768
    %v7831 = vmul.f32 %v7773, %v7773
    %v7832 = vmul.f32 %v7778, %v7778
    %v7833 = vmul.f32 %v7783, %v7783
    %v7834 = vmul.f32 %v7788, %v7788
    %v7835 = vmul.f32 %v7793, %v7793
    %v7836 = vmul.f32 %v7798, %v7798
    %v7837 = vmul.f32 %v7803, %v7803
    %v7838 = vmul.f32 %v7808, %v7808
    %v7839 = vmul.f32 %v7813, %v7813
    %v7840 = vmul.f32 %v7818, %v7818
    %v7841 = vmul.f32 %v7823, %v7823
    %v7843 = vsel %vm642, %v7826, 0
    %v7846 = vsel %vm642, %v7827, 0
    %v7849 = vsel %vm642, %v7828, 0
    %v7852 = vsel %vm642, %v7829, 0
    %v7855 = vsel %vm642, %v7830, 0
    %v7858 = vsel %vm642, %v7831, 0
    %v7861 = vsel %vm642, %v7832, 0
    %v7864 = vsel %vm642, %v7833, 0
    %v7867 = vsel %vm642, %v7834, 0
    %v7870 = vsel %vm642, %v7835, 0
    %v7873 = vsel %vm642, %v7836, 0
    %v7876 = vsel %vm642, %v7837, 0
    %v7879 = vsel %vm642, %v7838, 0
    %v7882 = vsel %vm642, %v7839, 0
    %v7885 = vsel %vm642, %v7840, 0
    %v7888 = vsel %vm642, %v7841, 0
    %7890 = vmatprep.subr.mxu0 0.0
    %7891 = vmatpush1.msra.mxu0 1.0
    %7892 = vmatprep.subr.mxu0 0.0
    %7893 = vmatpush1.msra.mxu0 1.0
    %7894 = vmatprep.subr.mxu0 0.0
    %7895 = vmatpush1.msra.mxu0 1.0
    %7896 = vmatprep.subr.mxu0 0.0
    %7897 = vmatpush1.msra.mxu0 1.0
    %7898 = vmatprep.subr.mxu0 0.0
    %7899 = vmatpush1.msra.mxu0 0.0
    %7900 = vmatprep.subr.mxu0 0.0
    %7901 = vmatpush1.msra.mxu0 0.0
    %7902 = vmatprep.subr.mxu0 0.0
    %7903 = vmatpush1.msra.mxu0 0.0
    %7904 = vmatprep.subr.mxu0 0.0
    %7905 = vmatpush1.msra.mxu0 0.0
    %7906 = vmatprep.subr.mxu0 0.0
    %7907 = vmatpush1.msra.mxu0 0.0
    %7908 = vmatprep.subr.mxu0 0.0
    %7909 = vmatpush1.msra.mxu0 0.0
    %7910 = vmatprep.subr.mxu0 0.0
    %7911 = vmatpush1.msra.mxu0 0.0
    %7912 = vmatprep.subr.mxu0 0.0
    %7913 = vmatpush1.msra.mxu0 0.0
    %7914 = vmatprep.subr.mxu0 0.0
    %7915 = vmatpush1.msra.mxu0 0.0
    %7916 = vmatprep.subr.mxu0 0.0
    %7917 = vmatpush1.msra.mxu0 0.0
    %7918 = vmatprep.subr.mxu0 0.0
    %7919 = vmatpush1.msra.mxu0 0.0
    %7920 = vmatprep.subr.mxu0 0.0
    %7921 = vmatpush1.msra.mxu0 0.0
    %7922 = vmatprep.subr.mxu0 0.0
    %7923 = vmatpush1.msra.mxu0 0.0
    %7924 = vmatprep.subr.mxu0 0.0
    %7925 = vmatpush1.msra.mxu0 0.0
    %7926 = vmatprep.subr.mxu0 0.0
    %7927 = vmatpush1.msra.mxu0 0.0
    %7928 = vmatprep.subr.mxu0 0.0
    %7929 = vmatpush1.msra.mxu0 0.0
    %7930 = vmatprep.subr.mxu0 0.0
    %7931 = vmatpush1.msra.mxu0 0.0
    %7932 = vmatprep.subr.mxu0 0.0
    %7933 = vmatpush1.msra.mxu0 0.0
    %7934 = vmatprep.subr.mxu0 0.0
    %7935 = vmatpush1.msra.mxu0 0.0
    %7936 = vmatprep.subr.mxu0 0.0
    %7937 = vmatpush1.msra.mxu0 0.0
    %7938 = vmatprep.subr.mxu0 0.0
    %7939 = vmatpush1.msra.mxu0 0.0
    %7940 = vmatprep.subr.mxu0 0.0
    %7941 = vmatpush1.msra.mxu0 0.0
    %7942 = vmatprep.subr.mxu0 0.0
    %7943 = vmatpush1.msra.mxu0 0.0
    %7944 = vmatprep.subr.mxu0 0.0
    %7945 = vmatpush1.msra.mxu0 0.0
    %7946 = vmatprep.subr.mxu0 0.0
    %7947 = vmatpush1.msra.mxu0 0.0
    %7948 = vmatprep.subr.mxu0 0.0
    %7949 = vmatpush1.msra.mxu0 0.0
    %7950 = vmatprep.subr.mxu0 0.0
    %7951 = vmatpush1.msra.mxu0 0.0
    %7952 = vmatprep.subr.mxu0 0.0
    %7953 = vmatpush1.msra.mxu0 0.0
    %7954 = vmatprep.mubr.f32.mxu0 0.0
    %7955 = vmatmul.mubr.f32.gmra.mrb[0].mxu0 %v7843
    %v7956 = vpop.f32.mrb[0].mxu0
    %v7957 = vadd.f32 1e-08, %v7956
    %v7958 = vpop.f32.mrb[0].mxu0
    %7959 = vmatprep.mubr.f32.mxu0 0.0
    %7960 = vmatmul.mubr.f32.gmra.mrb[0].mxu0 %v7846
    %v7961 = vpop.f32.mrb[0].mxu0
    %v7962 = vadd.f32 1e-08, %v7961
    %v7963 = vpop.f32.mrb[0].mxu0
    %7964 = vmatprep.mubr.f32.mxu0 0.0
    %7965 = vmatmul.mubr.f32.gmra.mrb[0].mxu0 %v7849
    %v7966 = vpop.f32.mrb[0].mxu0
    %v7967 = vadd.f32 1e-08, %v7966
    %v7968 = vpop.f32.mrb[0].mxu0
    %7969 = vmatprep.mubr.f32.mxu0 0.0
    %7970 = vmatmul.mubr.f32.gmra.mrb[0].mxu0 %v7852
    %v7971 = vpop.f32.mrb[0].mxu0
    %v7972 = vadd.f32 1e-08, %v7971
    %v7973 = vpop.f32.mrb[0].mxu0
    %7974 = vmatprep.mubr.f32.mxu0 0.0
    %7975 = vmatmul.mubr.f32.gmra.mrb[0].mxu0 %v7855
    %v7976 = vpop.f32.mrb[0].mxu0
    %v7977 = vadd.f32 1e-08, %v7976
    %v7978 = vpop.f32.mrb[0].mxu0
    %7979 = vmatprep.mubr.f32.mxu0 0.0
    %7980 = vmatmul.mubr.f32.gmra.mrb[0].mxu0 %v7858
    %v7981 = vpop.f32.mrb[0].mxu0
    %v7982 = vadd.f32 1e-08, %v7981
    %v7983 = vpop.f32.mrb[0].mxu0
    %7984 = vmatprep.mubr.f32.mxu0 0.0
    %7985 = vmatmul.mubr.f32.gmra.mrb[0].mxu0 %v7861
    %v7986 = vpop.f32.mrb[0].mxu0
    %v7987 = vadd.f32 1e-08, %v7986
    %v7988 = vpop.f32.mrb[0].mxu0
    %7989 = vmatprep.mubr.f32.mxu0 0.0
    %7990 = vmatmul.mubr.f32.gmra.mrb[0].mxu0 %v7864
    %v7991 = vpop.f32.mrb[0].mxu0
    %v7992 = vadd.f32 1e-08, %v7991
    %v7993 = vpop.f32.mrb[0].mxu0
    %7994 = vmatprep.mubr.f32.mxu0 0.0
    %7995 = vmatmul.mubr.f32.gmra.mrb[0].mxu0 %v7867
    %v7996 = vpop.f32.mrb[0].mxu0
    %v7997 = vadd.f32 1e-08, %v7996
    %v7998 = vpop.f32.mrb[0].mxu0
    %7999 = vmatprep.mubr.f32.mxu0 0.0
    %8000 = vmatmul.mubr.f32.gmra.mrb[0].mxu0 %v7870
    %v8001 = vpop.f32.mrb[0].mxu0
    %v8002 = vadd.f32 1e-08, %v8001
    %v8003 = vpop.f32.mrb[0].mxu0
    %8004 = vmatprep.mubr.f32.mxu0 0.0
    %8005 = vmatmul.mubr.f32.gmra.mrb[0].mxu0 %v7873
    %v8006 = vpop.f32.mrb[0].mxu0
    %v8007 = vadd.f32 1e-08, %v8006
    %v8008 = vpop.f32.mrb[0].mxu0
    %8009 = vmatprep.mubr.f32.mxu0 0.0
    %8010 = vmatmul.mubr.f32.gmra.mrb[0].mxu0 %v7876
    %v8011 = vpop.f32.mrb[0].mxu0
    %v8012 = vadd.f32 1e-08, %v8011
    %v8013 = vpop.f32.mrb[0].mxu0
    %8014 = vmatprep.mubr.f32.mxu0 0.0
    %8015 = vmatmul.mubr.f32.gmra.mrb[0].mxu0 %v7879
    %v8016 = vpop.f32.mrb[0].mxu0
    %v8017 = vadd.f32 1e-08, %v8016
    %v8018 = vpop.f32.mrb[0].mxu0
    %8019 = vmatprep.mubr.f32.mxu0 0.0
    %8020 = vmatmul.mubr.f32.gmra.mrb[0].mxu0 %v7882
    %v8021 = vpop.f32.mrb[0].mxu0
    %v8022 = vadd.f32 1e-08, %v8021
    %v8023 = vpop.f32.mrb[0].mxu0
    %8024 = vmatprep.mubr.f32.mxu0 0.0
    %8025 = vmatmul.mubr.f32.gmra.mrb[0].mxu0 %v7885
    %v8026 = vpop.f32.mrb[0].mxu0
    %v8027 = vadd.f32 1e-08, %v8026
    %v8028 = vpop.f32.mrb[0].mxu0
    %8029 = vmatprep.mubr.f32.mxu0 0.0
    %8030 = vmatmul.mubr.f32.gmra.mrb[0].mxu0 %v7888
    %v8031 = vpop.f32.mrb[0].mxu0
    %v8032 = vadd.f32 1e-08, %v8031
    %v8033 = vpop.f32.mrb[0].mxu0
    %8034 = vdwg.mxu0
    %v8035 = vrsqrt.pop %v7957
    %v8036 = vrsqrt.pop %v7962
    %v8037 = vrsqrt.pop %v7967
    %v8038 = vrsqrt.pop %v7972
    %v8039 = vrsqrt.pop %v7977
    %v8040 = vrsqrt.pop %v7982
    %v8041 = vrsqrt.pop %v7987
    %v8042 = vrsqrt.pop %v7992
    %v8043 = vrsqrt.pop %v7997
    %v8044 = vrsqrt.pop %v8002
    %v8045 = vrsqrt.pop %v8007
    %v8046 = vrsqrt.pop %v8012
    %v8047 = vrsqrt.pop %v8017
    %v8048 = vrsqrt.pop %v8022
    %v8049 = vrsqrt.pop %v8027
    %v8050 = vrsqrt.pop %v8032
    %8052 = vset.pattern.permute.xlu0 0
    %8053 = vperm.xlu0 %8052, %v8035
    %v8054 = vpop.permute.xlu0 %8053
    %8057 = vset.pattern.permute.xlu0 0
    %8058 = vperm.xlu0 %8057, %v8036
    %v8059 = vpop.permute.xlu0 %8058
    %8062 = vset.pattern.permute.xlu0 0
    %8063 = vperm.xlu0 %8062, %v8037
    %v8064 = vpop.permute.xlu0 %8063
    %8067 = vset.pattern.permute.xlu0 0
    %8068 = vperm.xlu0 %8067, %v8038
    %v8069 = vpop.permute.xlu0 %8068
    %8072 = vset.pattern.permute.xlu0 0
    %8073 = vperm.xlu0 %8072, %v8039
    %v8074 = vpop.permute.xlu0 %8073
    %8077 = vset.pattern.permute.xlu0 0
    %8078 = vperm.xlu0 %8077, %v8040
    %v8079 = vpop.permute.xlu0 %8078
    %8082 = vset.pattern.permute.xlu0 0
    %8083 = vperm.xlu0 %8082, %v8041
    %v8084 = vpop.permute.xlu0 %8083
    %8087 = vset.pattern.permute.xlu0 0
    %8088 = vperm.xlu0 %8087, %v8042
    %v8089 = vpop.permute.xlu0 %8088
    %8092 = vset.pattern.permute.xlu0 0
    %8093 = vperm.xlu0 %8092, %v8043
    %v8094 = vpop.permute.xlu0 %8093
    %8097 = vset.pattern.permute.xlu0 0
    %8098 = vperm.xlu0 %8097, %v8044
    %v8099 = vpop.permute.xlu0 %8098
    %8102 = vset.pattern.permute.xlu0 0
    %8103 = vperm.xlu0 %8102, %v8045
    %v8104 = vpop.permute.xlu0 %8103
    %8107 = vset.pattern.permute.xlu0 0
    %8108 = vperm.xlu0 %8107, %v8046
    %v8109 = vpop.permute.xlu0 %8108
    %8112 = vset.pattern.permute.xlu0 0
    %8113 = vperm.xlu0 %8112, %v8047
    %v8114 = vpop.permute.xlu0 %8113
    %8117 = vset.pattern.permute.xlu0 0
    %8118 = vperm.xlu0 %8117, %v8048
    %v8119 = vpop.permute.xlu0 %8118
    %8122 = vset.pattern.permute.xlu0 0
    %8123 = vperm.xlu0 %8122, %v8049
    %v8124 = vpop.permute.xlu0 %8123
    %8127 = vset.pattern.permute.xlu0 0
    %8128 = vperm.xlu0 %8127, %v8050
    %v8129 = vpop.permute.xlu0 %8128
    %v8131 = vmul.f32 %v7748, %v8054
    %v8132 = vmul.f32 %v7753, %v8059
    %v8133 = vmul.f32 %v7758, %v8064
    %v8134 = vmul.f32 %v7763, %v8069
    %v8135 = vmul.f32 %v7768, %v8074
    %v8136 = vmul.f32 %v7773, %v8079
    %v8137 = vmul.f32 %v7778, %v8084
    %v8138 = vmul.f32 %v7783, %v8089
    %v8139 = vmul.f32 %v7788, %v8094
    %v8140 = vmul.f32 %v7793, %v8099
    %v8141 = vmul.f32 %v7798, %v8104
    %v8142 = vmul.f32 %v7803, %v8109
    %v8143 = vmul.f32 %v7808, %v8114
    %v8144 = vmul.f32 %v7813, %v8119
    %v8145 = vmul.f32 %v7818, %v8124
    %v8146 = vmul.f32 %v7823, %v8129
    %v8147 = vsub.f32 %v8131, %v7436
    %v8148 = vsub.f32 %v8132, %v7437
    %v8149 = vsub.f32 %v8133, %v7438
    %v8150 = vsub.f32 %v8134, %v7439
    %v8151 = vsub.f32 %v8135, %v7440
    %v8152 = vsub.f32 %v8136, %v7441
    %v8153 = vsub.f32 %v8137, %v7442
    %v8154 = vsub.f32 %v8138, %v7443
    %v8155 = vsub.f32 %v8139, %v7444
    %v8156 = vsub.f32 %v8140, %v7445
    %v8157 = vsub.f32 %v8141, %v7446
    %v8158 = vsub.f32 %v8142, %v7447
    %v8159 = vsub.f32 %v8143, %v7448
    %v8160 = vsub.f32 %v8144, %v7449
    %v8161 = vsub.f32 %v8145, %v7450
    %v8162 = vsub.f32 %v8146, %v7451
    %v8163 = vmul.f32 %v1662, %v8147
    %v8164 = vmul.f32 %v1662, %v8148
    %v8165 = vmul.f32 %v1662, %v8149
    %v8166 = vmul.f32 %v1662, %v8150
    %v8167 = vmul.f32 %v1662, %v8151
    %v8168 = vmul.f32 %v1662, %v8152
    %v8169 = vmul.f32 %v1662, %v8153
    %v8170 = vmul.f32 %v1662, %v8154
    %v8171 = vmul.f32 %v1662, %v8155
    %v8172 = vmul.f32 %v1662, %v8156
    %v8173 = vmul.f32 %v1662, %v8157
    %v8174 = vmul.f32 %v1662, %v8158
    %v8175 = vmul.f32 %v1662, %v8159
    %v8176 = vmul.f32 %v1662, %v8160
    %v8177 = vmul.f32 %v1662, %v8161
    %v8178 = vmul.f32 %v1662, %v8162
    %v8179 = vadd.f32 %v7436, %v8163
    %v8180 = vadd.f32 %v7437, %v8164
    %v8181 = vadd.f32 %v7438, %v8165
    %v8182 = vadd.f32 %v7439, %v8166
    %v8183 = vadd.f32 %v7440, %v8167
    %v8184 = vadd.f32 %v7441, %v8168
    %v8185 = vadd.f32 %v7442, %v8169
    %v8186 = vadd.f32 %v7443, %v8170
    %v8187 = vadd.f32 %v7444, %v8171
    %v8188 = vadd.f32 %v7445, %v8172
    %v8189 = vadd.f32 %v7446, %v8173
    %v8190 = vadd.f32 %v7447, %v8174
    %v8191 = vadd.f32 %v7448, %v8175
    %v8192 = vadd.f32 %v7449, %v8176
    %v8193 = vadd.f32 %v7450, %v8177
    %v8194 = vadd.f32 %v7451, %v8178
    %v8195 = vmul.f32 %v8179, %v8179
    %v8196 = vmul.f32 %v8180, %v8180
    %v8197 = vmul.f32 %v8181, %v8181
    %v8198 = vmul.f32 %v8182, %v8182
    %v8199 = vmul.f32 %v8183, %v8183
    %v8200 = vmul.f32 %v8184, %v8184
    %v8201 = vmul.f32 %v8185, %v8185
    %v8202 = vmul.f32 %v8186, %v8186
    %v8203 = vmul.f32 %v8187, %v8187
    %v8204 = vmul.f32 %v8188, %v8188
    %v8205 = vmul.f32 %v8189, %v8189
    %v8206 = vmul.f32 %v8190, %v8190
    %v8207 = vmul.f32 %v8191, %v8191
    %v8208 = vmul.f32 %v8192, %v8192
    %v8209 = vmul.f32 %v8193, %v8193
    %v8210 = vmul.f32 %v8194, %v8194
    %v8212 = vsel %vm642, %v8195, 0
    %v8215 = vsel %vm642, %v8196, 0
    %v8218 = vsel %vm642, %v8197, 0
    %v8221 = vsel %vm642, %v8198, 0
    %v8224 = vsel %vm642, %v8199, 0
    %v8227 = vsel %vm642, %v8200, 0
    %v8230 = vsel %vm642, %v8201, 0
    %v8233 = vsel %vm642, %v8202, 0
    %v8236 = vsel %vm642, %v8203, 0
    %v8239 = vsel %vm642, %v8204, 0
    %v8242 = vsel %vm642, %v8205, 0
    %v8245 = vsel %vm642, %v8206, 0
    %v8248 = vsel %vm642, %v8207, 0
    %v8251 = vsel %vm642, %v8208, 0
    %v8254 = vsel %vm642, %v8209, 0
    %v8257 = vsel %vm642, %v8210, 0
    %8259 = vmatprep.subr.mxu0 0.0
    %8260 = vmatpush1.msra.mxu0 1.0
    %8261 = vmatprep.subr.mxu0 0.0
    %8262 = vmatpush1.msra.mxu0 1.0
    %8263 = vmatprep.subr.mxu0 0.0
    %8264 = vmatpush1.msra.mxu0 1.0
    %8265 = vmatprep.subr.mxu0 0.0
    %8266 = vmatpush1.msra.mxu0 1.0
    %8267 = vmatprep.subr.mxu0 0.0
    %8268 = vmatpush1.msra.mxu0 0.0
    %8269 = vmatprep.subr.mxu0 0.0
    %8270 = vmatpush1.msra.mxu0 0.0
    %8271 = vmatprep.subr.mxu0 0.0
    %8272 = vmatpush1.msra.mxu0 0.0
    %8273 = vmatprep.subr.mxu0 0.0
    %8274 = vmatpush1.msra.mxu0 0.0
    %8275 = vmatprep.subr.mxu0 0.0
    %8276 = vmatpush1.msra.mxu0 0.0
    %8277 = vmatprep.subr.mxu0 0.0
    %8278 = vmatpush1.msra.mxu0 0.0
    %8279 = vmatprep.subr.mxu0 0.0
    %8280 = vmatpush1.msra.mxu0 0.0
    %8281 = vmatprep.subr.mxu0 0.0
    %8282 = vmatpush1.msra.mxu0 0.0
    %8283 = vmatprep.subr.mxu0 0.0
    %8284 = vmatpush1.msra.mxu0 0.0
    %8285 = vmatprep.subr.mxu0 0.0
    %8286 = vmatpush1.msra.mxu0 0.0
    %8287 = vmatprep.subr.mxu0 0.0
    %8288 = vmatpush1.msra.mxu0 0.0
    %8289 = vmatprep.subr.mxu0 0.0
    %8290 = vmatpush1.msra.mxu0 0.0
    %8291 = vmatprep.subr.mxu0 0.0
    %8292 = vmatpush1.msra.mxu0 0.0
    %8293 = vmatprep.subr.mxu0 0.0
    %8294 = vmatpush1.msra.mxu0 0.0
    %8295 = vmatprep.subr.mxu0 0.0
    %8296 = vmatpush1.msra.mxu0 0.0
    %8297 = vmatprep.subr.mxu0 0.0
    %8298 = vmatpush1.msra.mxu0 0.0
    %8299 = vmatprep.subr.mxu0 0.0
    %8300 = vmatpush1.msra.mxu0 0.0
    %8301 = vmatprep.subr.mxu0 0.0
    %8302 = vmatpush1.msra.mxu0 0.0
    %8303 = vmatprep.subr.mxu0 0.0
    %8304 = vmatpush1.msra.mxu0 0.0
    %8305 = vmatprep.subr.mxu0 0.0
    %8306 = vmatpush1.msra.mxu0 0.0
    %8307 = vmatprep.subr.mxu0 0.0
    %8308 = vmatpush1.msra.mxu0 0.0
    %8309 = vmatprep.subr.mxu0 0.0
    %8310 = vmatpush1.msra.mxu0 0.0
    %8311 = vmatprep.subr.mxu0 0.0
    %8312 = vmatpush1.msra.mxu0 0.0
    %8313 = vmatprep.subr.mxu0 0.0
    %8314 = vmatpush1.msra.mxu0 0.0
    %8315 = vmatprep.subr.mxu0 0.0
    %8316 = vmatpush1.msra.mxu0 0.0
    %8317 = vmatprep.subr.mxu0 0.0
    %8318 = vmatpush1.msra.mxu0 0.0
    %8319 = vmatprep.subr.mxu0 0.0
    %8320 = vmatpush1.msra.mxu0 0.0
    %8321 = vmatprep.subr.mxu0 0.0
    %8322 = vmatpush1.msra.mxu0 0.0
    %8323 = vmatprep.mubr.f32.mxu0 0.0
    %8324 = vmatmul.mubr.f32.gmra.mrb[0].mxu0 %v8212
    %v8325 = vpop.f32.mrb[0].mxu0
    %v8326 = vadd.f32 1e-08, %v8325
    %v8327 = vpop.f32.mrb[0].mxu0
    %8328 = vmatprep.mubr.f32.mxu0 0.0
    %8329 = vmatmul.mubr.f32.gmra.mrb[0].mxu0 %v8215
    %v8330 = vpop.f32.mrb[0].mxu0
    %v8331 = vadd.f32 1e-08, %v8330
    %v8332 = vpop.f32.mrb[0].mxu0
    %8333 = vmatprep.mubr.f32.mxu0 0.0
    %8334 = vmatmul.mubr.f32.gmra.mrb[0].mxu0 %v8218
    %v8335 = vpop.f32.mrb[0].mxu0
    %v8336 = vadd.f32 1e-08, %v8335
    %v8337 = vpop.f32.mrb[0].mxu0
    %8338 = vmatprep.mubr.f32.mxu0 0.0
    %8339 = vmatmul.mubr.f32.gmra.mrb[0].mxu0 %v8221
    %v8340 = vpop.f32.mrb[0].mxu0
    %v8341 = vadd.f32 1e-08, %v8340
    %v8342 = vpop.f32.mrb[0].mxu0
    %8343 = vmatprep.mubr.f32.mxu0 0.0
    %8344 = vmatmul.mubr.f32.gmra.mrb[0].mxu0 %v8224
    %v8345 = vpop.f32.mrb[0].mxu0
    %v8346 = vadd.f32 1e-08, %v8345
    %v8347 = vpop.f32.mrb[0].mxu0
    %8348 = vmatprep.mubr.f32.mxu0 0.0
    %8349 = vmatmul.mubr.f32.gmra.mrb[0].mxu0 %v8227
    %v8350 = vpop.f32.mrb[0].mxu0
    %v8351 = vadd.f32 1e-08, %v8350
    %v8352 = vpop.f32.mrb[0].mxu0
    %8353 = vmatprep.mubr.f32.mxu0 0.0
    %8354 = vmatmul.mubr.f32.gmra.mrb[0].mxu0 %v8230
    %v8355 = vpop.f32.mrb[0].mxu0
    %v8356 = vadd.f32 1e-08, %v8355
    %v8357 = vpop.f32.mrb[0].mxu0
    %8358 = vmatprep.mubr.f32.mxu0 0.0
    %8359 = vmatmul.mubr.f32.gmra.mrb[0].mxu0 %v8233
    %v8360 = vpop.f32.mrb[0].mxu0
    %v8361 = vadd.f32 1e-08, %v8360
    %v8362 = vpop.f32.mrb[0].mxu0
    %8363 = vmatprep.mubr.f32.mxu0 0.0
    %8364 = vmatmul.mubr.f32.gmra.mrb[0].mxu0 %v8236
    %v8365 = vpop.f32.mrb[0].mxu0
    %v8366 = vadd.f32 1e-08, %v8365
    %v8367 = vpop.f32.mrb[0].mxu0
    %8368 = vmatprep.mubr.f32.mxu0 0.0
    %8369 = vmatmul.mubr.f32.gmra.mrb[0].mxu0 %v8239
    %v8370 = vpop.f32.mrb[0].mxu0
    %v8371 = vadd.f32 1e-08, %v8370
    %v8372 = vpop.f32.mrb[0].mxu0
    %8373 = vmatprep.mubr.f32.mxu0 0.0
    %8374 = vmatmul.mubr.f32.gmra.mrb[0].mxu0 %v8242
    %v8375 = vpop.f32.mrb[0].mxu0
    %v8376 = vadd.f32 1e-08, %v8375
    %v8377 = vpop.f32.mrb[0].mxu0
    %8378 = vmatprep.mubr.f32.mxu0 0.0
    %8379 = vmatmul.mubr.f32.gmra.mrb[0].mxu0 %v8245
    %v8380 = vpop.f32.mrb[0].mxu0
    %v8381 = vadd.f32 1e-08, %v8380
    %v8382 = vpop.f32.mrb[0].mxu0
    %8383 = vmatprep.mubr.f32.mxu0 0.0
    %8384 = vmatmul.mubr.f32.gmra.mrb[0].mxu0 %v8248
    %v8385 = vpop.f32.mrb[0].mxu0
    %v8386 = vadd.f32 1e-08, %v8385
    %v8387 = vpop.f32.mrb[0].mxu0
    %8388 = vmatprep.mubr.f32.mxu0 0.0
    %8389 = vmatmul.mubr.f32.gmra.mrb[0].mxu0 %v8251
    %v8390 = vpop.f32.mrb[0].mxu0
    %v8391 = vadd.f32 1e-08, %v8390
    %v8392 = vpop.f32.mrb[0].mxu0
    %8393 = vmatprep.mubr.f32.mxu0 0.0
    %8394 = vmatmul.mubr.f32.gmra.mrb[0].mxu0 %v8254
    %v8395 = vpop.f32.mrb[0].mxu0
    %v8396 = vadd.f32 1e-08, %v8395
    %v8397 = vpop.f32.mrb[0].mxu0
    %8398 = vmatprep.mubr.f32.mxu0 0.0
    %8399 = vmatmul.mubr.f32.gmra.mrb[0].mxu0 %v8257
    %v8400 = vpop.f32.mrb[0].mxu0
    %v8401 = vadd.f32 1e-08, %v8400
    %v8402 = vpop.f32.mrb[0].mxu0
    %8403 = vdwg.mxu0
    %v8404 = vrsqrt.pop %v8326
    %v8405 = vrsqrt.pop %v8331
    %v8406 = vrsqrt.pop %v8336
    %v8407 = vrsqrt.pop %v8341
    %v8408 = vrsqrt.pop %v8346
    %v8409 = vrsqrt.pop %v8351
    %v8410 = vrsqrt.pop %v8356
    %v8411 = vrsqrt.pop %v8361
    %v8412 = vrsqrt.pop %v8366
    %v8413 = vrsqrt.pop %v8371
    %v8414 = vrsqrt.pop %v8376
    %v8415 = vrsqrt.pop %v8381
    %v8416 = vrsqrt.pop %v8386
    %v8417 = vrsqrt.pop %v8391
    %v8418 = vrsqrt.pop %v8396
    %v8419 = vrsqrt.pop %v8401
    %8421 = vset.pattern.permute.xlu0 0
    %8422 = vperm.xlu0 %8421, %v8404
    %v8423 = vpop.permute.xlu0 %8422
    %8426 = vset.pattern.permute.xlu0 0
    %8427 = vperm.xlu0 %8426, %v8405
    %v8428 = vpop.permute.xlu0 %8427
    %8431 = vset.pattern.permute.xlu0 0
    %8432 = vperm.xlu0 %8431, %v8406
    %v8433 = vpop.permute.xlu0 %8432
    %8436 = vset.pattern.permute.xlu0 0
    %8437 = vperm.xlu0 %8436, %v8407
    %v8438 = vpop.permute.xlu0 %8437
    %8441 = vset.pattern.permute.xlu0 0
    %8442 = vperm.xlu0 %8441, %v8408
    %v8443 = vpop.permute.xlu0 %8442
    %8446 = vset.pattern.permute.xlu0 0
    %8447 = vperm.xlu0 %8446, %v8409
    %v8448 = vpop.permute.xlu0 %8447
    %8451 = vset.pattern.permute.xlu0 0
    %8452 = vperm.xlu0 %8451, %v8410
    %v8453 = vpop.permute.xlu0 %8452
    %8456 = vset.pattern.permute.xlu0 0
    %8457 = vperm.xlu0 %8456, %v8411
    %v8458 = vpop.permute.xlu0 %8457
    %8461 = vset.pattern.permute.xlu0 0
    %8462 = vperm.xlu0 %8461, %v8412
    %v8463 = vpop.permute.xlu0 %8462
    %8466 = vset.pattern.permute.xlu0 0
    %8467 = vperm.xlu0 %8466, %v8413
    %v8468 = vpop.permute.xlu0 %8467
    %8471 = vset.pattern.permute.xlu0 0
    %8472 = vperm.xlu0 %8471, %v8414
    %v8473 = vpop.permute.xlu0 %8472
    %8476 = vset.pattern.permute.xlu0 0
    %8477 = vperm.xlu0 %8476, %v8415
    %v8478 = vpop.permute.xlu0 %8477
    %8481 = vset.pattern.permute.xlu0 0
    %8482 = vperm.xlu0 %8481, %v8416
    %v8483 = vpop.permute.xlu0 %8482
    %8486 = vset.pattern.permute.xlu0 0
    %8487 = vperm.xlu0 %8486, %v8417
    %v8488 = vpop.permute.xlu0 %8487
    %8491 = vset.pattern.permute.xlu0 0
    %8492 = vperm.xlu0 %8491, %v8418
    %v8493 = vpop.permute.xlu0 %8492
    %8496 = vset.pattern.permute.xlu0 0
    %8497 = vperm.xlu0 %8496, %v8419
    %v8498 = vpop.permute.xlu0 %8497
    %v8500 = vmul.f32 %v8179, %v8423
    %v8501 = vmul.f32 %v8180, %v8428
    %v8502 = vmul.f32 %v8181, %v8433
    %v8503 = vmul.f32 %v8182, %v8438
    %v8504 = vmul.f32 %v8183, %v8443
    %v8505 = vmul.f32 %v8184, %v8448
    %v8506 = vmul.f32 %v8185, %v8453
    %v8507 = vmul.f32 %v8186, %v8458
    %v8508 = vmul.f32 %v8187, %v8463
    %v8509 = vmul.f32 %v8188, %v8468
    %v8510 = vmul.f32 %v8189, %v8473
    %v8511 = vmul.f32 %v8190, %v8478
    %v8512 = vmul.f32 %v8191, %v8483
    %v8513 = vmul.f32 %v8192, %v8488
    %v8514 = vmul.f32 %v8193, %v8493
    %v8515 = vmul.f32 %v8194, %v8498
    %v8516 = vld [vmem:[%s2016] sm:$0xff]
    %v8517 = vld [vmem:[%s2016 + $0x8] sm:$0xff]
    %v8518 = vld [vmem:[%s2016 + $0x10] sm:$0xff]
    %v8519 = vld [vmem:[%s2016 + $0x18] sm:$0xff]
    %v8521 = vsel %vm642, %v8500, 0
    %v8524 = vsel %vm642, %v8501, 0
    %v8527 = vsel %vm642, %v8502, 0
    %v8530 = vsel %vm642, %v8503, 0
    %v8533 = vsel %vm642, %v8504, 0
    %v8536 = vsel %vm642, %v8505, 0
    %v8539 = vsel %vm642, %v8506, 0
    %v8542 = vsel %vm642, %v8507, 0
    %v8545 = vsel %vm642, %v8508, 0
    %v8548 = vsel %vm642, %v8509, 0
    %v8551 = vsel %vm642, %v8510, 0
    %v8554 = vsel %vm642, %v8511, 0
    %v8557 = vsel %vm642, %v8512, 0
    %v8560 = vsel %vm642, %v8513, 0
    %v8563 = vsel %vm642, %v8514, 0
    %v8566 = vsel %vm642, %v8515, 0
    %8568 = vmatprep.subr.mxu0 0.0
    %8569 = vmatpush1.msra.mxu0 %v8516
    %8570 = vmatprep.subr.mxu0 0.0
    %8571 = vmatpush1.msra.mxu0 %v8517
    %8572 = vmatprep.subr.mxu0 0.0
    %8573 = vmatpush1.msra.mxu0 %v8518
    %8574 = vmatprep.subr.mxu0 0.0
    %8575 = vmatpush1.msra.mxu0 %v8519
    %8576 = vmatprep.subr.mxu0 0.0
    %8577 = vmatpush1.msra.mxu0 0.0
    %8578 = vmatprep.subr.mxu0 0.0
    %8579 = vmatpush1.msra.mxu0 0.0
    %8580 = vmatprep.subr.mxu0 0.0
    %8581 = vmatpush1.msra.mxu0 0.0
    %8582 = vmatprep.subr.mxu0 0.0
    %8583 = vmatpush1.msra.mxu0 0.0
    %8584 = vmatprep.subr.mxu0 0.0
    %8585 = vmatpush1.msra.mxu0 0.0
    %8586 = vmatprep.subr.mxu0 0.0
    %8587 = vmatpush1.msra.mxu0 0.0
    %8588 = vmatprep.subr.mxu0 0.0
    %8589 = vmatpush1.msra.mxu0 0.0
    %8590 = vmatprep.subr.mxu0 0.0
    %8591 = vmatpush1.msra.mxu0 0.0
    %8592 = vmatprep.subr.mxu0 0.0
    %8593 = vmatpush1.msra.mxu0 0.0
    %8594 = vmatprep.subr.mxu0 0.0
    %8595 = vmatpush1.msra.mxu0 0.0
    %8596 = vmatprep.subr.mxu0 0.0
    %8597 = vmatpush1.msra.mxu0 0.0
    %8598 = vmatprep.subr.mxu0 0.0
    %8599 = vmatpush1.msra.mxu0 0.0
    %8600 = vmatprep.subr.mxu0 0.0
    %8601 = vmatpush1.msra.mxu0 0.0
    %8602 = vmatprep.subr.mxu0 0.0
    %8603 = vmatpush1.msra.mxu0 0.0
    %8604 = vmatprep.subr.mxu0 0.0
    %8605 = vmatpush1.msra.mxu0 0.0
    %8606 = vmatprep.subr.mxu0 0.0
    %8607 = vmatpush1.msra.mxu0 0.0
    %8608 = vmatprep.subr.mxu0 0.0
    %8609 = vmatpush1.msra.mxu0 0.0
    %8610 = vmatprep.subr.mxu0 0.0
    %8611 = vmatpush1.msra.mxu0 0.0
    %8612 = vmatprep.subr.mxu0 0.0
    %8613 = vmatpush1.msra.mxu0 0.0
    %8614 = vmatprep.subr.mxu0 0.0
    %8615 = vmatpush1.msra.mxu0 0.0
    %8616 = vmatprep.subr.mxu0 0.0
    %8617 = vmatpush1.msra.mxu0 0.0
    %8618 = vmatprep.subr.mxu0 0.0
    %8619 = vmatpush1.msra.mxu0 0.0
    %8620 = vmatprep.subr.mxu0 0.0
    %8621 = vmatpush1.msra.mxu0 0.0
    %8622 = vmatprep.subr.mxu0 0.0
    %8623 = vmatpush1.msra.mxu0 0.0
    %8624 = vmatprep.subr.mxu0 0.0
    %8625 = vmatpush1.msra.mxu0 0.0
    %8626 = vmatprep.subr.mxu0 0.0
    %8627 = vmatpush1.msra.mxu0 0.0
    %8628 = vmatprep.subr.mxu0 0.0
    %8629 = vmatpush1.msra.mxu0 0.0
    %8630 = vmatprep.subr.mxu0 0.0
    %8631 = vmatpush1.msra.mxu0 0.0
    %8632 = vmatprep.mubr.f32.mxu0 0.0
    %8633 = vmatmul.mubr.f32.gmra.mrb[0].mxu0 %v8521
    %v8634 = vpop.f32.mrb[0].mxu0
    %v8635 = vadd.f32 0.0, %v8634
    %v8636 = vpop.f32.mrb[0].mxu0
    %8637 = vmatprep.mubr.f32.mxu0 0.0
    %8638 = vmatmul.mubr.f32.gmra.mrb[0].mxu0 %v8524
    %v8639 = vpop.f32.mrb[0].mxu0
    %v8640 = vadd.f32 0.0, %v8639
    %v8641 = vpop.f32.mrb[0].mxu0
    %8642 = vmatprep.mubr.f32.mxu0 0.0
    %8643 = vmatmul.mubr.f32.gmra.mrb[0].mxu0 %v8527
    %v8644 = vpop.f32.mrb[0].mxu0
    %v8645 = vadd.f32 0.0, %v8644
    %v8646 = vpop.f32.mrb[0].mxu0
    %8647 = vmatprep.mubr.f32.mxu0 0.0
    %8648 = vmatmul.mubr.f32.gmra.mrb[0].mxu0 %v8530
    %v8649 = vpop.f32.mrb[0].mxu0
    %v8650 = vadd.f32 0.0, %v8649
    %v8651 = vpop.f32.mrb[0].mxu0
    %8652 = vmatprep.mubr.f32.mxu0 0.0
    %8653 = vmatmul.mubr.f32.gmra.mrb[0].mxu0 %v8533
    %v8654 = vpop.f32.mrb[0].mxu0
    %v8655 = vadd.f32 0.0, %v8654
    %v8656 = vpop.f32.mrb[0].mxu0
    %8657 = vmatprep.mubr.f32.mxu0 0.0
    %8658 = vmatmul.mubr.f32.gmra.mrb[0].mxu0 %v8536
    %v8659 = vpop.f32.mrb[0].mxu0
    %v8660 = vadd.f32 0.0, %v8659
    %v8661 = vpop.f32.mrb[0].mxu0
    %8662 = vmatprep.mubr.f32.mxu0 0.0
    %8663 = vmatmul.mubr.f32.gmra.mrb[0].mxu0 %v8539
    %v8664 = vpop.f32.mrb[0].mxu0
    %v8665 = vadd.f32 0.0, %v8664
    %v8666 = vpop.f32.mrb[0].mxu0
    %8667 = vmatprep.mubr.f32.mxu0 0.0
    %8668 = vmatmul.mubr.f32.gmra.mrb[0].mxu0 %v8542
    %v8669 = vpop.f32.mrb[0].mxu0
    %v8670 = vadd.f32 0.0, %v8669
    %v8671 = vpop.f32.mrb[0].mxu0
    %8672 = vmatprep.mubr.f32.mxu0 0.0
    %8673 = vmatmul.mubr.f32.gmra.mrb[0].mxu0 %v8545
    %v8674 = vpop.f32.mrb[0].mxu0
    %v8675 = vadd.f32 0.0, %v8674
    %v8676 = vpop.f32.mrb[0].mxu0
    %8677 = vmatprep.mubr.f32.mxu0 0.0
    %8678 = vmatmul.mubr.f32.gmra.mrb[0].mxu0 %v8548
    %v8679 = vpop.f32.mrb[0].mxu0
    %v8680 = vadd.f32 0.0, %v8679
    %v8681 = vpop.f32.mrb[0].mxu0
    %8682 = vmatprep.mubr.f32.mxu0 0.0
    %8683 = vmatmul.mubr.f32.gmra.mrb[0].mxu0 %v8551
    %v8684 = vpop.f32.mrb[0].mxu0
    %v8685 = vadd.f32 0.0, %v8684
    %v8686 = vpop.f32.mrb[0].mxu0
    %8687 = vmatprep.mubr.f32.mxu0 0.0
    %8688 = vmatmul.mubr.f32.gmra.mrb[0].mxu0 %v8554
    %v8689 = vpop.f32.mrb[0].mxu0
    %v8690 = vadd.f32 0.0, %v8689
    %v8691 = vpop.f32.mrb[0].mxu0
    %8692 = vmatprep.mubr.f32.mxu0 0.0
    %8693 = vmatmul.mubr.f32.gmra.mrb[0].mxu0 %v8557
    %v8694 = vpop.f32.mrb[0].mxu0
    %v8695 = vadd.f32 0.0, %v8694
    %v8696 = vpop.f32.mrb[0].mxu0
    %8697 = vmatprep.mubr.f32.mxu0 0.0
    %8698 = vmatmul.mubr.f32.gmra.mrb[0].mxu0 %v8560
    %v8699 = vpop.f32.mrb[0].mxu0
    %v8700 = vadd.f32 0.0, %v8699
    %v8701 = vpop.f32.mrb[0].mxu0
    %8702 = vmatprep.mubr.f32.mxu0 0.0
    %8703 = vmatmul.mubr.f32.gmra.mrb[0].mxu0 %v8563
    %v8704 = vpop.f32.mrb[0].mxu0
    %v8705 = vadd.f32 0.0, %v8704
    %v8706 = vpop.f32.mrb[0].mxu0
    %8707 = vmatprep.mubr.f32.mxu0 0.0
    %8708 = vmatmul.mubr.f32.gmra.mrb[0].mxu0 %v8566
    %v8709 = vpop.f32.mrb[0].mxu0
    %v8710 = vadd.f32 0.0, %v8709
    %v8711 = vpop.f32.mrb[0].mxu0
    %8712 = vdwg.mxu0
    %v8713 = vmax.f32 %v8635, 0.0
    %v8714 = vmax.f32 %v8640, 0.0
    %v8715 = vmax.f32 %v8645, 0.0
    %v8716 = vmax.f32 %v8650, 0.0
    %v8717 = vmax.f32 %v8655, 0.0
    %v8718 = vmax.f32 %v8660, 0.0
    %v8719 = vmax.f32 %v8665, 0.0
    %v8720 = vmax.f32 %v8670, 0.0
    %v8721 = vmax.f32 %v8675, 0.0
    %v8722 = vmax.f32 %v8680, 0.0
    %v8723 = vmax.f32 %v8685, 0.0
    %v8724 = vmax.f32 %v8690, 0.0
    %v8725 = vmax.f32 %v8695, 0.0
    %v8726 = vmax.f32 %v8700, 0.0
    %v8727 = vmax.f32 %v8705, 0.0
    %v8728 = vmax.f32 %v8710, 0.0
    %v8729 = vld [vmem:[%s2230] sm:$0xff]
    %v8730 = vld [vmem:[%s2230 + $0x8] sm:$0xff]
    %v8731 = vld [vmem:[%s2230 + $0x10] sm:$0xff]
    %v8732 = vld [vmem:[%s2230 + $0x18] sm:$0xff]
    %v8733 = vld [vmem:[%s2230 + $0x20] sm:$0xff]
    %v8734 = vld [vmem:[%s2230 + $0x28] sm:$0xff]
    %v8735 = vld [vmem:[%s2230 + $0x30] sm:$0xff]
    %v8736 = vld [vmem:[%s2230 + $0x38] sm:$0xff]
    %v8737 = vld [vmem:[%s2230 + $0x40] sm:$0xff]
    %v8738 = vld [vmem:[%s2230 + $0x48] sm:$0xff]
    %v8739 = vld [vmem:[%s2230 + $0x50] sm:$0xff]
    %v8740 = vld [vmem:[%s2230 + $0x58] sm:$0xff]
    %v8741 = vld [vmem:[%s2230 + $0x60] sm:$0xff]
    %v8742 = vld [vmem:[%s2230 + $0x68] sm:$0xff]
    %v8743 = vld [vmem:[%s2230 + $0x70] sm:$0xff]
    %v8744 = vld [vmem:[%s2230 + $0x78] sm:$0xff]
    %8745 = vmatprep.subr.mxu0 0.0
    %8746 = vmatpush1.msra.mxu0 %v8729
    %8747 = vmatprep.subr.mxu0 0.0
    %8748 = vmatpush1.msra.mxu0 %v8730
    %8749 = vmatprep.subr.mxu0 0.0
    %8750 = vmatpush1.msra.mxu0 %v8731
    %8751 = vmatprep.subr.mxu0 0.0
    %8752 = vmatpush1.msra.mxu0 %v8732
    %8753 = vmatprep.subr.mxu0 0.0
    %8754 = vmatpush1.msra.mxu0 %v8733
    %8755 = vmatprep.subr.mxu0 0.0
    %8756 = vmatpush1.msra.mxu0 %v8734
    %8757 = vmatprep.subr.mxu0 0.0
    %8758 = vmatpush1.msra.mxu0 %v8735
    %8759 = vmatprep.subr.mxu0 0.0
    %8760 = vmatpush1.msra.mxu0 %v8736
    %8761 = vmatprep.subr.mxu0 0.0
    %8762 = vmatpush1.msra.mxu0 %v8737
    %8763 = vmatprep.subr.mxu0 0.0
    %8764 = vmatpush1.msra.mxu0 %v8738
    %8765 = vmatprep.subr.mxu0 0.0
    %8766 = vmatpush1.msra.mxu0 %v8739
    %8767 = vmatprep.subr.mxu0 0.0
    %8768 = vmatpush1.msra.mxu0 %v8740
    %8769 = vmatprep.subr.mxu0 0.0
    %8770 = vmatpush1.msra.mxu0 %v8741
    %8771 = vmatprep.subr.mxu0 0.0
    %8772 = vmatpush1.msra.mxu0 %v8742
    %8773 = vmatprep.subr.mxu0 0.0
    %8774 = vmatpush1.msra.mxu0 %v8743
    %8775 = vmatprep.subr.mxu0 0.0
    %8776 = vmatpush1.msra.mxu0 %v8744
    %8777 = vmatprep.subr.mxu0 0.0
    %8778 = vmatpush1.msra.mxu0 0.0
    %8779 = vmatprep.subr.mxu0 0.0
    %8780 = vmatpush1.msra.mxu0 0.0
    %8781 = vmatprep.subr.mxu0 0.0
    %8782 = vmatpush1.msra.mxu0 0.0
    %8783 = vmatprep.subr.mxu0 0.0
    %8784 = vmatpush1.msra.mxu0 0.0
    %8785 = vmatprep.subr.mxu0 0.0
    %8786 = vmatpush1.msra.mxu0 0.0
    %8787 = vmatprep.subr.mxu0 0.0
    %8788 = vmatpush1.msra.mxu0 0.0
    %8789 = vmatprep.subr.mxu0 0.0
    %8790 = vmatpush1.msra.mxu0 0.0
    %8791 = vmatprep.subr.mxu0 0.0
    %8792 = vmatpush1.msra.mxu0 0.0
    %8793 = vmatprep.subr.mxu0 0.0
    %8794 = vmatpush1.msra.mxu0 0.0
    %8795 = vmatprep.subr.mxu0 0.0
    %8796 = vmatpush1.msra.mxu0 0.0
    %8797 = vmatprep.subr.mxu0 0.0
    %8798 = vmatpush1.msra.mxu0 0.0
    %8799 = vmatprep.subr.mxu0 0.0
    %8800 = vmatpush1.msra.mxu0 0.0
    %8801 = vmatprep.subr.mxu0 0.0
    %8802 = vmatpush1.msra.mxu0 0.0
    %8803 = vmatprep.subr.mxu0 0.0
    %8804 = vmatpush1.msra.mxu0 0.0
    %8805 = vmatprep.subr.mxu0 0.0
    %8806 = vmatpush1.msra.mxu0 0.0
    %8807 = vmatprep.subr.mxu0 0.0
    %8808 = vmatpush1.msra.mxu0 0.0
    %8809 = vmatprep.mubr.f32.mxu0 0.0
    %8810 = vmatmul.mubr.f32.gmra.mrb[0].mxu0 %v8713
    %v8811 = vpop.f32.mrb[0].mxu0
    %v8812 = vadd.f32 0.0, %v8811
    %v8813 = vpop.f32.mrb[0].mxu0
    %8814 = vmatprep.mubr.f32.mxu0 0.0
    %8815 = vmatmul.mubr.f32.gmra.mrb[0].mxu0 %v8714
    %v8816 = vpop.f32.mrb[0].mxu0
    %v8817 = vadd.f32 0.0, %v8816
    %v8818 = vpop.f32.mrb[0].mxu0
    %8819 = vmatprep.mubr.f32.mxu0 0.0
    %8820 = vmatmul.mubr.f32.gmra.mrb[0].mxu0 %v8715
    %v8821 = vpop.f32.mrb[0].mxu0
    %v8822 = vadd.f32 0.0, %v8821
    %v8823 = vpop.f32.mrb[0].mxu0
    %8824 = vmatprep.mubr.f32.mxu0 0.0
    %8825 = vmatmul.mubr.f32.gmra.mrb[0].mxu0 %v8716
    %v8826 = vpop.f32.mrb[0].mxu0
    %v8827 = vadd.f32 0.0, %v8826
    %v8828 = vpop.f32.mrb[0].mxu0
    %8829 = vmatprep.mubr.f32.mxu0 0.0
    %8830 = vmatmul.mubr.f32.gmra.mrb[0].mxu0 %v8717
    %v8831 = vpop.f32.mrb[0].mxu0
    %v8832 = vadd.f32 0.0, %v8831
    %v8833 = vpop.f32.mrb[0].mxu0
    %8834 = vmatprep.mubr.f32.mxu0 0.0
    %8835 = vmatmul.mubr.f32.gmra.mrb[0].mxu0 %v8718
    %v8836 = vpop.f32.mrb[0].mxu0
    %v8837 = vadd.f32 0.0, %v8836
    %v8838 = vpop.f32.mrb[0].mxu0
    %8839 = vmatprep.mubr.f32.mxu0 0.0
    %8840 = vmatmul.mubr.f32.gmra.mrb[0].mxu0 %v8719
    %v8841 = vpop.f32.mrb[0].mxu0
    %v8842 = vadd.f32 0.0, %v8841
    %v8843 = vpop.f32.mrb[0].mxu0
    %8844 = vmatprep.mubr.f32.mxu0 0.0
    %8845 = vmatmul.mubr.f32.gmra.mrb[0].mxu0 %v8720
    %v8846 = vpop.f32.mrb[0].mxu0
    %v8847 = vadd.f32 0.0, %v8846
    %v8848 = vpop.f32.mrb[0].mxu0
    %8849 = vmatprep.mubr.f32.mxu0 0.0
    %8850 = vmatmul.mubr.f32.gmra.mrb[0].mxu0 %v8721
    %v8851 = vpop.f32.mrb[0].mxu0
    %v8852 = vadd.f32 0.0, %v8851
    %v8853 = vpop.f32.mrb[0].mxu0
    %8854 = vmatprep.mubr.f32.mxu0 0.0
    %8855 = vmatmul.mubr.f32.gmra.mrb[0].mxu0 %v8722
    %v8856 = vpop.f32.mrb[0].mxu0
    %v8857 = vadd.f32 0.0, %v8856
    %v8858 = vpop.f32.mrb[0].mxu0
    %8859 = vmatprep.mubr.f32.mxu0 0.0
    %8860 = vmatmul.mubr.f32.gmra.mrb[0].mxu0 %v8723
    %v8861 = vpop.f32.mrb[0].mxu0
    %v8862 = vadd.f32 0.0, %v8861
    %v8863 = vpop.f32.mrb[0].mxu0
    %8864 = vmatprep.mubr.f32.mxu0 0.0
    %8865 = vmatmul.mubr.f32.gmra.mrb[0].mxu0 %v8724
    %v8866 = vpop.f32.mrb[0].mxu0
    %v8867 = vadd.f32 0.0, %v8866
    %v8868 = vpop.f32.mrb[0].mxu0
    %8869 = vmatprep.mubr.f32.mxu0 0.0
    %8870 = vmatmul.mubr.f32.gmra.mrb[0].mxu0 %v8725
    %v8871 = vpop.f32.mrb[0].mxu0
    %v8872 = vadd.f32 0.0, %v8871
    %v8873 = vpop.f32.mrb[0].mxu0
    %8874 = vmatprep.mubr.f32.mxu0 0.0
    %8875 = vmatmul.mubr.f32.gmra.mrb[0].mxu0 %v8726
    %v8876 = vpop.f32.mrb[0].mxu0
    %v8877 = vadd.f32 0.0, %v8876
    %v8878 = vpop.f32.mrb[0].mxu0
    %8879 = vmatprep.mubr.f32.mxu0 0.0
    %8880 = vmatmul.mubr.f32.gmra.mrb[0].mxu0 %v8727
    %v8881 = vpop.f32.mrb[0].mxu0
    %v8882 = vadd.f32 0.0, %v8881
    %v8883 = vpop.f32.mrb[0].mxu0
    %8884 = vmatprep.mubr.f32.mxu0 0.0
    %8885 = vmatmul.mubr.f32.gmra.mrb[0].mxu0 %v8728
    %v8886 = vpop.f32.mrb[0].mxu0
    %v8887 = vadd.f32 0.0, %v8886
    %v8888 = vpop.f32.mrb[0].mxu0
    %8889 = vdwg.mxu0
    %v8890 = vmul.f32 %v8812, %v8812
    %v8891 = vmul.f32 %v8817, %v8817
    %v8892 = vmul.f32 %v8822, %v8822
    %v8893 = vmul.f32 %v8827, %v8827
    %v8894 = vmul.f32 %v8832, %v8832
    %v8895 = vmul.f32 %v8837, %v8837
    %v8896 = vmul.f32 %v8842, %v8842
    %v8897 = vmul.f32 %v8847, %v8847
    %v8898 = vmul.f32 %v8852, %v8852
    %v8899 = vmul.f32 %v8857, %v8857
    %v8900 = vmul.f32 %v8862, %v8862
    %v8901 = vmul.f32 %v8867, %v8867
    %v8902 = vmul.f32 %v8872, %v8872
    %v8903 = vmul.f32 %v8877, %v8877
    %v8904 = vmul.f32 %v8882, %v8882
    %v8905 = vmul.f32 %v8887, %v8887
    %v8907 = vsel %vm642, %v8890, 0
    %v8910 = vsel %vm642, %v8891, 0
    %v8913 = vsel %vm642, %v8892, 0
    %v8916 = vsel %vm642, %v8893, 0
    %v8919 = vsel %vm642, %v8894, 0
    %v8922 = vsel %vm642, %v8895, 0
    %v8925 = vsel %vm642, %v8896, 0
    %v8928 = vsel %vm642, %v8897, 0
    %v8931 = vsel %vm642, %v8898, 0
    %v8934 = vsel %vm642, %v8899, 0
    %v8937 = vsel %vm642, %v8900, 0
    %v8940 = vsel %vm642, %v8901, 0
    %v8943 = vsel %vm642, %v8902, 0
    %v8946 = vsel %vm642, %v8903, 0
    %v8949 = vsel %vm642, %v8904, 0
    %v8952 = vsel %vm642, %v8905, 0
    %8954 = vmatprep.subr.mxu0 0.0
    %8955 = vmatpush1.msra.mxu0 1.0
    %8956 = vmatprep.subr.mxu0 0.0
    %8957 = vmatpush1.msra.mxu0 1.0
    %8958 = vmatprep.subr.mxu0 0.0
    %8959 = vmatpush1.msra.mxu0 1.0
    %8960 = vmatprep.subr.mxu0 0.0
    %8961 = vmatpush1.msra.mxu0 1.0
    %8962 = vmatprep.subr.mxu0 0.0
    %8963 = vmatpush1.msra.mxu0 0.0
    %8964 = vmatprep.subr.mxu0 0.0
    %8965 = vmatpush1.msra.mxu0 0.0
    %8966 = vmatprep.subr.mxu0 0.0
    %8967 = vmatpush1.msra.mxu0 0.0
    %8968 = vmatprep.subr.mxu0 0.0
    %8969 = vmatpush1.msra.mxu0 0.0
    %8970 = vmatprep.subr.mxu0 0.0
    %8971 = vmatpush1.msra.mxu0 0.0
    %8972 = vmatprep.subr.mxu0 0.0
    %8973 = vmatpush1.msra.mxu0 0.0
    %8974 = vmatprep.subr.mxu0 0.0
    %8975 = vmatpush1.msra.mxu0 0.0
    %8976 = vmatprep.subr.mxu0 0.0
    %8977 = vmatpush1.msra.mxu0 0.0
    %8978 = vmatprep.subr.mxu0 0.0
    %8979 = vmatpush1.msra.mxu0 0.0
    %8980 = vmatprep.subr.mxu0 0.0
    %8981 = vmatpush1.msra.mxu0 0.0
    %8982 = vmatprep.subr.mxu0 0.0
    %8983 = vmatpush1.msra.mxu0 0.0
    %8984 = vmatprep.subr.mxu0 0.0
    %8985 = vmatpush1.msra.mxu0 0.0
    %8986 = vmatprep.subr.mxu0 0.0
    %8987 = vmatpush1.msra.mxu0 0.0
    %8988 = vmatprep.subr.mxu0 0.0
    %8989 = vmatpush1.msra.mxu0 0.0
    %8990 = vmatprep.subr.mxu0 0.0
    %8991 = vmatpush1.msra.mxu0 0.0
    %8992 = vmatprep.subr.mxu0 0.0
    %8993 = vmatpush1.msra.mxu0 0.0
    %8994 = vmatprep.subr.mxu0 0.0
    %8995 = vmatpush1.msra.mxu0 0.0
    %8996 = vmatprep.subr.mxu0 0.0
    %8997 = vmatpush1.msra.mxu0 0.0
    %8998 = vmatprep.subr.mxu0 0.0
    %8999 = vmatpush1.msra.mxu0 0.0
    %9000 = vmatprep.subr.mxu0 0.0
    %9001 = vmatpush1.msra.mxu0 0.0
    %9002 = vmatprep.subr.mxu0 0.0
    %9003 = vmatpush1.msra.mxu0 0.0
    %9004 = vmatprep.subr.mxu0 0.0
    %9005 = vmatpush1.msra.mxu0 0.0
    %9006 = vmatprep.subr.mxu0 0.0
    %9007 = vmatpush1.msra.mxu0 0.0
    %9008 = vmatprep.subr.mxu0 0.0
    %9009 = vmatpush1.msra.mxu0 0.0
    %9010 = vmatprep.subr.mxu0 0.0
    %9011 = vmatpush1.msra.mxu0 0.0
    %9012 = vmatprep.subr.mxu0 0.0
    %9013 = vmatpush1.msra.mxu0 0.0
    %9014 = vmatprep.subr.mxu0 0.0
    %9015 = vmatpush1.msra.mxu0 0.0
    %9016 = vmatprep.subr.mxu0 0.0
    %9017 = vmatpush1.msra.mxu0 0.0
    %9018 = vmatprep.mubr.f32.mxu0 0.0
    %9019 = vmatmul.mubr.f32.gmra.mrb[0].mxu0 %v8907
    %v9020 = vpop.f32.mrb[0].mxu0
    %v9021 = vadd.f32 1e-08, %v9020
    %v9022 = vpop.f32.mrb[0].mxu0
    %9023 = vmatprep.mubr.f32.mxu0 0.0
    %9024 = vmatmul.mubr.f32.gmra.mrb[0].mxu0 %v8910
    %v9025 = vpop.f32.mrb[0].mxu0
    %v9026 = vadd.f32 1e-08, %v9025
    %v9027 = vpop.f32.mrb[0].mxu0
    %9028 = vmatprep.mubr.f32.mxu0 0.0
    %9029 = vmatmul.mubr.f32.gmra.mrb[0].mxu0 %v8913
    %v9030 = vpop.f32.mrb[0].mxu0
    %v9031 = vadd.f32 1e-08, %v9030
    %v9032 = vpop.f32.mrb[0].mxu0
    %9033 = vmatprep.mubr.f32.mxu0 0.0
    %9034 = vmatmul.mubr.f32.gmra.mrb[0].mxu0 %v8916
    %v9035 = vpop.f32.mrb[0].mxu0
    %v9036 = vadd.f32 1e-08, %v9035
    %v9037 = vpop.f32.mrb[0].mxu0
    %9038 = vmatprep.mubr.f32.mxu0 0.0
    %9039 = vmatmul.mubr.f32.gmra.mrb[0].mxu0 %v8919
    %v9040 = vpop.f32.mrb[0].mxu0
    %v9041 = vadd.f32 1e-08, %v9040
    %v9042 = vpop.f32.mrb[0].mxu0
    %9043 = vmatprep.mubr.f32.mxu0 0.0
    %9044 = vmatmul.mubr.f32.gmra.mrb[0].mxu0 %v8922
    %v9045 = vpop.f32.mrb[0].mxu0
    %v9046 = vadd.f32 1e-08, %v9045
    %v9047 = vpop.f32.mrb[0].mxu0
    %9048 = vmatprep.mubr.f32.mxu0 0.0
    %9049 = vmatmul.mubr.f32.gmra.mrb[0].mxu0 %v8925
    %v9050 = vpop.f32.mrb[0].mxu0
    %v9051 = vadd.f32 1e-08, %v9050
    %v9052 = vpop.f32.mrb[0].mxu0
    %9053 = vmatprep.mubr.f32.mxu0 0.0
    %9054 = vmatmul.mubr.f32.gmra.mrb[0].mxu0 %v8928
    %v9055 = vpop.f32.mrb[0].mxu0
    %v9056 = vadd.f32 1e-08, %v9055
    %v9057 = vpop.f32.mrb[0].mxu0
    %9058 = vmatprep.mubr.f32.mxu0 0.0
    %9059 = vmatmul.mubr.f32.gmra.mrb[0].mxu0 %v8931
    %v9060 = vpop.f32.mrb[0].mxu0
    %v9061 = vadd.f32 1e-08, %v9060
    %v9062 = vpop.f32.mrb[0].mxu0
    %9063 = vmatprep.mubr.f32.mxu0 0.0
    %9064 = vmatmul.mubr.f32.gmra.mrb[0].mxu0 %v8934
    %v9065 = vpop.f32.mrb[0].mxu0
    %v9066 = vadd.f32 1e-08, %v9065
    %v9067 = vpop.f32.mrb[0].mxu0
    %9068 = vmatprep.mubr.f32.mxu0 0.0
    %9069 = vmatmul.mubr.f32.gmra.mrb[0].mxu0 %v8937
    %v9070 = vpop.f32.mrb[0].mxu0
    %v9071 = vadd.f32 1e-08, %v9070
    %v9072 = vpop.f32.mrb[0].mxu0
    %9073 = vmatprep.mubr.f32.mxu0 0.0
    %9074 = vmatmul.mubr.f32.gmra.mrb[0].mxu0 %v8940
    %v9075 = vpop.f32.mrb[0].mxu0
    %v9076 = vadd.f32 1e-08, %v9075
    %v9077 = vpop.f32.mrb[0].mxu0
    %9078 = vmatprep.mubr.f32.mxu0 0.0
    %9079 = vmatmul.mubr.f32.gmra.mrb[0].mxu0 %v8943
    %v9080 = vpop.f32.mrb[0].mxu0
    %v9081 = vadd.f32 1e-08, %v9080
    %v9082 = vpop.f32.mrb[0].mxu0
    %9083 = vmatprep.mubr.f32.mxu0 0.0
    %9084 = vmatmul.mubr.f32.gmra.mrb[0].mxu0 %v8946
    %v9085 = vpop.f32.mrb[0].mxu0
    %v9086 = vadd.f32 1e-08, %v9085
    %v9087 = vpop.f32.mrb[0].mxu0
    %9088 = vmatprep.mubr.f32.mxu0 0.0
    %9089 = vmatmul.mubr.f32.gmra.mrb[0].mxu0 %v8949
    %v9090 = vpop.f32.mrb[0].mxu0
    %v9091 = vadd.f32 1e-08, %v9090
    %v9092 = vpop.f32.mrb[0].mxu0
    %9093 = vmatprep.mubr.f32.mxu0 0.0
    %9094 = vmatmul.mubr.f32.gmra.mrb[0].mxu0 %v8952
    %v9095 = vpop.f32.mrb[0].mxu0
    %v9096 = vadd.f32 1e-08, %v9095
    %v9097 = vpop.f32.mrb[0].mxu0
    %9098 = vdwg.mxu0
    %v9099 = vrsqrt.pop %v9021
    %v9100 = vrsqrt.pop %v9026
    %v9101 = vrsqrt.pop %v9031
    %v9102 = vrsqrt.pop %v9036
    %v9103 = vrsqrt.pop %v9041
    %v9104 = vrsqrt.pop %v9046
    %v9105 = vrsqrt.pop %v9051
    %v9106 = vrsqrt.pop %v9056
    %v9107 = vrsqrt.pop %v9061
    %v9108 = vrsqrt.pop %v9066
    %v9109 = vrsqrt.pop %v9071
    %v9110 = vrsqrt.pop %v9076
    %v9111 = vrsqrt.pop %v9081
    %v9112 = vrsqrt.pop %v9086
    %v9113 = vrsqrt.pop %v9091
    %v9114 = vrsqrt.pop %v9096
    %9116 = vset.pattern.permute.xlu0 0
    %9117 = vperm.xlu0 %9116, %v9099
    %v9118 = vpop.permute.xlu0 %9117
    %9121 = vset.pattern.permute.xlu0 0
    %9122 = vperm.xlu0 %9121, %v9100
    %v9123 = vpop.permute.xlu0 %9122
    %9126 = vset.pattern.permute.xlu0 0
    %9127 = vperm.xlu0 %9126, %v9101
    %v9128 = vpop.permute.xlu0 %9127
    %9131 = vset.pattern.permute.xlu0 0
    %9132 = vperm.xlu0 %9131, %v9102
    %v9133 = vpop.permute.xlu0 %9132
    %9136 = vset.pattern.permute.xlu0 0
    %9137 = vperm.xlu0 %9136, %v9103
    %v9138 = vpop.permute.xlu0 %9137
    %9141 = vset.pattern.permute.xlu0 0
    %9142 = vperm.xlu0 %9141, %v9104
    %v9143 = vpop.permute.xlu0 %9142
    %9146 = vset.pattern.permute.xlu0 0
    %9147 = vperm.xlu0 %9146, %v9105
    %v9148 = vpop.permute.xlu0 %9147
    %9151 = vset.pattern.permute.xlu0 0
    %9152 = vperm.xlu0 %9151, %v9106
    %v9153 = vpop.permute.xlu0 %9152
    %9156 = vset.pattern.permute.xlu0 0
    %9157 = vperm.xlu0 %9156, %v9107
    %v9158 = vpop.permute.xlu0 %9157
    %9161 = vset.pattern.permute.xlu0 0
    %9162 = vperm.xlu0 %9161, %v9108
    %v9163 = vpop.permute.xlu0 %9162
    %9166 = vset.pattern.permute.xlu0 0
    %9167 = vperm.xlu0 %9166, %v9109
    %v9168 = vpop.permute.xlu0 %9167
    %9171 = vset.pattern.permute.xlu0 0
    %9172 = vperm.xlu0 %9171, %v9110
    %v9173 = vpop.permute.xlu0 %9172
    %9176 = vset.pattern.permute.xlu0 0
    %9177 = vperm.xlu0 %9176, %v9111
    %v9178 = vpop.permute.xlu0 %9177
    %9181 = vset.pattern.permute.xlu0 0
    %9182 = vperm.xlu0 %9181, %v9112
    %v9183 = vpop.permute.xlu0 %9182
    %9186 = vset.pattern.permute.xlu0 0
    %9187 = vperm.xlu0 %9186, %v9113
    %v9188 = vpop.permute.xlu0 %9187
    %9191 = vset.pattern.permute.xlu0 0
    %9192 = vperm.xlu0 %9191, %v9114
    %v9193 = vpop.permute.xlu0 %9192
    %v9195 = vmul.f32 %v8812, %v9118
    %v9196 = vmul.f32 %v8817, %v9123
    %v9197 = vmul.f32 %v8822, %v9128
    %v9198 = vmul.f32 %v8827, %v9133
    %v9199 = vmul.f32 %v8832, %v9138
    %v9200 = vmul.f32 %v8837, %v9143
    %v9201 = vmul.f32 %v8842, %v9148
    %v9202 = vmul.f32 %v8847, %v9153
    %v9203 = vmul.f32 %v8852, %v9158
    %v9204 = vmul.f32 %v8857, %v9163
    %v9205 = vmul.f32 %v8862, %v9168
    %v9206 = vmul.f32 %v8867, %v9173
    %v9207 = vmul.f32 %v8872, %v9178
    %v9208 = vmul.f32 %v8877, %v9183
    %v9209 = vmul.f32 %v8882, %v9188
    %v9210 = vmul.f32 %v8887, %v9193
    %v9211 = vsub.f32 %v9195, %v8500
    %v9212 = vsub.f32 %v9196, %v8501
    %v9213 = vsub.f32 %v9197, %v8502
    %v9214 = vsub.f32 %v9198, %v8503
    %v9215 = vsub.f32 %v9199, %v8504
    %v9216 = vsub.f32 %v9200, %v8505
    %v9217 = vsub.f32 %v9201, %v8506
    %v9218 = vsub.f32 %v9202, %v8507
    %v9219 = vsub.f32 %v9203, %v8508
    %v9220 = vsub.f32 %v9204, %v8509
    %v9221 = vsub.f32 %v9205, %v8510
    %v9222 = vsub.f32 %v9206, %v8511
    %v9223 = vsub.f32 %v9207, %v8512
    %v9224 = vsub.f32 %v9208, %v8513
    %v9225 = vsub.f32 %v9209, %v8514
    %v9226 = vsub.f32 %v9210, %v8515
    %v9227 = vmul.f32 %v2732, %v9211
    %v9228 = vmul.f32 %v2732, %v9212
    %v9229 = vmul.f32 %v2732, %v9213
    %v9230 = vmul.f32 %v2732, %v9214
    %v9231 = vmul.f32 %v2732, %v9215
    %v9232 = vmul.f32 %v2732, %v9216
    %v9233 = vmul.f32 %v2732, %v9217
    %v9234 = vmul.f32 %v2732, %v9218
    %v9235 = vmul.f32 %v2732, %v9219
    %v9236 = vmul.f32 %v2732, %v9220
    %v9237 = vmul.f32 %v2732, %v9221
    %v9238 = vmul.f32 %v2732, %v9222
    %v9239 = vmul.f32 %v2732, %v9223
    %v9240 = vmul.f32 %v2732, %v9224
    %v9241 = vmul.f32 %v2732, %v9225
    %v9242 = vmul.f32 %v2732, %v9226
    %v9243 = vadd.f32 %v8500, %v9227
    %v9244 = vadd.f32 %v8501, %v9228
    %v9245 = vadd.f32 %v8502, %v9229
    %v9246 = vadd.f32 %v8503, %v9230
    %v9247 = vadd.f32 %v8504, %v9231
    %v9248 = vadd.f32 %v8505, %v9232
    %v9249 = vadd.f32 %v8506, %v9233
    %v9250 = vadd.f32 %v8507, %v9234
    %v9251 = vadd.f32 %v8508, %v9235
    %v9252 = vadd.f32 %v8509, %v9236
    %v9253 = vadd.f32 %v8510, %v9237
    %v9254 = vadd.f32 %v8511, %v9238
    %v9255 = vadd.f32 %v8512, %v9239
    %v9256 = vadd.f32 %v8513, %v9240
    %v9257 = vadd.f32 %v8514, %v9241
    %v9258 = vadd.f32 %v8515, %v9242
    %v9259 = vmul.f32 %v9243, %v9243
    %v9260 = vmul.f32 %v9244, %v9244
    %v9261 = vmul.f32 %v9245, %v9245
    %v9262 = vmul.f32 %v9246, %v9246
    %v9263 = vmul.f32 %v9247, %v9247
    %v9264 = vmul.f32 %v9248, %v9248
    %v9265 = vmul.f32 %v9249, %v9249
    %v9266 = vmul.f32 %v9250, %v9250
    %v9267 = vmul.f32 %v9251, %v9251
    %v9268 = vmul.f32 %v9252, %v9252
    %v9269 = vmul.f32 %v9253, %v9253
    %v9270 = vmul.f32 %v9254, %v9254
    %v9271 = vmul.f32 %v9255, %v9255
    %v9272 = vmul.f32 %v9256, %v9256
    %v9273 = vmul.f32 %v9257, %v9257
    %v9274 = vmul.f32 %v9258, %v9258
    %v9276 = vsel %vm642, %v9259, 0
    %v9279 = vsel %vm642, %v9260, 0
    %v9282 = vsel %vm642, %v9261, 0
    %v9285 = vsel %vm642, %v9262, 0
    %v9288 = vsel %vm642, %v9263, 0
    %v9291 = vsel %vm642, %v9264, 0
    %v9294 = vsel %vm642, %v9265, 0
    %v9297 = vsel %vm642, %v9266, 0
    %v9300 = vsel %vm642, %v9267, 0
    %v9303 = vsel %vm642, %v9268, 0
    %v9306 = vsel %vm642, %v9269, 0
    %v9309 = vsel %vm642, %v9270, 0
    %v9312 = vsel %vm642, %v9271, 0
    %v9315 = vsel %vm642, %v9272, 0
    %v9318 = vsel %vm642, %v9273, 0
    %v9321 = vsel %vm642, %v9274, 0
    %9323 = vmatprep.subr.mxu0 0.0
    %9324 = vmatpush1.msra.mxu0 1.0
    %9325 = vmatprep.subr.mxu0 0.0
    %9326 = vmatpush1.msra.mxu0 1.0
    %9327 = vmatprep.subr.mxu0 0.0
    %9328 = vmatpush1.msra.mxu0 1.0
    %9329 = vmatprep.subr.mxu0 0.0
    %9330 = vmatpush1.msra.mxu0 1.0
    %9331 = vmatprep.subr.mxu0 0.0
    %9332 = vmatpush1.msra.mxu0 0.0
    %9333 = vmatprep.subr.mxu0 0.0
    %9334 = vmatpush1.msra.mxu0 0.0
    %9335 = vmatprep.subr.mxu0 0.0
    %9336 = vmatpush1.msra.mxu0 0.0
    %9337 = vmatprep.subr.mxu0 0.0
    %9338 = vmatpush1.msra.mxu0 0.0
    %9339 = vmatprep.subr.mxu0 0.0
    %9340 = vmatpush1.msra.mxu0 0.0
    %9341 = vmatprep.subr.mxu0 0.0
    %9342 = vmatpush1.msra.mxu0 0.0
    %9343 = vmatprep.subr.mxu0 0.0
    %9344 = vmatpush1.msra.mxu0 0.0
    %9345 = vmatprep.subr.mxu0 0.0
    %9346 = vmatpush1.msra.mxu0 0.0
    %9347 = vmatprep.subr.mxu0 0.0
    %9348 = vmatpush1.msra.mxu0 0.0
    %9349 = vmatprep.subr.mxu0 0.0
    %9350 = vmatpush1.msra.mxu0 0.0
    %9351 = vmatprep.subr.mxu0 0.0
    %9352 = vmatpush1.msra.mxu0 0.0
    %9353 = vmatprep.subr.mxu0 0.0
    %9354 = vmatpush1.msra.mxu0 0.0
    %9355 = vmatprep.subr.mxu0 0.0
    %9356 = vmatpush1.msra.mxu0 0.0
    %9357 = vmatprep.subr.mxu0 0.0
    %9358 = vmatpush1.msra.mxu0 0.0
    %9359 = vmatprep.subr.mxu0 0.0
    %9360 = vmatpush1.msra.mxu0 0.0
    %9361 = vmatprep.subr.mxu0 0.0
    %9362 = vmatpush1.msra.mxu0 0.0
    %9363 = vmatprep.subr.mxu0 0.0
    %9364 = vmatpush1.msra.mxu0 0.0
    %9365 = vmatprep.subr.mxu0 0.0
    %9366 = vmatpush1.msra.mxu0 0.0
    %9367 = vmatprep.subr.mxu0 0.0
    %9368 = vmatpush1.msra.mxu0 0.0
    %9369 = vmatprep.subr.mxu0 0.0
    %9370 = vmatpush1.msra.mxu0 0.0
    %9371 = vmatprep.subr.mxu0 0.0
    %9372 = vmatpush1.msra.mxu0 0.0
    %9373 = vmatprep.subr.mxu0 0.0
    %9374 = vmatpush1.msra.mxu0 0.0
    %9375 = vmatprep.subr.mxu0 0.0
    %9376 = vmatpush1.msra.mxu0 0.0
    %9377 = vmatprep.subr.mxu0 0.0
    %9378 = vmatpush1.msra.mxu0 0.0
    %9379 = vmatprep.subr.mxu0 0.0
    %9380 = vmatpush1.msra.mxu0 0.0
    %9381 = vmatprep.subr.mxu0 0.0
    %9382 = vmatpush1.msra.mxu0 0.0
    %9383 = vmatprep.subr.mxu0 0.0
    %9384 = vmatpush1.msra.mxu0 0.0
    %9385 = vmatprep.subr.mxu0 0.0
    %9386 = vmatpush1.msra.mxu0 0.0
    %9387 = vmatprep.mubr.f32.mxu0 0.0
    %9388 = vmatmul.mubr.f32.gmra.mrb[0].mxu0 %v9276
    %v9389 = vpop.f32.mrb[0].mxu0
    %v9390 = vadd.f32 1e-08, %v9389
    %v9391 = vpop.f32.mrb[0].mxu0
    %9392 = vmatprep.mubr.f32.mxu0 0.0
    %9393 = vmatmul.mubr.f32.gmra.mrb[0].mxu0 %v9279
    %v9394 = vpop.f32.mrb[0].mxu0
    %v9395 = vadd.f32 1e-08, %v9394
    %v9396 = vpop.f32.mrb[0].mxu0
    %9397 = vmatprep.mubr.f32.mxu0 0.0
    %9398 = vmatmul.mubr.f32.gmra.mrb[0].mxu0 %v9282
    %v9399 = vpop.f32.mrb[0].mxu0
    %v9400 = vadd.f32 1e-08, %v9399
    %v9401 = vpop.f32.mrb[0].mxu0
    %9402 = vmatprep.mubr.f32.mxu0 0.0
    %9403 = vmatmul.mubr.f32.gmra.mrb[0].mxu0 %v9285
    %v9404 = vpop.f32.mrb[0].mxu0
    %v9405 = vadd.f32 1e-08, %v9404
    %v9406 = vpop.f32.mrb[0].mxu0
    %9407 = vmatprep.mubr.f32.mxu0 0.0
    %9408 = vmatmul.mubr.f32.gmra.mrb[0].mxu0 %v9288
    %v9409 = vpop.f32.mrb[0].mxu0
    %v9410 = vadd.f32 1e-08, %v9409
    %v9411 = vpop.f32.mrb[0].mxu0
    %9412 = vmatprep.mubr.f32.mxu0 0.0
    %9413 = vmatmul.mubr.f32.gmra.mrb[0].mxu0 %v9291
    %v9414 = vpop.f32.mrb[0].mxu0
    %v9415 = vadd.f32 1e-08, %v9414
    %v9416 = vpop.f32.mrb[0].mxu0
    %9417 = vmatprep.mubr.f32.mxu0 0.0
    %9418 = vmatmul.mubr.f32.gmra.mrb[0].mxu0 %v9294
    %v9419 = vpop.f32.mrb[0].mxu0
    %v9420 = vadd.f32 1e-08, %v9419
    %v9421 = vpop.f32.mrb[0].mxu0
    %9422 = vmatprep.mubr.f32.mxu0 0.0
    %9423 = vmatmul.mubr.f32.gmra.mrb[0].mxu0 %v9297
    %v9424 = vpop.f32.mrb[0].mxu0
    %v9425 = vadd.f32 1e-08, %v9424
    %v9426 = vpop.f32.mrb[0].mxu0
    %9427 = vmatprep.mubr.f32.mxu0 0.0
    %9428 = vmatmul.mubr.f32.gmra.mrb[0].mxu0 %v9300
    %v9429 = vpop.f32.mrb[0].mxu0
    %v9430 = vadd.f32 1e-08, %v9429
    %v9431 = vpop.f32.mrb[0].mxu0
    %9432 = vmatprep.mubr.f32.mxu0 0.0
    %9433 = vmatmul.mubr.f32.gmra.mrb[0].mxu0 %v9303
    %v9434 = vpop.f32.mrb[0].mxu0
    %v9435 = vadd.f32 1e-08, %v9434
    %v9436 = vpop.f32.mrb[0].mxu0
    %9437 = vmatprep.mubr.f32.mxu0 0.0
    %9438 = vmatmul.mubr.f32.gmra.mrb[0].mxu0 %v9306
    %v9439 = vpop.f32.mrb[0].mxu0
    %v9440 = vadd.f32 1e-08, %v9439
    %v9441 = vpop.f32.mrb[0].mxu0
    %9442 = vmatprep.mubr.f32.mxu0 0.0
    %9443 = vmatmul.mubr.f32.gmra.mrb[0].mxu0 %v9309
    %v9444 = vpop.f32.mrb[0].mxu0
    %v9445 = vadd.f32 1e-08, %v9444
    %v9446 = vpop.f32.mrb[0].mxu0
    %9447 = vmatprep.mubr.f32.mxu0 0.0
    %9448 = vmatmul.mubr.f32.gmra.mrb[0].mxu0 %v9312
    %v9449 = vpop.f32.mrb[0].mxu0
    %v9450 = vadd.f32 1e-08, %v9449
    %v9451 = vpop.f32.mrb[0].mxu0
    %9452 = vmatprep.mubr.f32.mxu0 0.0
    %9453 = vmatmul.mubr.f32.gmra.mrb[0].mxu0 %v9315
    %v9454 = vpop.f32.mrb[0].mxu0
    %v9455 = vadd.f32 1e-08, %v9454
    %v9456 = vpop.f32.mrb[0].mxu0
    %9457 = vmatprep.mubr.f32.mxu0 0.0
    %9458 = vmatmul.mubr.f32.gmra.mrb[0].mxu0 %v9318
    %v9459 = vpop.f32.mrb[0].mxu0
    %v9460 = vadd.f32 1e-08, %v9459
    %v9461 = vpop.f32.mrb[0].mxu0
    %9462 = vmatprep.mubr.f32.mxu0 0.0
    %9463 = vmatmul.mubr.f32.gmra.mrb[0].mxu0 %v9321
    %v9464 = vpop.f32.mrb[0].mxu0
    %v9465 = vadd.f32 1e-08, %v9464
    %v9466 = vpop.f32.mrb[0].mxu0
    %9467 = vdwg.mxu0
    %v9468 = vrsqrt.pop %v9390
    %v9469 = vrsqrt.pop %v9395
    %v9470 = vrsqrt.pop %v9400
    %v9471 = vrsqrt.pop %v9405
    %v9472 = vrsqrt.pop %v9410
    %v9473 = vrsqrt.pop %v9415
    %v9474 = vrsqrt.pop %v9420
    %v9475 = vrsqrt.pop %v9425
    %v9476 = vrsqrt.pop %v9430
    %v9477 = vrsqrt.pop %v9435
    %v9478 = vrsqrt.pop %v9440
    %v9479 = vrsqrt.pop %v9445
    %v9480 = vrsqrt.pop %v9450
    %v9481 = vrsqrt.pop %v9455
    %v9482 = vrsqrt.pop %v9460
    %v9483 = vrsqrt.pop %v9465
    %9485 = vset.pattern.permute.xlu0 0
    %9486 = vperm.xlu0 %9485, %v9468
    %v9487 = vpop.permute.xlu0 %9486
    %9490 = vset.pattern.permute.xlu0 0
    %9491 = vperm.xlu0 %9490, %v9469
    %v9492 = vpop.permute.xlu0 %9491
    %9495 = vset.pattern.permute.xlu0 0
    %9496 = vperm.xlu0 %9495, %v9470
    %v9497 = vpop.permute.xlu0 %9496
    %9500 = vset.pattern.permute.xlu0 0
    %9501 = vperm.xlu0 %9500, %v9471
    %v9502 = vpop.permute.xlu0 %9501
    %9505 = vset.pattern.permute.xlu0 0
    %9506 = vperm.xlu0 %9505, %v9472
    %v9507 = vpop.permute.xlu0 %9506
    %9510 = vset.pattern.permute.xlu0 0
    %9511 = vperm.xlu0 %9510, %v9473
    %v9512 = vpop.permute.xlu0 %9511
    %9515 = vset.pattern.permute.xlu0 0
    %9516 = vperm.xlu0 %9515, %v9474
    %v9517 = vpop.permute.xlu0 %9516
    %9520 = vset.pattern.permute.xlu0 0
    %9521 = vperm.xlu0 %9520, %v9475
    %v9522 = vpop.permute.xlu0 %9521
    %9525 = vset.pattern.permute.xlu0 0
    %9526 = vperm.xlu0 %9525, %v9476
    %v9527 = vpop.permute.xlu0 %9526
    %9530 = vset.pattern.permute.xlu0 0
    %9531 = vperm.xlu0 %9530, %v9477
    %v9532 = vpop.permute.xlu0 %9531
    %9535 = vset.pattern.permute.xlu0 0
    %9536 = vperm.xlu0 %9535, %v9478
    %v9537 = vpop.permute.xlu0 %9536
    %9540 = vset.pattern.permute.xlu0 0
    %9541 = vperm.xlu0 %9540, %v9479
    %v9542 = vpop.permute.xlu0 %9541
    %9545 = vset.pattern.permute.xlu0 0
    %9546 = vperm.xlu0 %9545, %v9480
    %v9547 = vpop.permute.xlu0 %9546
    %9550 = vset.pattern.permute.xlu0 0
    %9551 = vperm.xlu0 %9550, %v9481
    %v9552 = vpop.permute.xlu0 %9551
    %9555 = vset.pattern.permute.xlu0 0
    %9556 = vperm.xlu0 %9555, %v9482
    %v9557 = vpop.permute.xlu0 %9556
    %9560 = vset.pattern.permute.xlu0 0
    %9561 = vperm.xlu0 %9560, %v9483
    %v9562 = vpop.permute.xlu0 %9561
    %v9564 = vmul.f32 %v9243, %v9487
    %v9565 = vmul.f32 %v9244, %v9492
    %v9566 = vmul.f32 %v9245, %v9497
    %v9567 = vmul.f32 %v9246, %v9502
    %v9568 = vmul.f32 %v9247, %v9507
    %v9569 = vmul.f32 %v9248, %v9512
    %v9570 = vmul.f32 %v9249, %v9517
    %v9571 = vmul.f32 %v9250, %v9522
    %v9572 = vmul.f32 %v9251, %v9527
    %v9573 = vmul.f32 %v9252, %v9532
    %v9574 = vmul.f32 %v9253, %v9537
    %v9575 = vmul.f32 %v9254, %v9542
    %v9576 = vmul.f32 %v9255, %v9547
    %v9577 = vmul.f32 %v9256, %v9552
    %v9578 = vmul.f32 %v9257, %v9557
    %v9579 = vmul.f32 %v9258, %v9562
    %v9580 = vld [vmem:[%s3086] sm:$0xff]
    %v9581 = vld [vmem:[%s3086 + $0x8] sm:$0xff]
    %v9582 = vld [vmem:[%s3086 + $0x10] sm:$0xff]
    %v9583 = vld [vmem:[%s3086 + $0x18] sm:$0xff]
    %v9585 = vsel %vm642, %v9564, 0
    %v9588 = vsel %vm642, %v9565, 0
    %v9591 = vsel %vm642, %v9566, 0
    %v9594 = vsel %vm642, %v9567, 0
    %v9597 = vsel %vm642, %v9568, 0
    %v9600 = vsel %vm642, %v9569, 0
    %v9603 = vsel %vm642, %v9570, 0
    %v9606 = vsel %vm642, %v9571, 0
    %v9609 = vsel %vm642, %v9572, 0
    %v9612 = vsel %vm642, %v9573, 0
    %v9615 = vsel %vm642, %v9574, 0
    %v9618 = vsel %vm642, %v9575, 0
    %v9621 = vsel %vm642, %v9576, 0
    %v9624 = vsel %vm642, %v9577, 0
    %v9627 = vsel %vm642, %v9578, 0
    %v9630 = vsel %vm642, %v9579, 0
    %9632 = vmatprep.subr.mxu0 0.0
    %9633 = vmatpush1.msra.mxu0 %v9580
    %9634 = vmatprep.subr.mxu0 0.0
    %9635 = vmatpush1.msra.mxu0 %v9581
    %9636 = vmatprep.subr.mxu0 0.0
    %9637 = vmatpush1.msra.mxu0 %v9582
    %9638 = vmatprep.subr.mxu0 0.0
    %9639 = vmatpush1.msra.mxu0 %v9583
    %9640 = vmatprep.subr.mxu0 0.0
    %9641 = vmatpush1.msra.mxu0 0.0
    %9642 = vmatprep.subr.mxu0 0.0
    %9643 = vmatpush1.msra.mxu0 0.0
    %9644 = vmatprep.subr.mxu0 0.0
    %9645 = vmatpush1.msra.mxu0 0.0
    %9646 = vmatprep.subr.mxu0 0.0
    %9647 = vmatpush1.msra.mxu0 0.0
    %9648 = vmatprep.subr.mxu0 0.0
    %9649 = vmatpush1.msra.mxu0 0.0
    %9650 = vmatprep.subr.mxu0 0.0
    %9651 = vmatpush1.msra.mxu0 0.0
    %9652 = vmatprep.subr.mxu0 0.0
    %9653 = vmatpush1.msra.mxu0 0.0
    %9654 = vmatprep.subr.mxu0 0.0
    %9655 = vmatpush1.msra.mxu0 0.0
    %9656 = vmatprep.subr.mxu0 0.0
    %9657 = vmatpush1.msra.mxu0 0.0
    %9658 = vmatprep.subr.mxu0 0.0
    %9659 = vmatpush1.msra.mxu0 0.0
    %9660 = vmatprep.subr.mxu0 0.0
    %9661 = vmatpush1.msra.mxu0 0.0
    %9662 = vmatprep.subr.mxu0 0.0
    %9663 = vmatpush1.msra.mxu0 0.0
    %9664 = vmatprep.subr.mxu0 0.0
    %9665 = vmatpush1.msra.mxu0 0.0
    %9666 = vmatprep.subr.mxu0 0.0
    %9667 = vmatpush1.msra.mxu0 0.0
    %9668 = vmatprep.subr.mxu0 0.0
    %9669 = vmatpush1.msra.mxu0 0.0
    %9670 = vmatprep.subr.mxu0 0.0
    %9671 = vmatpush1.msra.mxu0 0.0
    %9672 = vmatprep.subr.mxu0 0.0
    %9673 = vmatpush1.msra.mxu0 0.0
    %9674 = vmatprep.subr.mxu0 0.0
    %9675 = vmatpush1.msra.mxu0 0.0
    %9676 = vmatprep.subr.mxu0 0.0
    %9677 = vmatpush1.msra.mxu0 0.0
    %9678 = vmatprep.subr.mxu0 0.0
    %9679 = vmatpush1.msra.mxu0 0.0
    %9680 = vmatprep.subr.mxu0 0.0
    %9681 = vmatpush1.msra.mxu0 0.0
    %9682 = vmatprep.subr.mxu0 0.0
    %9683 = vmatpush1.msra.mxu0 0.0
    %9684 = vmatprep.subr.mxu0 0.0
    %9685 = vmatpush1.msra.mxu0 0.0
    %9686 = vmatprep.subr.mxu0 0.0
    %9687 = vmatpush1.msra.mxu0 0.0
    %9688 = vmatprep.subr.mxu0 0.0
    %9689 = vmatpush1.msra.mxu0 0.0
    %9690 = vmatprep.subr.mxu0 0.0
    %9691 = vmatpush1.msra.mxu0 0.0
    %9692 = vmatprep.subr.mxu0 0.0
    %9693 = vmatpush1.msra.mxu0 0.0
    %9694 = vmatprep.subr.mxu0 0.0
    %9695 = vmatpush1.msra.mxu0 0.0
    %9696 = vmatprep.mubr.f32.mxu0 0.0
    %9697 = vmatmul.mubr.f32.gmra.mrb[0].mxu0 %v9585
    %v9698 = vpop.f32.mrb[0].mxu0
    %v9699 = vadd.f32 0.0, %v9698
    %v9700 = vpop.f32.mrb[0].mxu0
    %9701 = vmatprep.mubr.f32.mxu0 0.0
    %9702 = vmatmul.mubr.f32.gmra.mrb[0].mxu0 %v9588
    %v9703 = vpop.f32.mrb[0].mxu0
    %v9704 = vadd.f32 0.0, %v9703
    %v9705 = vpop.f32.mrb[0].mxu0
    %9706 = vmatprep.mubr.f32.mxu0 0.0
    %9707 = vmatmul.mubr.f32.gmra.mrb[0].mxu0 %v9591
    %v9708 = vpop.f32.mrb[0].mxu0
    %v9709 = vadd.f32 0.0, %v9708
    %v9710 = vpop.f32.mrb[0].mxu0
    %9711 = vmatprep.mubr.f32.mxu0 0.0
    %9712 = vmatmul.mubr.f32.gmra.mrb[0].mxu0 %v9594
    %v9713 = vpop.f32.mrb[0].mxu0
    %v9714 = vadd.f32 0.0, %v9713
    %v9715 = vpop.f32.mrb[0].mxu0
    %9716 = vmatprep.mubr.f32.mxu0 0.0
    %9717 = vmatmul.mubr.f32.gmra.mrb[0].mxu0 %v9597
    %v9718 = vpop.f32.mrb[0].mxu0
    %v9719 = vadd.f32 0.0, %v9718
    %v9720 = vpop.f32.mrb[0].mxu0
    %9721 = vmatprep.mubr.f32.mxu0 0.0
    %9722 = vmatmul.mubr.f32.gmra.mrb[0].mxu0 %v9600
    %v9723 = vpop.f32.mrb[0].mxu0
    %v9724 = vadd.f32 0.0, %v9723
    %v9725 = vpop.f32.mrb[0].mxu0
    %9726 = vmatprep.mubr.f32.mxu0 0.0
    %9727 = vmatmul.mubr.f32.gmra.mrb[0].mxu0 %v9603
    %v9728 = vpop.f32.mrb[0].mxu0
    %v9729 = vadd.f32 0.0, %v9728
    %v9730 = vpop.f32.mrb[0].mxu0
    %9731 = vmatprep.mubr.f32.mxu0 0.0
    %9732 = vmatmul.mubr.f32.gmra.mrb[0].mxu0 %v9606
    %v9733 = vpop.f32.mrb[0].mxu0
    %v9734 = vadd.f32 0.0, %v9733
    %v9735 = vpop.f32.mrb[0].mxu0
    %9736 = vmatprep.mubr.f32.mxu0 0.0
    %9737 = vmatmul.mubr.f32.gmra.mrb[0].mxu0 %v9609
    %v9738 = vpop.f32.mrb[0].mxu0
    %v9739 = vadd.f32 0.0, %v9738
    %v9740 = vpop.f32.mrb[0].mxu0
    %9741 = vmatprep.mubr.f32.mxu0 0.0
    %9742 = vmatmul.mubr.f32.gmra.mrb[0].mxu0 %v9612
    %v9743 = vpop.f32.mrb[0].mxu0
    %v9744 = vadd.f32 0.0, %v9743
    %v9745 = vpop.f32.mrb[0].mxu0
    %9746 = vmatprep.mubr.f32.mxu0 0.0
    %9747 = vmatmul.mubr.f32.gmra.mrb[0].mxu0 %v9615
    %v9748 = vpop.f32.mrb[0].mxu0
    %v9749 = vadd.f32 0.0, %v9748
    %v9750 = vpop.f32.mrb[0].mxu0
    %9751 = vmatprep.mubr.f32.mxu0 0.0
    %9752 = vmatmul.mubr.f32.gmra.mrb[0].mxu0 %v9618
    %v9753 = vpop.f32.mrb[0].mxu0
    %v9754 = vadd.f32 0.0, %v9753
    %v9755 = vpop.f32.mrb[0].mxu0
    %9756 = vmatprep.mubr.f32.mxu0 0.0
    %9757 = vmatmul.mubr.f32.gmra.mrb[0].mxu0 %v9621
    %v9758 = vpop.f32.mrb[0].mxu0
    %v9759 = vadd.f32 0.0, %v9758
    %v9760 = vpop.f32.mrb[0].mxu0
    %9761 = vmatprep.mubr.f32.mxu0 0.0
    %9762 = vmatmul.mubr.f32.gmra.mrb[0].mxu0 %v9624
    %v9763 = vpop.f32.mrb[0].mxu0
    %v9764 = vadd.f32 0.0, %v9763
    %v9765 = vpop.f32.mrb[0].mxu0
    %9766 = vmatprep.mubr.f32.mxu0 0.0
    %9767 = vmatmul.mubr.f32.gmra.mrb[0].mxu0 %v9627
    %v9768 = vpop.f32.mrb[0].mxu0
    %v9769 = vadd.f32 0.0, %v9768
    %v9770 = vpop.f32.mrb[0].mxu0
    %9771 = vmatprep.mubr.f32.mxu0 0.0
    %9772 = vmatmul.mubr.f32.gmra.mrb[0].mxu0 %v9630
    %v9773 = vpop.f32.mrb[0].mxu0
    %v9774 = vadd.f32 0.0, %v9773
    %v9775 = vpop.f32.mrb[0].mxu0
    %9776 = vdwg.mxu0
    %s9777 = scalar_lea.vmem [#allocation2], 256
    %9778 = vst [vmem:[%s9777] sm:$0xff] %v9699
    %9779 = vst [vmem:[%s9777 + $0x8] sm:$0xff] %v9704
    %9780 = vst [vmem:[%s9777 + $0x10] sm:$0xff] %v9709
    %9781 = vst [vmem:[%s9777 + $0x18] sm:$0xff] %v9714
    %9782 = vst [vmem:[%s9777 + $0x20] sm:$0xff] %v9719
    %9783 = vst [vmem:[%s9777 + $0x28] sm:$0xff] %v9724
    %9784 = vst [vmem:[%s9777 + $0x30] sm:$0xff] %v9729
    %9785 = vst [vmem:[%s9777 + $0x38] sm:$0xff] %v9734
    %9786 = vst [vmem:[%s9777 + $0x40] sm:$0xff] %v9739
    %9787 = vst [vmem:[%s9777 + $0x48] sm:$0xff] %v9744
    %9788 = vst [vmem:[%s9777 + $0x50] sm:$0xff] %v9749
    %9789 = vst [vmem:[%s9777 + $0x58] sm:$0xff] %v9754
    %9790 = vst [vmem:[%s9777 + $0x60] sm:$0xff] %v9759
    %9791 = vst [vmem:[%s9777 + $0x68] sm:$0xff] %v9764
    %9792 = vst [vmem:[%s9777 + $0x70] sm:$0xff] %v9769
    %9793 = vst [vmem:[%s9777 + $0x78] sm:$0xff] %v9774
    %s9794 = scalar_lea.vmem %s0, 384
    %v9795 = vld [vmem:[%s9794] sm:$0xff]
    %v9796 = vld [vmem:[%s9794 + $0x8] sm:$0xff]
    %v9797 = vld [vmem:[%s9794 + $0x10] sm:$0xff]
    %v9798 = vld [vmem:[%s9794 + $0x18] sm:$0xff]
    %v9799 = vld [vmem:[%s9794 + $0x20] sm:$0xff]
    %v9800 = vld [vmem:[%s9794 + $0x28] sm:$0xff]
    %v9801 = vld [vmem:[%s9794 + $0x30] sm:$0xff]
    %v9802 = vld [vmem:[%s9794 + $0x38] sm:$0xff]
    %v9803 = vld [vmem:[%s9794 + $0x40] sm:$0xff]
    %v9804 = vld [vmem:[%s9794 + $0x48] sm:$0xff]
    %v9805 = vld [vmem:[%s9794 + $0x50] sm:$0xff]
    %v9806 = vld [vmem:[%s9794 + $0x58] sm:$0xff]
    %v9807 = vld [vmem:[%s9794 + $0x60] sm:$0xff]
    %v9808 = vld [vmem:[%s9794 + $0x68] sm:$0xff]
    %v9809 = vld [vmem:[%s9794 + $0x70] sm:$0xff]
    %v9810 = vld [vmem:[%s9794 + $0x78] sm:$0xff]
    %v9811 = vmul.f32 %v9795, %v45
    %v9812 = vmul.f32 %v9796, %v45
    %v9813 = vmul.f32 %v9797, %v45
    %v9814 = vmul.f32 %v9798, %v45
    %v9815 = vmul.f32 %v9799, %v45
    %v9816 = vmul.f32 %v9800, %v45
    %v9817 = vmul.f32 %v9801, %v45
    %v9818 = vmul.f32 %v9802, %v45
    %v9819 = vmul.f32 %v9803, %v45
    %v9820 = vmul.f32 %v9804, %v45
    %v9821 = vmul.f32 %v9805, %v45
    %v9822 = vmul.f32 %v9806, %v45
    %v9823 = vmul.f32 %v9807, %v45
    %v9824 = vmul.f32 %v9808, %v45
    %v9825 = vmul.f32 %v9809, %v45
    %v9826 = vmul.f32 %v9810, %v45
    %v9827 = vadd.f32 %v9811, %v65
    %v9828 = vadd.f32 %v9812, %v65
    %v9829 = vadd.f32 %v9813, %v65
    %v9830 = vadd.f32 %v9814, %v65
    %v9831 = vadd.f32 %v9815, %v65
    %v9832 = vadd.f32 %v9816, %v65
    %v9833 = vadd.f32 %v9817, %v65
    %v9834 = vadd.f32 %v9818, %v65
    %v9835 = vadd.f32 %v9819, %v65
    %v9836 = vadd.f32 %v9820, %v65
    %v9837 = vadd.f32 %v9821, %v65
    %v9838 = vadd.f32 %v9822, %v65
    %v9839 = vadd.f32 %v9823, %v65
    %v9840 = vadd.f32 %v9824, %v65
    %v9841 = vadd.f32 %v9825, %v65
    %v9842 = vadd.f32 %v9826, %v65
    %v9843 = vmul.f32 %v9827, %v9827
    %v9844 = vmul.f32 %v9828, %v9828
    %v9845 = vmul.f32 %v9829, %v9829
    %v9846 = vmul.f32 %v9830, %v9830
    %v9847 = vmul.f32 %v9831, %v9831
    %v9848 = vmul.f32 %v9832, %v9832
    %v9849 = vmul.f32 %v9833, %v9833
    %v9850 = vmul.f32 %v9834, %v9834
    %v9851 = vmul.f32 %v9835, %v9835
    %v9852 = vmul.f32 %v9836, %v9836
    %v9853 = vmul.f32 %v9837, %v9837
    %v9854 = vmul.f32 %v9838, %v9838
    %v9855 = vmul.f32 %v9839, %v9839
    %v9856 = vmul.f32 %v9840, %v9840
    %v9857 = vmul.f32 %v9841, %v9841
    %v9858 = vmul.f32 %v9842, %v9842
    %v9860 = vsel %vm98, %v9843, 0
    %v9863 = vsel %vm98, %v9844, 0
    %v9866 = vsel %vm98, %v9845, 0
    %v9869 = vsel %vm98, %v9846, 0
    %v9872 = vsel %vm98, %v9847, 0
    %v9875 = vsel %vm98, %v9848, 0
    %v9878 = vsel %vm98, %v9849, 0
    %v9881 = vsel %vm98, %v9850, 0
    %v9884 = vsel %vm98, %v9851, 0
    %v9887 = vsel %vm98, %v9852, 0
    %v9890 = vsel %vm98, %v9853, 0
    %v9893 = vsel %vm98, %v9854, 0
    %v9896 = vsel %vm98, %v9855, 0
    %v9899 = vsel %vm98, %v9856, 0
    %v9902 = vsel %vm98, %v9857, 0
    %v9905 = vsel %vm98, %v9858, 0
    %9907 = vmatprep.subr.mxu0 0.0
    %9908 = vmatpush1.msra.mxu0 1.0
    %9909 = vmatprep.subr.mxu0 0.0
    %9910 = vmatpush1.msra.mxu0 %v149
    %9911 = vmatprep.subr.mxu0 0.0
    %9912 = vmatpush1.msra.mxu0 0.0
    %9913 = vmatprep.subr.mxu0 0.0
    %9914 = vmatpush1.msra.mxu0 0.0
    %9915 = vmatprep.subr.mxu0 0.0
    %9916 = vmatpush1.msra.mxu0 0.0
    %9917 = vmatprep.subr.mxu0 0.0
    %9918 = vmatpush1.msra.mxu0 0.0
    %9919 = vmatprep.subr.mxu0 0.0
    %9920 = vmatpush1.msra.mxu0 0.0
    %9921 = vmatprep.subr.mxu0 0.0
    %9922 = vmatpush1.msra.mxu0 0.0
    %9923 = vmatprep.subr.mxu0 0.0
    %9924 = vmatpush1.msra.mxu0 0.0
    %9925 = vmatprep.subr.mxu0 0.0
    %9926 = vmatpush1.msra.mxu0 0.0
    %9927 = vmatprep.subr.mxu0 0.0
    %9928 = vmatpush1.msra.mxu0 0.0
    %9929 = vmatprep.subr.mxu0 0.0
    %9930 = vmatpush1.msra.mxu0 0.0
    %9931 = vmatprep.subr.mxu0 0.0
    %9932 = vmatpush1.msra.mxu0 0.0
    %9933 = vmatprep.subr.mxu0 0.0
    %9934 = vmatpush1.msra.mxu0 0.0
    %9935 = vmatprep.subr.mxu0 0.0
    %9936 = vmatpush1.msra.mxu0 0.0
    %9937 = vmatprep.subr.mxu0 0.0
    %9938 = vmatpush1.msra.mxu0 0.0
    %9939 = vmatprep.subr.mxu0 0.0
    %9940 = vmatpush1.msra.mxu0 0.0
    %9941 = vmatprep.subr.mxu0 0.0
    %9942 = vmatpush1.msra.mxu0 0.0
    %9943 = vmatprep.subr.mxu0 0.0
    %9944 = vmatpush1.msra.mxu0 0.0
    %9945 = vmatprep.subr.mxu0 0.0
    %9946 = vmatpush1.msra.mxu0 0.0
    %9947 = vmatprep.subr.mxu0 0.0
    %9948 = vmatpush1.msra.mxu0 0.0
    %9949 = vmatprep.subr.mxu0 0.0
    %9950 = vmatpush1.msra.mxu0 0.0
    %9951 = vmatprep.subr.mxu0 0.0
    %9952 = vmatpush1.msra.mxu0 0.0
    %9953 = vmatprep.subr.mxu0 0.0
    %9954 = vmatpush1.msra.mxu0 0.0
    %9955 = vmatprep.subr.mxu0 0.0
    %9956 = vmatpush1.msra.mxu0 0.0
    %9957 = vmatprep.subr.mxu0 0.0
    %9958 = vmatpush1.msra.mxu0 0.0
    %9959 = vmatprep.subr.mxu0 0.0
    %9960 = vmatpush1.msra.mxu0 0.0
    %9961 = vmatprep.subr.mxu0 0.0
    %9962 = vmatpush1.msra.mxu0 0.0
    %9963 = vmatprep.subr.mxu0 0.0
    %9964 = vmatpush1.msra.mxu0 0.0
    %9965 = vmatprep.subr.mxu0 0.0
    %9966 = vmatpush1.msra.mxu0 0.0
    %9967 = vmatprep.subr.mxu0 0.0
    %9968 = vmatpush1.msra.mxu0 0.0
    %9969 = vmatprep.subr.mxu0 0.0
    %9970 = vmatpush1.msra.mxu0 0.0
    %9971 = vmatprep.mubr.f32.mxu0 0.0
    %9972 = vmatmul.mubr.f32.gmra.mrb[0].mxu0 %v9860
    %v9973 = vpop.f32.mrb[0].mxu0
    %v9974 = vadd.f32 9.0, %v9973
    %v9975 = vpop.f32.mrb[0].mxu0
    %9976 = vmatprep.mubr.f32.mxu0 0.0
    %9977 = vmatmul.mubr.f32.gmra.mrb[0].mxu0 %v9863
    %v9978 = vpop.f32.mrb[0].mxu0
    %v9979 = vadd.f32 9.0, %v9978
    %v9980 = vpop.f32.mrb[0].mxu0
    %9981 = vmatprep.mubr.f32.mxu0 0.0
    %9982 = vmatmul.mubr.f32.gmra.mrb[0].mxu0 %v9866
    %v9983 = vpop.f32.mrb[0].mxu0
    %v9984 = vadd.f32 9.0, %v9983
    %v9985 = vpop.f32.mrb[0].mxu0
    %9986 = vmatprep.mubr.f32.mxu0 0.0
    %9987 = vmatmul.mubr.f32.gmra.mrb[0].mxu0 %v9869
    %v9988 = vpop.f32.mrb[0].mxu0
    %v9989 = vadd.f32 9.0, %v9988
    %v9990 = vpop.f32.mrb[0].mxu0
    %9991 = vmatprep.mubr.f32.mxu0 0.0
    %9992 = vmatmul.mubr.f32.gmra.mrb[0].mxu0 %v9872
    %v9993 = vpop.f32.mrb[0].mxu0
    %v9994 = vadd.f32 9.0, %v9993
    %v9995 = vpop.f32.mrb[0].mxu0
    %9996 = vmatprep.mubr.f32.mxu0 0.0
    %9997 = vmatmul.mubr.f32.gmra.mrb[0].mxu0 %v9875
    %v9998 = vpop.f32.mrb[0].mxu0
    %v9999 = vadd.f32 9.0, %v9998
    %v10000 = vpop.f32.mrb[0].mxu0
    %10001 = vmatprep.mubr.f32.mxu0 0.0
    %10002 = vmatmul.mubr.f32.gmra.mrb[0].mxu0 %v9878
    %v10003 = vpop.f32.mrb[0].mxu0
    %v10004 = vadd.f32 9.0, %v10003
    %v10005 = vpop.f32.mrb[0].mxu0
    %10006 = vmatprep.mubr.f32.mxu0 0.0
    %10007 = vmatmul.mubr.f32.gmra.mrb[0].mxu0 %v9881
    %v10008 = vpop.f32.mrb[0].mxu0
    %v10009 = vadd.f32 9.0, %v10008
    %v10010 = vpop.f32.mrb[0].mxu0
    %10011 = vmatprep.mubr.f32.mxu0 0.0
    %10012 = vmatmul.mubr.f32.gmra.mrb[0].mxu0 %v9884
    %v10013 = vpop.f32.mrb[0].mxu0
    %v10014 = vadd.f32 9.0, %v10013
    %v10015 = vpop.f32.mrb[0].mxu0
    %10016 = vmatprep.mubr.f32.mxu0 0.0
    %10017 = vmatmul.mubr.f32.gmra.mrb[0].mxu0 %v9887
    %v10018 = vpop.f32.mrb[0].mxu0
    %v10019 = vadd.f32 9.0, %v10018
    %v10020 = vpop.f32.mrb[0].mxu0
    %10021 = vmatprep.mubr.f32.mxu0 0.0
    %10022 = vmatmul.mubr.f32.gmra.mrb[0].mxu0 %v9890
    %v10023 = vpop.f32.mrb[0].mxu0
    %v10024 = vadd.f32 9.0, %v10023
    %v10025 = vpop.f32.mrb[0].mxu0
    %10026 = vmatprep.mubr.f32.mxu0 0.0
    %10027 = vmatmul.mubr.f32.gmra.mrb[0].mxu0 %v9893
    %v10028 = vpop.f32.mrb[0].mxu0
    %v10029 = vadd.f32 9.0, %v10028
    %v10030 = vpop.f32.mrb[0].mxu0
    %10031 = vmatprep.mubr.f32.mxu0 0.0
    %10032 = vmatmul.mubr.f32.gmra.mrb[0].mxu0 %v9896
    %v10033 = vpop.f32.mrb[0].mxu0
    %v10034 = vadd.f32 9.0, %v10033
    %v10035 = vpop.f32.mrb[0].mxu0
    %10036 = vmatprep.mubr.f32.mxu0 0.0
    %10037 = vmatmul.mubr.f32.gmra.mrb[0].mxu0 %v9899
    %v10038 = vpop.f32.mrb[0].mxu0
    %v10039 = vadd.f32 9.0, %v10038
    %v10040 = vpop.f32.mrb[0].mxu0
    %10041 = vmatprep.mubr.f32.mxu0 0.0
    %10042 = vmatmul.mubr.f32.gmra.mrb[0].mxu0 %v9902
    %v10043 = vpop.f32.mrb[0].mxu0
    %v10044 = vadd.f32 9.0, %v10043
    %v10045 = vpop.f32.mrb[0].mxu0
    %10046 = vmatprep.mubr.f32.mxu0 0.0
    %10047 = vmatmul.mubr.f32.gmra.mrb[0].mxu0 %v9905
    %v10048 = vpop.f32.mrb[0].mxu0
    %v10049 = vadd.f32 9.0, %v10048
    %v10050 = vpop.f32.mrb[0].mxu0
    %10051 = vdwg.mxu0
    %v10052 = vadd.f32 %v9974, 1e-08
    %v10053 = vadd.f32 %v9979, 1e-08
    %v10054 = vadd.f32 %v9984, 1e-08
    %v10055 = vadd.f32 %v9989, 1e-08
    %v10056 = vadd.f32 %v9994, 1e-08
    %v10057 = vadd.f32 %v9999, 1e-08
    %v10058 = vadd.f32 %v10004, 1e-08
    %v10059 = vadd.f32 %v10009, 1e-08
    %v10060 = vadd.f32 %v10014, 1e-08
    %v10061 = vadd.f32 %v10019, 1e-08
    %v10062 = vadd.f32 %v10024, 1e-08
    %v10063 = vadd.f32 %v10029, 1e-08
    %v10064 = vadd.f32 %v10034, 1e-08
    %v10065 = vadd.f32 %v10039, 1e-08
    %v10066 = vadd.f32 %v10044, 1e-08
    %v10067 = vadd.f32 %v10049, 1e-08
    %v10068 = vrsqrt.pop %v10052
    %v10069 = vrsqrt.pop %v10053
    %v10070 = vrsqrt.pop %v10054
    %v10071 = vrsqrt.pop %v10055
    %v10072 = vrsqrt.pop %v10056
    %v10073 = vrsqrt.pop %v10057
    %v10074 = vrsqrt.pop %v10058
    %v10075 = vrsqrt.pop %v10059
    %v10076 = vrsqrt.pop %v10060
    %v10077 = vrsqrt.pop %v10061
    %v10078 = vrsqrt.pop %v10062
    %v10079 = vrsqrt.pop %v10063
    %v10080 = vrsqrt.pop %v10064
    %v10081 = vrsqrt.pop %v10065
    %v10082 = vrsqrt.pop %v10066
    %v10083 = vrsqrt.pop %v10067
    %v10084 = vld [vmem:[%s2] sm:$0xff]
    %v10085 = vld [vmem:[%s2 + $0x8] sm:$0xf]
    %v10087 = vsel %vm98, %v9827, 0
    %v10090 = vsel %vm98, %v9828, 0
    %v10093 = vsel %vm98, %v9829, 0
    %v10096 = vsel %vm98, %v9830, 0
    %v10099 = vsel %vm98, %v9831, 0
    %v10102 = vsel %vm98, %v9832, 0
    %v10105 = vsel %vm98, %v9833, 0
    %v10108 = vsel %vm98, %v9834, 0
    %v10111 = vsel %vm98, %v9835, 0
    %v10114 = vsel %vm98, %v9836, 0
    %v10117 = vsel %vm98, %v9837, 0
    %v10120 = vsel %vm98, %v9838, 0
    %v10123 = vsel %vm98, %v9839, 0
    %v10126 = vsel %vm98, %v9840, 0
    %v10129 = vsel %vm98, %v9841, 0
    %v10132 = vsel %vm98, %v9842, 0
    %v10135 = vsel %vm147, %v10085, 0
    %10137 = vmatprep.subr.mxu0 0.0
    %10138 = vmatpush1.msra.mxu0 %v10084
    %10139 = vmatprep.subr.mxu0 0.0
    %10140 = vmatpush1.msra.mxu0 %v10135
    %10141 = vmatprep.subr.mxu0 0.0
    %10142 = vmatpush1.msra.mxu0 0.0
    %10143 = vmatprep.subr.mxu0 0.0
    %10144 = vmatpush1.msra.mxu0 0.0
    %10145 = vmatprep.subr.mxu0 0.0
    %10146 = vmatpush1.msra.mxu0 0.0
    %10147 = vmatprep.subr.mxu0 0.0
    %10148 = vmatpush1.msra.mxu0 0.0
    %10149 = vmatprep.subr.mxu0 0.0
    %10150 = vmatpush1.msra.mxu0 0.0
    %10151 = vmatprep.subr.mxu0 0.0
    %10152 = vmatpush1.msra.mxu0 0.0
    %10153 = vmatprep.subr.mxu0 0.0
    %10154 = vmatpush1.msra.mxu0 0.0
    %10155 = vmatprep.subr.mxu0 0.0
    %10156 = vmatpush1.msra.mxu0 0.0
    %10157 = vmatprep.subr.mxu0 0.0
    %10158 = vmatpush1.msra.mxu0 0.0
    %10159 = vmatprep.subr.mxu0 0.0
    %10160 = vmatpush1.msra.mxu0 0.0
    %10161 = vmatprep.subr.mxu0 0.0
    %10162 = vmatpush1.msra.mxu0 0.0
    %10163 = vmatprep.subr.mxu0 0.0
    %10164 = vmatpush1.msra.mxu0 0.0
    %10165 = vmatprep.subr.mxu0 0.0
    %10166 = vmatpush1.msra.mxu0 0.0
    %10167 = vmatprep.subr.mxu0 0.0
    %10168 = vmatpush1.msra.mxu0 0.0
    %10169 = vmatprep.subr.mxu0 0.0
    %10170 = vmatpush1.msra.mxu0 0.0
    %10171 = vmatprep.subr.mxu0 0.0
    %10172 = vmatpush1.msra.mxu0 0.0
    %10173 = vmatprep.subr.mxu0 0.0
    %10174 = vmatpush1.msra.mxu0 0.0
    %10175 = vmatprep.subr.mxu0 0.0
    %10176 = vmatpush1.msra.mxu0 0.0
    %10177 = vmatprep.subr.mxu0 0.0
    %10178 = vmatpush1.msra.mxu0 0.0
    %10179 = vmatprep.subr.mxu0 0.0
    %10180 = vmatpush1.msra.mxu0 0.0
    %10181 = vmatprep.subr.mxu0 0.0
    %10182 = vmatpush1.msra.mxu0 0.0
    %10183 = vmatprep.subr.mxu0 0.0
    %10184 = vmatpush1.msra.mxu0 0.0
    %10185 = vmatprep.subr.mxu0 0.0
    %10186 = vmatpush1.msra.mxu0 0.0
    %10187 = vmatprep.subr.mxu0 0.0
    %10188 = vmatpush1.msra.mxu0 0.0
    %10189 = vmatprep.subr.mxu0 0.0
    %10190 = vmatpush1.msra.mxu0 0.0
    %10191 = vmatprep.subr.mxu0 0.0
    %10192 = vmatpush1.msra.mxu0 0.0
    %10193 = vmatprep.subr.mxu0 0.0
    %10194 = vmatpush1.msra.mxu0 0.0
    %10195 = vmatprep.subr.mxu0 0.0
    %10196 = vmatpush1.msra.mxu0 0.0
    %10197 = vmatprep.subr.mxu0 0.0
    %10198 = vmatpush1.msra.mxu0 0.0
    %10199 = vmatprep.subr.mxu0 0.0
    %10200 = vmatpush1.msra.mxu0 0.0
    %10201 = vmatprep.mubr.f32.mxu0 0.0
    %10202 = vmatmul.mubr.f32.gmra.mrb[0].mxu0 %v10087
    %v10203 = vpop.f32.mrb[0].mxu0
    %v10204 = vadd.f32 %v333, %v10203
    %v10205 = vpop.f32.mrb[0].mxu0
    %10206 = vmatprep.mubr.f32.mxu0 0.0
    %10207 = vmatmul.mubr.f32.gmra.mrb[0].mxu0 %v10090
    %v10208 = vpop.f32.mrb[0].mxu0
    %v10209 = vadd.f32 %v333, %v10208
    %v10210 = vpop.f32.mrb[0].mxu0
    %10211 = vmatprep.mubr.f32.mxu0 0.0
    %10212 = vmatmul.mubr.f32.gmra.mrb[0].mxu0 %v10093
    %v10213 = vpop.f32.mrb[0].mxu0
    %v10214 = vadd.f32 %v333, %v10213
    %v10215 = vpop.f32.mrb[0].mxu0
    %10216 = vmatprep.mubr.f32.mxu0 0.0
    %10217 = vmatmul.mubr.f32.gmra.mrb[0].mxu0 %v10096
    %v10218 = vpop.f32.mrb[0].mxu0
    %v10219 = vadd.f32 %v333, %v10218
    %v10220 = vpop.f32.mrb[0].mxu0
    %10221 = vmatprep.mubr.f32.mxu0 0.0
    %10222 = vmatmul.mubr.f32.gmra.mrb[0].mxu0 %v10099
    %v10223 = vpop.f32.mrb[0].mxu0
    %v10224 = vadd.f32 %v333, %v10223
    %v10225 = vpop.f32.mrb[0].mxu0
    %10226 = vmatprep.mubr.f32.mxu0 0.0
    %10227 = vmatmul.mubr.f32.gmra.mrb[0].mxu0 %v10102
    %v10228 = vpop.f32.mrb[0].mxu0
    %v10229 = vadd.f32 %v333, %v10228
    %v10230 = vpop.f32.mrb[0].mxu0
    %10231 = vmatprep.mubr.f32.mxu0 0.0
    %10232 = vmatmul.mubr.f32.gmra.mrb[0].mxu0 %v10105
    %v10233 = vpop.f32.mrb[0].mxu0
    %v10234 = vadd.f32 %v333, %v10233
    %v10235 = vpop.f32.mrb[0].mxu0
    %10236 = vmatprep.mubr.f32.mxu0 0.0
    %10237 = vmatmul.mubr.f32.gmra.mrb[0].mxu0 %v10108
    %v10238 = vpop.f32.mrb[0].mxu0
    %v10239 = vadd.f32 %v333, %v10238
    %v10240 = vpop.f32.mrb[0].mxu0
    %10241 = vmatprep.mubr.f32.mxu0 0.0
    %10242 = vmatmul.mubr.f32.gmra.mrb[0].mxu0 %v10111
    %v10243 = vpop.f32.mrb[0].mxu0
    %v10244 = vadd.f32 %v333, %v10243
    %v10245 = vpop.f32.mrb[0].mxu0
    %10246 = vmatprep.mubr.f32.mxu0 0.0
    %10247 = vmatmul.mubr.f32.gmra.mrb[0].mxu0 %v10114
    %v10248 = vpop.f32.mrb[0].mxu0
    %v10249 = vadd.f32 %v333, %v10248
    %v10250 = vpop.f32.mrb[0].mxu0
    %10251 = vmatprep.mubr.f32.mxu0 0.0
    %10252 = vmatmul.mubr.f32.gmra.mrb[0].mxu0 %v10117
    %v10253 = vpop.f32.mrb[0].mxu0
    %v10254 = vadd.f32 %v333, %v10253
    %v10255 = vpop.f32.mrb[0].mxu0
    %10256 = vmatprep.mubr.f32.mxu0 0.0
    %10257 = vmatmul.mubr.f32.gmra.mrb[0].mxu0 %v10120
    %v10258 = vpop.f32.mrb[0].mxu0
    %v10259 = vadd.f32 %v333, %v10258
    %v10260 = vpop.f32.mrb[0].mxu0
    %10261 = vmatprep.mubr.f32.mxu0 0.0
    %10262 = vmatmul.mubr.f32.gmra.mrb[0].mxu0 %v10123
    %v10263 = vpop.f32.mrb[0].mxu0
    %v10264 = vadd.f32 %v333, %v10263
    %v10265 = vpop.f32.mrb[0].mxu0
    %10266 = vmatprep.mubr.f32.mxu0 0.0
    %10267 = vmatmul.mubr.f32.gmra.mrb[0].mxu0 %v10126
    %v10268 = vpop.f32.mrb[0].mxu0
    %v10269 = vadd.f32 %v333, %v10268
    %v10270 = vpop.f32.mrb[0].mxu0
    %10271 = vmatprep.mubr.f32.mxu0 0.0
    %10272 = vmatmul.mubr.f32.gmra.mrb[0].mxu0 %v10129
    %v10273 = vpop.f32.mrb[0].mxu0
    %v10274 = vadd.f32 %v333, %v10273
    %v10275 = vpop.f32.mrb[0].mxu0
    %10276 = vmatprep.mubr.f32.mxu0 0.0
    %10277 = vmatmul.mubr.f32.gmra.mrb[0].mxu0 %v10132
    %v10278 = vpop.f32.mrb[0].mxu0
    %v10279 = vadd.f32 %v333, %v10278
    %v10280 = vpop.f32.mrb[0].mxu0
    %10281 = vdwg.mxu0
    %10283 = vset.pattern.permute.xlu0 0
    %10284 = vperm.xlu0 %10283, %v10068
    %v10285 = vpop.permute.xlu0 %10284
    %10288 = vset.pattern.permute.xlu0 0
    %10289 = vperm.xlu0 %10288, %v10069
    %v10290 = vpop.permute.xlu0 %10289
    %10293 = vset.pattern.permute.xlu0 0
    %10294 = vperm.xlu0 %10293, %v10070
    %v10295 = vpop.permute.xlu0 %10294
    %10298 = vset.pattern.permute.xlu0 0
    %10299 = vperm.xlu0 %10298, %v10071
    %v10300 = vpop.permute.xlu0 %10299
    %10303 = vset.pattern.permute.xlu0 0
    %10304 = vperm.xlu0 %10303, %v10072
    %v10305 = vpop.permute.xlu0 %10304
    %10308 = vset.pattern.permute.xlu0 0
    %10309 = vperm.xlu0 %10308, %v10073
    %v10310 = vpop.permute.xlu0 %10309
    %10313 = vset.pattern.permute.xlu0 0
    %10314 = vperm.xlu0 %10313, %v10074
    %v10315 = vpop.permute.xlu0 %10314
    %10318 = vset.pattern.permute.xlu0 0
    %10319 = vperm.xlu0 %10318, %v10075
    %v10320 = vpop.permute.xlu0 %10319
    %10323 = vset.pattern.permute.xlu0 0
    %10324 = vperm.xlu0 %10323, %v10076
    %v10325 = vpop.permute.xlu0 %10324
    %10328 = vset.pattern.permute.xlu0 0
    %10329 = vperm.xlu0 %10328, %v10077
    %v10330 = vpop.permute.xlu0 %10329
    %10333 = vset.pattern.permute.xlu0 0
    %10334 = vperm.xlu0 %10333, %v10078
    %v10335 = vpop.permute.xlu0 %10334
    %10338 = vset.pattern.permute.xlu0 0
    %10339 = vperm.xlu0 %10338, %v10079
    %v10340 = vpop.permute.xlu0 %10339
    %10343 = vset.pattern.permute.xlu0 0
    %10344 = vperm.xlu0 %10343, %v10080
    %v10345 = vpop.permute.xlu0 %10344
    %10348 = vset.pattern.permute.xlu0 0
    %10349 = vperm.xlu0 %10348, %v10081
    %v10350 = vpop.permute.xlu0 %10349
    %10353 = vset.pattern.permute.xlu0 0
    %10354 = vperm.xlu0 %10353, %v10082
    %v10355 = vpop.permute.xlu0 %10354
    %10358 = vset.pattern.permute.xlu0 0
    %10359 = vperm.xlu0 %10358, %v10083
    %v10360 = vpop.permute.xlu0 %10359
    %v10362 = vmul.f32 %v10204, %v10285
    %v10363 = vmul.f32 %v10209, %v10290
    %v10364 = vmul.f32 %v10214, %v10295
    %v10365 = vmul.f32 %v10219, %v10300
    %v10366 = vmul.f32 %v10224, %v10305
    %v10367 = vmul.f32 %v10229, %v10310
    %v10368 = vmul.f32 %v10234, %v10315
    %v10369 = vmul.f32 %v10239, %v10320
    %v10370 = vmul.f32 %v10244, %v10325
    %v10371 = vmul.f32 %v10249, %v10330
    %v10372 = vmul.f32 %v10254, %v10335
    %v10373 = vmul.f32 %v10259, %v10340
    %v10374 = vmul.f32 %v10264, %v10345
    %v10375 = vmul.f32 %v10269, %v10350
    %v10376 = vmul.f32 %v10274, %v10355
    %v10377 = vmul.f32 %v10279, %v10360
    %v10378 = vmul.f32 %v10362, %v10362
    %v10379 = vmul.f32 %v10363, %v10363
    %v10380 = vmul.f32 %v10364, %v10364
    %v10381 = vmul.f32 %v10365, %v10365
    %v10382 = vmul.f32 %v10366, %v10366
    %v10383 = vmul.f32 %v10367, %v10367
    %v10384 = vmul.f32 %v10368, %v10368
    %v10385 = vmul.f32 %v10369, %v10369
    %v10386 = vmul.f32 %v10370, %v10370
    %v10387 = vmul.f32 %v10371, %v10371
    %v10388 = vmul.f32 %v10372, %v10372
    %v10389 = vmul.f32 %v10373, %v10373
    %v10390 = vmul.f32 %v10374, %v10374
    %v10391 = vmul.f32 %v10375, %v10375
    %v10392 = vmul.f32 %v10376, %v10376
    %v10393 = vmul.f32 %v10377, %v10377
    %v10395 = vsel %vm642, %v10378, 0
    %v10398 = vsel %vm642, %v10379, 0
    %v10401 = vsel %vm642, %v10380, 0
    %v10404 = vsel %vm642, %v10381, 0
    %v10407 = vsel %vm642, %v10382, 0
    %v10410 = vsel %vm642, %v10383, 0
    %v10413 = vsel %vm642, %v10384, 0
    %v10416 = vsel %vm642, %v10385, 0
    %v10419 = vsel %vm642, %v10386, 0
    %v10422 = vsel %vm642, %v10387, 0
    %v10425 = vsel %vm642, %v10388, 0
    %v10428 = vsel %vm642, %v10389, 0
    %v10431 = vsel %vm642, %v10390, 0
    %v10434 = vsel %vm642, %v10391, 0
    %v10437 = vsel %vm642, %v10392, 0
    %v10440 = vsel %vm642, %v10393, 0
    %10442 = vmatprep.subr.mxu0 0.0
    %10443 = vmatpush1.msra.mxu0 1.0
    %10444 = vmatprep.subr.mxu0 0.0
    %10445 = vmatpush1.msra.mxu0 1.0
    %10446 = vmatprep.subr.mxu0 0.0
    %10447 = vmatpush1.msra.mxu0 1.0
    %10448 = vmatprep.subr.mxu0 0.0
    %10449 = vmatpush1.msra.mxu0 1.0
    %10450 = vmatprep.subr.mxu0 0.0
    %10451 = vmatpush1.msra.mxu0 0.0
    %10452 = vmatprep.subr.mxu0 0.0
    %10453 = vmatpush1.msra.mxu0 0.0
    %10454 = vmatprep.subr.mxu0 0.0
    %10455 = vmatpush1.msra.mxu0 0.0
    %10456 = vmatprep.subr.mxu0 0.0
    %10457 = vmatpush1.msra.mxu0 0.0
    %10458 = vmatprep.subr.mxu0 0.0
    %10459 = vmatpush1.msra.mxu0 0.0
    %10460 = vmatprep.subr.mxu0 0.0
    %10461 = vmatpush1.msra.mxu0 0.0
    %10462 = vmatprep.subr.mxu0 0.0
    %10463 = vmatpush1.msra.mxu0 0.0
    %10464 = vmatprep.subr.mxu0 0.0
    %10465 = vmatpush1.msra.mxu0 0.0
    %10466 = vmatprep.subr.mxu0 0.0
    %10467 = vmatpush1.msra.mxu0 0.0
    %10468 = vmatprep.subr.mxu0 0.0
    %10469 = vmatpush1.msra.mxu0 0.0
    %10470 = vmatprep.subr.mxu0 0.0
    %10471 = vmatpush1.msra.mxu0 0.0
    %10472 = vmatprep.subr.mxu0 0.0
    %10473 = vmatpush1.msra.mxu0 0.0
    %10474 = vmatprep.subr.mxu0 0.0
    %10475 = vmatpush1.msra.mxu0 0.0
    %10476 = vmatprep.subr.mxu0 0.0
    %10477 = vmatpush1.msra.mxu0 0.0
    %10478 = vmatprep.subr.mxu0 0.0
    %10479 = vmatpush1.msra.mxu0 0.0
    %10480 = vmatprep.subr.mxu0 0.0
    %10481 = vmatpush1.msra.mxu0 0.0
    %10482 = vmatprep.subr.mxu0 0.0
    %10483 = vmatpush1.msra.mxu0 0.0
    %10484 = vmatprep.subr.mxu0 0.0
    %10485 = vmatpush1.msra.mxu0 0.0
    %10486 = vmatprep.subr.mxu0 0.0
    %10487 = vmatpush1.msra.mxu0 0.0
    %10488 = vmatprep.subr.mxu0 0.0
    %10489 = vmatpush1.msra.mxu0 0.0
    %10490 = vmatprep.subr.mxu0 0.0
    %10491 = vmatpush1.msra.mxu0 0.0
    %10492 = vmatprep.subr.mxu0 0.0
    %10493 = vmatpush1.msra.mxu0 0.0
    %10494 = vmatprep.subr.mxu0 0.0
    %10495 = vmatpush1.msra.mxu0 0.0
    %10496 = vmatprep.subr.mxu0 0.0
    %10497 = vmatpush1.msra.mxu0 0.0
    %10498 = vmatprep.subr.mxu0 0.0
    %10499 = vmatpush1.msra.mxu0 0.0
    %10500 = vmatprep.subr.mxu0 0.0
    %10501 = vmatpush1.msra.mxu0 0.0
    %10502 = vmatprep.subr.mxu0 0.0
    %10503 = vmatpush1.msra.mxu0 0.0
    %10504 = vmatprep.subr.mxu0 0.0
    %10505 = vmatpush1.msra.mxu0 0.0
    %10506 = vmatprep.mubr.f32.mxu0 0.0
    %10507 = vmatmul.mubr.f32.gmra.mrb[0].mxu0 %v10395
    %v10508 = vpop.f32.mrb[0].mxu0
    %v10509 = vadd.f32 1e-08, %v10508
    %v10510 = vpop.f32.mrb[0].mxu0
    %10511 = vmatprep.mubr.f32.mxu0 0.0
    %10512 = vmatmul.mubr.f32.gmra.mrb[0].mxu0 %v10398
    %v10513 = vpop.f32.mrb[0].mxu0
    %v10514 = vadd.f32 1e-08, %v10513
    %v10515 = vpop.f32.mrb[0].mxu0
    %10516 = vmatprep.mubr.f32.mxu0 0.0
    %10517 = vmatmul.mubr.f32.gmra.mrb[0].mxu0 %v10401
    %v10518 = vpop.f32.mrb[0].mxu0
    %v10519 = vadd.f32 1e-08, %v10518
    %v10520 = vpop.f32.mrb[0].mxu0
    %10521 = vmatprep.mubr.f32.mxu0 0.0
    %10522 = vmatmul.mubr.f32.gmra.mrb[0].mxu0 %v10404
    %v10523 = vpop.f32.mrb[0].mxu0
    %v10524 = vadd.f32 1e-08, %v10523
    %v10525 = vpop.f32.mrb[0].mxu0
    %10526 = vmatprep.mubr.f32.mxu0 0.0
    %10527 = vmatmul.mubr.f32.gmra.mrb[0].mxu0 %v10407
    %v10528 = vpop.f32.mrb[0].mxu0
    %v10529 = vadd.f32 1e-08, %v10528
    %v10530 = vpop.f32.mrb[0].mxu0
    %10531 = vmatprep.mubr.f32.mxu0 0.0
    %10532 = vmatmul.mubr.f32.gmra.mrb[0].mxu0 %v10410
    %v10533 = vpop.f32.mrb[0].mxu0
    %v10534 = vadd.f32 1e-08, %v10533
    %v10535 = vpop.f32.mrb[0].mxu0
    %10536 = vmatprep.mubr.f32.mxu0 0.0
    %10537 = vmatmul.mubr.f32.gmra.mrb[0].mxu0 %v10413
    %v10538 = vpop.f32.mrb[0].mxu0
    %v10539 = vadd.f32 1e-08, %v10538
    %v10540 = vpop.f32.mrb[0].mxu0
    %10541 = vmatprep.mubr.f32.mxu0 0.0
    %10542 = vmatmul.mubr.f32.gmra.mrb[0].mxu0 %v10416
    %v10543 = vpop.f32.mrb[0].mxu0
    %v10544 = vadd.f32 1e-08, %v10543
    %v10545 = vpop.f32.mrb[0].mxu0
    %10546 = vmatprep.mubr.f32.mxu0 0.0
    %10547 = vmatmul.mubr.f32.gmra.mrb[0].mxu0 %v10419
    %v10548 = vpop.f32.mrb[0].mxu0
    %v10549 = vadd.f32 1e-08, %v10548
    %v10550 = vpop.f32.mrb[0].mxu0
    %10551 = vmatprep.mubr.f32.mxu0 0.0
    %10552 = vmatmul.mubr.f32.gmra.mrb[0].mxu0 %v10422
    %v10553 = vpop.f32.mrb[0].mxu0
    %v10554 = vadd.f32 1e-08, %v10553
    %v10555 = vpop.f32.mrb[0].mxu0
    %10556 = vmatprep.mubr.f32.mxu0 0.0
    %10557 = vmatmul.mubr.f32.gmra.mrb[0].mxu0 %v10425
    %v10558 = vpop.f32.mrb[0].mxu0
    %v10559 = vadd.f32 1e-08, %v10558
    %v10560 = vpop.f32.mrb[0].mxu0
    %10561 = vmatprep.mubr.f32.mxu0 0.0
    %10562 = vmatmul.mubr.f32.gmra.mrb[0].mxu0 %v10428
    %v10563 = vpop.f32.mrb[0].mxu0
    %v10564 = vadd.f32 1e-08, %v10563
    %v10565 = vpop.f32.mrb[0].mxu0
    %10566 = vmatprep.mubr.f32.mxu0 0.0
    %10567 = vmatmul.mubr.f32.gmra.mrb[0].mxu0 %v10431
    %v10568 = vpop.f32.mrb[0].mxu0
    %v10569 = vadd.f32 1e-08, %v10568
    %v10570 = vpop.f32.mrb[0].mxu0
    %10571 = vmatprep.mubr.f32.mxu0 0.0
    %10572 = vmatmul.mubr.f32.gmra.mrb[0].mxu0 %v10434
    %v10573 = vpop.f32.mrb[0].mxu0
    %v10574 = vadd.f32 1e-08, %v10573
    %v10575 = vpop.f32.mrb[0].mxu0
    %10576 = vmatprep.mubr.f32.mxu0 0.0
    %10577 = vmatmul.mubr.f32.gmra.mrb[0].mxu0 %v10437
    %v10578 = vpop.f32.mrb[0].mxu0
    %v10579 = vadd.f32 1e-08, %v10578
    %v10580 = vpop.f32.mrb[0].mxu0
    %10581 = vmatprep.mubr.f32.mxu0 0.0
    %10582 = vmatmul.mubr.f32.gmra.mrb[0].mxu0 %v10440
    %v10583 = vpop.f32.mrb[0].mxu0
    %v10584 = vadd.f32 1e-08, %v10583
    %v10585 = vpop.f32.mrb[0].mxu0
    %10586 = vdwg.mxu0
    %v10587 = vrsqrt.pop %v10509
    %v10588 = vrsqrt.pop %v10514
    %v10589 = vrsqrt.pop %v10519
    %v10590 = vrsqrt.pop %v10524
    %v10591 = vrsqrt.pop %v10529
    %v10592 = vrsqrt.pop %v10534
    %v10593 = vrsqrt.pop %v10539
    %v10594 = vrsqrt.pop %v10544
    %v10595 = vrsqrt.pop %v10549
    %v10596 = vrsqrt.pop %v10554
    %v10597 = vrsqrt.pop %v10559
    %v10598 = vrsqrt.pop %v10564
    %v10599 = vrsqrt.pop %v10569
    %v10600 = vrsqrt.pop %v10574
    %v10601 = vrsqrt.pop %v10579
    %v10602 = vrsqrt.pop %v10584
    %10604 = vset.pattern.permute.xlu0 0
    %10605 = vperm.xlu0 %10604, %v10587
    %v10606 = vpop.permute.xlu0 %10605
    %10609 = vset.pattern.permute.xlu0 0
    %10610 = vperm.xlu0 %10609, %v10588
    %v10611 = vpop.permute.xlu0 %10610
    %10614 = vset.pattern.permute.xlu0 0
    %10615 = vperm.xlu0 %10614, %v10589
    %v10616 = vpop.permute.xlu0 %10615
    %10619 = vset.pattern.permute.xlu0 0
    %10620 = vperm.xlu0 %10619, %v10590
    %v10621 = vpop.permute.xlu0 %10620
    %10624 = vset.pattern.permute.xlu0 0
    %10625 = vperm.xlu0 %10624, %v10591
    %v10626 = vpop.permute.xlu0 %10625
    %10629 = vset.pattern.permute.xlu0 0
    %10630 = vperm.xlu0 %10629, %v10592
    %v10631 = vpop.permute.xlu0 %10630
    %10634 = vset.pattern.permute.xlu0 0
    %10635 = vperm.xlu0 %10634, %v10593
    %v10636 = vpop.permute.xlu0 %10635
    %10639 = vset.pattern.permute.xlu0 0
    %10640 = vperm.xlu0 %10639, %v10594
    %v10641 = vpop.permute.xlu0 %10640
    %10644 = vset.pattern.permute.xlu0 0
    %10645 = vperm.xlu0 %10644, %v10595
    %v10646 = vpop.permute.xlu0 %10645
    %10649 = vset.pattern.permute.xlu0 0
    %10650 = vperm.xlu0 %10649, %v10596
    %v10651 = vpop.permute.xlu0 %10650
    %10654 = vset.pattern.permute.xlu0 0
    %10655 = vperm.xlu0 %10654, %v10597
    %v10656 = vpop.permute.xlu0 %10655
    %10659 = vset.pattern.permute.xlu0 0
    %10660 = vperm.xlu0 %10659, %v10598
    %v10661 = vpop.permute.xlu0 %10660
    %10664 = vset.pattern.permute.xlu0 0
    %10665 = vperm.xlu0 %10664, %v10599
    %v10666 = vpop.permute.xlu0 %10665
    %10669 = vset.pattern.permute.xlu0 0
    %10670 = vperm.xlu0 %10669, %v10600
    %v10671 = vpop.permute.xlu0 %10670
    %10674 = vset.pattern.permute.xlu0 0
    %10675 = vperm.xlu0 %10674, %v10601
    %v10676 = vpop.permute.xlu0 %10675
    %10679 = vset.pattern.permute.xlu0 0
    %10680 = vperm.xlu0 %10679, %v10602
    %v10681 = vpop.permute.xlu0 %10680
    %v10683 = vmul.f32 %v10362, %v10606
    %v10684 = vmul.f32 %v10363, %v10611
    %v10685 = vmul.f32 %v10364, %v10616
    %v10686 = vmul.f32 %v10365, %v10621
    %v10687 = vmul.f32 %v10366, %v10626
    %v10688 = vmul.f32 %v10367, %v10631
    %v10689 = vmul.f32 %v10368, %v10636
    %v10690 = vmul.f32 %v10369, %v10641
    %v10691 = vmul.f32 %v10370, %v10646
    %v10692 = vmul.f32 %v10371, %v10651
    %v10693 = vmul.f32 %v10372, %v10656
    %v10694 = vmul.f32 %v10373, %v10661
    %v10695 = vmul.f32 %v10374, %v10666
    %v10696 = vmul.f32 %v10375, %v10671
    %v10697 = vmul.f32 %v10376, %v10676
    %v10698 = vmul.f32 %v10377, %v10681
    %v10699 = vld [vmem:[%s3] sm:$0xff]
    %v10700 = vld [vmem:[%s3 + $0x8] sm:$0xff]
    %v10701 = vld [vmem:[%s3 + $0x10] sm:$0xff]
    %v10702 = vld [vmem:[%s3 + $0x18] sm:$0xff]
    %v10704 = vsel %vm642, %v10683, 0
    %v10707 = vsel %vm642, %v10684, 0
    %v10710 = vsel %vm642, %v10685, 0
    %v10713 = vsel %vm642, %v10686, 0
    %v10716 = vsel %vm642, %v10687, 0
    %v10719 = vsel %vm642, %v10688, 0
    %v10722 = vsel %vm642, %v10689, 0
    %v10725 = vsel %vm642, %v10690, 0
    %v10728 = vsel %vm642, %v10691, 0
    %v10731 = vsel %vm642, %v10692, 0
    %v10734 = vsel %vm642, %v10693, 0
    %v10737 = vsel %vm642, %v10694, 0
    %v10740 = vsel %vm642, %v10695, 0
    %v10743 = vsel %vm642, %v10696, 0
    %v10746 = vsel %vm642, %v10697, 0
    %v10749 = vsel %vm642, %v10698, 0
    %10751 = vmatprep.subr.mxu0 0.0
    %10752 = vmatpush1.msra.mxu0 %v10699
    %10753 = vmatprep.subr.mxu0 0.0
    %10754 = vmatpush1.msra.mxu0 %v10700
    %10755 = vmatprep.subr.mxu0 0.0
    %10756 = vmatpush1.msra.mxu0 %v10701
    %10757 = vmatprep.subr.mxu0 0.0
    %10758 = vmatpush1.msra.mxu0 %v10702
    %10759 = vmatprep.subr.mxu0 0.0
    %10760 = vmatpush1.msra.mxu0 0.0
    %10761 = vmatprep.subr.mxu0 0.0
    %10762 = vmatpush1.msra.mxu0 0.0
    %10763 = vmatprep.subr.mxu0 0.0
    %10764 = vmatpush1.msra.mxu0 0.0
    %10765 = vmatprep.subr.mxu0 0.0
    %10766 = vmatpush1.msra.mxu0 0.0
    %10767 = vmatprep.subr.mxu0 0.0
    %10768 = vmatpush1.msra.mxu0 0.0
    %10769 = vmatprep.subr.mxu0 0.0
    %10770 = vmatpush1.msra.mxu0 0.0
    %10771 = vmatprep.subr.mxu0 0.0
    %10772 = vmatpush1.msra.mxu0 0.0
    %10773 = vmatprep.subr.mxu0 0.0
    %10774 = vmatpush1.msra.mxu0 0.0
    %10775 = vmatprep.subr.mxu0 0.0
    %10776 = vmatpush1.msra.mxu0 0.0
    %10777 = vmatprep.subr.mxu0 0.0
    %10778 = vmatpush1.msra.mxu0 0.0
    %10779 = vmatprep.subr.mxu0 0.0
    %10780 = vmatpush1.msra.mxu0 0.0
    %10781 = vmatprep.subr.mxu0 0.0
    %10782 = vmatpush1.msra.mxu0 0.0
    %10783 = vmatprep.subr.mxu0 0.0
    %10784 = vmatpush1.msra.mxu0 0.0
    %10785 = vmatprep.subr.mxu0 0.0
    %10786 = vmatpush1.msra.mxu0 0.0
    %10787 = vmatprep.subr.mxu0 0.0
    %10788 = vmatpush1.msra.mxu0 0.0
    %10789 = vmatprep.subr.mxu0 0.0
    %10790 = vmatpush1.msra.mxu0 0.0
    %10791 = vmatprep.subr.mxu0 0.0
    %10792 = vmatpush1.msra.mxu0 0.0
    %10793 = vmatprep.subr.mxu0 0.0
    %10794 = vmatpush1.msra.mxu0 0.0
    %10795 = vmatprep.subr.mxu0 0.0
    %10796 = vmatpush1.msra.mxu0 0.0
    %10797 = vmatprep.subr.mxu0 0.0
    %10798 = vmatpush1.msra.mxu0 0.0
    %10799 = vmatprep.subr.mxu0 0.0
    %10800 = vmatpush1.msra.mxu0 0.0
    %10801 = vmatprep.subr.mxu0 0.0
    %10802 = vmatpush1.msra.mxu0 0.0
    %10803 = vmatprep.subr.mxu0 0.0
    %10804 = vmatpush1.msra.mxu0 0.0
    %10805 = vmatprep.subr.mxu0 0.0
    %10806 = vmatpush1.msra.mxu0 0.0
    %10807 = vmatprep.subr.mxu0 0.0
    %10808 = vmatpush1.msra.mxu0 0.0
    %10809 = vmatprep.subr.mxu0 0.0
    %10810 = vmatpush1.msra.mxu0 0.0
    %10811 = vmatprep.subr.mxu0 0.0
    %10812 = vmatpush1.msra.mxu0 0.0
    %10813 = vmatprep.subr.mxu0 0.0
    %10814 = vmatpush1.msra.mxu0 0.0
    %10815 = vmatprep.mubr.f32.mxu0 0.0
    %10816 = vmatmul.mubr.f32.gmra.mrb[0].mxu0 %v10704
    %v10817 = vpop.f32.mrb[0].mxu0
    %v10818 = vadd.f32 0.0, %v10817
    %v10819 = vpop.f32.mrb[0].mxu0
    %10820 = vmatprep.mubr.f32.mxu0 0.0
    %10821 = vmatmul.mubr.f32.gmra.mrb[0].mxu0 %v10707
    %v10822 = vpop.f32.mrb[0].mxu0
    %v10823 = vadd.f32 0.0, %v10822
    %v10824 = vpop.f32.mrb[0].mxu0
    %10825 = vmatprep.mubr.f32.mxu0 0.0
    %10826 = vmatmul.mubr.f32.gmra.mrb[0].mxu0 %v10710
    %v10827 = vpop.f32.mrb[0].mxu0
    %v10828 = vadd.f32 0.0, %v10827
    %v10829 = vpop.f32.mrb[0].mxu0
    %10830 = vmatprep.mubr.f32.mxu0 0.0
    %10831 = vmatmul.mubr.f32.gmra.mrb[0].mxu0 %v10713
    %v10832 = vpop.f32.mrb[0].mxu0
    %v10833 = vadd.f32 0.0, %v10832
    %v10834 = vpop.f32.mrb[0].mxu0
    %10835 = vmatprep.mubr.f32.mxu0 0.0
    %10836 = vmatmul.mubr.f32.gmra.mrb[0].mxu0 %v10716
    %v10837 = vpop.f32.mrb[0].mxu0
    %v10838 = vadd.f32 0.0, %v10837
    %v10839 = vpop.f32.mrb[0].mxu0
    %10840 = vmatprep.mubr.f32.mxu0 0.0
    %10841 = vmatmul.mubr.f32.gmra.mrb[0].mxu0 %v10719
    %v10842 = vpop.f32.mrb[0].mxu0
    %v10843 = vadd.f32 0.0, %v10842
    %v10844 = vpop.f32.mrb[0].mxu0
    %10845 = vmatprep.mubr.f32.mxu0 0.0
    %10846 = vmatmul.mubr.f32.gmra.mrb[0].mxu0 %v10722
    %v10847 = vpop.f32.mrb[0].mxu0
    %v10848 = vadd.f32 0.0, %v10847
    %v10849 = vpop.f32.mrb[0].mxu0
    %10850 = vmatprep.mubr.f32.mxu0 0.0
    %10851 = vmatmul.mubr.f32.gmra.mrb[0].mxu0 %v10725
    %v10852 = vpop.f32.mrb[0].mxu0
    %v10853 = vadd.f32 0.0, %v10852
    %v10854 = vpop.f32.mrb[0].mxu0
    %10855 = vmatprep.mubr.f32.mxu0 0.0
    %10856 = vmatmul.mubr.f32.gmra.mrb[0].mxu0 %v10728
    %v10857 = vpop.f32.mrb[0].mxu0
    %v10858 = vadd.f32 0.0, %v10857
    %v10859 = vpop.f32.mrb[0].mxu0
    %10860 = vmatprep.mubr.f32.mxu0 0.0
    %10861 = vmatmul.mubr.f32.gmra.mrb[0].mxu0 %v10731
    %v10862 = vpop.f32.mrb[0].mxu0
    %v10863 = vadd.f32 0.0, %v10862
    %v10864 = vpop.f32.mrb[0].mxu0
    %10865 = vmatprep.mubr.f32.mxu0 0.0
    %10866 = vmatmul.mubr.f32.gmra.mrb[0].mxu0 %v10734
    %v10867 = vpop.f32.mrb[0].mxu0
    %v10868 = vadd.f32 0.0, %v10867
    %v10869 = vpop.f32.mrb[0].mxu0
    %10870 = vmatprep.mubr.f32.mxu0 0.0
    %10871 = vmatmul.mubr.f32.gmra.mrb[0].mxu0 %v10737
    %v10872 = vpop.f32.mrb[0].mxu0
    %v10873 = vadd.f32 0.0, %v10872
    %v10874 = vpop.f32.mrb[0].mxu0
    %10875 = vmatprep.mubr.f32.mxu0 0.0
    %10876 = vmatmul.mubr.f32.gmra.mrb[0].mxu0 %v10740
    %v10877 = vpop.f32.mrb[0].mxu0
    %v10878 = vadd.f32 0.0, %v10877
    %v10879 = vpop.f32.mrb[0].mxu0
    %10880 = vmatprep.mubr.f32.mxu0 0.0
    %10881 = vmatmul.mubr.f32.gmra.mrb[0].mxu0 %v10743
    %v10882 = vpop.f32.mrb[0].mxu0
    %v10883 = vadd.f32 0.0, %v10882
    %v10884 = vpop.f32.mrb[0].mxu0
    %10885 = vmatprep.mubr.f32.mxu0 0.0
    %10886 = vmatmul.mubr.f32.gmra.mrb[0].mxu0 %v10746
    %v10887 = vpop.f32.mrb[0].mxu0
    %v10888 = vadd.f32 0.0, %v10887
    %v10889 = vpop.f32.mrb[0].mxu0
    %10890 = vmatprep.mubr.f32.mxu0 0.0
    %10891 = vmatmul.mubr.f32.gmra.mrb[0].mxu0 %v10749
    %v10892 = vpop.f32.mrb[0].mxu0
    %v10893 = vadd.f32 0.0, %v10892
    %v10894 = vpop.f32.mrb[0].mxu0
    %10895 = vdwg.mxu0
    %v10896 = vmax.f32 %v10818, 0.0
    %v10897 = vmax.f32 %v10823, 0.0
    %v10898 = vmax.f32 %v10828, 0.0
    %v10899 = vmax.f32 %v10833, 0.0
    %v10900 = vmax.f32 %v10838, 0.0
    %v10901 = vmax.f32 %v10843, 0.0
    %v10902 = vmax.f32 %v10848, 0.0
    %v10903 = vmax.f32 %v10853, 0.0
    %v10904 = vmax.f32 %v10858, 0.0
    %v10905 = vmax.f32 %v10863, 0.0
    %v10906 = vmax.f32 %v10868, 0.0
    %v10907 = vmax.f32 %v10873, 0.0
    %v10908 = vmax.f32 %v10878, 0.0
    %v10909 = vmax.f32 %v10883, 0.0
    %v10910 = vmax.f32 %v10888, 0.0
    %v10911 = vmax.f32 %v10893, 0.0
    %v10912 = vld [vmem:[%s4] sm:$0xff]
    %v10913 = vld [vmem:[%s4 + $0x8] sm:$0xff]
    %v10914 = vld [vmem:[%s4 + $0x10] sm:$0xff]
    %v10915 = vld [vmem:[%s4 + $0x18] sm:$0xff]
    %v10916 = vld [vmem:[%s4 + $0x20] sm:$0xff]
    %v10917 = vld [vmem:[%s4 + $0x28] sm:$0xff]
    %v10918 = vld [vmem:[%s4 + $0x30] sm:$0xff]
    %v10919 = vld [vmem:[%s4 + $0x38] sm:$0xff]
    %v10920 = vld [vmem:[%s4 + $0x40] sm:$0xff]
    %v10921 = vld [vmem:[%s4 + $0x48] sm:$0xff]
    %v10922 = vld [vmem:[%s4 + $0x50] sm:$0xff]
    %v10923 = vld [vmem:[%s4 + $0x58] sm:$0xff]
    %v10924 = vld [vmem:[%s4 + $0x60] sm:$0xff]
    %v10925 = vld [vmem:[%s4 + $0x68] sm:$0xff]
    %v10926 = vld [vmem:[%s4 + $0x70] sm:$0xff]
    %v10927 = vld [vmem:[%s4 + $0x78] sm:$0xff]
    %10928 = vmatprep.subr.mxu0 0.0
    %10929 = vmatpush1.msra.mxu0 %v10912
    %10930 = vmatprep.subr.mxu0 0.0
    %10931 = vmatpush1.msra.mxu0 %v10913
    %10932 = vmatprep.subr.mxu0 0.0
    %10933 = vmatpush1.msra.mxu0 %v10914
    %10934 = vmatprep.subr.mxu0 0.0
    %10935 = vmatpush1.msra.mxu0 %v10915
    %10936 = vmatprep.subr.mxu0 0.0
    %10937 = vmatpush1.msra.mxu0 %v10916
    %10938 = vmatprep.subr.mxu0 0.0
    %10939 = vmatpush1.msra.mxu0 %v10917
    %10940 = vmatprep.subr.mxu0 0.0
    %10941 = vmatpush1.msra.mxu0 %v10918
    %10942 = vmatprep.subr.mxu0 0.0
    %10943 = vmatpush1.msra.mxu0 %v10919
    %10944 = vmatprep.subr.mxu0 0.0
    %10945 = vmatpush1.msra.mxu0 %v10920
    %10946 = vmatprep.subr.mxu0 0.0
    %10947 = vmatpush1.msra.mxu0 %v10921
    %10948 = vmatprep.subr.mxu0 0.0
    %10949 = vmatpush1.msra.mxu0 %v10922
    %10950 = vmatprep.subr.mxu0 0.0
    %10951 = vmatpush1.msra.mxu0 %v10923
    %10952 = vmatprep.subr.mxu0 0.0
    %10953 = vmatpush1.msra.mxu0 %v10924
    %10954 = vmatprep.subr.mxu0 0.0
    %10955 = vmatpush1.msra.mxu0 %v10925
    %10956 = vmatprep.subr.mxu0 0.0
    %10957 = vmatpush1.msra.mxu0 %v10926
    %10958 = vmatprep.subr.mxu0 0.0
    %10959 = vmatpush1.msra.mxu0 %v10927
    %10960 = vmatprep.subr.mxu0 0.0
    %10961 = vmatpush1.msra.mxu0 0.0
    %10962 = vmatprep.subr.mxu0 0.0
    %10963 = vmatpush1.msra.mxu0 0.0
    %10964 = vmatprep.subr.mxu0 0.0
    %10965 = vmatpush1.msra.mxu0 0.0
    %10966 = vmatprep.subr.mxu0 0.0
    %10967 = vmatpush1.msra.mxu0 0.0
    %10968 = vmatprep.subr.mxu0 0.0
    %10969 = vmatpush1.msra.mxu0 0.0
    %10970 = vmatprep.subr.mxu0 0.0
    %10971 = vmatpush1.msra.mxu0 0.0
    %10972 = vmatprep.subr.mxu0 0.0
    %10973 = vmatpush1.msra.mxu0 0.0
    %10974 = vmatprep.subr.mxu0 0.0
    %10975 = vmatpush1.msra.mxu0 0.0
    %10976 = vmatprep.subr.mxu0 0.0
    %10977 = vmatpush1.msra.mxu0 0.0
    %10978 = vmatprep.subr.mxu0 0.0
    %10979 = vmatpush1.msra.mxu0 0.0
    %10980 = vmatprep.subr.mxu0 0.0
    %10981 = vmatpush1.msra.mxu0 0.0
    %10982 = vmatprep.subr.mxu0 0.0
    %10983 = vmatpush1.msra.mxu0 0.0
    %10984 = vmatprep.subr.mxu0 0.0
    %10985 = vmatpush1.msra.mxu0 0.0
    %10986 = vmatprep.subr.mxu0 0.0
    %10987 = vmatpush1.msra.mxu0 0.0
    %10988 = vmatprep.subr.mxu0 0.0
    %10989 = vmatpush1.msra.mxu0 0.0
    %10990 = vmatprep.subr.mxu0 0.0
    %10991 = vmatpush1.msra.mxu0 0.0
    %10992 = vmatprep.mubr.f32.mxu0 0.0
    %10993 = vmatmul.mubr.f32.gmra.mrb[0].mxu0 %v10896
    %v10994 = vpop.f32.mrb[0].mxu0
    %v10995 = vadd.f32 0.0, %v10994
    %v10996 = vpop.f32.mrb[0].mxu0
    %10997 = vmatprep.mubr.f32.mxu0 0.0
    %10998 = vmatmul.mubr.f32.gmra.mrb[0].mxu0 %v10897
    %v10999 = vpop.f32.mrb[0].mxu0
    %v11000 = vadd.f32 0.0, %v10999
    %v11001 = vpop.f32.mrb[0].mxu0
    %11002 = vmatprep.mubr.f32.mxu0 0.0
    %11003 = vmatmul.mubr.f32.gmra.mrb[0].mxu0 %v10898
    %v11004 = vpop.f32.mrb[0].mxu0
    %v11005 = vadd.f32 0.0, %v11004
    %v11006 = vpop.f32.mrb[0].mxu0
    %11007 = vmatprep.mubr.f32.mxu0 0.0
    %11008 = vmatmul.mubr.f32.gmra.mrb[0].mxu0 %v10899
    %v11009 = vpop.f32.mrb[0].mxu0
    %v11010 = vadd.f32 0.0, %v11009
    %v11011 = vpop.f32.mrb[0].mxu0
    %11012 = vmatprep.mubr.f32.mxu0 0.0
    %11013 = vmatmul.mubr.f32.gmra.mrb[0].mxu0 %v10900
    %v11014 = vpop.f32.mrb[0].mxu0
    %v11015 = vadd.f32 0.0, %v11014
    %v11016 = vpop.f32.mrb[0].mxu0
    %11017 = vmatprep.mubr.f32.mxu0 0.0
    %11018 = vmatmul.mubr.f32.gmra.mrb[0].mxu0 %v10901
    %v11019 = vpop.f32.mrb[0].mxu0
    %v11020 = vadd.f32 0.0, %v11019
    %v11021 = vpop.f32.mrb[0].mxu0
    %11022 = vmatprep.mubr.f32.mxu0 0.0
    %11023 = vmatmul.mubr.f32.gmra.mrb[0].mxu0 %v10902
    %v11024 = vpop.f32.mrb[0].mxu0
    %v11025 = vadd.f32 0.0, %v11024
    %v11026 = vpop.f32.mrb[0].mxu0
    %11027 = vmatprep.mubr.f32.mxu0 0.0
    %11028 = vmatmul.mubr.f32.gmra.mrb[0].mxu0 %v10903
    %v11029 = vpop.f32.mrb[0].mxu0
    %v11030 = vadd.f32 0.0, %v11029
    %v11031 = vpop.f32.mrb[0].mxu0
    %11032 = vmatprep.mubr.f32.mxu0 0.0
    %11033 = vmatmul.mubr.f32.gmra.mrb[0].mxu0 %v10904
    %v11034 = vpop.f32.mrb[0].mxu0
    %v11035 = vadd.f32 0.0, %v11034
    %v11036 = vpop.f32.mrb[0].mxu0
    %11037 = vmatprep.mubr.f32.mxu0 0.0
    %11038 = vmatmul.mubr.f32.gmra.mrb[0].mxu0 %v10905
    %v11039 = vpop.f32.mrb[0].mxu0
    %v11040 = vadd.f32 0.0, %v11039
    %v11041 = vpop.f32.mrb[0].mxu0
    %11042 = vmatprep.mubr.f32.mxu0 0.0
    %11043 = vmatmul.mubr.f32.gmra.mrb[0].mxu0 %v10906
    %v11044 = vpop.f32.mrb[0].mxu0
    %v11045 = vadd.f32 0.0, %v11044
    %v11046 = vpop.f32.mrb[0].mxu0
    %11047 = vmatprep.mubr.f32.mxu0 0.0
    %11048 = vmatmul.mubr.f32.gmra.mrb[0].mxu0 %v10907
    %v11049 = vpop.f32.mrb[0].mxu0
    %v11050 = vadd.f32 0.0, %v11049
    %v11051 = vpop.f32.mrb[0].mxu0
    %11052 = vmatprep.mubr.f32.mxu0 0.0
    %11053 = vmatmul.mubr.f32.gmra.mrb[0].mxu0 %v10908
    %v11054 = vpop.f32.mrb[0].mxu0
    %v11055 = vadd.f32 0.0, %v11054
    %v11056 = vpop.f32.mrb[0].mxu0
    %11057 = vmatprep.mubr.f32.mxu0 0.0
    %11058 = vmatmul.mubr.f32.gmra.mrb[0].mxu0 %v10909
    %v11059 = vpop.f32.mrb[0].mxu0
    %v11060 = vadd.f32 0.0, %v11059
    %v11061 = vpop.f32.mrb[0].mxu0
    %11062 = vmatprep.mubr.f32.mxu0 0.0
    %11063 = vmatmul.mubr.f32.gmra.mrb[0].mxu0 %v10910
    %v11064 = vpop.f32.mrb[0].mxu0
    %v11065 = vadd.f32 0.0, %v11064
    %v11066 = vpop.f32.mrb[0].mxu0
    %11067 = vmatprep.mubr.f32.mxu0 0.0
    %11068 = vmatmul.mubr.f32.gmra.mrb[0].mxu0 %v10911
    %v11069 = vpop.f32.mrb[0].mxu0
    %v11070 = vadd.f32 0.0, %v11069
    %v11071 = vpop.f32.mrb[0].mxu0
    %11072 = vdwg.mxu0
    %v11073 = vmul.f32 %v10995, %v10995
    %v11074 = vmul.f32 %v11000, %v11000
    %v11075 = vmul.f32 %v11005, %v11005
    %v11076 = vmul.f32 %v11010, %v11010
    %v11077 = vmul.f32 %v11015, %v11015
    %v11078 = vmul.f32 %v11020, %v11020
    %v11079 = vmul.f32 %v11025, %v11025
    %v11080 = vmul.f32 %v11030, %v11030
    %v11081 = vmul.f32 %v11035, %v11035
    %v11082 = vmul.f32 %v11040, %v11040
    %v11083 = vmul.f32 %v11045, %v11045
    %v11084 = vmul.f32 %v11050, %v11050
    %v11085 = vmul.f32 %v11055, %v11055
    %v11086 = vmul.f32 %v11060, %v11060
    %v11087 = vmul.f32 %v11065, %v11065
    %v11088 = vmul.f32 %v11070, %v11070
    %v11090 = vsel %vm642, %v11073, 0
    %v11093 = vsel %vm642, %v11074, 0
    %v11096 = vsel %vm642, %v11075, 0
    %v11099 = vsel %vm642, %v11076, 0
    %v11102 = vsel %vm642, %v11077, 0
    %v11105 = vsel %vm642, %v11078, 0
    %v11108 = vsel %vm642, %v11079, 0
    %v11111 = vsel %vm642, %v11080, 0
    %v11114 = vsel %vm642, %v11081, 0
    %v11117 = vsel %vm642, %v11082, 0
    %v11120 = vsel %vm642, %v11083, 0
    %v11123 = vsel %vm642, %v11084, 0
    %v11126 = vsel %vm642, %v11085, 0
    %v11129 = vsel %vm642, %v11086, 0
    %v11132 = vsel %vm642, %v11087, 0
    %v11135 = vsel %vm642, %v11088, 0
    %11137 = vmatprep.subr.mxu0 0.0
    %11138 = vmatpush1.msra.mxu0 1.0
    %11139 = vmatprep.subr.mxu0 0.0
    %11140 = vmatpush1.msra.mxu0 1.0
    %11141 = vmatprep.subr.mxu0 0.0
    %11142 = vmatpush1.msra.mxu0 1.0
    %11143 = vmatprep.subr.mxu0 0.0
    %11144 = vmatpush1.msra.mxu0 1.0
    %11145 = vmatprep.subr.mxu0 0.0
    %11146 = vmatpush1.msra.mxu0 0.0
    %11147 = vmatprep.subr.mxu0 0.0
    %11148 = vmatpush1.msra.mxu0 0.0
    %11149 = vmatprep.subr.mxu0 0.0
    %11150 = vmatpush1.msra.mxu0 0.0
    %11151 = vmatprep.subr.mxu0 0.0
    %11152 = vmatpush1.msra.mxu0 0.0
    %11153 = vmatprep.subr.mxu0 0.0
    %11154 = vmatpush1.msra.mxu0 0.0
    %11155 = vmatprep.subr.mxu0 0.0
    %11156 = vmatpush1.msra.mxu0 0.0
    %11157 = vmatprep.subr.mxu0 0.0
    %11158 = vmatpush1.msra.mxu0 0.0
    %11159 = vmatprep.subr.mxu0 0.0
    %11160 = vmatpush1.msra.mxu0 0.0
    %11161 = vmatprep.subr.mxu0 0.0
    %11162 = vmatpush1.msra.mxu0 0.0
    %11163 = vmatprep.subr.mxu0 0.0
    %11164 = vmatpush1.msra.mxu0 0.0
    %11165 = vmatprep.subr.mxu0 0.0
    %11166 = vmatpush1.msra.mxu0 0.0
    %11167 = vmatprep.subr.mxu0 0.0
    %11168 = vmatpush1.msra.mxu0 0.0
    %11169 = vmatprep.subr.mxu0 0.0
    %11170 = vmatpush1.msra.mxu0 0.0
    %11171 = vmatprep.subr.mxu0 0.0
    %11172 = vmatpush1.msra.mxu0 0.0
    %11173 = vmatprep.subr.mxu0 0.0
    %11174 = vmatpush1.msra.mxu0 0.0
    %11175 = vmatprep.subr.mxu0 0.0
    %11176 = vmatpush1.msra.mxu0 0.0
    %11177 = vmatprep.subr.mxu0 0.0
    %11178 = vmatpush1.msra.mxu0 0.0
    %11179 = vmatprep.subr.mxu0 0.0
    %11180 = vmatpush1.msra.mxu0 0.0
    %11181 = vmatprep.subr.mxu0 0.0
    %11182 = vmatpush1.msra.mxu0 0.0
    %11183 = vmatprep.subr.mxu0 0.0
    %11184 = vmatpush1.msra.mxu0 0.0
    %11185 = vmatprep.subr.mxu0 0.0
    %11186 = vmatpush1.msra.mxu0 0.0
    %11187 = vmatprep.subr.mxu0 0.0
    %11188 = vmatpush1.msra.mxu0 0.0
    %11189 = vmatprep.subr.mxu0 0.0
    %11190 = vmatpush1.msra.mxu0 0.0
    %11191 = vmatprep.subr.mxu0 0.0
    %11192 = vmatpush1.msra.mxu0 0.0
    %11193 = vmatprep.subr.mxu0 0.0
    %11194 = vmatpush1.msra.mxu0 0.0
    %11195 = vmatprep.subr.mxu0 0.0
    %11196 = vmatpush1.msra.mxu0 0.0
    %11197 = vmatprep.subr.mxu0 0.0
    %11198 = vmatpush1.msra.mxu0 0.0
    %11199 = vmatprep.subr.mxu0 0.0
    %11200 = vmatpush1.msra.mxu0 0.0
    %11201 = vmatprep.mubr.f32.mxu0 0.0
    %11202 = vmatmul.mubr.f32.gmra.mrb[0].mxu0 %v11090
    %v11203 = vpop.f32.mrb[0].mxu0
    %v11204 = vadd.f32 1e-08, %v11203
    %v11205 = vpop.f32.mrb[0].mxu0
    %11206 = vmatprep.mubr.f32.mxu0 0.0
    %11207 = vmatmul.mubr.f32.gmra.mrb[0].mxu0 %v11093
    %v11208 = vpop.f32.mrb[0].mxu0
    %v11209 = vadd.f32 1e-08, %v11208
    %v11210 = vpop.f32.mrb[0].mxu0
    %11211 = vmatprep.mubr.f32.mxu0 0.0
    %11212 = vmatmul.mubr.f32.gmra.mrb[0].mxu0 %v11096
    %v11213 = vpop.f32.mrb[0].mxu0
    %v11214 = vadd.f32 1e-08, %v11213
    %v11215 = vpop.f32.mrb[0].mxu0
    %11216 = vmatprep.mubr.f32.mxu0 0.0
    %11217 = vmatmul.mubr.f32.gmra.mrb[0].mxu0 %v11099
    %v11218 = vpop.f32.mrb[0].mxu0
    %v11219 = vadd.f32 1e-08, %v11218
    %v11220 = vpop.f32.mrb[0].mxu0
    %11221 = vmatprep.mubr.f32.mxu0 0.0
    %11222 = vmatmul.mubr.f32.gmra.mrb[0].mxu0 %v11102
    %v11223 = vpop.f32.mrb[0].mxu0
    %v11224 = vadd.f32 1e-08, %v11223
    %v11225 = vpop.f32.mrb[0].mxu0
    %11226 = vmatprep.mubr.f32.mxu0 0.0
    %11227 = vmatmul.mubr.f32.gmra.mrb[0].mxu0 %v11105
    %v11228 = vpop.f32.mrb[0].mxu0
    %v11229 = vadd.f32 1e-08, %v11228
    %v11230 = vpop.f32.mrb[0].mxu0
    %11231 = vmatprep.mubr.f32.mxu0 0.0
    %11232 = vmatmul.mubr.f32.gmra.mrb[0].mxu0 %v11108
    %v11233 = vpop.f32.mrb[0].mxu0
    %v11234 = vadd.f32 1e-08, %v11233
    %v11235 = vpop.f32.mrb[0].mxu0
    %11236 = vmatprep.mubr.f32.mxu0 0.0
    %11237 = vmatmul.mubr.f32.gmra.mrb[0].mxu0 %v11111
    %v11238 = vpop.f32.mrb[0].mxu0
    %v11239 = vadd.f32 1e-08, %v11238
    %v11240 = vpop.f32.mrb[0].mxu0
    %11241 = vmatprep.mubr.f32.mxu0 0.0
    %11242 = vmatmul.mubr.f32.gmra.mrb[0].mxu0 %v11114
    %v11243 = vpop.f32.mrb[0].mxu0
    %v11244 = vadd.f32 1e-08, %v11243
    %v11245 = vpop.f32.mrb[0].mxu0
    %11246 = vmatprep.mubr.f32.mxu0 0.0
    %11247 = vmatmul.mubr.f32.gmra.mrb[0].mxu0 %v11117
    %v11248 = vpop.f32.mrb[0].mxu0
    %v11249 = vadd.f32 1e-08, %v11248
    %v11250 = vpop.f32.mrb[0].mxu0
    %11251 = vmatprep.mubr.f32.mxu0 0.0
    %11252 = vmatmul.mubr.f32.gmra.mrb[0].mxu0 %v11120
    %v11253 = vpop.f32.mrb[0].mxu0
    %v11254 = vadd.f32 1e-08, %v11253
    %v11255 = vpop.f32.mrb[0].mxu0
    %11256 = vmatprep.mubr.f32.mxu0 0.0
    %11257 = vmatmul.mubr.f32.gmra.mrb[0].mxu0 %v11123
    %v11258 = vpop.f32.mrb[0].mxu0
    %v11259 = vadd.f32 1e-08, %v11258
    %v11260 = vpop.f32.mrb[0].mxu0
    %11261 = vmatprep.mubr.f32.mxu0 0.0
    %11262 = vmatmul.mubr.f32.gmra.mrb[0].mxu0 %v11126
    %v11263 = vpop.f32.mrb[0].mxu0
    %v11264 = vadd.f32 1e-08, %v11263
    %v11265 = vpop.f32.mrb[0].mxu0
    %11266 = vmatprep.mubr.f32.mxu0 0.0
    %11267 = vmatmul.mubr.f32.gmra.mrb[0].mxu0 %v11129
    %v11268 = vpop.f32.mrb[0].mxu0
    %v11269 = vadd.f32 1e-08, %v11268
    %v11270 = vpop.f32.mrb[0].mxu0
    %11271 = vmatprep.mubr.f32.mxu0 0.0
    %11272 = vmatmul.mubr.f32.gmra.mrb[0].mxu0 %v11132
    %v11273 = vpop.f32.mrb[0].mxu0
    %v11274 = vadd.f32 1e-08, %v11273
    %v11275 = vpop.f32.mrb[0].mxu0
    %11276 = vmatprep.mubr.f32.mxu0 0.0
    %11277 = vmatmul.mubr.f32.gmra.mrb[0].mxu0 %v11135
    %v11278 = vpop.f32.mrb[0].mxu0
    %v11279 = vadd.f32 1e-08, %v11278
    %v11280 = vpop.f32.mrb[0].mxu0
    %11281 = vdwg.mxu0
    %v11282 = vrsqrt.pop %v11204
    %v11283 = vrsqrt.pop %v11209
    %v11284 = vrsqrt.pop %v11214
    %v11285 = vrsqrt.pop %v11219
    %v11286 = vrsqrt.pop %v11224
    %v11287 = vrsqrt.pop %v11229
    %v11288 = vrsqrt.pop %v11234
    %v11289 = vrsqrt.pop %v11239
    %v11290 = vrsqrt.pop %v11244
    %v11291 = vrsqrt.pop %v11249
    %v11292 = vrsqrt.pop %v11254
    %v11293 = vrsqrt.pop %v11259
    %v11294 = vrsqrt.pop %v11264
    %v11295 = vrsqrt.pop %v11269
    %v11296 = vrsqrt.pop %v11274
    %v11297 = vrsqrt.pop %v11279
    %11299 = vset.pattern.permute.xlu0 0
    %11300 = vperm.xlu0 %11299, %v11282
    %v11301 = vpop.permute.xlu0 %11300
    %11304 = vset.pattern.permute.xlu0 0
    %11305 = vperm.xlu0 %11304, %v11283
    %v11306 = vpop.permute.xlu0 %11305
    %11309 = vset.pattern.permute.xlu0 0
    %11310 = vperm.xlu0 %11309, %v11284
    %v11311 = vpop.permute.xlu0 %11310
    %11314 = vset.pattern.permute.xlu0 0
    %11315 = vperm.xlu0 %11314, %v11285
    %v11316 = vpop.permute.xlu0 %11315
    %11319 = vset.pattern.permute.xlu0 0
    %11320 = vperm.xlu0 %11319, %v11286
    %v11321 = vpop.permute.xlu0 %11320
    %11324 = vset.pattern.permute.xlu0 0
    %11325 = vperm.xlu0 %11324, %v11287
    %v11326 = vpop.permute.xlu0 %11325
    %11329 = vset.pattern.permute.xlu0 0
    %11330 = vperm.xlu0 %11329, %v11288
    %v11331 = vpop.permute.xlu0 %11330
    %11334 = vset.pattern.permute.xlu0 0
    %11335 = vperm.xlu0 %11334, %v11289
    %v11336 = vpop.permute.xlu0 %11335
    %11339 = vset.pattern.permute.xlu0 0
    %11340 = vperm.xlu0 %11339, %v11290
    %v11341 = vpop.permute.xlu0 %11340
    %11344 = vset.pattern.permute.xlu0 0
    %11345 = vperm.xlu0 %11344, %v11291
    %v11346 = vpop.permute.xlu0 %11345
    %11349 = vset.pattern.permute.xlu0 0
    %11350 = vperm.xlu0 %11349, %v11292
    %v11351 = vpop.permute.xlu0 %11350
    %11354 = vset.pattern.permute.xlu0 0
    %11355 = vperm.xlu0 %11354, %v11293
    %v11356 = vpop.permute.xlu0 %11355
    %11359 = vset.pattern.permute.xlu0 0
    %11360 = vperm.xlu0 %11359, %v11294
    %v11361 = vpop.permute.xlu0 %11360
    %11364 = vset.pattern.permute.xlu0 0
    %11365 = vperm.xlu0 %11364, %v11295
    %v11366 = vpop.permute.xlu0 %11365
    %11369 = vset.pattern.permute.xlu0 0
    %11370 = vperm.xlu0 %11369, %v11296
    %v11371 = vpop.permute.xlu0 %11370
    %11374 = vset.pattern.permute.xlu0 0
    %11375 = vperm.xlu0 %11374, %v11297
    %v11376 = vpop.permute.xlu0 %11375
    %v11378 = vmul.f32 %v10995, %v11301
    %v11379 = vmul.f32 %v11000, %v11306
    %v11380 = vmul.f32 %v11005, %v11311
    %v11381 = vmul.f32 %v11010, %v11316
    %v11382 = vmul.f32 %v11015, %v11321
    %v11383 = vmul.f32 %v11020, %v11326
    %v11384 = vmul.f32 %v11025, %v11331
    %v11385 = vmul.f32 %v11030, %v11336
    %v11386 = vmul.f32 %v11035, %v11341
    %v11387 = vmul.f32 %v11040, %v11346
    %v11388 = vmul.f32 %v11045, %v11351
    %v11389 = vmul.f32 %v11050, %v11356
    %v11390 = vmul.f32 %v11055, %v11361
    %v11391 = vmul.f32 %v11060, %v11366
    %v11392 = vmul.f32 %v11065, %v11371
    %v11393 = vmul.f32 %v11070, %v11376
    %v11394 = vsub.f32 %v11378, %v10683
    %v11395 = vsub.f32 %v11379, %v10684
    %v11396 = vsub.f32 %v11380, %v10685
    %v11397 = vsub.f32 %v11381, %v10686
    %v11398 = vsub.f32 %v11382, %v10687
    %v11399 = vsub.f32 %v11383, %v10688
    %v11400 = vsub.f32 %v11384, %v10689
    %v11401 = vsub.f32 %v11385, %v10690
    %v11402 = vsub.f32 %v11386, %v10691
    %v11403 = vsub.f32 %v11387, %v10692
    %v11404 = vsub.f32 %v11388, %v10693
    %v11405 = vsub.f32 %v11389, %v10694
    %v11406 = vsub.f32 %v11390, %v10695
    %v11407 = vsub.f32 %v11391, %v10696
    %v11408 = vsub.f32 %v11392, %v10697
    %v11409 = vsub.f32 %v11393, %v10698
    %v11410 = vmul.f32 %v1662, %v11394
    %v11411 = vmul.f32 %v1662, %v11395
    %v11412 = vmul.f32 %v1662, %v11396
    %v11413 = vmul.f32 %v1662, %v11397
    %v11414 = vmul.f32 %v1662, %v11398
    %v11415 = vmul.f32 %v1662, %v11399
    %v11416 = vmul.f32 %v1662, %v11400
    %v11417 = vmul.f32 %v1662, %v11401
    %v11418 = vmul.f32 %v1662, %v11402
    %v11419 = vmul.f32 %v1662, %v11403
    %v11420 = vmul.f32 %v1662, %v11404
    %v11421 = vmul.f32 %v1662, %v11405
    %v11422 = vmul.f32 %v1662, %v11406
    %v11423 = vmul.f32 %v1662, %v11407
    %v11424 = vmul.f32 %v1662, %v11408
    %v11425 = vmul.f32 %v1662, %v11409
    %v11426 = vadd.f32 %v10683, %v11410
    %v11427 = vadd.f32 %v10684, %v11411
    %v11428 = vadd.f32 %v10685, %v11412
    %v11429 = vadd.f32 %v10686, %v11413
    %v11430 = vadd.f32 %v10687, %v11414
    %v11431 = vadd.f32 %v10688, %v11415
    %v11432 = vadd.f32 %v10689, %v11416
    %v11433 = vadd.f32 %v10690, %v11417
    %v11434 = vadd.f32 %v10691, %v11418
    %v11435 = vadd.f32 %v10692, %v11419
    %v11436 = vadd.f32 %v10693, %v11420
    %v11437 = vadd.f32 %v10694, %v11421
    %v11438 = vadd.f32 %v10695, %v11422
    %v11439 = vadd.f32 %v10696, %v11423
    %v11440 = vadd.f32 %v10697, %v11424
    %v11441 = vadd.f32 %v10698, %v11425
    %v11442 = vmul.f32 %v11426, %v11426
    %v11443 = vmul.f32 %v11427, %v11427
    %v11444 = vmul.f32 %v11428, %v11428
    %v11445 = vmul.f32 %v11429, %v11429
    %v11446 = vmul.f32 %v11430, %v11430
    %v11447 = vmul.f32 %v11431, %v11431
    %v11448 = vmul.f32 %v11432, %v11432
    %v11449 = vmul.f32 %v11433, %v11433
    %v11450 = vmul.f32 %v11434, %v11434
    %v11451 = vmul.f32 %v11435, %v11435
    %v11452 = vmul.f32 %v11436, %v11436
    %v11453 = vmul.f32 %v11437, %v11437
    %v11454 = vmul.f32 %v11438, %v11438
    %v11455 = vmul.f32 %v11439, %v11439
    %v11456 = vmul.f32 %v11440, %v11440
    %v11457 = vmul.f32 %v11441, %v11441
    %v11459 = vsel %vm642, %v11442, 0
    %v11462 = vsel %vm642, %v11443, 0
    %v11465 = vsel %vm642, %v11444, 0
    %v11468 = vsel %vm642, %v11445, 0
    %v11471 = vsel %vm642, %v11446, 0
    %v11474 = vsel %vm642, %v11447, 0
    %v11477 = vsel %vm642, %v11448, 0
    %v11480 = vsel %vm642, %v11449, 0
    %v11483 = vsel %vm642, %v11450, 0
    %v11486 = vsel %vm642, %v11451, 0
    %v11489 = vsel %vm642, %v11452, 0
    %v11492 = vsel %vm642, %v11453, 0
    %v11495 = vsel %vm642, %v11454, 0
    %v11498 = vsel %vm642, %v11455, 0
    %v11501 = vsel %vm642, %v11456, 0
    %v11504 = vsel %vm642, %v11457, 0
    %11506 = vmatprep.subr.mxu0 0.0
    %11507 = vmatpush1.msra.mxu0 1.0
    %11508 = vmatprep.subr.mxu0 0.0
    %11509 = vmatpush1.msra.mxu0 1.0
    %11510 = vmatprep.subr.mxu0 0.0
    %11511 = vmatpush1.msra.mxu0 1.0
    %11512 = vmatprep.subr.mxu0 0.0
    %11513 = vmatpush1.msra.mxu0 1.0
    %11514 = vmatprep.subr.mxu0 0.0
    %11515 = vmatpush1.msra.mxu0 0.0
    %11516 = vmatprep.subr.mxu0 0.0
    %11517 = vmatpush1.msra.mxu0 0.0
    %11518 = vmatprep.subr.mxu0 0.0
    %11519 = vmatpush1.msra.mxu0 0.0
    %11520 = vmatprep.subr.mxu0 0.0
    %11521 = vmatpush1.msra.mxu0 0.0
    %11522 = vmatprep.subr.mxu0 0.0
    %11523 = vmatpush1.msra.mxu0 0.0
    %11524 = vmatprep.subr.mxu0 0.0
    %11525 = vmatpush1.msra.mxu0 0.0
    %11526 = vmatprep.subr.mxu0 0.0
    %11527 = vmatpush1.msra.mxu0 0.0
    %11528 = vmatprep.subr.mxu0 0.0
    %11529 = vmatpush1.msra.mxu0 0.0
    %11530 = vmatprep.subr.mxu0 0.0
    %11531 = vmatpush1.msra.mxu0 0.0
    %11532 = vmatprep.subr.mxu0 0.0
    %11533 = vmatpush1.msra.mxu0 0.0
    %11534 = vmatprep.subr.mxu0 0.0
    %11535 = vmatpush1.msra.mxu0 0.0
    %11536 = vmatprep.subr.mxu0 0.0
    %11537 = vmatpush1.msra.mxu0 0.0
    %11538 = vmatprep.subr.mxu0 0.0
    %11539 = vmatpush1.msra.mxu0 0.0
    %11540 = vmatprep.subr.mxu0 0.0
    %11541 = vmatpush1.msra.mxu0 0.0
    %11542 = vmatprep.subr.mxu0 0.0
    %11543 = vmatpush1.msra.mxu0 0.0
    %11544 = vmatprep.subr.mxu0 0.0
    %11545 = vmatpush1.msra.mxu0 0.0
    %11546 = vmatprep.subr.mxu0 0.0
    %11547 = vmatpush1.msra.mxu0 0.0
    %11548 = vmatprep.subr.mxu0 0.0
    %11549 = vmatpush1.msra.mxu0 0.0
    %11550 = vmatprep.subr.mxu0 0.0
    %11551 = vmatpush1.msra.mxu0 0.0
    %11552 = vmatprep.subr.mxu0 0.0
    %11553 = vmatpush1.msra.mxu0 0.0
    %11554 = vmatprep.subr.mxu0 0.0
    %11555 = vmatpush1.msra.mxu0 0.0
    %11556 = vmatprep.subr.mxu0 0.0
    %11557 = vmatpush1.msra.mxu0 0.0
    %11558 = vmatprep.subr.mxu0 0.0
    %11559 = vmatpush1.msra.mxu0 0.0
    %11560 = vmatprep.subr.mxu0 0.0
    %11561 = vmatpush1.msra.mxu0 0.0
    %11562 = vmatprep.subr.mxu0 0.0
    %11563 = vmatpush1.msra.mxu0 0.0
    %11564 = vmatprep.subr.mxu0 0.0
    %11565 = vmatpush1.msra.mxu0 0.0
    %11566 = vmatprep.subr.mxu0 0.0
    %11567 = vmatpush1.msra.mxu0 0.0
    %11568 = vmatprep.subr.mxu0 0.0
    %11569 = vmatpush1.msra.mxu0 0.0
    %11570 = vmatprep.mubr.f32.mxu0 0.0
    %11571 = vmatmul.mubr.f32.gmra.mrb[0].mxu0 %v11459
    %v11572 = vpop.f32.mrb[0].mxu0
    %v11573 = vadd.f32 1e-08, %v11572
    %v11574 = vpop.f32.mrb[0].mxu0
    %11575 = vmatprep.mubr.f32.mxu0 0.0
    %11576 = vmatmul.mubr.f32.gmra.mrb[0].mxu0 %v11462
    %v11577 = vpop.f32.mrb[0].mxu0
    %v11578 = vadd.f32 1e-08, %v11577
    %v11579 = vpop.f32.mrb[0].mxu0
    %11580 = vmatprep.mubr.f32.mxu0 0.0
    %11581 = vmatmul.mubr.f32.gmra.mrb[0].mxu0 %v11465
    %v11582 = vpop.f32.mrb[0].mxu0
    %v11583 = vadd.f32 1e-08, %v11582
    %v11584 = vpop.f32.mrb[0].mxu0
    %11585 = vmatprep.mubr.f32.mxu0 0.0
    %11586 = vmatmul.mubr.f32.gmra.mrb[0].mxu0 %v11468
    %v11587 = vpop.f32.mrb[0].mxu0
    %v11588 = vadd.f32 1e-08, %v11587
    %v11589 = vpop.f32.mrb[0].mxu0
    %11590 = vmatprep.mubr.f32.mxu0 0.0
    %11591 = vmatmul.mubr.f32.gmra.mrb[0].mxu0 %v11471
    %v11592 = vpop.f32.mrb[0].mxu0
    %v11593 = vadd.f32 1e-08, %v11592
    %v11594 = vpop.f32.mrb[0].mxu0
    %11595 = vmatprep.mubr.f32.mxu0 0.0
    %11596 = vmatmul.mubr.f32.gmra.mrb[0].mxu0 %v11474
    %v11597 = vpop.f32.mrb[0].mxu0
    %v11598 = vadd.f32 1e-08, %v11597
    %v11599 = vpop.f32.mrb[0].mxu0
    %11600 = vmatprep.mubr.f32.mxu0 0.0
    %11601 = vmatmul.mubr.f32.gmra.mrb[0].mxu0 %v11477
    %v11602 = vpop.f32.mrb[0].mxu0
    %v11603 = vadd.f32 1e-08, %v11602
    %v11604 = vpop.f32.mrb[0].mxu0
    %11605 = vmatprep.mubr.f32.mxu0 0.0
    %11606 = vmatmul.mubr.f32.gmra.mrb[0].mxu0 %v11480
    %v11607 = vpop.f32.mrb[0].mxu0
    %v11608 = vadd.f32 1e-08, %v11607
    %v11609 = vpop.f32.mrb[0].mxu0
    %11610 = vmatprep.mubr.f32.mxu0 0.0
    %11611 = vmatmul.mubr.f32.gmra.mrb[0].mxu0 %v11483
    %v11612 = vpop.f32.mrb[0].mxu0
    %v11613 = vadd.f32 1e-08, %v11612
    %v11614 = vpop.f32.mrb[0].mxu0
    %11615 = vmatprep.mubr.f32.mxu0 0.0
    %11616 = vmatmul.mubr.f32.gmra.mrb[0].mxu0 %v11486
    %v11617 = vpop.f32.mrb[0].mxu0
    %v11618 = vadd.f32 1e-08, %v11617
    %v11619 = vpop.f32.mrb[0].mxu0
    %11620 = vmatprep.mubr.f32.mxu0 0.0
    %11621 = vmatmul.mubr.f32.gmra.mrb[0].mxu0 %v11489
    %v11622 = vpop.f32.mrb[0].mxu0
    %v11623 = vadd.f32 1e-08, %v11622
    %v11624 = vpop.f32.mrb[0].mxu0
    %11625 = vmatprep.mubr.f32.mxu0 0.0
    %11626 = vmatmul.mubr.f32.gmra.mrb[0].mxu0 %v11492
    %v11627 = vpop.f32.mrb[0].mxu0
    %v11628 = vadd.f32 1e-08, %v11627
    %v11629 = vpop.f32.mrb[0].mxu0
    %11630 = vmatprep.mubr.f32.mxu0 0.0
    %11631 = vmatmul.mubr.f32.gmra.mrb[0].mxu0 %v11495
    %v11632 = vpop.f32.mrb[0].mxu0
    %v11633 = vadd.f32 1e-08, %v11632
    %v11634 = vpop.f32.mrb[0].mxu0
    %11635 = vmatprep.mubr.f32.mxu0 0.0
    %11636 = vmatmul.mubr.f32.gmra.mrb[0].mxu0 %v11498
    %v11637 = vpop.f32.mrb[0].mxu0
    %v11638 = vadd.f32 1e-08, %v11637
    %v11639 = vpop.f32.mrb[0].mxu0
    %11640 = vmatprep.mubr.f32.mxu0 0.0
    %11641 = vmatmul.mubr.f32.gmra.mrb[0].mxu0 %v11501
    %v11642 = vpop.f32.mrb[0].mxu0
    %v11643 = vadd.f32 1e-08, %v11642
    %v11644 = vpop.f32.mrb[0].mxu0
    %11645 = vmatprep.mubr.f32.mxu0 0.0
    %11646 = vmatmul.mubr.f32.gmra.mrb[0].mxu0 %v11504
    %v11647 = vpop.f32.mrb[0].mxu0
    %v11648 = vadd.f32 1e-08, %v11647
    %v11649 = vpop.f32.mrb[0].mxu0
    %11650 = vdwg.mxu0
    %v11651 = vrsqrt.pop %v11573
    %v11652 = vrsqrt.pop %v11578
    %v11653 = vrsqrt.pop %v11583
    %v11654 = vrsqrt.pop %v11588
    %v11655 = vrsqrt.pop %v11593
    %v11656 = vrsqrt.pop %v11598
    %v11657 = vrsqrt.pop %v11603
    %v11658 = vrsqrt.pop %v11608
    %v11659 = vrsqrt.pop %v11613
    %v11660 = vrsqrt.pop %v11618
    %v11661 = vrsqrt.pop %v11623
    %v11662 = vrsqrt.pop %v11628
    %v11663 = vrsqrt.pop %v11633
    %v11664 = vrsqrt.pop %v11638
    %v11665 = vrsqrt.pop %v11643
    %v11666 = vrsqrt.pop %v11648
    %11668 = vset.pattern.permute.xlu0 0
    %11669 = vperm.xlu0 %11668, %v11651
    %v11670 = vpop.permute.xlu0 %11669
    %11673 = vset.pattern.permute.xlu0 0
    %11674 = vperm.xlu0 %11673, %v11652
    %v11675 = vpop.permute.xlu0 %11674
    %11678 = vset.pattern.permute.xlu0 0
    %11679 = vperm.xlu0 %11678, %v11653
    %v11680 = vpop.permute.xlu0 %11679
    %11683 = vset.pattern.permute.xlu0 0
    %11684 = vperm.xlu0 %11683, %v11654
    %v11685 = vpop.permute.xlu0 %11684
    %11688 = vset.pattern.permute.xlu0 0
    %11689 = vperm.xlu0 %11688, %v11655
    %v11690 = vpop.permute.xlu0 %11689
    %11693 = vset.pattern.permute.xlu0 0
    %11694 = vperm.xlu0 %11693, %v11656
    %v11695 = vpop.permute.xlu0 %11694
    %11698 = vset.pattern.permute.xlu0 0
    %11699 = vperm.xlu0 %11698, %v11657
    %v11700 = vpop.permute.xlu0 %11699
    %11703 = vset.pattern.permute.xlu0 0
    %11704 = vperm.xlu0 %11703, %v11658
    %v11705 = vpop.permute.xlu0 %11704
    %11708 = vset.pattern.permute.xlu0 0
    %11709 = vperm.xlu0 %11708, %v11659
    %v11710 = vpop.permute.xlu0 %11709
    %11713 = vset.pattern.permute.xlu0 0
    %11714 = vperm.xlu0 %11713, %v11660
    %v11715 = vpop.permute.xlu0 %11714
    %11718 = vset.pattern.permute.xlu0 0
    %11719 = vperm.xlu0 %11718, %v11661
    %v11720 = vpop.permute.xlu0 %11719
    %11723 = vset.pattern.permute.xlu0 0
    %11724 = vperm.xlu0 %11723, %v11662
    %v11725 = vpop.permute.xlu0 %11724
    %11728 = vset.pattern.permute.xlu0 0
    %11729 = vperm.xlu0 %11728, %v11663
    %v11730 = vpop.permute.xlu0 %11729
    %11733 = vset.pattern.permute.xlu0 0
    %11734 = vperm.xlu0 %11733, %v11664
    %v11735 = vpop.permute.xlu0 %11734
    %11738 = vset.pattern.permute.xlu0 0
    %11739 = vperm.xlu0 %11738, %v11665
    %v11740 = vpop.permute.xlu0 %11739
    %11743 = vset.pattern.permute.xlu0 0
    %11744 = vperm.xlu0 %11743, %v11666
    %v11745 = vpop.permute.xlu0 %11744
    %v11747 = vmul.f32 %v11426, %v11670
    %v11748 = vmul.f32 %v11427, %v11675
    %v11749 = vmul.f32 %v11428, %v11680
    %v11750 = vmul.f32 %v11429, %v11685
    %v11751 = vmul.f32 %v11430, %v11690
    %v11752 = vmul.f32 %v11431, %v11695
    %v11753 = vmul.f32 %v11432, %v11700
    %v11754 = vmul.f32 %v11433, %v11705
    %v11755 = vmul.f32 %v11434, %v11710
    %v11756 = vmul.f32 %v11435, %v11715
    %v11757 = vmul.f32 %v11436, %v11720
    %v11758 = vmul.f32 %v11437, %v11725
    %v11759 = vmul.f32 %v11438, %v11730
    %v11760 = vmul.f32 %v11439, %v11735
    %v11761 = vmul.f32 %v11440, %v11740
    %v11762 = vmul.f32 %v11441, %v11745
    %v11763 = vld [vmem:[%s2016] sm:$0xff]
    %v11764 = vld [vmem:[%s2016 + $0x8] sm:$0xff]
    %v11765 = vld [vmem:[%s2016 + $0x10] sm:$0xff]
    %v11766 = vld [vmem:[%s2016 + $0x18] sm:$0xff]
    %v11768 = vsel %vm642, %v11747, 0
    %v11771 = vsel %vm642, %v11748, 0
    %v11774 = vsel %vm642, %v11749, 0
    %v11777 = vsel %vm642, %v11750, 0
    %v11780 = vsel %vm642, %v11751, 0
    %v11783 = vsel %vm642, %v11752, 0
    %v11786 = vsel %vm642, %v11753, 0
    %v11789 = vsel %vm642, %v11754, 0
    %v11792 = vsel %vm642, %v11755, 0
    %v11795 = vsel %vm642, %v11756, 0
    %v11798 = vsel %vm642, %v11757, 0
    %v11801 = vsel %vm642, %v11758, 0
    %v11804 = vsel %vm642, %v11759, 0
    %v11807 = vsel %vm642, %v11760, 0
    %v11810 = vsel %vm642, %v11761, 0
    %v11813 = vsel %vm642, %v11762, 0
    %11815 = vmatprep.subr.mxu0 0.0
    %11816 = vmatpush1.msra.mxu0 %v11763
    %11817 = vmatprep.subr.mxu0 0.0
    %11818 = vmatpush1.msra.mxu0 %v11764
    %11819 = vmatprep.subr.mxu0 0.0
    %11820 = vmatpush1.msra.mxu0 %v11765
    %11821 = vmatprep.subr.mxu0 0.0
    %11822 = vmatpush1.msra.mxu0 %v11766
    %11823 = vmatprep.subr.mxu0 0.0
    %11824 = vmatpush1.msra.mxu0 0.0
    %11825 = vmatprep.subr.mxu0 0.0
    %11826 = vmatpush1.msra.mxu0 0.0
    %11827 = vmatprep.subr.mxu0 0.0
    %11828 = vmatpush1.msra.mxu0 0.0
    %11829 = vmatprep.subr.mxu0 0.0
    %11830 = vmatpush1.msra.mxu0 0.0
    %11831 = vmatprep.subr.mxu0 0.0
    %11832 = vmatpush1.msra.mxu0 0.0
    %11833 = vmatprep.subr.mxu0 0.0
    %11834 = vmatpush1.msra.mxu0 0.0
    %11835 = vmatprep.subr.mxu0 0.0
    %11836 = vmatpush1.msra.mxu0 0.0
    %11837 = vmatprep.subr.mxu0 0.0
    %11838 = vmatpush1.msra.mxu0 0.0
    %11839 = vmatprep.subr.mxu0 0.0
    %11840 = vmatpush1.msra.mxu0 0.0
    %11841 = vmatprep.subr.mxu0 0.0
    %11842 = vmatpush1.msra.mxu0 0.0
    %11843 = vmatprep.subr.mxu0 0.0
    %11844 = vmatpush1.msra.mxu0 0.0
    %11845 = vmatprep.subr.mxu0 0.0
    %11846 = vmatpush1.msra.mxu0 0.0
    %11847 = vmatprep.subr.mxu0 0.0
    %11848 = vmatpush1.msra.mxu0 0.0
    %11849 = vmatprep.subr.mxu0 0.0
    %11850 = vmatpush1.msra.mxu0 0.0
    %11851 = vmatprep.subr.mxu0 0.0
    %11852 = vmatpush1.msra.mxu0 0.0
    %11853 = vmatprep.subr.mxu0 0.0
    %11854 = vmatpush1.msra.mxu0 0.0
    %11855 = vmatprep.subr.mxu0 0.0
    %11856 = vmatpush1.msra.mxu0 0.0
    %11857 = vmatprep.subr.mxu0 0.0
    %11858 = vmatpush1.msra.mxu0 0.0
    %11859 = vmatprep.subr.mxu0 0.0
    %11860 = vmatpush1.msra.mxu0 0.0
    %11861 = vmatprep.subr.mxu0 0.0
    %11862 = vmatpush1.msra.mxu0 0.0
    %11863 = vmatprep.subr.mxu0 0.0
    %11864 = vmatpush1.msra.mxu0 0.0
    %11865 = vmatprep.subr.mxu0 0.0
    %11866 = vmatpush1.msra.mxu0 0.0
    %11867 = vmatprep.subr.mxu0 0.0
    %11868 = vmatpush1.msra.mxu0 0.0
    %11869 = vmatprep.subr.mxu0 0.0
    %11870 = vmatpush1.msra.mxu0 0.0
    %11871 = vmatprep.subr.mxu0 0.0
    %11872 = vmatpush1.msra.mxu0 0.0
    %11873 = vmatprep.subr.mxu0 0.0
    %11874 = vmatpush1.msra.mxu0 0.0
    %11875 = vmatprep.subr.mxu0 0.0
    %11876 = vmatpush1.msra.mxu0 0.0
    %11877 = vmatprep.subr.mxu0 0.0
    %11878 = vmatpush1.msra.mxu0 0.0
    %11879 = vmatprep.mubr.f32.mxu0 0.0
    %11880 = vmatmul.mubr.f32.gmra.mrb[0].mxu0 %v11768
    %v11881 = vpop.f32.mrb[0].mxu0
    %v11882 = vadd.f32 0.0, %v11881
    %v11883 = vpop.f32.mrb[0].mxu0
    %11884 = vmatprep.mubr.f32.mxu0 0.0
    %11885 = vmatmul.mubr.f32.gmra.mrb[0].mxu0 %v11771
    %v11886 = vpop.f32.mrb[0].mxu0
    %v11887 = vadd.f32 0.0, %v11886
    %v11888 = vpop.f32.mrb[0].mxu0
    %11889 = vmatprep.mubr.f32.mxu0 0.0
    %11890 = vmatmul.mubr.f32.gmra.mrb[0].mxu0 %v11774
    %v11891 = vpop.f32.mrb[0].mxu0
    %v11892 = vadd.f32 0.0, %v11891
    %v11893 = vpop.f32.mrb[0].mxu0
    %11894 = vmatprep.mubr.f32.mxu0 0.0
    %11895 = vmatmul.mubr.f32.gmra.mrb[0].mxu0 %v11777
    %v11896 = vpop.f32.mrb[0].mxu0
    %v11897 = vadd.f32 0.0, %v11896
    %v11898 = vpop.f32.mrb[0].mxu0
    %11899 = vmatprep.mubr.f32.mxu0 0.0
    %11900 = vmatmul.mubr.f32.gmra.mrb[0].mxu0 %v11780
    %v11901 = vpop.f32.mrb[0].mxu0
    %v11902 = vadd.f32 0.0, %v11901
    %v11903 = vpop.f32.mrb[0].mxu0
    %11904 = vmatprep.mubr.f32.mxu0 0.0
    %11905 = vmatmul.mubr.f32.gmra.mrb[0].mxu0 %v11783
    %v11906 = vpop.f32.mrb[0].mxu0
    %v11907 = vadd.f32 0.0, %v11906
    %v11908 = vpop.f32.mrb[0].mxu0
    %11909 = vmatprep.mubr.f32.mxu0 0.0
    %11910 = vmatmul.mubr.f32.gmra.mrb[0].mxu0 %v11786
    %v11911 = vpop.f32.mrb[0].mxu0
    %v11912 = vadd.f32 0.0, %v11911
    %v11913 = vpop.f32.mrb[0].mxu0
    %11914 = vmatprep.mubr.f32.mxu0 0.0
    %11915 = vmatmul.mubr.f32.gmra.mrb[0].mxu0 %v11789
    %v11916 = vpop.f32.mrb[0].mxu0
    %v11917 = vadd.f32 0.0, %v11916
    %v11918 = vpop.f32.mrb[0].mxu0
    %11919 = vmatprep.mubr.f32.mxu0 0.0
    %11920 = vmatmul.mubr.f32.gmra.mrb[0].mxu0 %v11792
    %v11921 = vpop.f32.mrb[0].mxu0
    %v11922 = vadd.f32 0.0, %v11921
    %v11923 = vpop.f32.mrb[0].mxu0
    %11924 = vmatprep.mubr.f32.mxu0 0.0
    %11925 = vmatmul.mubr.f32.gmra.mrb[0].mxu0 %v11795
    %v11926 = vpop.f32.mrb[0].mxu0
    %v11927 = vadd.f32 0.0, %v11926
    %v11928 = vpop.f32.mrb[0].mxu0
    %11929 = vmatprep.mubr.f32.mxu0 0.0
    %11930 = vmatmul.mubr.f32.gmra.mrb[0].mxu0 %v11798
    %v11931 = vpop.f32.mrb[0].mxu0
    %v11932 = vadd.f32 0.0, %v11931
    %v11933 = vpop.f32.mrb[0].mxu0
    %11934 = vmatprep.mubr.f32.mxu0 0.0
    %11935 = vmatmul.mubr.f32.gmra.mrb[0].mxu0 %v11801
    %v11936 = vpop.f32.mrb[0].mxu0
    %v11937 = vadd.f32 0.0, %v11936
    %v11938 = vpop.f32.mrb[0].mxu0
    %11939 = vmatprep.mubr.f32.mxu0 0.0
    %11940 = vmatmul.mubr.f32.gmra.mrb[0].mxu0 %v11804
    %v11941 = vpop.f32.mrb[0].mxu0
    %v11942 = vadd.f32 0.0, %v11941
    %v11943 = vpop.f32.mrb[0].mxu0
    %11944 = vmatprep.mubr.f32.mxu0 0.0
    %11945 = vmatmul.mubr.f32.gmra.mrb[0].mxu0 %v11807
    %v11946 = vpop.f32.mrb[0].mxu0
    %v11947 = vadd.f32 0.0, %v11946
    %v11948 = vpop.f32.mrb[0].mxu0
    %11949 = vmatprep.mubr.f32.mxu0 0.0
    %11950 = vmatmul.mubr.f32.gmra.mrb[0].mxu0 %v11810
    %v11951 = vpop.f32.mrb[0].mxu0
    %v11952 = vadd.f32 0.0, %v11951
    %v11953 = vpop.f32.mrb[0].mxu0
    %11954 = vmatprep.mubr.f32.mxu0 0.0
    %11955 = vmatmul.mubr.f32.gmra.mrb[0].mxu0 %v11813
    %v11956 = vpop.f32.mrb[0].mxu0
    %v11957 = vadd.f32 0.0, %v11956
    %v11958 = vpop.f32.mrb[0].mxu0
    %11959 = vdwg.mxu0
    %v11960 = vmax.f32 %v11882, 0.0
    %v11961 = vmax.f32 %v11887, 0.0
    %v11962 = vmax.f32 %v11892, 0.0
    %v11963 = vmax.f32 %v11897, 0.0
    %v11964 = vmax.f32 %v11902, 0.0
    %v11965 = vmax.f32 %v11907, 0.0
    %v11966 = vmax.f32 %v11912, 0.0
    %v11967 = vmax.f32 %v11917, 0.0
    %v11968 = vmax.f32 %v11922, 0.0
    %v11969 = vmax.f32 %v11927, 0.0
    %v11970 = vmax.f32 %v11932, 0.0
    %v11971 = vmax.f32 %v11937, 0.0
    %v11972 = vmax.f32 %v11942, 0.0
    %v11973 = vmax.f32 %v11947, 0.0
    %v11974 = vmax.f32 %v11952, 0.0
    %v11975 = vmax.f32 %v11957, 0.0
    %v11976 = vld [vmem:[%s2230] sm:$0xff]
    %v11977 = vld [vmem:[%s2230 + $0x8] sm:$0xff]
    %v11978 = vld [vmem:[%s2230 + $0x10] sm:$0xff]
    %v11979 = vld [vmem:[%s2230 + $0x18] sm:$0xff]
    %v11980 = vld [vmem:[%s2230 + $0x20] sm:$0xff]
    %v11981 = vld [vmem:[%s2230 + $0x28] sm:$0xff]
    %v11982 = vld [vmem:[%s2230 + $0x30] sm:$0xff]
    %v11983 = vld [vmem:[%s2230 + $0x38] sm:$0xff]
    %v11984 = vld [vmem:[%s2230 + $0x40] sm:$0xff]
    %v11985 = vld [vmem:[%s2230 + $0x48] sm:$0xff]
    %v11986 = vld [vmem:[%s2230 + $0x50] sm:$0xff]
    %v11987 = vld [vmem:[%s2230 + $0x58] sm:$0xff]
    %v11988 = vld [vmem:[%s2230 + $0x60] sm:$0xff]
    %v11989 = vld [vmem:[%s2230 + $0x68] sm:$0xff]
    %v11990 = vld [vmem:[%s2230 + $0x70] sm:$0xff]
    %v11991 = vld [vmem:[%s2230 + $0x78] sm:$0xff]
    %11992 = vmatprep.subr.mxu0 0.0
    %11993 = vmatpush1.msra.mxu0 %v11976
    %11994 = vmatprep.subr.mxu0 0.0
    %11995 = vmatpush1.msra.mxu0 %v11977
    %11996 = vmatprep.subr.mxu0 0.0
    %11997 = vmatpush1.msra.mxu0 %v11978
    %11998 = vmatprep.subr.mxu0 0.0
    %11999 = vmatpush1.msra.mxu0 %v11979
    %12000 = vmatprep.subr.mxu0 0.0
    %12001 = vmatpush1.msra.mxu0 %v11980
    %12002 = vmatprep.subr.mxu0 0.0
    %12003 = vmatpush1.msra.mxu0 %v11981
    %12004 = vmatprep.subr.mxu0 0.0
    %12005 = vmatpush1.msra.mxu0 %v11982
    %12006 = vmatprep.subr.mxu0 0.0
    %12007 = vmatpush1.msra.mxu0 %v11983
    %12008 = vmatprep.subr.mxu0 0.0
    %12009 = vmatpush1.msra.mxu0 %v11984
    %12010 = vmatprep.subr.mxu0 0.0
    %12011 = vmatpush1.msra.mxu0 %v11985
    %12012 = vmatprep.subr.mxu0 0.0
    %12013 = vmatpush1.msra.mxu0 %v11986
    %12014 = vmatprep.subr.mxu0 0.0
    %12015 = vmatpush1.msra.mxu0 %v11987
    %12016 = vmatprep.subr.mxu0 0.0
    %12017 = vmatpush1.msra.mxu0 %v11988
    %12018 = vmatprep.subr.mxu0 0.0
    %12019 = vmatpush1.msra.mxu0 %v11989
    %12020 = vmatprep.subr.mxu0 0.0
    %12021 = vmatpush1.msra.mxu0 %v11990
    %12022 = vmatprep.subr.mxu0 0.0
    %12023 = vmatpush1.msra.mxu0 %v11991
    %12024 = vmatprep.subr.mxu0 0.0
    %12025 = vmatpush1.msra.mxu0 0.0
    %12026 = vmatprep.subr.mxu0 0.0
    %12027 = vmatpush1.msra.mxu0 0.0
    %12028 = vmatprep.subr.mxu0 0.0
    %12029 = vmatpush1.msra.mxu0 0.0
    %12030 = vmatprep.subr.mxu0 0.0
    %12031 = vmatpush1.msra.mxu0 0.0
    %12032 = vmatprep.subr.mxu0 0.0
    %12033 = vmatpush1.msra.mxu0 0.0
    %12034 = vmatprep.subr.mxu0 0.0
    %12035 = vmatpush1.msra.mxu0 0.0
    %12036 = vmatprep.subr.mxu0 0.0
    %12037 = vmatpush1.msra.mxu0 0.0
    %12038 = vmatprep.subr.mxu0 0.0
    %12039 = vmatpush1.msra.mxu0 0.0
    %12040 = vmatprep.subr.mxu0 0.0
    %12041 = vmatpush1.msra.mxu0 0.0
    %12042 = vmatprep.subr.mxu0 0.0
    %12043 = vmatpush1.msra.mxu0 0.0
    %12044 = vmatprep.subr.mxu0 0.0
    %12045 = vmatpush1.msra.mxu0 0.0
    %12046 = vmatprep.subr.mxu0 0.0
    %12047 = vmatpush1.msra.mxu0 0.0
    %12048 = vmatprep.subr.mxu0 0.0
    %12049 = vmatpush1.msra.mxu0 0.0
    %12050 = vmatprep.subr.mxu0 0.0
    %12051 = vmatpush1.msra.mxu0 0.0
    %12052 = vmatprep.subr.mxu0 0.0
    %12053 = vmatpush1.msra.mxu0 0.0
    %12054 = vmatprep.subr.mxu0 0.0
    %12055 = vmatpush1.msra.mxu0 0.0
    %12056 = vmatprep.mubr.f32.mxu0 0.0
    %12057 = vmatmul.mubr.f32.gmra.mrb[0].mxu0 %v11960
    %v12058 = vpop.f32.mrb[0].mxu0
    %v12059 = vadd.f32 0.0, %v12058
    %v12060 = vpop.f32.mrb[0].mxu0
    %12061 = vmatprep.mubr.f32.mxu0 0.0
    %12062 = vmatmul.mubr.f32.gmra.mrb[0].mxu0 %v11961
    %v12063 = vpop.f32.mrb[0].mxu0
    %v12064 = vadd.f32 0.0, %v12063
    %v12065 = vpop.f32.mrb[0].mxu0
    %12066 = vmatprep.mubr.f32.mxu0 0.0
    %12067 = vmatmul.mubr.f32.gmra.mrb[0].mxu0 %v11962
    %v12068 = vpop.f32.mrb[0].mxu0
    %v12069 = vadd.f32 0.0, %v12068
    %v12070 = vpop.f32.mrb[0].mxu0
    %12071 = vmatprep.mubr.f32.mxu0 0.0
    %12072 = vmatmul.mubr.f32.gmra.mrb[0].mxu0 %v11963
    %v12073 = vpop.f32.mrb[0].mxu0
    %v12074 = vadd.f32 0.0, %v12073
    %v12075 = vpop.f32.mrb[0].mxu0
    %12076 = vmatprep.mubr.f32.mxu0 0.0
    %12077 = vmatmul.mubr.f32.gmra.mrb[0].mxu0 %v11964
    %v12078 = vpop.f32.mrb[0].mxu0
    %v12079 = vadd.f32 0.0, %v12078
    %v12080 = vpop.f32.mrb[0].mxu0
    %12081 = vmatprep.mubr.f32.mxu0 0.0
    %12082 = vmatmul.mubr.f32.gmra.mrb[0].mxu0 %v11965
    %v12083 = vpop.f32.mrb[0].mxu0
    %v12084 = vadd.f32 0.0, %v12083
    %v12085 = vpop.f32.mrb[0].mxu0
    %12086 = vmatprep.mubr.f32.mxu0 0.0
    %12087 = vmatmul.mubr.f32.gmra.mrb[0].mxu0 %v11966
    %v12088 = vpop.f32.mrb[0].mxu0
    %v12089 = vadd.f32 0.0, %v12088
    %v12090 = vpop.f32.mrb[0].mxu0
    %12091 = vmatprep.mubr.f32.mxu0 0.0
    %12092 = vmatmul.mubr.f32.gmra.mrb[0].mxu0 %v11967
    %v12093 = vpop.f32.mrb[0].mxu0
    %v12094 = vadd.f32 0.0, %v12093
    %v12095 = vpop.f32.mrb[0].mxu0
    %12096 = vmatprep.mubr.f32.mxu0 0.0
    %12097 = vmatmul.mubr.f32.gmra.mrb[0].mxu0 %v11968
    %v12098 = vpop.f32.mrb[0].mxu0
    %v12099 = vadd.f32 0.0, %v12098
    %v12100 = vpop.f32.mrb[0].mxu0
    %12101 = vmatprep.mubr.f32.mxu0 0.0
    %12102 = vmatmul.mubr.f32.gmra.mrb[0].mxu0 %v11969
    %v12103 = vpop.f32.mrb[0].mxu0
    %v12104 = vadd.f32 0.0, %v12103
    %v12105 = vpop.f32.mrb[0].mxu0
    %12106 = vmatprep.mubr.f32.mxu0 0.0
    %12107 = vmatmul.mubr.f32.gmra.mrb[0].mxu0 %v11970
    %v12108 = vpop.f32.mrb[0].mxu0
    %v12109 = vadd.f32 0.0, %v12108
    %v12110 = vpop.f32.mrb[0].mxu0
    %12111 = vmatprep.mubr.f32.mxu0 0.0
    %12112 = vmatmul.mubr.f32.gmra.mrb[0].mxu0 %v11971
    %v12113 = vpop.f32.mrb[0].mxu0
    %v12114 = vadd.f32 0.0, %v12113
    %v12115 = vpop.f32.mrb[0].mxu0
    %12116 = vmatprep.mubr.f32.mxu0 0.0
    %12117 = vmatmul.mubr.f32.gmra.mrb[0].mxu0 %v11972
    %v12118 = vpop.f32.mrb[0].mxu0
    %v12119 = vadd.f32 0.0, %v12118
    %v12120 = vpop.f32.mrb[0].mxu0
    %12121 = vmatprep.mubr.f32.mxu0 0.0
    %12122 = vmatmul.mubr.f32.gmra.mrb[0].mxu0 %v11973
    %v12123 = vpop.f32.mrb[0].mxu0
    %v12124 = vadd.f32 0.0, %v12123
    %v12125 = vpop.f32.mrb[0].mxu0
    %12126 = vmatprep.mubr.f32.mxu0 0.0
    %12127 = vmatmul.mubr.f32.gmra.mrb[0].mxu0 %v11974
    %v12128 = vpop.f32.mrb[0].mxu0
    %v12129 = vadd.f32 0.0, %v12128
    %v12130 = vpop.f32.mrb[0].mxu0
    %12131 = vmatprep.mubr.f32.mxu0 0.0
    %12132 = vmatmul.mubr.f32.gmra.mrb[0].mxu0 %v11975
    %v12133 = vpop.f32.mrb[0].mxu0
    %v12134 = vadd.f32 0.0, %v12133
    %v12135 = vpop.f32.mrb[0].mxu0
    %12136 = vdwg.mxu0
    %v12137 = vmul.f32 %v12059, %v12059
    %v12138 = vmul.f32 %v12064, %v12064
    %v12139 = vmul.f32 %v12069, %v12069
    %v12140 = vmul.f32 %v12074, %v12074
    %v12141 = vmul.f32 %v12079, %v12079
    %v12142 = vmul.f32 %v12084, %v12084
    %v12143 = vmul.f32 %v12089, %v12089
    %v12144 = vmul.f32 %v12094, %v12094
    %v12145 = vmul.f32 %v12099, %v12099
    %v12146 = vmul.f32 %v12104, %v12104
    %v12147 = vmul.f32 %v12109, %v12109
    %v12148 = vmul.f32 %v12114, %v12114
    %v12149 = vmul.f32 %v12119, %v12119
    %v12150 = vmul.f32 %v12124, %v12124
    %v12151 = vmul.f32 %v12129, %v12129
    %v12152 = vmul.f32 %v12134, %v12134
    %v12154 = vsel %vm642, %v12137, 0
    %v12157 = vsel %vm642, %v12138, 0
    %v12160 = vsel %vm642, %v12139, 0
    %v12163 = vsel %vm642, %v12140, 0
    %v12166 = vsel %vm642, %v12141, 0
    %v12169 = vsel %vm642, %v12142, 0
    %v12172 = vsel %vm642, %v12143, 0
    %v12175 = vsel %vm642, %v12144, 0
    %v12178 = vsel %vm642, %v12145, 0
    %v12181 = vsel %vm642, %v12146, 0
    %v12184 = vsel %vm642, %v12147, 0
    %v12187 = vsel %vm642, %v12148, 0
    %v12190 = vsel %vm642, %v12149, 0
    %v12193 = vsel %vm642, %v12150, 0
    %v12196 = vsel %vm642, %v12151, 0
    %v12199 = vsel %vm642, %v12152, 0
    %12201 = vmatprep.subr.mxu0 0.0
    %12202 = vmatpush1.msra.mxu0 1.0
    %12203 = vmatprep.subr.mxu0 0.0
    %12204 = vmatpush1.msra.mxu0 1.0
    %12205 = vmatprep.subr.mxu0 0.0
    %12206 = vmatpush1.msra.mxu0 1.0
    %12207 = vmatprep.subr.mxu0 0.0
    %12208 = vmatpush1.msra.mxu0 1.0
    %12209 = vmatprep.subr.mxu0 0.0
    %12210 = vmatpush1.msra.mxu0 0.0
    %12211 = vmatprep.subr.mxu0 0.0
    %12212 = vmatpush1.msra.mxu0 0.0
    %12213 = vmatprep.subr.mxu0 0.0
    %12214 = vmatpush1.msra.mxu0 0.0
    %12215 = vmatprep.subr.mxu0 0.0
    %12216 = vmatpush1.msra.mxu0 0.0
    %12217 = vmatprep.subr.mxu0 0.0
    %12218 = vmatpush1.msra.mxu0 0.0
    %12219 = vmatprep.subr.mxu0 0.0
    %12220 = vmatpush1.msra.mxu0 0.0
    %12221 = vmatprep.subr.mxu0 0.0
    %12222 = vmatpush1.msra.mxu0 0.0
    %12223 = vmatprep.subr.mxu0 0.0
    %12224 = vmatpush1.msra.mxu0 0.0
    %12225 = vmatprep.subr.mxu0 0.0
    %12226 = vmatpush1.msra.mxu0 0.0
    %12227 = vmatprep.subr.mxu0 0.0
    %12228 = vmatpush1.msra.mxu0 0.0
    %12229 = vmatprep.subr.mxu0 0.0
    %12230 = vmatpush1.msra.mxu0 0.0
    %12231 = vmatprep.subr.mxu0 0.0
    %12232 = vmatpush1.msra.mxu0 0.0
    %12233 = vmatprep.subr.mxu0 0.0
    %12234 = vmatpush1.msra.mxu0 0.0
    %12235 = vmatprep.subr.mxu0 0.0
    %12236 = vmatpush1.msra.mxu0 0.0
    %12237 = vmatprep.subr.mxu0 0.0
    %12238 = vmatpush1.msra.mxu0 0.0
    %12239 = vmatprep.subr.mxu0 0.0
    %12240 = vmatpush1.msra.mxu0 0.0
    %12241 = vmatprep.subr.mxu0 0.0
    %12242 = vmatpush1.msra.mxu0 0.0
    %12243 = vmatprep.subr.mxu0 0.0
    %12244 = vmatpush1.msra.mxu0 0.0
    %12245 = vmatprep.subr.mxu0 0.0
    %12246 = vmatpush1.msra.mxu0 0.0
    %12247 = vmatprep.subr.mxu0 0.0
    %12248 = vmatpush1.msra.mxu0 0.0
    %12249 = vmatprep.subr.mxu0 0.0
    %12250 = vmatpush1.msra.mxu0 0.0
    %12251 = vmatprep.subr.mxu0 0.0
    %12252 = vmatpush1.msra.mxu0 0.0
    %12253 = vmatprep.subr.mxu0 0.0
    %12254 = vmatpush1.msra.mxu0 0.0
    %12255 = vmatprep.subr.mxu0 0.0
    %12256 = vmatpush1.msra.mxu0 0.0
    %12257 = vmatprep.subr.mxu0 0.0
    %12258 = vmatpush1.msra.mxu0 0.0
    %12259 = vmatprep.subr.mxu0 0.0
    %12260 = vmatpush1.msra.mxu0 0.0
    %12261 = vmatprep.subr.mxu0 0.0
    %12262 = vmatpush1.msra.mxu0 0.0
    %12263 = vmatprep.subr.mxu0 0.0
    %12264 = vmatpush1.msra.mxu0 0.0
    %12265 = vmatprep.mubr.f32.mxu0 0.0
    %12266 = vmatmul.mubr.f32.gmra.mrb[0].mxu0 %v12154
    %v12267 = vpop.f32.mrb[0].mxu0
    %v12268 = vadd.f32 1e-08, %v12267
    %v12269 = vpop.f32.mrb[0].mxu0
    %12270 = vmatprep.mubr.f32.mxu0 0.0
    %12271 = vmatmul.mubr.f32.gmra.mrb[0].mxu0 %v12157
    %v12272 = vpop.f32.mrb[0].mxu0
    %v12273 = vadd.f32 1e-08, %v12272
    %v12274 = vpop.f32.mrb[0].mxu0
    %12275 = vmatprep.mubr.f32.mxu0 0.0
    %12276 = vmatmul.mubr.f32.gmra.mrb[0].mxu0 %v12160
    %v12277 = vpop.f32.mrb[0].mxu0
    %v12278 = vadd.f32 1e-08, %v12277
    %v12279 = vpop.f32.mrb[0].mxu0
    %12280 = vmatprep.mubr.f32.mxu0 0.0
    %12281 = vmatmul.mubr.f32.gmra.mrb[0].mxu0 %v12163
    %v12282 = vpop.f32.mrb[0].mxu0
    %v12283 = vadd.f32 1e-08, %v12282
    %v12284 = vpop.f32.mrb[0].mxu0
    %12285 = vmatprep.mubr.f32.mxu0 0.0
    %12286 = vmatmul.mubr.f32.gmra.mrb[0].mxu0 %v12166
    %v12287 = vpop.f32.mrb[0].mxu0
    %v12288 = vadd.f32 1e-08, %v12287
    %v12289 = vpop.f32.mrb[0].mxu0
    %12290 = vmatprep.mubr.f32.mxu0 0.0
    %12291 = vmatmul.mubr.f32.gmra.mrb[0].mxu0 %v12169
    %v12292 = vpop.f32.mrb[0].mxu0
    %v12293 = vadd.f32 1e-08, %v12292
    %v12294 = vpop.f32.mrb[0].mxu0
    %12295 = vmatprep.mubr.f32.mxu0 0.0
    %12296 = vmatmul.mubr.f32.gmra.mrb[0].mxu0 %v12172
    %v12297 = vpop.f32.mrb[0].mxu0
    %v12298 = vadd.f32 1e-08, %v12297
    %v12299 = vpop.f32.mrb[0].mxu0
    %12300 = vmatprep.mubr.f32.mxu0 0.0
    %12301 = vmatmul.mubr.f32.gmra.mrb[0].mxu0 %v12175
    %v12302 = vpop.f32.mrb[0].mxu0
    %v12303 = vadd.f32 1e-08, %v12302
    %v12304 = vpop.f32.mrb[0].mxu0
    %12305 = vmatprep.mubr.f32.mxu0 0.0
    %12306 = vmatmul.mubr.f32.gmra.mrb[0].mxu0 %v12178
    %v12307 = vpop.f32.mrb[0].mxu0
    %v12308 = vadd.f32 1e-08, %v12307
    %v12309 = vpop.f32.mrb[0].mxu0
    %12310 = vmatprep.mubr.f32.mxu0 0.0
    %12311 = vmatmul.mubr.f32.gmra.mrb[0].mxu0 %v12181
    %v12312 = vpop.f32.mrb[0].mxu0
    %v12313 = vadd.f32 1e-08, %v12312
    %v12314 = vpop.f32.mrb[0].mxu0
    %12315 = vmatprep.mubr.f32.mxu0 0.0
    %12316 = vmatmul.mubr.f32.gmra.mrb[0].mxu0 %v12184
    %v12317 = vpop.f32.mrb[0].mxu0
    %v12318 = vadd.f32 1e-08, %v12317
    %v12319 = vpop.f32.mrb[0].mxu0
    %12320 = vmatprep.mubr.f32.mxu0 0.0
    %12321 = vmatmul.mubr.f32.gmra.mrb[0].mxu0 %v12187
    %v12322 = vpop.f32.mrb[0].mxu0
    %v12323 = vadd.f32 1e-08, %v12322
    %v12324 = vpop.f32.mrb[0].mxu0
    %12325 = vmatprep.mubr.f32.mxu0 0.0
    %12326 = vmatmul.mubr.f32.gmra.mrb[0].mxu0 %v12190
    %v12327 = vpop.f32.mrb[0].mxu0
    %v12328 = vadd.f32 1e-08, %v12327
    %v12329 = vpop.f32.mrb[0].mxu0
    %12330 = vmatprep.mubr.f32.mxu0 0.0
    %12331 = vmatmul.mubr.f32.gmra.mrb[0].mxu0 %v12193
    %v12332 = vpop.f32.mrb[0].mxu0
    %v12333 = vadd.f32 1e-08, %v12332
    %v12334 = vpop.f32.mrb[0].mxu0
    %12335 = vmatprep.mubr.f32.mxu0 0.0
    %12336 = vmatmul.mubr.f32.gmra.mrb[0].mxu0 %v12196
    %v12337 = vpop.f32.mrb[0].mxu0
    %v12338 = vadd.f32 1e-08, %v12337
    %v12339 = vpop.f32.mrb[0].mxu0
    %12340 = vmatprep.mubr.f32.mxu0 0.0
    %12341 = vmatmul.mubr.f32.gmra.mrb[0].mxu0 %v12199
    %v12342 = vpop.f32.mrb[0].mxu0
    %v12343 = vadd.f32 1e-08, %v12342
    %v12344 = vpop.f32.mrb[0].mxu0
    %12345 = vdwg.mxu0
    %v12346 = vrsqrt.pop %v12268
    %v12347 = vrsqrt.pop %v12273
    %v12348 = vrsqrt.pop %v12278
    %v12349 = vrsqrt.pop %v12283
    %v12350 = vrsqrt.pop %v12288
    %v12351 = vrsqrt.pop %v12293
    %v12352 = vrsqrt.pop %v12298
    %v12353 = vrsqrt.pop %v12303
    %v12354 = vrsqrt.pop %v12308
    %v12355 = vrsqrt.pop %v12313
    %v12356 = vrsqrt.pop %v12318
    %v12357 = vrsqrt.pop %v12323
    %v12358 = vrsqrt.pop %v12328
    %v12359 = vrsqrt.pop %v12333
    %v12360 = vrsqrt.pop %v12338
    %v12361 = vrsqrt.pop %v12343
    %12363 = vset.pattern.permute.xlu0 0
    %12364 = vperm.xlu0 %12363, %v12346
    %v12365 = vpop.permute.xlu0 %12364
    %12368 = vset.pattern.permute.xlu0 0
    %12369 = vperm.xlu0 %12368, %v12347
    %v12370 = vpop.permute.xlu0 %12369
    %12373 = vset.pattern.permute.xlu0 0
    %12374 = vperm.xlu0 %12373, %v12348
    %v12375 = vpop.permute.xlu0 %12374
    %12378 = vset.pattern.permute.xlu0 0
    %12379 = vperm.xlu0 %12378, %v12349
    %v12380 = vpop.permute.xlu0 %12379
    %12383 = vset.pattern.permute.xlu0 0
    %12384 = vperm.xlu0 %12383, %v12350
    %v12385 = vpop.permute.xlu0 %12384
    %12388 = vset.pattern.permute.xlu0 0
    %12389 = vperm.xlu0 %12388, %v12351
    %v12390 = vpop.permute.xlu0 %12389
    %12393 = vset.pattern.permute.xlu0 0
    %12394 = vperm.xlu0 %12393, %v12352
    %v12395 = vpop.permute.xlu0 %12394
    %12398 = vset.pattern.permute.xlu0 0
    %12399 = vperm.xlu0 %12398, %v12353
    %v12400 = vpop.permute.xlu0 %12399
    %12403 = vset.pattern.permute.xlu0 0
    %12404 = vperm.xlu0 %12403, %v12354
    %v12405 = vpop.permute.xlu0 %12404
    %12408 = vset.pattern.permute.xlu0 0
    %12409 = vperm.xlu0 %12408, %v12355
    %v12410 = vpop.permute.xlu0 %12409
    %12413 = vset.pattern.permute.xlu0 0
    %12414 = vperm.xlu0 %12413, %v12356
    %v12415 = vpop.permute.xlu0 %12414
    %12418 = vset.pattern.permute.xlu0 0
    %12419 = vperm.xlu0 %12418, %v12357
    %v12420 = vpop.permute.xlu0 %12419
    %12423 = vset.pattern.permute.xlu0 0
    %12424 = vperm.xlu0 %12423, %v12358
    %v12425 = vpop.permute.xlu0 %12424
    %12428 = vset.pattern.permute.xlu0 0
    %12429 = vperm.xlu0 %12428, %v12359
    %v12430 = vpop.permute.xlu0 %12429
    %12433 = vset.pattern.permute.xlu0 0
    %12434 = vperm.xlu0 %12433, %v12360
    %v12435 = vpop.permute.xlu0 %12434
    %12438 = vset.pattern.permute.xlu0 0
    %12439 = vperm.xlu0 %12438, %v12361
    %v12440 = vpop.permute.xlu0 %12439
    %v12442 = vmul.f32 %v12059, %v12365
    %v12443 = vmul.f32 %v12064, %v12370
    %v12444 = vmul.f32 %v12069, %v12375
    %v12445 = vmul.f32 %v12074, %v12380
    %v12446 = vmul.f32 %v12079, %v12385
    %v12447 = vmul.f32 %v12084, %v12390
    %v12448 = vmul.f32 %v12089, %v12395
    %v12449 = vmul.f32 %v12094, %v12400
    %v12450 = vmul.f32 %v12099, %v12405
    %v12451 = vmul.f32 %v12104, %v12410
    %v12452 = vmul.f32 %v12109, %v12415
    %v12453 = vmul.f32 %v12114, %v12420
    %v12454 = vmul.f32 %v12119, %v12425
    %v12455 = vmul.f32 %v12124, %v12430
    %v12456 = vmul.f32 %v12129, %v12435
    %v12457 = vmul.f32 %v12134, %v12440
    %v12458 = vsub.f32 %v12442, %v11747
    %v12459 = vsub.f32 %v12443, %v11748
    %v12460 = vsub.f32 %v12444, %v11749
    %v12461 = vsub.f32 %v12445, %v11750
    %v12462 = vsub.f32 %v12446, %v11751
    %v12463 = vsub.f32 %v12447, %v11752
    %v12464 = vsub.f32 %v12448, %v11753
    %v12465 = vsub.f32 %v12449, %v11754
    %v12466 = vsub.f32 %v12450, %v11755
    %v12467 = vsub.f32 %v12451, %v11756
    %v12468 = vsub.f32 %v12452, %v11757
    %v12469 = vsub.f32 %v12453, %v11758
    %v12470 = vsub.f32 %v12454, %v11759
    %v12471 = vsub.f32 %v12455, %v11760
    %v12472 = vsub.f32 %v12456, %v11761
    %v12473 = vsub.f32 %v12457, %v11762
    %v12474 = vmul.f32 %v2732, %v12458
    %v12475 = vmul.f32 %v2732, %v12459
    %v12476 = vmul.f32 %v2732, %v12460
    %v12477 = vmul.f32 %v2732, %v12461
    %v12478 = vmul.f32 %v2732, %v12462
    %v12479 = vmul.f32 %v2732, %v12463
    %v12480 = vmul.f32 %v2732, %v12464
    %v12481 = vmul.f32 %v2732, %v12465
    %v12482 = vmul.f32 %v2732, %v12466
    %v12483 = vmul.f32 %v2732, %v12467
    %v12484 = vmul.f32 %v2732, %v12468
    %v12485 = vmul.f32 %v2732, %v12469
    %v12486 = vmul.f32 %v2732, %v12470
    %v12487 = vmul.f32 %v2732, %v12471
    %v12488 = vmul.f32 %v2732, %v12472
    %v12489 = vmul.f32 %v2732, %v12473
    %v12490 = vadd.f32 %v11747, %v12474
    %v12491 = vadd.f32 %v11748, %v12475
    %v12492 = vadd.f32 %v11749, %v12476
    %v12493 = vadd.f32 %v11750, %v12477
    %v12494 = vadd.f32 %v11751, %v12478
    %v12495 = vadd.f32 %v11752, %v12479
    %v12496 = vadd.f32 %v11753, %v12480
    %v12497 = vadd.f32 %v11754, %v12481
    %v12498 = vadd.f32 %v11755, %v12482
    %v12499 = vadd.f32 %v11756, %v12483
    %v12500 = vadd.f32 %v11757, %v12484
    %v12501 = vadd.f32 %v11758, %v12485
    %v12502 = vadd.f32 %v11759, %v12486
    %v12503 = vadd.f32 %v11760, %v12487
    %v12504 = vadd.f32 %v11761, %v12488
    %v12505 = vadd.f32 %v11762, %v12489
    %v12506 = vmul.f32 %v12490, %v12490
    %v12507 = vmul.f32 %v12491, %v12491
    %v12508 = vmul.f32 %v12492, %v12492
    %v12509 = vmul.f32 %v12493, %v12493
    %v12510 = vmul.f32 %v12494, %v12494
    %v12511 = vmul.f32 %v12495, %v12495
    %v12512 = vmul.f32 %v12496, %v12496
    %v12513 = vmul.f32 %v12497, %v12497
    %v12514 = vmul.f32 %v12498, %v12498
    %v12515 = vmul.f32 %v12499, %v12499
    %v12516 = vmul.f32 %v12500, %v12500
    %v12517 = vmul.f32 %v12501, %v12501
    %v12518 = vmul.f32 %v12502, %v12502
    %v12519 = vmul.f32 %v12503, %v12503
    %v12520 = vmul.f32 %v12504, %v12504
    %v12521 = vmul.f32 %v12505, %v12505
    %v12523 = vsel %vm642, %v12506, 0
    %v12526 = vsel %vm642, %v12507, 0
    %v12529 = vsel %vm642, %v12508, 0
    %v12532 = vsel %vm642, %v12509, 0
    %v12535 = vsel %vm642, %v12510, 0
    %v12538 = vsel %vm642, %v12511, 0
    %v12541 = vsel %vm642, %v12512, 0
    %v12544 = vsel %vm642, %v12513, 0
    %v12547 = vsel %vm642, %v12514, 0
    %v12550 = vsel %vm642, %v12515, 0
    %v12553 = vsel %vm642, %v12516, 0
    %v12556 = vsel %vm642, %v12517, 0
    %v12559 = vsel %vm642, %v12518, 0
    %v12562 = vsel %vm642, %v12519, 0
    %v12565 = vsel %vm642, %v12520, 0
    %v12568 = vsel %vm642, %v12521, 0
    %12570 = vmatprep.subr.mxu0 0.0
    %12571 = vmatpush1.msra.mxu0 1.0
    %12572 = vmatprep.subr.mxu0 0.0
    %12573 = vmatpush1.msra.mxu0 1.0
    %12574 = vmatprep.subr.mxu0 0.0
    %12575 = vmatpush1.msra.mxu0 1.0
    %12576 = vmatprep.subr.mxu0 0.0
    %12577 = vmatpush1.msra.mxu0 1.0
    %12578 = vmatprep.subr.mxu0 0.0
    %12579 = vmatpush1.msra.mxu0 0.0
    %12580 = vmatprep.subr.mxu0 0.0
    %12581 = vmatpush1.msra.mxu0 0.0
    %12582 = vmatprep.subr.mxu0 0.0
    %12583 = vmatpush1.msra.mxu0 0.0
    %12584 = vmatprep.subr.mxu0 0.0
    %12585 = vmatpush1.msra.mxu0 0.0
    %12586 = vmatprep.subr.mxu0 0.0
    %12587 = vmatpush1.msra.mxu0 0.0
    %12588 = vmatprep.subr.mxu0 0.0
    %12589 = vmatpush1.msra.mxu0 0.0
    %12590 = vmatprep.subr.mxu0 0.0
    %12591 = vmatpush1.msra.mxu0 0.0
    %12592 = vmatprep.subr.mxu0 0.0
    %12593 = vmatpush1.msra.mxu0 0.0
    %12594 = vmatprep.subr.mxu0 0.0
    %12595 = vmatpush1.msra.mxu0 0.0
    %12596 = vmatprep.subr.mxu0 0.0
    %12597 = vmatpush1.msra.mxu0 0.0
    %12598 = vmatprep.subr.mxu0 0.0
    %12599 = vmatpush1.msra.mxu0 0.0
    %12600 = vmatprep.subr.mxu0 0.0
    %12601 = vmatpush1.msra.mxu0 0.0
    %12602 = vmatprep.subr.mxu0 0.0
    %12603 = vmatpush1.msra.mxu0 0.0
    %12604 = vmatprep.subr.mxu0 0.0
    %12605 = vmatpush1.msra.mxu0 0.0
    %12606 = vmatprep.subr.mxu0 0.0
    %12607 = vmatpush1.msra.mxu0 0.0
    %12608 = vmatprep.subr.mxu0 0.0
    %12609 = vmatpush1.msra.mxu0 0.0
    %12610 = vmatprep.subr.mxu0 0.0
    %12611 = vmatpush1.msra.mxu0 0.0
    %12612 = vmatprep.subr.mxu0 0.0
    %12613 = vmatpush1.msra.mxu0 0.0
    %12614 = vmatprep.subr.mxu0 0.0
    %12615 = vmatpush1.msra.mxu0 0.0
    %12616 = vmatprep.subr.mxu0 0.0
    %12617 = vmatpush1.msra.mxu0 0.0
    %12618 = vmatprep.subr.mxu0 0.0
    %12619 = vmatpush1.msra.mxu0 0.0
    %12620 = vmatprep.subr.mxu0 0.0
    %12621 = vmatpush1.msra.mxu0 0.0
    %12622 = vmatprep.subr.mxu0 0.0
    %12623 = vmatpush1.msra.mxu0 0.0
    %12624 = vmatprep.subr.mxu0 0.0
    %12625 = vmatpush1.msra.mxu0 0.0
    %12626 = vmatprep.subr.mxu0 0.0
    %12627 = vmatpush1.msra.mxu0 0.0
    %12628 = vmatprep.subr.mxu0 0.0
    %12629 = vmatpush1.msra.mxu0 0.0
    %12630 = vmatprep.subr.mxu0 0.0
    %12631 = vmatpush1.msra.mxu0 0.0
    %12632 = vmatprep.subr.mxu0 0.0
    %12633 = vmatpush1.msra.mxu0 0.0
    %12634 = vmatprep.mubr.f32.mxu0 0.0
    %12635 = vmatmul.mubr.f32.gmra.mrb[0].mxu0 %v12523
    %v12636 = vpop.f32.mrb[0].mxu0
    %v12637 = vadd.f32 1e-08, %v12636
    %v12638 = vpop.f32.mrb[0].mxu0
    %12639 = vmatprep.mubr.f32.mxu0 0.0
    %12640 = vmatmul.mubr.f32.gmra.mrb[0].mxu0 %v12526
    %v12641 = vpop.f32.mrb[0].mxu0
    %v12642 = vadd.f32 1e-08, %v12641
    %v12643 = vpop.f32.mrb[0].mxu0
    %12644 = vmatprep.mubr.f32.mxu0 0.0
    %12645 = vmatmul.mubr.f32.gmra.mrb[0].mxu0 %v12529
    %v12646 = vpop.f32.mrb[0].mxu0
    %v12647 = vadd.f32 1e-08, %v12646
    %v12648 = vpop.f32.mrb[0].mxu0
    %12649 = vmatprep.mubr.f32.mxu0 0.0
    %12650 = vmatmul.mubr.f32.gmra.mrb[0].mxu0 %v12532
    %v12651 = vpop.f32.mrb[0].mxu0
    %v12652 = vadd.f32 1e-08, %v12651
    %v12653 = vpop.f32.mrb[0].mxu0
    %12654 = vmatprep.mubr.f32.mxu0 0.0
    %12655 = vmatmul.mubr.f32.gmra.mrb[0].mxu0 %v12535
    %v12656 = vpop.f32.mrb[0].mxu0
    %v12657 = vadd.f32 1e-08, %v12656
    %v12658 = vpop.f32.mrb[0].mxu0
    %12659 = vmatprep.mubr.f32.mxu0 0.0
    %12660 = vmatmul.mubr.f32.gmra.mrb[0].mxu0 %v12538
    %v12661 = vpop.f32.mrb[0].mxu0
    %v12662 = vadd.f32 1e-08, %v12661
    %v12663 = vpop.f32.mrb[0].mxu0
    %12664 = vmatprep.mubr.f32.mxu0 0.0
    %12665 = vmatmul.mubr.f32.gmra.mrb[0].mxu0 %v12541
    %v12666 = vpop.f32.mrb[0].mxu0
    %v12667 = vadd.f32 1e-08, %v12666
    %v12668 = vpop.f32.mrb[0].mxu0
    %12669 = vmatprep.mubr.f32.mxu0 0.0
    %12670 = vmatmul.mubr.f32.gmra.mrb[0].mxu0 %v12544
    %v12671 = vpop.f32.mrb[0].mxu0
    %v12672 = vadd.f32 1e-08, %v12671
    %v12673 = vpop.f32.mrb[0].mxu0
    %12674 = vmatprep.mubr.f32.mxu0 0.0
    %12675 = vmatmul.mubr.f32.gmra.mrb[0].mxu0 %v12547
    %v12676 = vpop.f32.mrb[0].mxu0
    %v12677 = vadd.f32 1e-08, %v12676
    %v12678 = vpop.f32.mrb[0].mxu0
    %12679 = vmatprep.mubr.f32.mxu0 0.0
    %12680 = vmatmul.mubr.f32.gmra.mrb[0].mxu0 %v12550
    %v12681 = vpop.f32.mrb[0].mxu0
    %v12682 = vadd.f32 1e-08, %v12681
    %v12683 = vpop.f32.mrb[0].mxu0
    %12684 = vmatprep.mubr.f32.mxu0 0.0
    %12685 = vmatmul.mubr.f32.gmra.mrb[0].mxu0 %v12553
    %v12686 = vpop.f32.mrb[0].mxu0
    %v12687 = vadd.f32 1e-08, %v12686
    %v12688 = vpop.f32.mrb[0].mxu0
    %12689 = vmatprep.mubr.f32.mxu0 0.0
    %12690 = vmatmul.mubr.f32.gmra.mrb[0].mxu0 %v12556
    %v12691 = vpop.f32.mrb[0].mxu0
    %v12692 = vadd.f32 1e-08, %v12691
    %v12693 = vpop.f32.mrb[0].mxu0
    %12694 = vmatprep.mubr.f32.mxu0 0.0
    %12695 = vmatmul.mubr.f32.gmra.mrb[0].mxu0 %v12559
    %v12696 = vpop.f32.mrb[0].mxu0
    %v12697 = vadd.f32 1e-08, %v12696
    %v12698 = vpop.f32.mrb[0].mxu0
    %12699 = vmatprep.mubr.f32.mxu0 0.0
    %12700 = vmatmul.mubr.f32.gmra.mrb[0].mxu0 %v12562
    %v12701 = vpop.f32.mrb[0].mxu0
    %v12702 = vadd.f32 1e-08, %v12701
    %v12703 = vpop.f32.mrb[0].mxu0
    %12704 = vmatprep.mubr.f32.mxu0 0.0
    %12705 = vmatmul.mubr.f32.gmra.mrb[0].mxu0 %v12565
    %v12706 = vpop.f32.mrb[0].mxu0
    %v12707 = vadd.f32 1e-08, %v12706
    %v12708 = vpop.f32.mrb[0].mxu0
    %12709 = vmatprep.mubr.f32.mxu0 0.0
    %12710 = vmatmul.mubr.f32.gmra.mrb[0].mxu0 %v12568
    %v12711 = vpop.f32.mrb[0].mxu0
    %v12712 = vadd.f32 1e-08, %v12711
    %v12713 = vpop.f32.mrb[0].mxu0
    %12714 = vdwg.mxu0
    %v12715 = vrsqrt.pop %v12637
    %v12716 = vrsqrt.pop %v12642
    %v12717 = vrsqrt.pop %v12647
    %v12718 = vrsqrt.pop %v12652
    %v12719 = vrsqrt.pop %v12657
    %v12720 = vrsqrt.pop %v12662
    %v12721 = vrsqrt.pop %v12667
    %v12722 = vrsqrt.pop %v12672
    %v12723 = vrsqrt.pop %v12677
    %v12724 = vrsqrt.pop %v12682
    %v12725 = vrsqrt.pop %v12687
    %v12726 = vrsqrt.pop %v12692
    %v12727 = vrsqrt.pop %v12697
    %v12728 = vrsqrt.pop %v12702
    %v12729 = vrsqrt.pop %v12707
    %v12730 = vrsqrt.pop %v12712
    %12732 = vset.pattern.permute.xlu0 0
    %12733 = vperm.xlu0 %12732, %v12715
    %v12734 = vpop.permute.xlu0 %12733
    %12737 = vset.pattern.permute.xlu0 0
    %12738 = vperm.xlu0 %12737, %v12716
    %v12739 = vpop.permute.xlu0 %12738
    %12742 = vset.pattern.permute.xlu0 0
    %12743 = vperm.xlu0 %12742, %v12717
    %v12744 = vpop.permute.xlu0 %12743
    %12747 = vset.pattern.permute.xlu0 0
    %12748 = vperm.xlu0 %12747, %v12718
    %v12749 = vpop.permute.xlu0 %12748
    %12752 = vset.pattern.permute.xlu0 0
    %12753 = vperm.xlu0 %12752, %v12719
    %v12754 = vpop.permute.xlu0 %12753
    %12757 = vset.pattern.permute.xlu0 0
    %12758 = vperm.xlu0 %12757, %v12720
    %v12759 = vpop.permute.xlu0 %12758
    %12762 = vset.pattern.permute.xlu0 0
    %12763 = vperm.xlu0 %12762, %v12721
    %v12764 = vpop.permute.xlu0 %12763
    %12767 = vset.pattern.permute.xlu0 0
    %12768 = vperm.xlu0 %12767, %v12722
    %v12769 = vpop.permute.xlu0 %12768
    %12772 = vset.pattern.permute.xlu0 0
    %12773 = vperm.xlu0 %12772, %v12723
    %v12774 = vpop.permute.xlu0 %12773
    %12777 = vset.pattern.permute.xlu0 0
    %12778 = vperm.xlu0 %12777, %v12724
    %v12779 = vpop.permute.xlu0 %12778
    %12782 = vset.pattern.permute.xlu0 0
    %12783 = vperm.xlu0 %12782, %v12725
    %v12784 = vpop.permute.xlu0 %12783
    %12787 = vset.pattern.permute.xlu0 0
    %12788 = vperm.xlu0 %12787, %v12726
    %v12789 = vpop.permute.xlu0 %12788
    %12792 = vset.pattern.permute.xlu0 0
    %12793 = vperm.xlu0 %12792, %v12727
    %v12794 = vpop.permute.xlu0 %12793
    %12797 = vset.pattern.permute.xlu0 0
    %12798 = vperm.xlu0 %12797, %v12728
    %v12799 = vpop.permute.xlu0 %12798
    %12802 = vset.pattern.permute.xlu0 0
    %12803 = vperm.xlu0 %12802, %v12729
    %v12804 = vpop.permute.xlu0 %12803
    %12807 = vset.pattern.permute.xlu0 0
    %12808 = vperm.xlu0 %12807, %v12730
    %v12809 = vpop.permute.xlu0 %12808
    %v12811 = vmul.f32 %v12490, %v12734
    %v12812 = vmul.f32 %v12491, %v12739
    %v12813 = vmul.f32 %v12492, %v12744
    %v12814 = vmul.f32 %v12493, %v12749
    %v12815 = vmul.f32 %v12494, %v12754
    %v12816 = vmul.f32 %v12495, %v12759
    %v12817 = vmul.f32 %v12496, %v12764
    %v12818 = vmul.f32 %v12497, %v12769
    %v12819 = vmul.f32 %v12498, %v12774
    %v12820 = vmul.f32 %v12499, %v12779
    %v12821 = vmul.f32 %v12500, %v12784
    %v12822 = vmul.f32 %v12501, %v12789
    %v12823 = vmul.f32 %v12502, %v12794
    %v12824 = vmul.f32 %v12503, %v12799
    %v12825 = vmul.f32 %v12504, %v12804
    %v12826 = vmul.f32 %v12505, %v12809
    %v12827 = vld [vmem:[%s3086] sm:$0xff]
    %v12828 = vld [vmem:[%s3086 + $0x8] sm:$0xff]
    %v12829 = vld [vmem:[%s3086 + $0x10] sm:$0xff]
    %v12830 = vld [vmem:[%s3086 + $0x18] sm:$0xff]
    %v12832 = vsel %vm642, %v12811, 0
    %v12835 = vsel %vm642, %v12812, 0
    %v12838 = vsel %vm642, %v12813, 0
    %v12841 = vsel %vm642, %v12814, 0
    %v12844 = vsel %vm642, %v12815, 0
    %v12847 = vsel %vm642, %v12816, 0
    %v12850 = vsel %vm642, %v12817, 0
    %v12853 = vsel %vm642, %v12818, 0
    %v12856 = vsel %vm642, %v12819, 0
    %v12859 = vsel %vm642, %v12820, 0
    %v12862 = vsel %vm642, %v12821, 0
    %v12865 = vsel %vm642, %v12822, 0
    %v12868 = vsel %vm642, %v12823, 0
    %v12871 = vsel %vm642, %v12824, 0
    %v12874 = vsel %vm642, %v12825, 0
    %v12877 = vsel %vm642, %v12826, 0
    %12879 = vmatprep.subr.mxu0 0.0
    %12880 = vmatpush1.msra.mxu0 %v12827
    %12881 = vmatprep.subr.mxu0 0.0
    %12882 = vmatpush1.msra.mxu0 %v12828
    %12883 = vmatprep.subr.mxu0 0.0
    %12884 = vmatpush1.msra.mxu0 %v12829
    %12885 = vmatprep.subr.mxu0 0.0
    %12886 = vmatpush1.msra.mxu0 %v12830
    %12887 = vmatprep.subr.mxu0 0.0
    %12888 = vmatpush1.msra.mxu0 0.0
    %12889 = vmatprep.subr.mxu0 0.0
    %12890 = vmatpush1.msra.mxu0 0.0
    %12891 = vmatprep.subr.mxu0 0.0
    %12892 = vmatpush1.msra.mxu0 0.0
    %12893 = vmatprep.subr.mxu0 0.0
    %12894 = vmatpush1.msra.mxu0 0.0
    %12895 = vmatprep.subr.mxu0 0.0
    %12896 = vmatpush1.msra.mxu0 0.0
    %12897 = vmatprep.subr.mxu0 0.0
    %12898 = vmatpush1.msra.mxu0 0.0
    %12899 = vmatprep.subr.mxu0 0.0
    %12900 = vmatpush1.msra.mxu0 0.0
    %12901 = vmatprep.subr.mxu0 0.0
    %12902 = vmatpush1.msra.mxu0 0.0
    %12903 = vmatprep.subr.mxu0 0.0
    %12904 = vmatpush1.msra.mxu0 0.0
    %12905 = vmatprep.subr.mxu0 0.0
    %12906 = vmatpush1.msra.mxu0 0.0
    %12907 = vmatprep.subr.mxu0 0.0
    %12908 = vmatpush1.msra.mxu0 0.0
    %12909 = vmatprep.subr.mxu0 0.0
    %12910 = vmatpush1.msra.mxu0 0.0
    %12911 = vmatprep.subr.mxu0 0.0
    %12912 = vmatpush1.msra.mxu0 0.0
    %12913 = vmatprep.subr.mxu0 0.0
    %12914 = vmatpush1.msra.mxu0 0.0
    %12915 = vmatprep.subr.mxu0 0.0
    %12916 = vmatpush1.msra.mxu0 0.0
    %12917 = vmatprep.subr.mxu0 0.0
    %12918 = vmatpush1.msra.mxu0 0.0
    %12919 = vmatprep.subr.mxu0 0.0
    %12920 = vmatpush1.msra.mxu0 0.0
    %12921 = vmatprep.subr.mxu0 0.0
    %12922 = vmatpush1.msra.mxu0 0.0
    %12923 = vmatprep.subr.mxu0 0.0
    %12924 = vmatpush1.msra.mxu0 0.0
    %12925 = vmatprep.subr.mxu0 0.0
    %12926 = vmatpush1.msra.mxu0 0.0
    %12927 = vmatprep.subr.mxu0 0.0
    %12928 = vmatpush1.msra.mxu0 0.0
    %12929 = vmatprep.subr.mxu0 0.0
    %12930 = vmatpush1.msra.mxu0 0.0
    %12931 = vmatprep.subr.mxu0 0.0
    %12932 = vmatpush1.msra.mxu0 0.0
    %12933 = vmatprep.subr.mxu0 0.0
    %12934 = vmatpush1.msra.mxu0 0.0
    %12935 = vmatprep.subr.mxu0 0.0
    %12936 = vmatpush1.msra.mxu0 0.0
    %12937 = vmatprep.subr.mxu0 0.0
    %12938 = vmatpush1.msra.mxu0 0.0
    %12939 = vmatprep.subr.mxu0 0.0
    %12940 = vmatpush1.msra.mxu0 0.0
    %12941 = vmatprep.subr.mxu0 0.0
    %12942 = vmatpush1.msra.mxu0 0.0
    %12943 = vmatprep.mubr.f32.mxu0 0.0
    %12944 = vmatmul.mubr.f32.gmra.mrb[0].mxu0 %v12832
    %v12945 = vpop.f32.mrb[0].mxu0
    %v12946 = vadd.f32 0.0, %v12945
    %v12947 = vpop.f32.mrb[0].mxu0
    %12948 = vmatprep.mubr.f32.mxu0 0.0
    %12949 = vmatmul.mubr.f32.gmra.mrb[0].mxu0 %v12835
    %v12950 = vpop.f32.mrb[0].mxu0
    %v12951 = vadd.f32 0.0, %v12950
    %v12952 = vpop.f32.mrb[0].mxu0
    %12953 = vmatprep.mubr.f32.mxu0 0.0
    %12954 = vmatmul.mubr.f32.gmra.mrb[0].mxu0 %v12838
    %v12955 = vpop.f32.mrb[0].mxu0
    %v12956 = vadd.f32 0.0, %v12955
    %v12957 = vpop.f32.mrb[0].mxu0
    %12958 = vmatprep.mubr.f32.mxu0 0.0
    %12959 = vmatmul.mubr.f32.gmra.mrb[0].mxu0 %v12841
    %v12960 = vpop.f32.mrb[0].mxu0
    %v12961 = vadd.f32 0.0, %v12960
    %v12962 = vpop.f32.mrb[0].mxu0
    %12963 = vmatprep.mubr.f32.mxu0 0.0
    %12964 = vmatmul.mubr.f32.gmra.mrb[0].mxu0 %v12844
    %v12965 = vpop.f32.mrb[0].mxu0
    %v12966 = vadd.f32 0.0, %v12965
    %v12967 = vpop.f32.mrb[0].mxu0
    %12968 = vmatprep.mubr.f32.mxu0 0.0
    %12969 = vmatmul.mubr.f32.gmra.mrb[0].mxu0 %v12847
    %v12970 = vpop.f32.mrb[0].mxu0
    %v12971 = vadd.f32 0.0, %v12970
    %v12972 = vpop.f32.mrb[0].mxu0
    %12973 = vmatprep.mubr.f32.mxu0 0.0
    %12974 = vmatmul.mubr.f32.gmra.mrb[0].mxu0 %v12850
    %v12975 = vpop.f32.mrb[0].mxu0
    %v12976 = vadd.f32 0.0, %v12975
    %v12977 = vpop.f32.mrb[0].mxu0
    %12978 = vmatprep.mubr.f32.mxu0 0.0
    %12979 = vmatmul.mubr.f32.gmra.mrb[0].mxu0 %v12853
    %v12980 = vpop.f32.mrb[0].mxu0
    %v12981 = vadd.f32 0.0, %v12980
    %v12982 = vpop.f32.mrb[0].mxu0
    %12983 = vmatprep.mubr.f32.mxu0 0.0
    %12984 = vmatmul.mubr.f32.gmra.mrb[0].mxu0 %v12856
    %v12985 = vpop.f32.mrb[0].mxu0
    %v12986 = vadd.f32 0.0, %v12985
    %v12987 = vpop.f32.mrb[0].mxu0
    %12988 = vmatprep.mubr.f32.mxu0 0.0
    %12989 = vmatmul.mubr.f32.gmra.mrb[0].mxu0 %v12859
    %v12990 = vpop.f32.mrb[0].mxu0
    %v12991 = vadd.f32 0.0, %v12990
    %v12992 = vpop.f32.mrb[0].mxu0
    %12993 = vmatprep.mubr.f32.mxu0 0.0
    %12994 = vmatmul.mubr.f32.gmra.mrb[0].mxu0 %v12862
    %v12995 = vpop.f32.mrb[0].mxu0
    %v12996 = vadd.f32 0.0, %v12995
    %v12997 = vpop.f32.mrb[0].mxu0
    %12998 = vmatprep.mubr.f32.mxu0 0.0
    %12999 = vmatmul.mubr.f32.gmra.mrb[0].mxu0 %v12865
    %v13000 = vpop.f32.mrb[0].mxu0
    %v13001 = vadd.f32 0.0, %v13000
    %v13002 = vpop.f32.mrb[0].mxu0
    %13003 = vmatprep.mubr.f32.mxu0 0.0
    %13004 = vmatmul.mubr.f32.gmra.mrb[0].mxu0 %v12868
    %v13005 = vpop.f32.mrb[0].mxu0
    %v13006 = vadd.f32 0.0, %v13005
    %v13007 = vpop.f32.mrb[0].mxu0
    %13008 = vmatprep.mubr.f32.mxu0 0.0
    %13009 = vmatmul.mubr.f32.gmra.mrb[0].mxu0 %v12871
    %v13010 = vpop.f32.mrb[0].mxu0
    %v13011 = vadd.f32 0.0, %v13010
    %v13012 = vpop.f32.mrb[0].mxu0
    %13013 = vmatprep.mubr.f32.mxu0 0.0
    %13014 = vmatmul.mubr.f32.gmra.mrb[0].mxu0 %v12874
    %v13015 = vpop.f32.mrb[0].mxu0
    %v13016 = vadd.f32 0.0, %v13015
    %v13017 = vpop.f32.mrb[0].mxu0
    %13018 = vmatprep.mubr.f32.mxu0 0.0
    %13019 = vmatmul.mubr.f32.gmra.mrb[0].mxu0 %v12877
    %v13020 = vpop.f32.mrb[0].mxu0
    %v13021 = vadd.f32 0.0, %v13020
    %v13022 = vpop.f32.mrb[0].mxu0
    %13023 = vdwg.mxu0
    %s13024 = scalar_lea.vmem [#allocation2], 384
    %13025 = vst [vmem:[%s13024] sm:$0xff] %v12946
    %13026 = vst [vmem:[%s13024 + $0x8] sm:$0xff] %v12951
    %13027 = vst [vmem:[%s13024 + $0x10] sm:$0xff] %v12956
    %13028 = vst [vmem:[%s13024 + $0x18] sm:$0xff] %v12961
    %13029 = vst [vmem:[%s13024 + $0x20] sm:$0xff] %v12966
    %13030 = vst [vmem:[%s13024 + $0x28] sm:$0xff] %v12971
    %13031 = vst [vmem:[%s13024 + $0x30] sm:$0xff] %v12976
    %13032 = vst [vmem:[%s13024 + $0x38] sm:$0xff] %v12981
    %13033 = vst [vmem:[%s13024 + $0x40] sm:$0xff] %v12986
    %13034 = vst [vmem:[%s13024 + $0x48] sm:$0xff] %v12991
    %13035 = vst [vmem:[%s13024 + $0x50] sm:$0xff] %v12996
    %13036 = vst [vmem:[%s13024 + $0x58] sm:$0xff] %v13001
    %13037 = vst [vmem:[%s13024 + $0x60] sm:$0xff] %v13006
    %13038 = vst [vmem:[%s13024 + $0x68] sm:$0xff] %v13011
    %13039 = vst [vmem:[%s13024 + $0x70] sm:$0xff] %v13016
    %13040 = vst [vmem:[%s13024 + $0x78] sm:$0xff] %v13021
    // Predicated region
    $region22: #{tpu_custom_call.1} parent=1 // pred_check
      _
    $region23: #{tpu_custom_call.1} parent=1 // pred_check_branch
      %13042 = sbr.rel (0) target = $region25
    $region24: #{tpu_custom_call.1} parent=1 // pred_region
      %s13044 = ssub.s32 8192, 8192
      %13045 = vsyncadd [#allocation3], %s13044
      %s13046 = sshll.u32 [#allocation2], 4
      %s13047 = int_to_ptr.vmem [resolvable:$true] %s13046
      %13052 = dma.vmem_to_hbm [thread:$0]  %s13047, 8192, %s5, [#allocation3], 128, 128, 8
    $region25: #{tpu_custom_call.1} parent=1 // pred_fallthru
      _
    // Predicated region
    $region26: #{tpu_custom_call.1} parent=1 // pred_check
      _
    $region27: #{tpu_custom_call.1} parent=1 // pred_check_branch
      %13054 = sbr.rel (0) target = $region29
    $region28: #{tpu_custom_call.1} parent=1 // pred_region
      %13055 = dma.done [#allocation3], 8192
    $region29: #{tpu_custom_call.1} parent=1 // pred_fallthru
      _
    %13056 = vsyncpa [#allocation3], 1

</llo_original>
